<compile_context>
chip_gen: v6e
topology: v6e:2x2x1
jax: 0.10.0
libtpu: 0.0.40
codegen_flags: <defaults>
</compile_context>

<pallas_src>
import functools

import jax
import jax.numpy as jnp
from jax.experimental import pallas as pl
from jax.experimental.pallas import tpu as pltpu

_LPAD = 8            # left halo of the intermediate scratch -> sublane-aligned interior
_M_CHUNK_ROWS = 256  # max rows fed to one MXU matmul (bounds the f32 accumulator)


def _ceil_to(x, m):
    return (x + m - 1) // m * m


def _vmem_capacity_bytes():
    """Physical VMEM of the local TPU generation (v5e/v6e: 128 MiB, v7x: 64 MiB)."""
    try:
        return int(pltpu.get_tpu_info().vmem_capacity_bytes)
    except Exception:  # no TPU / older API -> assume the smallest (v7x)
        return 64 * 1024 * 1024


def _vmem_need_bytes(th, W, cin, cout):
    """Rough per-grid-step VMEM need for H-tile height `th` (accounts for the
    internal 128-lane / 8-sublane layout padding of small channel counts)."""
    bf16 = 2
    cin_l, cout_l = _ceil_to(cin, 128), _ceil_to(cout, 128)
    in_blk = (th + 4) * _ceil_to(W + 2, 8) * cin_l * bf16 * 2     # double-buffered
    out_blk = th * _ceil_to(W, 8) * cout_l * bf16 * 2             # double-buffered
    wts = 9 * (_ceil_to(cin, 8) + _ceil_to(cout, 8)) * cout_l * bf16 * 2
    hpad = (th + 2) * _ceil_to(_LPAD + W + 1, 8) * cout_l * bf16  # scratch
    m = min((th + 2) * W, max(W, _M_CHUNK_ROWS))
    live = m * (cout_l * 4 * 2 + max(cin_l, cout_l) * bf16 * 3)   # acc + patches
    return in_blk + out_blk + wts + hpad + live + (2 << 20)


def _pick_tile_h(H, W, cin, cout, budget):
    """Largest tile height dividing H whose working set fits the VMEM budget."""
    for th in range(H, 0, -1):
        if H % th == 0 and _vmem_need_bytes(th, W, cin, cout) <= budget:
            return th
    return 1


def _double_conv_kernel(x_ref, w1_ref, s1_ref, b1_ref, w2_ref, s2_ref, b2_ref,
                        o_ref, hpad_ref):
    # x_ref   : (1, TH+4, W+2, Cin)  bf16 input window (2-row / 1-col zero halo,
    #                                 pre-padded + pre-windowed by the wrapper)
    # w*_ref  : (9, C_in, C_out)     bf16 conv weights, tap-major (tap = 3*dy + dx)
    # s*_ref  : (1, C_out) f32       fused BatchNorm scale
    # b*_ref  : (1, C_out) f32       fused BatchNorm bias (includes conv bias)
    # o_ref   : (1, TH, W, Cout)     bf16 output tile (real channels only)
    # hpad_ref: (TH+2, LPAD+W+1, Cout) bf16 conv1 activation + zero halo for conv2
    TH = o_ref.shape[1]
    W = o_ref.shape[2]
    cout = o_ref.shape[3]

    def conv_stage(load_patch, n_rows, w_ref, s_ref, b_ref, store_rows):
        # 3x3 conv + fused BN + ReLU as 9 direct-slice MXU matmuls (K = C),
        # M-chunked so the f32 accumulator stays small.
        ch = max(1, min(n_rows, _M_CHUNK_ROWS // max(W, 1)))
        for r0 in range(0, n_rows, ch):
            rows = min(ch, n_rows - r0)
            acc = None
            for dy in range(3):
                for dx in range(3):
                    part = jnp.dot(load_patch(r0, rows, dy, dx),
                                   w_ref[3 * dy + dx],
                                   preferred_element_type=jnp.float32)
                    acc = part if acc is None else acc + part
            y = jnp.maximum(acc * s_ref[...] + b_ref[...], 0.0)
            store_rows(r0, rows, y)

    # ---- Stage 1: conv1 + BN1 + ReLU over TH+2 rows (1-row halo for conv2);
    # the activation stays resident in the bf16 VMEM scratch. ----
    def load_x(r0, rows, dy, dx):
        cin = x_ref.shape[3]
        return x_ref[0, r0 + dy:r0 + dy + rows, dx:dx + W, :].reshape(rows * W, cin)

    def store_h(r0, rows, y):
        hpad_ref[r0:r0 + rows, _LPAD:_LPAD + W, :] = (
            y.reshape(rows, W, cout).astype(hpad_ref.dtype))

    conv_stage(load_x, TH + 2, w1_ref, s1_ref, b1_ref, store_h)

    # ---- conv2 zero padding: zero only the halo strips (no full-buffer fill).
    # Rows that fall outside the image (top/bottom tiles) are conv2's zero
    # padding, not conv1 outputs, so they are overwritten with zeros. ----
    hpad_ref[:, 0:_LPAD, :] = jnp.zeros((TH + 2, _LPAD, cout), hpad_ref.dtype)
    hpad_ref[:, _LPAD + W:_LPAD + W + 1, :] = jnp.zeros((TH + 2, 1, cout),
                                                        hpad_ref.dtype)
    h_tile = pl.program_id(1)

    @pl.when(h_tile == 0)
    def _():
        hpad_ref[0:1, :, :] = jnp.zeros((1, _LPAD + W + 1, cout), hpad_ref.dtype)

    @pl.when(h_tile == pl.num_programs(1) - 1)
    def _():
        hpad_ref[TH + 1:TH + 2, :, :] = jnp.zeros((1, _LPAD + W + 1, cout),
                                                  hpad_ref.dtype)

    # ---- Stage 2: conv2 + BN2 + ReLU; bf16 writeback of the real channels. ----
    def load_h(r0, rows, dy, dx):
        c0 = _LPAD - 1 + dx
        return hpad_ref[r0 + dy:r0 + dy + rows, c0:c0 + W, :].reshape(rows * W, cout)

    def store_o(r0, rows, y):
        o_ref[0, r0:r0 + rows, :, :] = y.reshape(rows, W, cout).astype(o_ref.dtype)

    conv_stage(load_h, TH, w2_ref, s2_ref, b2_ref, store_o)


def _double_conv_pallas(x_win, w1, s1, b1, w2, s2, b2, *, H, W, TH, vmem_cap):
    """x_win: (N, num_h*(TH+4), W+2, Cin) bf16 pre-windowed input.
    Returns (N, H, W, Cout) bf16."""
    N = x_win.shape[0]
    cin = x_win.shape[3]
    cout = w1.shape[-1]
    num_h = H // TH
    vmem_limit = max(32 * 1024 * 1024,
                     min(int(vmem_cap * 0.8), 100 * 1024 * 1024))
    return pl.pallas_call(
        _double_conv_kernel,
        out_shape=jax.ShapeDtypeStruct((N, H, W, cout), jnp.bfloat16),
        grid=(N, num_h),
        in_specs=[
            pl.BlockSpec((1, TH + 4, W + 2, cin), lambda n, h: (n, h, 0, 0)),
            pl.BlockSpec((9, cin, cout), lambda n, h: (0, 0, 0)),
            pl.BlockSpec((1, cout), lambda n, h: (0, 0)),
            pl.BlockSpec((1, cout), lambda n, h: (0, 0)),
            pl.BlockSpec((9, cout, cout), lambda n, h: (0, 0, 0)),
            pl.BlockSpec((1, cout), lambda n, h: (0, 0)),
            pl.BlockSpec((1, cout), lambda n, h: (0, 0)),
        ],
        out_specs=pl.BlockSpec((1, TH, W, cout), lambda n, h: (n, h, 0, 0)),
        scratch_shapes=[
            pltpu.VMEM((TH + 2, _LPAD + W + 1, cout), jnp.bfloat16),
        ],
        compiler_params=pltpu.CompilerParams(
            dimension_semantics=("parallel", "parallel"),
            vmem_limit_bytes=vmem_limit),
    )(x_win, w1, s1, b1, w2, s2, b2)


def _fold_bn(conv_bias, gamma, beta, running_mean, running_var, eps=1e-5):
    inv_std = 1.0 / jnp.sqrt(running_var + eps)
    scale = gamma * inv_std
    bias = beta + scale * (conv_bias - running_mean)
    return (scale.reshape(1, -1).astype(jnp.float32),
            bias.reshape(1, -1).astype(jnp.float32))


def _pack_conv_weights(w):
    # (3, 3, Cin, Cout) -> (9, Cin, Cout) bf16, tap-major (tap = 3*dy + dx).
    kh, kw, cin, cout = w.shape
    return w.reshape(kh * kw, cin, cout).astype(jnp.bfloat16)


class DoubleConvPallas:
    """Pallas equivalent of the PyTorch DoubleConv module (inference-mode BN)."""

    def __init__(self, in_channels, out_channels, key):
        k1, k2, k3, k4 = jax.random.split(key, 4)
        fan1 = in_channels * 9
        fan2 = out_channels * 9
        self.w1 = jax.random.uniform(
            k1, (3, 3, in_channels, out_channels), jnp.float32,
            -1.0 / jnp.sqrt(fan1), 1.0 / jnp.sqrt(fan1))
        self.b1 = jax.random.uniform(
            k2, (out_channels,), jnp.float32,
            -1.0 / jnp.sqrt(fan1), 1.0 / jnp.sqrt(fan1))
        self.w2 = jax.random.uniform(
            k3, (3, 3, out_channels, out_channels), jnp.float32,
            -1.0 / jnp.sqrt(fan2), 1.0 / jnp.sqrt(fan2))
        self.b2 = jax.random.uniform(
            k4, (out_channels,), jnp.float32,
            -1.0 / jnp.sqrt(fan2), 1.0 / jnp.sqrt(fan2))
        # BatchNorm2d fresh-init parameters / running stats (eval-mode).
        self.gamma1 = jnp.ones((out_channels,), jnp.float32)
        self.beta1 = jnp.zeros((out_channels,), jnp.float32)
        self.mean1 = jnp.zeros((out_channels,), jnp.float32)
        self.var1 = jnp.ones((out_channels,), jnp.float32)
        self.gamma2 = jnp.ones((out_channels,), jnp.float32)
        self.beta2 = jnp.zeros((out_channels,), jnp.float32)
        self.mean2 = jnp.zeros((out_channels,), jnp.float32)
        self.var2 = jnp.ones((out_channels,), jnp.float32)

    @functools.partial(jax.jit, static_argnums=0)
    def __call__(self, x_nchw):
        N, cin, H, W = x_nchw.shape
        cout = self.w1.shape[-1]

        # NCHW -> NHWC, bf16 activations for the MXU; channels stay UNPADDED.
        x = jnp.transpose(x_nchw, (0, 2, 3, 1)).astype(jnp.bfloat16)
        # Spatial zero halo for BOTH convs (2 rows / 1 col), applied once here;
        # the kernel never zero-fills an input scratch.
        xp = jnp.pad(x, ((0, 0), (2, 2), (1, 1), (0, 0)))

        # Generation-aware spatial tiling: largest H-tile that keeps the
        # per-step working set inside the local VMEM budget.
        vmem_cap = _vmem_capacity_bytes()
        TH = _pick_tile_h(H, W, cin, cout, int(vmem_cap * 0.55))
        num_h = H // TH
        if num_h == 1:
            x_win = xp                                 # already (N, TH+4, W+2, Cin)
        else:
            # Overlapping (TH+4)-row windows (2-row halo), materialized here so
            # the kernel BlockSpec stays a plain non-overlapping block
            # (halo duplication costs ~4/TH of the input bytes).
            idx = (jnp.arange(num_h) * TH)[:, None] + jnp.arange(TH + 4)[None, :]
            x_win = xp[:, idx].reshape(N, num_h * (TH + 4), W + 2, cin)

        s1, fb1 = _fold_bn(self.b1, self.gamma1, self.beta1, self.mean1, self.var1)
        s2, fb2 = _fold_bn(self.b2, self.gamma2, self.beta2, self.mean2, self.var2)

        y = _double_conv_pallas(
            x_win, _pack_conv_weights(self.w1), s1, fb1,
            _pack_conv_weights(self.w2), s2, fb2,
            H=H, W=W, TH=TH, vmem_cap=vmem_cap)

        # bf16 NHWC -> f32 NCHW (module contract).
        return jnp.transpose(y, (0, 3, 1, 2)).astype(jnp.float32)


def _reference(x_nchw, mod, bf16_operands):
    """Pure-JAX reference (lax conv). bf16_operands=True mirrors the kernel's
    bf16-operand / f32-accumulate matmuls for a tight comparison."""
    def conv_bn_relu(x, w, cb, gamma, beta, mean, var):
        if bf16_operands:
            x = x.astype(jnp.bfloat16)
            w = w.astype(jnp.bfloat16)
        out = jax.lax.conv_general_dilated(
            x, w, window_strides=(1, 1), padding=((1, 1), (1, 1)),
            dimension_numbers=("NHWC", "HWIO", "NHWC"),
            preferred_element_type=jnp.float32)
        out = out + cb
        out = gamma * (out - mean) / jnp.sqrt(var + 1e-5) + beta
        return jnp.maximum(out, 0.0)

    x = jnp.transpose(x_nchw, (0, 2, 3, 1)).astype(jnp.float32)
    h = conv_bn_relu(x, mod.w1, mod.b1, mod.gamma1, mod.beta1, mod.mean1, mod.var1)
    y = conv_bn_relu(h, mod.w2, mod.b2, mod.gamma2, mod.beta2, mod.mean2, mod.var2)
    return jnp.transpose(y, (0, 3, 1, 2))


if __name__ == "__main__":
    key = jax.random.PRNGKey(0)
    k_x, k_p = jax.random.split(key)

    N, Cin, Cout, H, W = 2, 4, 8, 16, 16
    x = jax.random.normal(k_x, (N, Cin, H, W), dtype=jnp.float32)

    model = DoubleConvPallas(Cin, Cout, k_p)
    out = jax.block_until_ready(model(x))
    assert out.shape == (N, Cout, H, W), out.shape

    # Tight check vs. a reference mirroring the kernel's bf16-operand /
    # f32-accumulate math, plus a looser check vs. the pure-f32 reference.
    ref_bf16 = _reference(x, model, bf16_operands=True)
    ref_f32 = _reference(x, model, bf16_operands=False)
    assert jnp.allclose(out, ref_bf16, atol=2e-2, rtol=2e-2), (
        float(jnp.max(jnp.abs(out - ref_bf16))))
    assert jnp.allclose(out, ref_f32, atol=6e-2, rtol=6e-2), (
        float(jnp.max(jnp.abs(out - ref_f32))))

    print("KERNEL_OK")
</pallas_src>

<mosaic_0001>
module attributes {stable_mosaic.version = 11 : i64} {
  func.func @_double_conv_kernel(%arg0: i32, %arg1: i32, %arg2: memref<1x20x18x4xbf16, #tpu.memory_space<vmem>>, %arg3: memref<9x4x8xbf16, #tpu.memory_space<vmem>>, %arg4: memref<1x8xf32, #tpu.memory_space<vmem>>, %arg5: memref<1x8xf32, #tpu.memory_space<vmem>>, %arg6: memref<9x8x8xbf16, #tpu.memory_space<vmem>>, %arg7: memref<1x8xf32, #tpu.memory_space<vmem>>, %arg8: memref<1x8xf32, #tpu.memory_space<vmem>>, %arg9: memref<1x16x16x8xbf16, #tpu.memory_space<vmem>>, %arg10: memref<18x25x8xbf16, #tpu.memory_space<vmem>>) attributes {dimension_semantics = [#tpu.dimension_semantics<parallel>, #tpu.dimension_semantics<parallel>], iteration_bounds = array<i64: 2, 1>, scalar_prefetch = 0 : i64, scratch_operands = 1 : i64, tpu.core_type = #tpu.core_type<tc>, window_params = [{transform_indices = @transform_0, window_bounds = array<i64: 1, 20, 18, 4>}, {pipeline_mode = #tpu.pipeline_mode<synchronous>, transform_indices = @transform_1, window_bounds = array<i64: 9, 4, 8>}, {pipeline_mode = #tpu.pipeline_mode<synchronous>, transform_indices = @transform_2, window_bounds = array<i64: 1, 8>}, {pipeline_mode = #tpu.pipeline_mode<synchronous>, transform_indices = @transform_3, window_bounds = array<i64: 1, 8>}, {pipeline_mode = #tpu.pipeline_mode<synchronous>, transform_indices = @transform_4, window_bounds = array<i64: 9, 8, 8>}, {pipeline_mode = #tpu.pipeline_mode<synchronous>, transform_indices = @transform_5, window_bounds = array<i64: 1, 8>}, {pipeline_mode = #tpu.pipeline_mode<synchronous>, transform_indices = @transform_6, window_bounds = array<i64: 1, 8>}, {transform_indices = @transform_7, window_bounds = array<i64: 1, 16, 16, 8>}]} {
    %c0 = arith.constant 0 : index
    %c0_0 = arith.constant 0 : index
    %c0_1 = arith.constant 0 : index
    %c0_2 = arith.constant 0 : index
    %0 = vector.load %arg2[%c0, %c0_0, %c0_1, %c0_2] : memref<1x20x18x4xbf16, #tpu.memory_space<vmem>>, vector<1x16x16x4xbf16>
    %1 = vector.shape_cast %0 : vector<1x16x16x4xbf16> to vector<16x16x4xbf16>
    %2 = vector.shape_cast %1 : vector<16x16x4xbf16> to vector<256x4xbf16>
    %c0_3 = arith.constant 0 : index
    %c0_4 = arith.constant 0 : index
    %c0_5 = arith.constant 0 : index
    %3 = vector.load %arg3[%c0_3, %c0_4, %c0_5] : memref<9x4x8xbf16, #tpu.memory_space<vmem>>, vector<1x4x8xbf16>
    %4 = vector.shape_cast %3 : vector<1x4x8xbf16> to vector<4x8xbf16>
    %cst = arith.constant dense<0.000000e+00> : vector<256x8xf32>
    %5 = tpu.matmul %2, %4, %cst {dimension_numbers = #tpu.dot_dimension_numbers<[1], [0], [0], [1], [0, 0, 1, 1], [], []>} : vector<256x4xbf16>, vector<4x8xbf16>, vector<256x8xf32> -> vector<256x8xf32>
    %c0_6 = arith.constant 0 : index
    %c0_7 = arith.constant 0 : index
    %c1 = arith.constant 1 : index
    %c0_8 = arith.constant 0 : index
    %6 = vector.load %arg2[%c0_6, %c0_7, %c1, %c0_8] : memref<1x20x18x4xbf16, #tpu.memory_space<vmem>>, vector<1x16x16x4xbf16>
    %7 = vector.shape_cast %6 : vector<1x16x16x4xbf16> to vector<16x16x4xbf16>
    %8 = vector.shape_cast %7 : vector<16x16x4xbf16> to vector<256x4xbf16>
    %c1_9 = arith.constant 1 : index
    %c0_10 = arith.constant 0 : index
    %c0_11 = arith.constant 0 : index
    %9 = vector.load %arg3[%c1_9, %c0_10, %c0_11] : memref<9x4x8xbf16, #tpu.memory_space<vmem>>, vector<1x4x8xbf16>
    %10 = vector.shape_cast %9 : vector<1x4x8xbf16> to vector<4x8xbf16>
    %cst_12 = arith.constant dense<0.000000e+00> : vector<256x8xf32>
    %11 = tpu.matmul %8, %10, %cst_12 {dimension_numbers = #tpu.dot_dimension_numbers<[1], [0], [0], [1], [0, 0, 1, 1], [], []>} : vector<256x4xbf16>, vector<4x8xbf16>, vector<256x8xf32> -> vector<256x8xf32>
    %12 = arith.addf %5, %11 : vector<256x8xf32>
    %c0_13 = arith.constant 0 : index
    %c0_14 = arith.constant 0 : index
    %c2 = arith.constant 2 : index
    %c0_15 = arith.constant 0 : index
    %13 = vector.load %arg2[%c0_13, %c0_14, %c2, %c0_15] : memref<1x20x18x4xbf16, #tpu.memory_space<vmem>>, vector<1x16x16x4xbf16>
    %14 = vector.shape_cast %13 : vector<1x16x16x4xbf16> to vector<16x16x4xbf16>
    %15 = vector.shape_cast %14 : vector<16x16x4xbf16> to vector<256x4xbf16>
    %c2_16 = arith.constant 2 : index
    %c0_17 = arith.constant 0 : index
    %c0_18 = arith.constant 0 : index
    %16 = vector.load %arg3[%c2_16, %c0_17, %c0_18] : memref<9x4x8xbf16, #tpu.memory_space<vmem>>, vector<1x4x8xbf16>
    %17 = vector.shape_cast %16 : vector<1x4x8xbf16> to vector<4x8xbf16>
    %cst_19 = arith.constant dense<0.000000e+00> : vector<256x8xf32>
    %18 = tpu.matmul %15, %17, %cst_19 {dimension_numbers = #tpu.dot_dimension_numbers<[1], [0], [0], [1], [0, 0, 1, 1], [], []>} : vector<256x4xbf16>, vector<4x8xbf16>, vector<256x8xf32> -> vector<256x8xf32>
    %19 = arith.addf %12, %18 : vector<256x8xf32>
    %c0_20 = arith.constant 0 : index
    %c1_21 = arith.constant 1 : index
    %c0_22 = arith.constant 0 : index
    %c0_23 = arith.constant 0 : index
    %20 = vector.load %arg2[%c0_20, %c1_21, %c0_22, %c0_23] : memref<1x20x18x4xbf16, #tpu.memory_space<vmem>>, vector<1x16x16x4xbf16>
    %21 = vector.shape_cast %20 : vector<1x16x16x4xbf16> to vector<16x16x4xbf16>
    %22 = vector.shape_cast %21 : vector<16x16x4xbf16> to vector<256x4xbf16>
    %c3 = arith.constant 3 : index
    %c0_24 = arith.constant 0 : index
    %c0_25 = arith.constant 0 : index
    %23 = vector.load %arg3[%c3, %c0_24, %c0_25] : memref<9x4x8xbf16, #tpu.memory_space<vmem>>, vector<1x4x8xbf16>
    %24 = vector.shape_cast %23 : vector<1x4x8xbf16> to vector<4x8xbf16>
    %cst_26 = arith.constant dense<0.000000e+00> : vector<256x8xf32>
    %25 = tpu.matmul %22, %24, %cst_26 {dimension_numbers = #tpu.dot_dimension_numbers<[1], [0], [0], [1], [0, 0, 1, 1], [], []>} : vector<256x4xbf16>, vector<4x8xbf16>, vector<256x8xf32> -> vector<256x8xf32>
    %26 = arith.addf %19, %25 : vector<256x8xf32>
    %c0_27 = arith.constant 0 : index
    %c1_28 = arith.constant 1 : index
    %c1_29 = arith.constant 1 : index
    %c0_30 = arith.constant 0 : index
    %27 = vector.load %arg2[%c0_27, %c1_28, %c1_29, %c0_30] : memref<1x20x18x4xbf16, #tpu.memory_space<vmem>>, vector<1x16x16x4xbf16>
    %28 = vector.shape_cast %27 : vector<1x16x16x4xbf16> to vector<16x16x4xbf16>
    %29 = vector.shape_cast %28 : vector<16x16x4xbf16> to vector<256x4xbf16>
    %c4 = arith.constant 4 : index
    %c0_31 = arith.constant 0 : index
    %c0_32 = arith.constant 0 : index
    %30 = vector.load %arg3[%c4, %c0_31, %c0_32] : memref<9x4x8xbf16, #tpu.memory_space<vmem>>, vector<1x4x8xbf16>
    %31 = vector.shape_cast %30 : vector<1x4x8xbf16> to vector<4x8xbf16>
    %cst_33 = arith.constant dense<0.000000e+00> : vector<256x8xf32>
    %32 = tpu.matmul %29, %31, %cst_33 {dimension_numbers = #tpu.dot_dimension_numbers<[1], [0], [0], [1], [0, 0, 1, 1], [], []>} : vector<256x4xbf16>, vector<4x8xbf16>, vector<256x8xf32> -> vector<256x8xf32>
    %33 = arith.addf %26, %32 : vector<256x8xf32>
    %c0_34 = arith.constant 0 : index
    %c1_35 = arith.constant 1 : index
    %c2_36 = arith.constant 2 : index
    %c0_37 = arith.constant 0 : index
    %34 = vector.load %arg2[%c0_34, %c1_35, %c2_36, %c0_37] : memref<1x20x18x4xbf16, #tpu.memory_space<vmem>>, vector<1x16x16x4xbf16>
    %35 = vector.shape_cast %34 : vector<1x16x16x4xbf16> to vector<16x16x4xbf16>
    %36 = vector.shape_cast %35 : vector<16x16x4xbf16> to vector<256x4xbf16>
    %c5 = arith.constant 5 : index
    %c0_38 = arith.constant 0 : index
    %c0_39 = arith.constant 0 : index
    %37 = vector.load %arg3[%c5, %c0_38, %c0_39] : memref<9x4x8xbf16, #tpu.memory_space<vmem>>, vector<1x4x8xbf16>
    %38 = vector.shape_cast %37 : vector<1x4x8xbf16> to vector<4x8xbf16>
    %cst_40 = arith.constant dense<0.000000e+00> : vector<256x8xf32>
    %39 = tpu.matmul %36, %38, %cst_40 {dimension_numbers = #tpu.dot_dimension_numbers<[1], [0], [0], [1], [0, 0, 1, 1], [], []>} : vector<256x4xbf16>, vector<4x8xbf16>, vector<256x8xf32> -> vector<256x8xf32>
    %40 = arith.addf %33, %39 : vector<256x8xf32>
    %c0_41 = arith.constant 0 : index
    %c2_42 = arith.constant 2 : index
    %c0_43 = arith.constant 0 : index
    %c0_44 = arith.constant 0 : index
    %41 = vector.load %arg2[%c0_41, %c2_42, %c0_43, %c0_44] : memref<1x20x18x4xbf16, #tpu.memory_space<vmem>>, vector<1x16x16x4xbf16>
    %42 = vector.shape_cast %41 : vector<1x16x16x4xbf16> to vector<16x16x4xbf16>
    %43 = vector.shape_cast %42 : vector<16x16x4xbf16> to vector<256x4xbf16>
    %c6 = arith.constant 6 : index
    %c0_45 = arith.constant 0 : index
    %c0_46 = arith.constant 0 : index
    %44 = vector.load %arg3[%c6, %c0_45, %c0_46] : memref<9x4x8xbf16, #tpu.memory_space<vmem>>, vector<1x4x8xbf16>
    %45 = vector.shape_cast %44 : vector<1x4x8xbf16> to vector<4x8xbf16>
    %cst_47 = arith.constant dense<0.000000e+00> : vector<256x8xf32>
    %46 = tpu.matmul %43, %45, %cst_47 {dimension_numbers = #tpu.dot_dimension_numbers<[1], [0], [0], [1], [0, 0, 1, 1], [], []>} : vector<256x4xbf16>, vector<4x8xbf16>, vector<256x8xf32> -> vector<256x8xf32>
    %47 = arith.addf %40, %46 : vector<256x8xf32>
    %c0_48 = arith.constant 0 : index
    %c2_49 = arith.constant 2 : index
    %c1_50 = arith.constant 1 : index
    %c0_51 = arith.constant 0 : index
    %48 = vector.load %arg2[%c0_48, %c2_49, %c1_50, %c0_51] : memref<1x20x18x4xbf16, #tpu.memory_space<vmem>>, vector<1x16x16x4xbf16>
    %49 = vector.shape_cast %48 : vector<1x16x16x4xbf16> to vector<16x16x4xbf16>
    %50 = vector.shape_cast %49 : vector<16x16x4xbf16> to vector<256x4xbf16>
    %c7 = arith.constant 7 : index
    %c0_52 = arith.constant 0 : index
    %c0_53 = arith.constant 0 : index
    %51 = vector.load %arg3[%c7, %c0_52, %c0_53] : memref<9x4x8xbf16, #tpu.memory_space<vmem>>, vector<1x4x8xbf16>
    %52 = vector.shape_cast %51 : vector<1x4x8xbf16> to vector<4x8xbf16>
    %cst_54 = arith.constant dense<0.000000e+00> : vector<256x8xf32>
    %53 = tpu.matmul %50, %52, %cst_54 {dimension_numbers = #tpu.dot_dimension_numbers<[1], [0], [0], [1], [0, 0, 1, 1], [], []>} : vector<256x4xbf16>, vector<4x8xbf16>, vector<256x8xf32> -> vector<256x8xf32>
    %54 = arith.addf %47, %53 : vector<256x8xf32>
    %c0_55 = arith.constant 0 : index
    %c2_56 = arith.constant 2 : index
    %c2_57 = arith.constant 2 : index
    %c0_58 = arith.constant 0 : index
    %55 = vector.load %arg2[%c0_55, %c2_56, %c2_57, %c0_58] : memref<1x20x18x4xbf16, #tpu.memory_space<vmem>>, vector<1x16x16x4xbf16>
    %56 = vector.shape_cast %55 : vector<1x16x16x4xbf16> to vector<16x16x4xbf16>
    %57 = vector.shape_cast %56 : vector<16x16x4xbf16> to vector<256x4xbf16>
    %c8 = arith.constant 8 : index
    %c0_59 = arith.constant 0 : index
    %c0_60 = arith.constant 0 : index
    %58 = vector.load %arg3[%c8, %c0_59, %c0_60] : memref<9x4x8xbf16, #tpu.memory_space<vmem>>, vector<1x4x8xbf16>
    %59 = vector.shape_cast %58 : vector<1x4x8xbf16> to vector<4x8xbf16>
    %cst_61 = arith.constant dense<0.000000e+00> : vector<256x8xf32>
    %60 = tpu.matmul %57, %59, %cst_61 {dimension_numbers = #tpu.dot_dimension_numbers<[1], [0], [0], [1], [0, 0, 1, 1], [], []>} : vector<256x4xbf16>, vector<4x8xbf16>, vector<256x8xf32> -> vector<256x8xf32>
    %61 = arith.addf %54, %60 : vector<256x8xf32>
    %c0_62 = arith.constant 0 : index
    %c0_63 = arith.constant 0 : index
    %62 = vector.load %arg4[%c0_62, %c0_63] : memref<1x8xf32, #tpu.memory_space<vmem>>, vector<1x8xf32>
    %63 = vector.broadcast %62 : vector<1x8xf32> to vector<256x8xf32>
    %64 = arith.mulf %61, %63 : vector<256x8xf32>
    %c0_64 = arith.constant 0 : index
    %c0_65 = arith.constant 0 : index
    %65 = vector.load %arg5[%c0_64, %c0_65] : memref<1x8xf32, #tpu.memory_space<vmem>>, vector<1x8xf32>
    %66 = vector.broadcast %65 : vector<1x8xf32> to vector<256x8xf32>
    %67 = arith.addf %64, %66 : vector<256x8xf32>
    %cst_66 = arith.constant 0.000000e+00 : f32
    %68 = vector.broadcast %cst_66 : f32 to vector<256x8xf32>
    %69 = arith.maximumf %67, %68 : vector<256x8xf32>
    %70 = vector.shape_cast %69 : vector<256x8xf32> to vector<16x16x8xf32>
    %71 = arith.truncf %70 : vector<16x16x8xf32> to vector<16x16x8xbf16>
    %c0_67 = arith.constant 0 : index
    %c8_68 = arith.constant 8 : index
    %c0_69 = arith.constant 0 : index
    %72 = vector.load %arg10[%c0_67, %c8_68, %c0_69] : memref<18x25x8xbf16, #tpu.memory_space<vmem>>, vector<16x16x8xbf16>
    tpu.vector_store %arg10[%c0_67, %c8_68, %c0_69], %71 {strides = array<i32>} : memref<18x25x8xbf16, #tpu.memory_space<vmem>>, vector<16x16x8xbf16>,
    %c0_70 = arith.constant 0 : index
    %c16 = arith.constant 16 : index
    %c0_71 = arith.constant 0 : index
    %c0_72 = arith.constant 0 : index
    %73 = vector.load %arg2[%c0_70, %c16, %c0_71, %c0_72] : memref<1x20x18x4xbf16, #tpu.memory_space<vmem>>, vector<1x2x16x4xbf16>
    %74 = vector.shape_cast %73 : vector<1x2x16x4xbf16> to vector<2x16x4xbf16>
    %75 = vector.shape_cast %74 : vector<2x16x4xbf16> to vector<32x4xbf16>
    %c0_73 = arith.constant 0 : index
    %c0_74 = arith.constant 0 : index
    %c0_75 = arith.constant 0 : index
    %76 = vector.load %arg3[%c0_73, %c0_74, %c0_75] : memref<9x4x8xbf16, #tpu.memory_space<vmem>>, vector<1x4x8xbf16>
    %77 = vector.shape_cast %76 : vector<1x4x8xbf16> to vector<4x8xbf16>
    %cst_76 = arith.constant dense<0.000000e+00> : vector<32x8xf32>
    %78 = tpu.matmul %75, %77, %cst_76 {dimension_numbers = #tpu.dot_dimension_numbers<[1], [0], [0], [1], [0, 0, 1, 1], [], []>} : vector<32x4xbf16>, vector<4x8xbf16>, vector<32x8xf32> -> vector<32x8xf32>
    %c0_77 = arith.constant 0 : index
    %c16_78 = arith.constant 16 : index
    %c1_79 = arith.constant 1 : index
    %c0_80 = arith.constant 0 : index
    %79 = vector.load %arg2[%c0_77, %c16_78, %c1_79, %c0_80] : memref<1x20x18x4xbf16, #tpu.memory_space<vmem>>, vector<1x2x16x4xbf16>
    %80 = vector.shape_cast %79 : vector<1x2x16x4xbf16> to vector<2x16x4xbf16>
    %81 = vector.shape_cast %80 : vector<2x16x4xbf16> to vector<32x4xbf16>
    %c1_81 = arith.constant 1 : index
    %c0_82 = arith.constant 0 : index
    %c0_83 = arith.constant 0 : index
    %82 = vector.load %arg3[%c1_81, %c0_82, %c0_83] : memref<9x4x8xbf16, #tpu.memory_space<vmem>>, vector<1x4x8xbf16>
    %83 = vector.shape_cast %82 : vector<1x4x8xbf16> to vector<4x8xbf16>
    %cst_84 = arith.constant dense<0.000000e+00> : vector<32x8xf32>
    %84 = tpu.matmul %81, %83, %cst_84 {dimension_numbers = #tpu.dot_dimension_numbers<[1], [0], [0], [1], [0, 0, 1, 1], [], []>} : vector<32x4xbf16>, vector<4x8xbf16>, vector<32x8xf32> -> vector<32x8xf32>
    %85 = arith.addf %78, %84 : vector<32x8xf32>
    %c0_85 = arith.constant 0 : index
    %c16_86 = arith.constant 16 : index
    %c2_87 = arith.constant 2 : index
    %c0_88 = arith.constant 0 : index
    %86 = vector.load %arg2[%c0_85, %c16_86, %c2_87, %c0_88] : memref<1x20x18x4xbf16, #tpu.memory_space<vmem>>, vector<1x2x16x4xbf16>
    %87 = vector.shape_cast %86 : vector<1x2x16x4xbf16> to vector<2x16x4xbf16>
    %88 = vector.shape_cast %87 : vector<2x16x4xbf16> to vector<32x4xbf16>
    %c2_89 = arith.constant 2 : index
    %c0_90 = arith.constant 0 : index
    %c0_91 = arith.constant 0 : index
    %89 = vector.load %arg3[%c2_89, %c0_90, %c0_91] : memref<9x4x8xbf16, #tpu.memory_space<vmem>>, vector<1x4x8xbf16>
    %90 = vector.shape_cast %89 : vector<1x4x8xbf16> to vector<4x8xbf16>
    %cst_92 = arith.constant dense<0.000000e+00> : vector<32x8xf32>
    %91 = tpu.matmul %88, %90, %cst_92 {dimension_numbers = #tpu.dot_dimension_numbers<[1], [0], [0], [1], [0, 0, 1, 1], [], []>} : vector<32x4xbf16>, vector<4x8xbf16>, vector<32x8xf32> -> vector<32x8xf32>
    %92 = arith.addf %85, %91 : vector<32x8xf32>
    %c0_93 = arith.constant 0 : index
    %c17 = arith.constant 17 : index
    %c0_94 = arith.constant 0 : index
    %c0_95 = arith.constant 0 : index
    %93 = vector.load %arg2[%c0_93, %c17, %c0_94, %c0_95] : memref<1x20x18x4xbf16, #tpu.memory_space<vmem>>, vector<1x2x16x4xbf16>
    %94 = vector.shape_cast %93 : vector<1x2x16x4xbf16> to vector<2x16x4xbf16>
    %95 = vector.shape_cast %94 : vector<2x16x4xbf16> to vector<32x4xbf16>
    %c3_96 = arith.constant 3 : index
    %c0_97 = arith.constant 0 : index
    %c0_98 = arith.constant 0 : index
    %96 = vector.load %arg3[%c3_96, %c0_97, %c0_98] : memref<9x4x8xbf16, #tpu.memory_space<vmem>>, vector<1x4x8xbf16>
    %97 = vector.shape_cast %96 : vector<1x4x8xbf16> to vector<4x8xbf16>
    %cst_99 = arith.constant dense<0.000000e+00> : vector<32x8xf32>
    %98 = tpu.matmul %95, %97, %cst_99 {dimension_numbers = #tpu.dot_dimension_numbers<[1], [0], [0], [1], [0, 0, 1, 1], [], []>} : vector<32x4xbf16>, vector<4x8xbf16>, vector<32x8xf32> -> vector<32x8xf32>
    %99 = arith.addf %92, %98 : vector<32x8xf32>
    %c0_100 = arith.constant 0 : index
    %c17_101 = arith.constant 17 : index
    %c1_102 = arith.constant 1 : index
    %c0_103 = arith.constant 0 : index
    %100 = vector.load %arg2[%c0_100, %c17_101, %c1_102, %c0_103] : memref<1x20x18x4xbf16, #tpu.memory_space<vmem>>, vector<1x2x16x4xbf16>
    %101 = vector.shape_cast %100 : vector<1x2x16x4xbf16> to vector<2x16x4xbf16>
    %102 = vector.shape_cast %101 : vector<2x16x4xbf16> to vector<32x4xbf16>
    %c4_104 = arith.constant 4 : index
    %c0_105 = arith.constant 0 : index
    %c0_106 = arith.constant 0 : index
    %103 = vector.load %arg3[%c4_104, %c0_105, %c0_106] : memref<9x4x8xbf16, #tpu.memory_space<vmem>>, vector<1x4x8xbf16>
    %104 = vector.shape_cast %103 : vector<1x4x8xbf16> to vector<4x8xbf16>
    %cst_107 = arith.constant dense<0.000000e+00> : vector<32x8xf32>
    %105 = tpu.matmul %102, %104, %cst_107 {dimension_numbers = #tpu.dot_dimension_numbers<[1], [0], [0], [1], [0, 0, 1, 1], [], []>} : vector<32x4xbf16>, vector<4x8xbf16>, vector<32x8xf32> -> vector<32x8xf32>
    %106 = arith.addf %99, %105 : vector<32x8xf32>
    %c0_108 = arith.constant 0 : index
    %c17_109 = arith.constant 17 : index
    %c2_110 = arith.constant 2 : index
    %c0_111 = arith.constant 0 : index
    %107 = vector.load %arg2[%c0_108, %c17_109, %c2_110, %c0_111] : memref<1x20x18x4xbf16, #tpu.memory_space<vmem>>, vector<1x2x16x4xbf16>
    %108 = vector.shape_cast %107 : vector<1x2x16x4xbf16> to vector<2x16x4xbf16>
    %109 = vector.shape_cast %108 : vector<2x16x4xbf16> to vector<32x4xbf16>
    %c5_112 = arith.constant 5 : index
    %c0_113 = arith.constant 0 : index
    %c0_114 = arith.constant 0 : index
    %110 = vector.load %arg3[%c5_112, %c0_113, %c0_114] : memref<9x4x8xbf16, #tpu.memory_space<vmem>>, vector<1x4x8xbf16>
    %111 = vector.shape_cast %110 : vector<1x4x8xbf16> to vector<4x8xbf16>
    %cst_115 = arith.constant dense<0.000000e+00> : vector<32x8xf32>
    %112 = tpu.matmul %109, %111, %cst_115 {dimension_numbers = #tpu.dot_dimension_numbers<[1], [0], [0], [1], [0, 0, 1, 1], [], []>} : vector<32x4xbf16>, vector<4x8xbf16>, vector<32x8xf32> -> vector<32x8xf32>
    %113 = arith.addf %106, %112 : vector<32x8xf32>
    %c0_116 = arith.constant 0 : index
    %c18 = arith.constant 18 : index
    %c0_117 = arith.constant 0 : index
    %c0_118 = arith.constant 0 : index
    %114 = vector.load %arg2[%c0_116, %c18, %c0_117, %c0_118] : memref<1x20x18x4xbf16, #tpu.memory_space<vmem>>, vector<1x2x16x4xbf16>
    %115 = vector.shape_cast %114 : vector<1x2x16x4xbf16> to vector<2x16x4xbf16>
    %116 = vector.shape_cast %115 : vector<2x16x4xbf16> to vector<32x4xbf16>
    %c6_119 = arith.constant 6 : index
    %c0_120 = arith.constant 0 : index
    %c0_121 = arith.constant 0 : index
    %117 = vector.load %arg3[%c6_119, %c0_120, %c0_121] : memref<9x4x8xbf16, #tpu.memory_space<vmem>>, vector<1x4x8xbf16>
    %118 = vector.shape_cast %117 : vector<1x4x8xbf16> to vector<4x8xbf16>
    %cst_122 = arith.constant dense<0.000000e+00> : vector<32x8xf32>
    %119 = tpu.matmul %116, %118, %cst_122 {dimension_numbers = #tpu.dot_dimension_numbers<[1], [0], [0], [1], [0, 0, 1, 1], [], []>} : vector<32x4xbf16>, vector<4x8xbf16>, vector<32x8xf32> -> vector<32x8xf32>
    %120 = arith.addf %113, %119 : vector<32x8xf32>
    %c0_123 = arith.constant 0 : index
    %c18_124 = arith.constant 18 : index
    %c1_125 = arith.constant 1 : index
    %c0_126 = arith.constant 0 : index
    %121 = vector.load %arg2[%c0_123, %c18_124, %c1_125, %c0_126] : memref<1x20x18x4xbf16, #tpu.memory_space<vmem>>, vector<1x2x16x4xbf16>
    %122 = vector.shape_cast %121 : vector<1x2x16x4xbf16> to vector<2x16x4xbf16>
    %123 = vector.shape_cast %122 : vector<2x16x4xbf16> to vector<32x4xbf16>
    %c7_127 = arith.constant 7 : index
    %c0_128 = arith.constant 0 : index
    %c0_129 = arith.constant 0 : index
    %124 = vector.load %arg3[%c7_127, %c0_128, %c0_129] : memref<9x4x8xbf16, #tpu.memory_space<vmem>>, vector<1x4x8xbf16>
    %125 = vector.shape_cast %124 : vector<1x4x8xbf16> to vector<4x8xbf16>
    %cst_130 = arith.constant dense<0.000000e+00> : vector<32x8xf32>
    %126 = tpu.matmul %123, %125, %cst_130 {dimension_numbers = #tpu.dot_dimension_numbers<[1], [0], [0], [1], [0, 0, 1, 1], [], []>} : vector<32x4xbf16>, vector<4x8xbf16>, vector<32x8xf32> -> vector<32x8xf32>
    %127 = arith.addf %120, %126 : vector<32x8xf32>
    %c0_131 = arith.constant 0 : index
    %c18_132 = arith.constant 18 : index
    %c2_133 = arith.constant 2 : index
    %c0_134 = arith.constant 0 : index
    %128 = vector.load %arg2[%c0_131, %c18_132, %c2_133, %c0_134] : memref<1x20x18x4xbf16, #tpu.memory_space<vmem>>, vector<1x2x16x4xbf16>
    %129 = vector.shape_cast %128 : vector<1x2x16x4xbf16> to vector<2x16x4xbf16>
    %130 = vector.shape_cast %129 : vector<2x16x4xbf16> to vector<32x4xbf16>
    %c8_135 = arith.constant 8 : index
    %c0_136 = arith.constant 0 : index
    %c0_137 = arith.constant 0 : index
    %131 = vector.load %arg3[%c8_135, %c0_136, %c0_137] : memref<9x4x8xbf16, #tpu.memory_space<vmem>>, vector<1x4x8xbf16>
    %132 = vector.shape_cast %131 : vector<1x4x8xbf16> to vector<4x8xbf16>
    %cst_138 = arith.constant dense<0.000000e+00> : vector<32x8xf32>
    %133 = tpu.matmul %130, %132, %cst_138 {dimension_numbers = #tpu.dot_dimension_numbers<[1], [0], [0], [1], [0, 0, 1, 1], [], []>} : vector<32x4xbf16>, vector<4x8xbf16>, vector<32x8xf32> -> vector<32x8xf32>
    %134 = arith.addf %127, %133 : vector<32x8xf32>
    %c0_139 = arith.constant 0 : index
    %c0_140 = arith.constant 0 : index
    %135 = vector.load %arg4[%c0_139, %c0_140] : memref<1x8xf32, #tpu.memory_space<vmem>>, vector<1x8xf32>
    %136 = vector.broadcast %135 : vector<1x8xf32> to vector<32x8xf32>
    %137 = arith.mulf %134, %136 : vector<32x8xf32>
    %c0_141 = arith.constant 0 : index
    %c0_142 = arith.constant 0 : index
    %138 = vector.load %arg5[%c0_141, %c0_142] : memref<1x8xf32, #tpu.memory_space<vmem>>, vector<1x8xf32>
    %139 = vector.broadcast %138 : vector<1x8xf32> to vector<32x8xf32>
    %140 = arith.addf %137, %139 : vector<32x8xf32>
    %cst_143 = arith.constant 0.000000e+00 : f32
    %141 = vector.broadcast %cst_143 : f32 to vector<32x8xf32>
    %142 = arith.maximumf %140, %141 : vector<32x8xf32>
    %143 = vector.shape_cast %142 : vector<32x8xf32> to vector<2x16x8xf32>
    %144 = arith.truncf %143 : vector<2x16x8xf32> to vector<2x16x8xbf16>
    %c16_144 = arith.constant 16 : index
    %c8_145 = arith.constant 8 : index
    %c0_146 = arith.constant 0 : index
    %145 = vector.load %arg10[%c16_144, %c8_145, %c0_146] : memref<18x25x8xbf16, #tpu.memory_space<vmem>>, vector<2x16x8xbf16>
    tpu.vector_store %arg10[%c16_144, %c8_145, %c0_146], %144 {strides = array<i32>} : memref<18x25x8xbf16, #tpu.memory_space<vmem>>, vector<2x16x8xbf16>,
    %cst_147 = arith.constant 0.000000e+00 : bf16
    %146 = vector.broadcast %cst_147 : bf16 to vector<18x8x8xbf16>
    %c0_148 = arith.constant 0 : index
    %c0_149 = arith.constant 0 : index
    %c0_150 = arith.constant 0 : index
    %147 = vector.load %arg10[%c0_148, %c0_149, %c0_150] : memref<18x25x8xbf16, #tpu.memory_space<vmem>>, vector<18x8x8xbf16>
    tpu.vector_store %arg10[%c0_148, %c0_149, %c0_150], %146 {strides = array<i32>} : memref<18x25x8xbf16, #tpu.memory_space<vmem>>, vector<18x8x8xbf16>,
    %cst_151 = arith.constant 0.000000e+00 : bf16
    %148 = vector.broadcast %cst_151 : bf16 to vector<18x1x8xbf16>
    %c0_152 = arith.constant 0 : index
    %c24 = arith.constant 24 : index
    %c0_153 = arith.constant 0 : index
    %149 = vector.load %arg10[%c0_152, %c24, %c0_153] : memref<18x25x8xbf16, #tpu.memory_space<vmem>>, vector<18x1x8xbf16>
    tpu.vector_store %arg10[%c0_152, %c24, %c0_153], %148 {strides = array<i32>} : memref<18x25x8xbf16, #tpu.memory_space<vmem>>, vector<18x1x8xbf16>,
    %c0_i32 = arith.constant 0 : i32
    %150 = arith.cmpi eq, %arg1, %c0_i32 : i32
    %151 = arith.extui %150 : i1 to i32
    %c0_i32_154 = arith.constant 0 : i32
    %152 = arith.cmpi ne, %151, %c0_i32_154 : i32
    scf.if %152 {
      %cst_228 = arith.constant 0.000000e+00 : bf16
      %222 = vector.broadcast %cst_228 : bf16 to vector<1x25x8xbf16>
      %c0_229 = arith.constant 0 : index
      %c0_230 = arith.constant 0 : index
      %c0_231 = arith.constant 0 : index
      %223 = vector.load %arg10[%c0_229, %c0_230, %c0_231] : memref<18x25x8xbf16, #tpu.memory_space<vmem>>, vector<1x25x8xbf16>
      tpu.vector_store %arg10[%c0_229, %c0_230, %c0_231], %222 {strides = array<i32>} : memref<18x25x8xbf16, #tpu.memory_space<vmem>>, vector<1x25x8xbf16>,
    } else {
    }
    %c0_i32_155 = arith.constant 0 : i32
    %153 = arith.cmpi eq, %arg1, %c0_i32_155 : i32
    %154 = arith.extui %153 : i1 to i32
    %c0_i32_156 = arith.constant 0 : i32
    %155 = arith.cmpi ne, %154, %c0_i32_156 : i32
    scf.if %155 {
      %cst_228 = arith.constant 0.000000e+00 : bf16
      %222 = vector.broadcast %cst_228 : bf16 to vector<1x25x8xbf16>
      %c17_229 = arith.constant 17 : index
      %c0_230 = arith.constant 0 : index
      %c0_231 = arith.constant 0 : index
      %223 = vector.load %arg10[%c17_229, %c0_230, %c0_231] : memref<18x25x8xbf16, #tpu.memory_space<vmem>>, vector<1x25x8xbf16>
      tpu.vector_store %arg10[%c17_229, %c0_230, %c0_231], %222 {strides = array<i32>} : memref<18x25x8xbf16, #tpu.memory_space<vmem>>, vector<1x25x8xbf16>,
    } else {
    }
    %c0_157 = arith.constant 0 : index
    %c7_158 = arith.constant 7 : index
    %c0_159 = arith.constant 0 : index
    %156 = vector.load %arg10[%c0_157, %c7_158, %c0_159] : memref<18x25x8xbf16, #tpu.memory_space<vmem>>, vector<16x16x8xbf16>
    %157 = vector.shape_cast %156 : vector<16x16x8xbf16> to vector<256x8xbf16>
    %c0_160 = arith.constant 0 : index
    %c0_161 = arith.constant 0 : index
    %c0_162 = arith.constant 0 : index
    %158 = vector.load %arg6[%c0_160, %c0_161, %c0_162] : memref<9x8x8xbf16, #tpu.memory_space<vmem>>, vector<1x8x8xbf16>
    %159 = vector.shape_cast %158 : vector<1x8x8xbf16> to vector<8x8xbf16>
    %cst_163 = arith.constant dense<0.000000e+00> : vector<256x8xf32>
    %160 = tpu.matmul %157, %159, %cst_163 {dimension_numbers = #tpu.dot_dimension_numbers<[1], [0], [0], [1], [0, 0, 1, 1], [], []>} : vector<256x8xbf16>, vector<8x8xbf16>, vector<256x8xf32> -> vector<256x8xf32>
    %c0_164 = arith.constant 0 : index
    %c8_165 = arith.constant 8 : index
    %c0_166 = arith.constant 0 : index
    %161 = vector.load %arg10[%c0_164, %c8_165, %c0_166] : memref<18x25x8xbf16, #tpu.memory_space<vmem>>, vector<16x16x8xbf16>
    %162 = vector.shape_cast %161 : vector<16x16x8xbf16> to vector<256x8xbf16>
    %c1_167 = arith.constant 1 : index
    %c0_168 = arith.constant 0 : index
    %c0_169 = arith.constant 0 : index
    %163 = vector.load %arg6[%c1_167, %c0_168, %c0_169] : memref<9x8x8xbf16, #tpu.memory_space<vmem>>, vector<1x8x8xbf16>
    %164 = vector.shape_cast %163 : vector<1x8x8xbf16> to vector<8x8xbf16>
    %cst_170 = arith.constant dense<0.000000e+00> : vector<256x8xf32>
    %165 = tpu.matmul %162, %164, %cst_170 {dimension_numbers = #tpu.dot_dimension_numbers<[1], [0], [0], [1], [0, 0, 1, 1], [], []>} : vector<256x8xbf16>, vector<8x8xbf16>, vector<256x8xf32> -> vector<256x8xf32>
    %166 = arith.addf %160, %165 : vector<256x8xf32>
    %c0_171 = arith.constant 0 : index
    %c9 = arith.constant 9 : index
    %c0_172 = arith.constant 0 : index
    %167 = vector.load %arg10[%c0_171, %c9, %c0_172] : memref<18x25x8xbf16, #tpu.memory_space<vmem>>, vector<16x16x8xbf16>
    %168 = vector.shape_cast %167 : vector<16x16x8xbf16> to vector<256x8xbf16>
    %c2_173 = arith.constant 2 : index
    %c0_174 = arith.constant 0 : index
    %c0_175 = arith.constant 0 : index
    %169 = vector.load %arg6[%c2_173, %c0_174, %c0_175] : memref<9x8x8xbf16, #tpu.memory_space<vmem>>, vector<1x8x8xbf16>
    %170 = vector.shape_cast %169 : vector<1x8x8xbf16> to vector<8x8xbf16>
    %cst_176 = arith.constant dense<0.000000e+00> : vector<256x8xf32>
    %171 = tpu.matmul %168, %170, %cst_176 {dimension_numbers = #tpu.dot_dimension_numbers<[1], [0], [0], [1], [0, 0, 1, 1], [], []>} : vector<256x8xbf16>, vector<8x8xbf16>, vector<256x8xf32> -> vector<256x8xf32>
    %172 = arith.addf %166, %171 : vector<256x8xf32>
    %c1_177 = arith.constant 1 : index
    %c7_178 = arith.constant 7 : index
    %c0_179 = arith.constant 0 : index
    %173 = vector.load %arg10[%c1_177, %c7_178, %c0_179] : memref<18x25x8xbf16, #tpu.memory_space<vmem>>, vector<16x16x8xbf16>
    %174 = vector.shape_cast %173 : vector<16x16x8xbf16> to vector<256x8xbf16>
    %c3_180 = arith.constant 3 : index
    %c0_181 = arith.constant 0 : index
    %c0_182 = arith.constant 0 : index
    %175 = vector.load %arg6[%c3_180, %c0_181, %c0_182] : memref<9x8x8xbf16, #tpu.memory_space<vmem>>, vector<1x8x8xbf16>
    %176 = vector.shape_cast %175 : vector<1x8x8xbf16> to vector<8x8xbf16>
    %cst_183 = arith.constant dense<0.000000e+00> : vector<256x8xf32>
    %177 = tpu.matmul %174, %176, %cst_183 {dimension_numbers = #tpu.dot_dimension_numbers<[1], [0], [0], [1], [0, 0, 1, 1], [], []>} : vector<256x8xbf16>, vector<8x8xbf16>, vector<256x8xf32> -> vector<256x8xf32>
    %178 = arith.addf %172, %177 : vector<256x8xf32>
    %c1_184 = arith.constant 1 : index
    %c8_185 = arith.constant 8 : index
    %c0_186 = arith.constant 0 : index
    %179 = vector.load %arg10[%c1_184, %c8_185, %c0_186] : memref<18x25x8xbf16, #tpu.memory_space<vmem>>, vector<16x16x8xbf16>
    %180 = vector.shape_cast %179 : vector<16x16x8xbf16> to vector<256x8xbf16>
    %c4_187 = arith.constant 4 : index
    %c0_188 = arith.constant 0 : index
    %c0_189 = arith.constant 0 : index
    %181 = vector.load %arg6[%c4_187, %c0_188, %c0_189] : memref<9x8x8xbf16, #tpu.memory_space<vmem>>, vector<1x8x8xbf16>
    %182 = vector.shape_cast %181 : vector<1x8x8xbf16> to vector<8x8xbf16>
    %cst_190 = arith.constant dense<0.000000e+00> : vector<256x8xf32>
    %183 = tpu.matmul %180, %182, %cst_190 {dimension_numbers = #tpu.dot_dimension_numbers<[1], [0], [0], [1], [0, 0, 1, 1], [], []>} : vector<256x8xbf16>, vector<8x8xbf16>, vector<256x8xf32> -> vector<256x8xf32>
    %184 = arith.addf %178, %183 : vector<256x8xf32>
    %c1_191 = arith.constant 1 : index
    %c9_192 = arith.constant 9 : index
    %c0_193 = arith.constant 0 : index
    %185 = vector.load %arg10[%c1_191, %c9_192, %c0_193] : memref<18x25x8xbf16, #tpu.memory_space<vmem>>, vector<16x16x8xbf16>
    %186 = vector.shape_cast %185 : vector<16x16x8xbf16> to vector<256x8xbf16>
    %c5_194 = arith.constant 5 : index
    %c0_195 = arith.constant 0 : index
    %c0_196 = arith.constant 0 : index
    %187 = vector.load %arg6[%c5_194, %c0_195, %c0_196] : memref<9x8x8xbf16, #tpu.memory_space<vmem>>, vector<1x8x8xbf16>
    %188 = vector.shape_cast %187 : vector<1x8x8xbf16> to vector<8x8xbf16>
    %cst_197 = arith.constant dense<0.000000e+00> : vector<256x8xf32>
    %189 = tpu.matmul %186, %188, %cst_197 {dimension_numbers = #tpu.dot_dimension_numbers<[1], [0], [0], [1], [0, 0, 1, 1], [], []>} : vector<256x8xbf16>, vector<8x8xbf16>, vector<256x8xf32> -> vector<256x8xf32>
    %190 = arith.addf %184, %189 : vector<256x8xf32>
    %c2_198 = arith.constant 2 : index
    %c7_199 = arith.constant 7 : index
    %c0_200 = arith.constant 0 : index
    %191 = vector.load %arg10[%c2_198, %c7_199, %c0_200] : memref<18x25x8xbf16, #tpu.memory_space<vmem>>, vector<16x16x8xbf16>
    %192 = vector.shape_cast %191 : vector<16x16x8xbf16> to vector<256x8xbf16>
    %c6_201 = arith.constant 6 : index
    %c0_202 = arith.constant 0 : index
    %c0_203 = arith.constant 0 : index
    %193 = vector.load %arg6[%c6_201, %c0_202, %c0_203] : memref<9x8x8xbf16, #tpu.memory_space<vmem>>, vector<1x8x8xbf16>
    %194 = vector.shape_cast %193 : vector<1x8x8xbf16> to vector<8x8xbf16>
    %cst_204 = arith.constant dense<0.000000e+00> : vector<256x8xf32>
    %195 = tpu.matmul %192, %194, %cst_204 {dimension_numbers = #tpu.dot_dimension_numbers<[1], [0], [0], [1], [0, 0, 1, 1], [], []>} : vector<256x8xbf16>, vector<8x8xbf16>, vector<256x8xf32> -> vector<256x8xf32>
    %196 = arith.addf %190, %195 : vector<256x8xf32>
    %c2_205 = arith.constant 2 : index
    %c8_206 = arith.constant 8 : index
    %c0_207 = arith.constant 0 : index
    %197 = vector.load %arg10[%c2_205, %c8_206, %c0_207] : memref<18x25x8xbf16, #tpu.memory_space<vmem>>, vector<16x16x8xbf16>
    %198 = vector.shape_cast %197 : vector<16x16x8xbf16> to vector<256x8xbf16>
    %c7_208 = arith.constant 7 : index
    %c0_209 = arith.constant 0 : index
    %c0_210 = arith.constant 0 : index
    %199 = vector.load %arg6[%c7_208, %c0_209, %c0_210] : memref<9x8x8xbf16, #tpu.memory_space<vmem>>, vector<1x8x8xbf16>
    %200 = vector.shape_cast %199 : vector<1x8x8xbf16> to vector<8x8xbf16>
    %cst_211 = arith.constant dense<0.000000e+00> : vector<256x8xf32>
    %201 = tpu.matmul %198, %200, %cst_211 {dimension_numbers = #tpu.dot_dimension_numbers<[1], [0], [0], [1], [0, 0, 1, 1], [], []>} : vector<256x8xbf16>, vector<8x8xbf16>, vector<256x8xf32> -> vector<256x8xf32>
    %202 = arith.addf %196, %201 : vector<256x8xf32>
    %c2_212 = arith.constant 2 : index
    %c9_213 = arith.constant 9 : index
    %c0_214 = arith.constant 0 : index
    %203 = vector.load %arg10[%c2_212, %c9_213, %c0_214] : memref<18x25x8xbf16, #tpu.memory_space<vmem>>, vector<16x16x8xbf16>
    %204 = vector.shape_cast %203 : vector<16x16x8xbf16> to vector<256x8xbf16>
    %c8_215 = arith.constant 8 : index
    %c0_216 = arith.constant 0 : index
    %c0_217 = arith.constant 0 : index
    %205 = vector.load %arg6[%c8_215, %c0_216, %c0_217] : memref<9x8x8xbf16, #tpu.memory_space<vmem>>, vector<1x8x8xbf16>
    %206 = vector.shape_cast %205 : vector<1x8x8xbf16> to vector<8x8xbf16>
    %cst_218 = arith.constant dense<0.000000e+00> : vector<256x8xf32>
    %207 = tpu.matmul %204, %206, %cst_218 {dimension_numbers = #tpu.dot_dimension_numbers<[1], [0], [0], [1], [0, 0, 1, 1], [], []>} : vector<256x8xbf16>, vector<8x8xbf16>, vector<256x8xf32> -> vector<256x8xf32>
    %208 = arith.addf %202, %207 : vector<256x8xf32>
    %c0_219 = arith.constant 0 : index
    %c0_220 = arith.constant 0 : index
    %209 = vector.load %arg7[%c0_219, %c0_220] : memref<1x8xf32, #tpu.memory_space<vmem>>, vector<1x8xf32>
    %210 = vector.broadcast %209 : vector<1x8xf32> to vector<256x8xf32>
    %211 = arith.mulf %208, %210 : vector<256x8xf32>
    %c0_221 = arith.constant 0 : index
    %c0_222 = arith.constant 0 : index
    %212 = vector.load %arg8[%c0_221, %c0_222] : memref<1x8xf32, #tpu.memory_space<vmem>>, vector<1x8xf32>
    %213 = vector.broadcast %212 : vector<1x8xf32> to vector<256x8xf32>
    %214 = arith.addf %211, %213 : vector<256x8xf32>
    %cst_223 = arith.constant 0.000000e+00 : f32
    %215 = vector.broadcast %cst_223 : f32 to vector<256x8xf32>
    %216 = arith.maximumf %214, %215 : vector<256x8xf32>
    %217 = vector.shape_cast %216 : vector<256x8xf32> to vector<16x16x8xf32>
    %218 = arith.truncf %217 : vector<16x16x8xf32> to vector<16x16x8xbf16>
    %c0_224 = arith.constant 0 : index
    %c0_225 = arith.constant 0 : index
    %c0_226 = arith.constant 0 : index
    %c0_227 = arith.constant 0 : index
    %219 = vector.load %arg9[%c0_224, %c0_225, %c0_226, %c0_227] : memref<1x16x16x8xbf16, #tpu.memory_space<vmem>>, vector<1x16x16x8xbf16>
    %220 = vector.shape_cast %219 : vector<1x16x16x8xbf16> to vector<16x16x8xbf16>
    %221 = vector.shape_cast %218 : vector<16x16x8xbf16> to vector<1x16x16x8xbf16>
    tpu.vector_store %arg9[%c0_224, %c0_225, %c0_226, %c0_227], %221 {strides = array<i32>} : memref<1x16x16x8xbf16, #tpu.memory_space<vmem>>, vector<1x16x16x8xbf16>,
    return
  }
  func.func @transform_0(%arg0: i32, %arg1: i32) -> (i32, i32, i32, i32) {
    %c0_i32 = arith.constant 0 : i32
    %c0_i32_0 = arith.constant 0 : i32
    %c0_i32_1 = arith.constant 0 : i32
    return %arg0, %arg1, %c0_i32, %c0_i32_0 : i32, i32, i32, i32
  }
  func.func @transform_1(%arg0: i32, %arg1: i32) -> (i32, i32, i32) {
    %c0_i32 = arith.constant 0 : i32
    %c0_i32_0 = arith.constant 0 : i32
    %c0_i32_1 = arith.constant 0 : i32
    %c0_i32_2 = arith.constant 0 : i32
    return %c0_i32, %c0_i32_0, %c0_i32_1 : i32, i32, i32
  }
  func.func @transform_2(%arg0: i32, %arg1: i32) -> (i32, i32) {
    %c0_i32 = arith.constant 0 : i32
    %c0_i32_0 = arith.constant 0 : i32
    %c0_i32_1 = arith.constant 0 : i32
    return %c0_i32, %c0_i32_0 : i32, i32
  }
  func.func @transform_3(%arg0: i32, %arg1: i32) -> (i32, i32) {
    %c0_i32 = arith.constant 0 : i32
    %c0_i32_0 = arith.constant 0 : i32
    %c0_i32_1 = arith.constant 0 : i32
    return %c0_i32, %c0_i32_0 : i32, i32
  }
  func.func @transform_4(%arg0: i32, %arg1: i32) -> (i32, i32, i32) {
    %c0_i32 = arith.constant 0 : i32
    %c0_i32_0 = arith.constant 0 : i32
    %c0_i32_1 = arith.constant 0 : i32
    %c0_i32_2 = arith.constant 0 : i32
    return %c0_i32, %c0_i32_0, %c0_i32_1 : i32, i32, i32
  }
  func.func @transform_5(%arg0: i32, %arg1: i32) -> (i32, i32) {
    %c0_i32 = arith.constant 0 : i32
    %c0_i32_0 = arith.constant 0 : i32
    %c0_i32_1 = arith.constant 0 : i32
    return %c0_i32, %c0_i32_0 : i32, i32
  }
  func.func @transform_6(%arg0: i32, %arg1: i32) -> (i32, i32) {
    %c0_i32 = arith.constant 0 : i32
    %c0_i32_0 = arith.constant 0 : i32
    %c0_i32_1 = arith.constant 0 : i32
    return %c0_i32, %c0_i32_0 : i32, i32
  }
  func.func @transform_7(%arg0: i32, %arg1: i32) -> (i32, i32, i32, i32) {
    %c0_i32 = arith.constant 0 : i32
    %c0_i32_0 = arith.constant 0 : i32
    %c0_i32_1 = arith.constant 0 : i32
    return %arg0, %arg1, %c0_i32, %c0_i32_0 : i32, i32, i32, i32
  }
}

</mosaic_0001>

<llo_original>
// kernel: a_call__.1
$region0: #{a_call__.1}
  #allocation0 [shape = 'u32[]', space=smem, size = 0x4, offset = 0x4, fixed_abs, tag = 'smem constant byte address 0x4 - core index']
  #allocation1 [shape = 'u32[144,128]{1,0:T(1,128)}', space=vmem, size = 0x12000, scoped, tag = 'internal scratch']
  #allocation2 [shape = 'bf16[18,25,8]{2,1,0:T(8,128)(2,1)}', space=vmem, size = 0x24000, scoped, tag = 'scratch operand']
  %s0 = inlined_call_operand.vmem [shape: bf16[2,20,18,4], index: 0, kind: input, shape index: {}]
  %s1 = inlined_call_operand.vmem [shape: bf16[9,4,8], index: 1, kind: input, shape index: {}]
  %s2 = inlined_call_operand.vmem [shape: f32[1,8], index: 2, kind: input, shape index: {}, may-alias: {2,5}]
  %s3 = inlined_call_operand.vmem [shape: f32[1,8], index: 3, kind: input, shape index: {}]
  %s4 = inlined_call_operand.vmem [shape: bf16[9,8,8], index: 4, kind: input, shape index: {}]
  %s5 = inlined_call_operand.vmem [shape: f32[1,8], index: 5, kind: input, shape index: {}, may-alias: {2,5}]
  %s6 = inlined_call_operand.vmem [shape: f32[1,8], index: 6, kind: input, shape index: {}]
  %s7 = inlined_call_operand.vmem [shape: bf16[2,16,16,8], index: 7, kind: output, shape index: {}]
  %s8 = sld [smem:[#allocation0]]
  $region65: #{a_call__.1} parent=0
    _
  %s10 = ssub.s32 1, %s8
  %s11 = scalar_select 0, %s10, %s8
  loop: start=0, step=1, limit=4
  $region2: #{a_call__.1} parent=0 // loop_pre_header
    _
  $region3: #{a_call__.1} parent=0 // loop_header
    %s13 = sphi 0, %s17
    %p14 = scmp.ge.s32.totalorder %s13, 4
    %s20 = sphi 0, %s32
    %s21 = sphi 0, %s28
    %s22 = sphi 0, %s20
    %s23 = sphi 0, %s21
    %s24 = sphi 0, %s22
    %s25 = sphi 0, %s23
    %s37 = sphi 0, %s39
    %s40 = sphi 0, %s37
    %s41 = sphi 0, %s40
    %s57 = sphi 0, %s41
    %s61 = sphi 0, %s61
    %s63 = sphi 0, %s61
    %s64 = sphi 0, %s63
    %s78 = sphi 0, %s64
    %s82 = sphi 0, %s82
    %s84 = sphi 0, %s82
    %s85 = sphi 0, %s84
    %s99 = sphi 0, %s85
    %s103 = sphi 0, %s103
    %s105 = sphi 0, %s103
    %s106 = sphi 0, %s105
    %s120 = sphi 0, %s106
    %s124 = sphi 0, %s124
    %s126 = sphi 0, %s124
    %s127 = sphi 0, %s126
    %s141 = sphi 0, %s127
    %s145 = sphi 0, %s145
    %s147 = sphi 0, %s145
    %s148 = sphi 0, %s147
    %s162 = sphi 0, %s148
    %s166 = sphi 0, %s166
    %s168 = sphi 0, %s166
    %s169 = sphi 0, %s168
    %s183 = sphi 0, %s169
    %s191 = sphi 0, %s193
    %s194 = sphi 0, %s191
    %s195 = sphi 0, %s194
    %s211 = sphi 0, %s195
  $region4: #{a_call__.1} parent=0 // loop_header_branch
    %16 = sbr.rel (%p14) target = $region8
  $region5: #{a_call__.1} parent=0 // loop_body
    %s18 = ssub.s32 %s13, 1
    %s19 = ssub.s32 %s13, 2
    %s26 = sadd.s32 1, %s21
    %p27 = scmp.ge.s32.totalorder %s26, 1
    %s28 = scalar_select %p27, 0, %s26
    %s29 = sadd.s32 1, %s20
    %s30 = scalar_select %p27, %s29, %s20
    %p31 = scmp.ge.s32.totalorder %s30, 2
    %s32 = scalar_select %p31, 0, %s30
    %s33 = ssub.s32 %s20, %s32
    %s34 = ssub.s32 %s21, %s28
    %s35 = sor.u32 %s33, %s34
    %p36 = scmp.eq.s32.totalorder %s35, 0
    %s38 = sadd.s32 %s37, 1
    %s39 = scalar_select %p36, %s37, %s38
    %p42 = pneg %p36
    %p43 = scmp.eq.s32.totalorder %s13, 1
    %p44 = por %p42, %p43
    %p45 = scmp.ne.s32.totalorder %s37, %s40
    %p46 = scmp.eq.s32.totalorder %s13, 0
    %p47 = por %p45, %p46
    %p48 = scmp.ne.s32.totalorder %s37, %s40
    %p49 = scmp.eq.s32.totalorder %s18, 1
    %p50 = por %p48, %p49
    %p51 = scmp.ne.s32.totalorder %s40, %s41
    %p52 = scmp.eq.s32.totalorder %s18, 0
    %p53 = por %p51, %p52
    %p54 = scmp.ne.s32.totalorder %s40, %s41
    %p55 = scmp.eq.s32.totalorder %s19, 1
    %p56 = por %p54, %p55
    %p58 = scmp.ne.s32.totalorder %s41, %s57
    %p59 = scmp.eq.s32.totalorder %s19, 0
    %p60 = por %p58, %p59
    %s62 = sadd.s32 %s61, 1
    %p65 = scmp.eq.s32.totalorder %s13, 1
    %p66 = scmp.ne.s32.totalorder %s61, %s63
    %p67 = scmp.eq.s32.totalorder %s13, 0
    %p68 = por %p66, %p67
    %p69 = scmp.ne.s32.totalorder %s61, %s63
    %p70 = scmp.eq.s32.totalorder %s18, 1
    %p71 = por %p69, %p70
    %p72 = scmp.ne.s32.totalorder %s63, %s64
    %p73 = scmp.eq.s32.totalorder %s18, 0
    %p74 = por %p72, %p73
    %p75 = scmp.ne.s32.totalorder %s63, %s64
    %p76 = scmp.eq.s32.totalorder %s19, 1
    %p77 = por %p75, %p76
    %p79 = scmp.ne.s32.totalorder %s64, %s78
    %p80 = scmp.eq.s32.totalorder %s19, 0
    %p81 = por %p79, %p80
    %s83 = sadd.s32 %s82, 1
    %p86 = scmp.eq.s32.totalorder %s13, 1
    %p87 = scmp.ne.s32.totalorder %s82, %s84
    %p88 = scmp.eq.s32.totalorder %s13, 0
    %p89 = por %p87, %p88
    %p90 = scmp.ne.s32.totalorder %s82, %s84
    %p91 = scmp.eq.s32.totalorder %s18, 1
    %p92 = por %p90, %p91
    %p93 = scmp.ne.s32.totalorder %s84, %s85
    %p94 = scmp.eq.s32.totalorder %s18, 0
    %p95 = por %p93, %p94
    %p96 = scmp.ne.s32.totalorder %s84, %s85
    %p97 = scmp.eq.s32.totalorder %s19, 1
    %p98 = por %p96, %p97
    %p100 = scmp.ne.s32.totalorder %s85, %s99
    %p101 = scmp.eq.s32.totalorder %s19, 0
    %p102 = por %p100, %p101
    %s104 = sadd.s32 %s103, 1
    %p107 = scmp.eq.s32.totalorder %s13, 1
    %p108 = scmp.ne.s32.totalorder %s103, %s105
    %p109 = scmp.eq.s32.totalorder %s13, 0
    %p110 = por %p108, %p109
    %p111 = scmp.ne.s32.totalorder %s103, %s105
    %p112 = scmp.eq.s32.totalorder %s18, 1
    %p113 = por %p111, %p112
    %p114 = scmp.ne.s32.totalorder %s105, %s106
    %p115 = scmp.eq.s32.totalorder %s18, 0
    %p116 = por %p114, %p115
    %p117 = scmp.ne.s32.totalorder %s105, %s106
    %p118 = scmp.eq.s32.totalorder %s19, 1
    %p119 = por %p117, %p118
    %p121 = scmp.ne.s32.totalorder %s106, %s120
    %p122 = scmp.eq.s32.totalorder %s19, 0
    %p123 = por %p121, %p122
    %s125 = sadd.s32 %s124, 1
    %p128 = scmp.eq.s32.totalorder %s13, 1
    %p129 = scmp.ne.s32.totalorder %s124, %s126
    %p130 = scmp.eq.s32.totalorder %s13, 0
    %p131 = por %p129, %p130
    %p132 = scmp.ne.s32.totalorder %s124, %s126
    %p133 = scmp.eq.s32.totalorder %s18, 1
    %p134 = por %p132, %p133
    %p135 = scmp.ne.s32.totalorder %s126, %s127
    %p136 = scmp.eq.s32.totalorder %s18, 0
    %p137 = por %p135, %p136
    %p138 = scmp.ne.s32.totalorder %s126, %s127
    %p139 = scmp.eq.s32.totalorder %s19, 1
    %p140 = por %p138, %p139
    %p142 = scmp.ne.s32.totalorder %s127, %s141
    %p143 = scmp.eq.s32.totalorder %s19, 0
    %p144 = por %p142, %p143
    %s146 = sadd.s32 %s145, 1
    %p149 = scmp.eq.s32.totalorder %s13, 1
    %p150 = scmp.ne.s32.totalorder %s145, %s147
    %p151 = scmp.eq.s32.totalorder %s13, 0
    %p152 = por %p150, %p151
    %p153 = scmp.ne.s32.totalorder %s145, %s147
    %p154 = scmp.eq.s32.totalorder %s18, 1
    %p155 = por %p153, %p154
    %p156 = scmp.ne.s32.totalorder %s147, %s148
    %p157 = scmp.eq.s32.totalorder %s18, 0
    %p158 = por %p156, %p157
    %p159 = scmp.ne.s32.totalorder %s147, %s148
    %p160 = scmp.eq.s32.totalorder %s19, 1
    %p161 = por %p159, %p160
    %p163 = scmp.ne.s32.totalorder %s148, %s162
    %p164 = scmp.eq.s32.totalorder %s19, 0
    %p165 = por %p163, %p164
    %s167 = sadd.s32 %s166, 1
    %p170 = scmp.eq.s32.totalorder %s13, 1
    %p171 = scmp.ne.s32.totalorder %s166, %s168
    %p172 = scmp.eq.s32.totalorder %s13, 0
    %p173 = por %p171, %p172
    %p174 = scmp.ne.s32.totalorder %s166, %s168
    %p175 = scmp.eq.s32.totalorder %s18, 1
    %p176 = por %p174, %p175
    %p177 = scmp.ne.s32.totalorder %s168, %s169
    %p178 = scmp.eq.s32.totalorder %s18, 0
    %p179 = por %p177, %p178
    %p180 = scmp.ne.s32.totalorder %s168, %s169
    %p181 = scmp.eq.s32.totalorder %s19, 1
    %p182 = por %p180, %p181
    %p184 = scmp.ne.s32.totalorder %s169, %s183
    %p185 = scmp.eq.s32.totalorder %s19, 0
    %p186 = por %p184, %p185
    %s187 = ssub.s32 %s20, %s32
    %s188 = ssub.s32 %s21, %s28
    %s189 = sor.u32 %s187, %s188
    %p190 = scmp.eq.s32.totalorder %s189, 0
    %s192 = sadd.s32 %s191, 1
    %s193 = scalar_select %p190, %s191, %s192
    %p196 = pneg %p190
    %p197 = scmp.eq.s32.totalorder %s13, 1
    %p198 = por %p196, %p197
    %p199 = scmp.ne.s32.totalorder %s191, %s194
    %p200 = scmp.eq.s32.totalorder %s13, 0
    %p201 = por %p199, %p200
    %p202 = scmp.ne.s32.totalorder %s191, %s194
    %p203 = scmp.eq.s32.totalorder %s18, 1
    %p204 = por %p202, %p203
    %p205 = scmp.ne.s32.totalorder %s194, %s195
    %p206 = scmp.eq.s32.totalorder %s18, 0
    %p207 = por %p205, %p206
    %p208 = scmp.ne.s32.totalorder %s194, %s195
    %p209 = scmp.eq.s32.totalorder %s19, 1
    %p210 = por %p208, %p209
    %p212 = scmp.ne.s32.totalorder %s195, %s211
    %p213 = scmp.eq.s32.totalorder %s19, 0
    %p214 = por %p212, %p213
    %p215 = scmp.le.s32.totalorder 1, %s13
    %p216 = scmp.lt.s32.totalorder %s13, 3
    %p217 = pnand %p215, %p216
    %p218 = pneg %p217
    // Predicated region
    $region9: #{a_call__.1} parent=5 // pred_check
      _
    $region10: #{a_call__.1} parent=5 // pred_check_branch
      %220 = sbr.rel (%p217) target = $region12
    $region11: #{a_call__.1} parent=5 // pred_region
      %s221 = ssub.s32 %s13, 1
      // Predicated region
      $region13: #{a_call__.1} parent=11 // pred_check
        %p222 = pneg %p74
      $region14: #{a_call__.1} parent=11 // pred_check_branch
        %224 = sbr.rel (%p222) target = $region16
      $region15: #{a_call__.1} parent=11 // pred_region
        _
      $region16: #{a_call__.1} parent=11 // pred_fallthru
        _
      // Predicated region
      $region17: #{a_call__.1} parent=11 // pred_check
        %p225 = pneg %p95
      $region18: #{a_call__.1} parent=11 // pred_check_branch
        %227 = sbr.rel (%p225) target = $region20
      $region19: #{a_call__.1} parent=11 // pred_region
        _
      $region20: #{a_call__.1} parent=11 // pred_fallthru
        _
      // Predicated region
      $region21: #{a_call__.1} parent=11 // pred_check
        %p228 = pneg %p116
      $region22: #{a_call__.1} parent=11 // pred_check_branch
        %230 = sbr.rel (%p228) target = $region24
      $region23: #{a_call__.1} parent=11 // pred_region
        _
      $region24: #{a_call__.1} parent=11 // pred_fallthru
        _
      // Predicated region
      $region25: #{a_call__.1} parent=11 // pred_check
        %p231 = pneg %p137
      $region26: #{a_call__.1} parent=11 // pred_check_branch
        %233 = sbr.rel (%p231) target = $region28
      $region27: #{a_call__.1} parent=11 // pred_region
        _
      $region28: #{a_call__.1} parent=11 // pred_fallthru
        _
      // Predicated region
      $region29: #{a_call__.1} parent=11 // pred_check
        %p234 = pneg %p158
      $region30: #{a_call__.1} parent=11 // pred_check_branch
        %236 = sbr.rel (%p234) target = $region32
      $region31: #{a_call__.1} parent=11 // pred_region
        _
      $region32: #{a_call__.1} parent=11 // pred_fallthru
        _
      // Predicated region
      $region33: #{a_call__.1} parent=11 // pred_check
        %p237 = pneg %p179
      $region34: #{a_call__.1} parent=11 // pred_check_branch
        %239 = sbr.rel (%p237) target = $region36
      $region35: #{a_call__.1} parent=11 // pred_region
        _
      $region36: #{a_call__.1} parent=11 // pred_fallthru
        _
    $region12: #{a_call__.1} parent=5 // pred_fallthru
      _
    %p240 = scmp.lt.s32.totalorder %s13, 2
    // Predicated region
    $region37: #{a_call__.1} parent=5 // pred_check
      %p241 = pneg %p240
    $region38: #{a_call__.1} parent=5 // pred_check_branch
      %243 = sbr.rel (%p241) target = $region40
    $region39: #{a_call__.1} parent=5 // pred_region
      // Predicated region
      $region41: #{a_call__.1} parent=39 // pred_check
        %p244 = pneg %p47
      $region42: #{a_call__.1} parent=39 // pred_check_branch
        %246 = sbr.rel (%p244) target = $region44
      $region43: #{a_call__.1} parent=39 // pred_region
        %s247 = smul.u32 20, %s21
        %p248 = scmp.lt.s32.totalorder %s20, 1
        %s249 = scalar_select %p248, %s20, 1
        %p250 = scmp.lt.s32.totalorder %s247, 19
        %s251 = scalar_select %p250, %s247, 19
        %s252 = smul.addr %s251, 3
        %s253 = smul.addr %s249, 60
        %s254 = sadd.s32 %s252, %s253
        %s255 = smul.addr %s254, 4
        %s256 = scalar_lea.vmem %s0, %s255
        %s257 = smul.u32 20, %s21
      $region44: #{a_call__.1} parent=39 // pred_fallthru
        _
    $region40: #{a_call__.1} parent=5 // pred_fallthru
      _
    %p258 = scmp.le.s32.totalorder 1, %s13
    %p259 = scmp.lt.s32.totalorder %s13, 3
    %p260 = pnand %p258, %p259
    %p261 = pneg %p260
    // Predicated region
    $region45: #{a_call__.1} parent=5 // pred_check
      _
    $region46: #{a_call__.1} parent=5 // pred_check_branch
      %263 = sbr.rel (%p260) target = $region48
    $region47: #{a_call__.1} parent=5 // pred_region
      %s264 = ssub.s32 %s13, 1
      %s265 = smul.u32 20, %s23
      %p266 = scmp.lt.s32.totalorder %s22, 1
      %s267 = scalar_select %p266, %s22, 1
      %p268 = scmp.lt.s32.totalorder %s265, 19
      %s269 = scalar_select %p268, %s265, 19
      %s270 = smul.addr %s269, 3
      %s271 = smul.addr %s267, 60
      %s272 = sadd.s32 %s270, %s271
      %s273 = smul.addr %s272, 4
      %s274 = scalar_lea.vmem %s0, %s273
      %p275 = pneg %p53
      %p276 = pneg %p50
      %p277 = pneg %p74
      %p278 = pneg %p71
      %p279 = pneg %p95
      %p280 = pneg %p92
      %p281 = pneg %p116
      %p282 = pneg %p113
      %p283 = pneg %p137
      %p284 = pneg %p134
      %p285 = pneg %p158
      %p286 = pneg %p155
      %p287 = pneg %p179
      %p288 = pneg %p176
      %p289 = pneg %p207
      %p290 = pneg %p204
      %s291 = smul.u32 16, %s23
      %p292 = scmp.lt.s32.totalorder %s22, 1
      %s293 = scalar_select %p292, %s22, 1
      %p294 = scmp.lt.s32.totalorder %s291, 15
      %s295 = scalar_select %p294, %s291, 15
      %s296 = smul.addr %s295, 2
      %s297 = smul.addr %s293, 32
      %s298 = sadd.s32 %s296, %s297
      %s299 = smul.addr %s298, 4
      %s300 = scalar_lea.vmem %s7, %s299
      %s301 = smul.u32 20, %s23
      %p302 = scmp.lt.s32.totalorder %s22, 1
      %s303 = scalar_select %p302, %s22, 1
      %p304 = scmp.lt.s32.totalorder %s301, 19
      %s305 = scalar_select %p304, %s301, 19
      %s306 = smul.addr %s305, 3
      %s307 = smul.addr %s303, 60
      %s308 = sadd.s32 %s306, %s307
      %s309 = smul.addr %s308, 4
      %s310 = scalar_lea.vmem %s0, %s309
      %s311 = smul.u32 20, %s23
      %s312 = smul.u32 16, %s23
      %p313 = scmp.lt.s32.totalorder %s22, 1
      %s314 = scalar_select %p313, %s22, 1
      %p315 = scmp.lt.s32.totalorder %s312, 15
      %s316 = scalar_select %p315, %s312, 15
      %s317 = smul.addr %s316, 2
      %s318 = smul.addr %s314, 32
      %s319 = sadd.s32 %s317, %s318
      %s320 = smul.addr %s319, 4
      %s321 = scalar_lea.vmem %s7, %s320
      %s322 = smul.u32 16, %s23
      %v324 = vld [vmem:[%s310] sm:$0xf]
      %v325 = vld [vmem:[%s310 + $0x4] sm:$0xf]
      %v326 = vld [vmem:[%s310 + $0xc] sm:$0xf]
      %v327 = vld [vmem:[%s310 + $0x10] sm:$0xf]
      %v328 = vld [vmem:[%s310 + $0x18] sm:$0xf]
      %v329 = vld [vmem:[%s310 + $0x1c] sm:$0xf]
      %v330 = vld [vmem:[%s310 + $0x24] sm:$0xf]
      %v331 = vld [vmem:[%s310 + $0x28] sm:$0xf]
      %v332 = vld [vmem:[%s310 + $0x30] sm:$0xf]
      %v333 = vld [vmem:[%s310 + $0x34] sm:$0xf]
      %v334 = vld [vmem:[%s310 + $0x3c] sm:$0xf]
      %v335 = vld [vmem:[%s310 + $0x40] sm:$0xf]
      %v336 = vld [vmem:[%s310 + $0x48] sm:$0xf]
      %v337 = vld [vmem:[%s310 + $0x4c] sm:$0xf]
      %v338 = vld [vmem:[%s310 + $0x54] sm:$0xf]
      %v339 = vld [vmem:[%s310 + $0x58] sm:$0xf]
      %v340 = vld [vmem:[%s310 + $0x60] sm:$0xf]
      %v341 = vld [vmem:[%s310 + $0x64] sm:$0xf]
      %v342 = vld [vmem:[%s310 + $0x6c] sm:$0xf]
      %v343 = vld [vmem:[%s310 + $0x70] sm:$0xf]
      %v344 = vld [vmem:[%s310 + $0x78] sm:$0xf]
      %v345 = vld [vmem:[%s310 + $0x7c] sm:$0xf]
      %v346 = vld [vmem:[%s310 + $0x84] sm:$0xf]
      %v347 = vld [vmem:[%s310 + $0x88] sm:$0xf]
      %v348 = vld [vmem:[%s310 + $0x90] sm:$0xf]
      %v349 = vld [vmem:[%s310 + $0x94] sm:$0xf]
      %v350 = vld [vmem:[%s310 + $0x9c] sm:$0xf]
      %v351 = vld [vmem:[%s310 + $0xa0] sm:$0xf]
      %v352 = vld [vmem:[%s310 + $0xa8] sm:$0xf]
      %v353 = vld [vmem:[%s310 + $0xac] sm:$0xf]
      %v354 = vld [vmem:[%s310 + $0xb4] sm:$0xf]
      %v355 = vld [vmem:[%s310 + $0xb8] sm:$0xf]
      %v356 = vld [vmem:[%s1] sm:$0x3]
      %v357 = vld [vmem:[%s310 + $0x8] sm:$0x1]
      %v358 = vld [vmem:[%s310 + $0x14] sm:$0x1]
      %v359 = vld [vmem:[%s310 + $0x20] sm:$0x1]
      %v360 = vld [vmem:[%s310 + $0x2c] sm:$0x1]
      %v361 = vld [vmem:[%s310 + $0x38] sm:$0x1]
      %v362 = vld [vmem:[%s310 + $0x44] sm:$0x1]
      %v363 = vld [vmem:[%s310 + $0x50] sm:$0x1]
      %v364 = vld [vmem:[%s310 + $0x5c] sm:$0x1]
      %v365 = vld [vmem:[%s310 + $0x68] sm:$0x1]
      %v366 = vld [vmem:[%s310 + $0x74] sm:$0x1]
      %v367 = vld [vmem:[%s310 + $0x80] sm:$0x1]
      %v368 = vld [vmem:[%s310 + $0x8c] sm:$0x1]
      %v369 = vld [vmem:[%s310 + $0x98] sm:$0x1]
      %v370 = vld [vmem:[%s310 + $0xa4] sm:$0x1]
      %v371 = vld [vmem:[%s310 + $0xb0] sm:$0x1]
      %v372 = vld [vmem:[%s310 + $0xbc] sm:$0x1]
      %vm373 = vsmask.f32 3328
      %vm374 = vsmask.f32 7440
      %vm375 = vmor %vm373, %vm374
      %v377 = vshrl.u32 %v324, 16
      %v379 = vrot.slane %v377, 4
      %v380 = vshll.u32 %v324, 16
      %v382 = vrot.slane %v380, 5
      %v383 = vor.u32 %v379, %v382
      %v384 = vrot.slane %v383, 4
      %v386 = vshll.u32 %v325, 16
      %v388 = vrot.slane %v386, 5
      %v389 = vsel %vm375, %v384, %v388
      %v390 = vshrl.u32 %v325, 16
      %v392 = vrot.slane %v390, 4
      %v393 = vor.u32 %v392, %v388
      %v394 = vrot.slane %v393, 4
      %v396 = vshll.u32 %v357, 16
      %v398 = vrot.slane %v396, 5
      %v399 = vsel %vm375, %v394, %v398
      %v401 = vshrl.u32 %v326, 16
      %v403 = vrot.slane %v401, 4
      %v404 = vshll.u32 %v326, 16
      %v406 = vrot.slane %v404, 5
      %v407 = vor.u32 %v403, %v406
      %v408 = vrot.slane %v407, 4
      %v410 = vshll.u32 %v327, 16
      %v412 = vrot.slane %v410, 5
      %v413 = vsel %vm375, %v408, %v412
      %v414 = vshrl.u32 %v327, 16
      %v416 = vrot.slane %v414, 4
      %v417 = vor.u32 %v416, %v412
      %v418 = vrot.slane %v417, 4
      %v420 = vshll.u32 %v358, 16
      %v422 = vrot.slane %v420, 5
      %v423 = vsel %vm375, %v418, %v422
      %v425 = vshrl.u32 %v328, 16
      %v427 = vrot.slane %v425, 4
      %v428 = vshll.u32 %v328, 16
      %v430 = vrot.slane %v428, 5
      %v431 = vor.u32 %v427, %v430
      %v432 = vrot.slane %v431, 4
      %v434 = vshll.u32 %v329, 16
      %v436 = vrot.slane %v434, 5
      %v437 = vsel %vm375, %v432, %v436
      %v438 = vshrl.u32 %v329, 16
      %v440 = vrot.slane %v438, 4
      %v441 = vor.u32 %v440, %v436
      %v442 = vrot.slane %v441, 4
      %v444 = vshll.u32 %v359, 16
      %v446 = vrot.slane %v444, 5
      %v447 = vsel %vm375, %v442, %v446
      %v449 = vshrl.u32 %v330, 16
      %v451 = vrot.slane %v449, 4
      %v452 = vshll.u32 %v330, 16
      %v454 = vrot.slane %v452, 5
      %v455 = vor.u32 %v451, %v454
      %v456 = vrot.slane %v455, 4
      %v458 = vshll.u32 %v331, 16
      %v460 = vrot.slane %v458, 5
      %v461 = vsel %vm375, %v456, %v460
      %v462 = vshrl.u32 %v331, 16
      %v464 = vrot.slane %v462, 4
      %v465 = vor.u32 %v464, %v460
      %v466 = vrot.slane %v465, 4
      %v468 = vshll.u32 %v360, 16
      %v470 = vrot.slane %v468, 5
      %v471 = vsel %vm375, %v466, %v470
      %v473 = vshrl.u32 %v332, 16
      %v475 = vrot.slane %v473, 4
      %v476 = vshll.u32 %v332, 16
      %v478 = vrot.slane %v476, 5
      %v479 = vor.u32 %v475, %v478
      %v480 = vrot.slane %v479, 4
      %v482 = vshll.u32 %v333, 16
      %v484 = vrot.slane %v482, 5
      %v485 = vsel %vm375, %v480, %v484
      %v486 = vshrl.u32 %v333, 16
      %v488 = vrot.slane %v486, 4
      %v489 = vor.u32 %v488, %v484
      %v490 = vrot.slane %v489, 4
      %v492 = vshll.u32 %v361, 16
      %v494 = vrot.slane %v492, 5
      %v495 = vsel %vm375, %v490, %v494
      %v497 = vshrl.u32 %v334, 16
      %v499 = vrot.slane %v497, 4
      %v500 = vshll.u32 %v334, 16
      %v502 = vrot.slane %v500, 5
      %v503 = vor.u32 %v499, %v502
      %v504 = vrot.slane %v503, 4
      %v506 = vshll.u32 %v335, 16
      %v508 = vrot.slane %v506, 5
      %v509 = vsel %vm375, %v504, %v508
      %v510 = vshrl.u32 %v335, 16
      %v512 = vrot.slane %v510, 4
      %v513 = vor.u32 %v512, %v508
      %v514 = vrot.slane %v513, 4
      %v516 = vshll.u32 %v362, 16
      %v518 = vrot.slane %v516, 5
      %v519 = vsel %vm375, %v514, %v518
      %v521 = vshrl.u32 %v336, 16
      %v523 = vrot.slane %v521, 4
      %v524 = vshll.u32 %v336, 16
      %v526 = vrot.slane %v524, 5
      %v527 = vor.u32 %v523, %v526
      %v528 = vrot.slane %v527, 4
      %v530 = vshll.u32 %v337, 16
      %v532 = vrot.slane %v530, 5
      %v533 = vsel %vm375, %v528, %v532
      %v534 = vshrl.u32 %v337, 16
      %v536 = vrot.slane %v534, 4
      %v537 = vor.u32 %v536, %v532
      %v538 = vrot.slane %v537, 4
      %v540 = vshll.u32 %v363, 16
      %v542 = vrot.slane %v540, 5
      %v543 = vsel %vm375, %v538, %v542
      %v545 = vshrl.u32 %v338, 16
      %v547 = vrot.slane %v545, 4
      %v548 = vshll.u32 %v338, 16
      %v550 = vrot.slane %v548, 5
      %v551 = vor.u32 %v547, %v550
      %v552 = vrot.slane %v551, 4
      %v554 = vshll.u32 %v339, 16
      %v556 = vrot.slane %v554, 5
      %v557 = vsel %vm375, %v552, %v556
      %v558 = vshrl.u32 %v339, 16
      %v560 = vrot.slane %v558, 4
      %v561 = vor.u32 %v560, %v556
      %v562 = vrot.slane %v561, 4
      %v564 = vshll.u32 %v364, 16
      %v566 = vrot.slane %v564, 5
      %v567 = vsel %vm375, %v562, %v566
      %v569 = vshrl.u32 %v340, 16
      %v571 = vrot.slane %v569, 4
      %v572 = vshll.u32 %v340, 16
      %v574 = vrot.slane %v572, 5
      %v575 = vor.u32 %v571, %v574
      %v576 = vrot.slane %v575, 4
      %v578 = vshll.u32 %v341, 16
      %v580 = vrot.slane %v578, 5
      %v581 = vsel %vm375, %v576, %v580
      %v582 = vshrl.u32 %v341, 16
      %v584 = vrot.slane %v582, 4
      %v585 = vor.u32 %v584, %v580
      %v586 = vrot.slane %v585, 4
      %v588 = vshll.u32 %v365, 16
      %v590 = vrot.slane %v588, 5
      %v591 = vsel %vm375, %v586, %v590
      %v593 = vshrl.u32 %v342, 16
      %v595 = vrot.slane %v593, 4
      %v596 = vshll.u32 %v342, 16
      %v598 = vrot.slane %v596, 5
      %v599 = vor.u32 %v595, %v598
      %v600 = vrot.slane %v599, 4
      %v602 = vshll.u32 %v343, 16
      %v604 = vrot.slane %v602, 5
      %v605 = vsel %vm375, %v600, %v604
      %v606 = vshrl.u32 %v343, 16
      %v608 = vrot.slane %v606, 4
      %v609 = vor.u32 %v608, %v604
      %v610 = vrot.slane %v609, 4
      %v612 = vshll.u32 %v366, 16
      %v614 = vrot.slane %v612, 5
      %v615 = vsel %vm375, %v610, %v614
      %v617 = vshrl.u32 %v344, 16
      %v619 = vrot.slane %v617, 4
      %v620 = vshll.u32 %v344, 16
      %v622 = vrot.slane %v620, 5
      %v623 = vor.u32 %v619, %v622
      %v624 = vrot.slane %v623, 4
      %v626 = vshll.u32 %v345, 16
      %v628 = vrot.slane %v626, 5
      %v629 = vsel %vm375, %v624, %v628
      %v630 = vshrl.u32 %v345, 16
      %v632 = vrot.slane %v630, 4
      %v633 = vor.u32 %v632, %v628
      %v634 = vrot.slane %v633, 4
      %v636 = vshll.u32 %v367, 16
      %v638 = vrot.slane %v636, 5
      %v639 = vsel %vm375, %v634, %v638
      %v641 = vshrl.u32 %v346, 16
      %v643 = vrot.slane %v641, 4
      %v644 = vshll.u32 %v346, 16
      %v646 = vrot.slane %v644, 5
      %v647 = vor.u32 %v643, %v646
      %v648 = vrot.slane %v647, 4
      %v650 = vshll.u32 %v347, 16
      %v652 = vrot.slane %v650, 5
      %v653 = vsel %vm375, %v648, %v652
      %v654 = vshrl.u32 %v347, 16
      %v656 = vrot.slane %v654, 4
      %v657 = vor.u32 %v656, %v652
      %v658 = vrot.slane %v657, 4
      %v660 = vshll.u32 %v368, 16
      %v662 = vrot.slane %v660, 5
      %v663 = vsel %vm375, %v658, %v662
      %v665 = vshrl.u32 %v348, 16
      %v667 = vrot.slane %v665, 4
      %v668 = vshll.u32 %v348, 16
      %v670 = vrot.slane %v668, 5
      %v671 = vor.u32 %v667, %v670
      %v672 = vrot.slane %v671, 4
      %v674 = vshll.u32 %v349, 16
      %v676 = vrot.slane %v674, 5
      %v677 = vsel %vm375, %v672, %v676
      %v678 = vshrl.u32 %v349, 16
      %v680 = vrot.slane %v678, 4
      %v681 = vor.u32 %v680, %v676
      %v682 = vrot.slane %v681, 4
      %v684 = vshll.u32 %v369, 16
      %v686 = vrot.slane %v684, 5
      %v687 = vsel %vm375, %v682, %v686
      %v689 = vshrl.u32 %v350, 16
      %v691 = vrot.slane %v689, 4
      %v692 = vshll.u32 %v350, 16
      %v694 = vrot.slane %v692, 5
      %v695 = vor.u32 %v691, %v694
      %v696 = vrot.slane %v695, 4
      %v698 = vshll.u32 %v351, 16
      %v700 = vrot.slane %v698, 5
      %v701 = vsel %vm375, %v696, %v700
      %v702 = vshrl.u32 %v351, 16
      %v704 = vrot.slane %v702, 4
      %v705 = vor.u32 %v704, %v700
      %v706 = vrot.slane %v705, 4
      %v708 = vshll.u32 %v370, 16
      %v710 = vrot.slane %v708, 5
      %v711 = vsel %vm375, %v706, %v710
      %v713 = vshrl.u32 %v352, 16
      %v715 = vrot.slane %v713, 4
      %v716 = vshll.u32 %v352, 16
      %v718 = vrot.slane %v716, 5
      %v719 = vor.u32 %v715, %v718
      %v720 = vrot.slane %v719, 4
      %v722 = vshll.u32 %v353, 16
      %v724 = vrot.slane %v722, 5
      %v725 = vsel %vm375, %v720, %v724
      %v726 = vshrl.u32 %v353, 16
      %v728 = vrot.slane %v726, 4
      %v729 = vor.u32 %v728, %v724
      %v730 = vrot.slane %v729, 4
      %v732 = vshll.u32 %v371, 16
      %v734 = vrot.slane %v732, 5
      %v735 = vsel %vm375, %v730, %v734
      %v737 = vshrl.u32 %v354, 16
      %v739 = vrot.slane %v737, 4
      %v740 = vshll.u32 %v354, 16
      %v742 = vrot.slane %v740, 5
      %v743 = vor.u32 %v739, %v742
      %v744 = vrot.slane %v743, 4
      %v746 = vshll.u32 %v355, 16
      %v748 = vrot.slane %v746, 5
      %v749 = vsel %vm375, %v744, %v748
      %v750 = vshrl.u32 %v355, 16
      %v752 = vrot.slane %v750, 4
      %v753 = vor.u32 %v752, %v748
      %v754 = vrot.slane %v753, 4
      %v756 = vshll.u32 %v372, 16
      %v758 = vrot.slane %v756, 5
      %v759 = vsel %vm375, %v754, %v758
      %s760 = scalar_lea.vmem %s1, 2
      %v761 = vld [vmem:[%s760] sm:$0x3]
      %v762 = vunpack.c.l.b16 %v389
      %v763 = vunpack.c.l.b16 %v399
      %v764 = vunpack.c.l.b16 %v413
      %v765 = vunpack.c.l.b16 %v423
      %v766 = vunpack.c.l.b16 %v437
      %v767 = vunpack.c.l.b16 %v447
      %v768 = vunpack.c.l.b16 %v461
      %v769 = vunpack.c.l.b16 %v471
      %v770 = vunpack.c.l.b16 %v485
      %v771 = vunpack.c.l.b16 %v495
      %v772 = vunpack.c.l.b16 %v509
      %v773 = vunpack.c.l.b16 %v519
      %v774 = vunpack.c.l.b16 %v533
      %v775 = vunpack.c.l.b16 %v543
      %v776 = vunpack.c.l.b16 %v557
      %v777 = vunpack.c.l.b16 %v567
      %v778 = vunpack.c.l.b16 %v581
      %v779 = vunpack.c.l.b16 %v591
      %v780 = vunpack.c.l.b16 %v605
      %v781 = vunpack.c.l.b16 %v615
      %v782 = vunpack.c.l.b16 %v629
      %v783 = vunpack.c.l.b16 %v639
      %v784 = vunpack.c.l.b16 %v653
      %v785 = vunpack.c.l.b16 %v663
      %v786 = vunpack.c.l.b16 %v677
      %v787 = vunpack.c.l.b16 %v687
      %v788 = vunpack.c.l.b16 %v701
      %v789 = vunpack.c.l.b16 %v711
      %v790 = vunpack.c.l.b16 %v725
      %v791 = vunpack.c.l.b16 %v735
      %v792 = vunpack.c.l.b16 %v749
      %v793 = vunpack.c.l.b16 %v759
      %v794 = vpack.c.b16 %v763, %v762
      %v795 = vpack.c.b16 %v765, %v764
      %v796 = vpack.c.b16 %v767, %v766
      %v797 = vpack.c.b16 %v769, %v768
      %v798 = vpack.c.b16 %v771, %v770
      %v799 = vpack.c.b16 %v773, %v772
      %v800 = vpack.c.b16 %v775, %v774
      %v801 = vpack.c.b16 %v777, %v776
      %v802 = vpack.c.b16 %v779, %v778
      %v803 = vpack.c.b16 %v781, %v780
      %v804 = vpack.c.b16 %v783, %v782
      %v805 = vpack.c.b16 %v785, %v784
      %v806 = vpack.c.b16 %v787, %v786
      %v807 = vpack.c.b16 %v789, %v788
      %v808 = vpack.c.b16 %v791, %v790
      %v809 = vpack.c.b16 %v793, %v792
      %vm810 = vcmask 31744
      %v812 = vsel %vm810, %v794, 0
      %v815 = vsel %vm810, %v795, 0
      %v818 = vsel %vm810, %v796, 0
      %v821 = vsel %vm810, %v797, 0
      %v824 = vsel %vm810, %v798, 0
      %v827 = vsel %vm810, %v799, 0
      %v830 = vsel %vm810, %v800, 0
      %v833 = vsel %vm810, %v801, 0
      %v836 = vsel %vm810, %v802, 0
      %v839 = vsel %vm810, %v803, 0
      %v842 = vsel %vm810, %v804, 0
      %v845 = vsel %vm810, %v805, 0
      %v848 = vsel %vm810, %v806, 0
      %v851 = vsel %vm810, %v807, 0
      %v854 = vsel %vm810, %v808, 0
      %v857 = vsel %vm810, %v809, 0
      %vm859 = vcmask 1041408
      %v861 = vsel %vm859, %v761, 0
      %863 = vmatprep.subr.bf16.mxu0 0
      %864 = vmatpush1.bf16.msra.mxu0 0
      %865 = vmatprep.subr.bf16.mxu0 0
      %866 = vmatpush1.bf16.msra.mxu0 0
      %867 = vmatprep.subr.bf16.mxu0 0
      %868 = vmatpush1.bf16.msra.mxu0 0
      %869 = vmatprep.subr.bf16.mxu0 0
      %870 = vmatpush1.bf16.msra.mxu0 0
      %871 = vmatprep.subr.bf16.mxu0 0
      %872 = vmatpush1.bf16.msra.mxu0 0
      %873 = vmatprep.subr.bf16.mxu0 0
      %874 = vmatpush1.bf16.msra.mxu0 0
      %875 = vmatprep.subr.bf16.mxu0 0
      %876 = vmatpush1.bf16.msra.mxu0 0
      %877 = vmatprep.subr.bf16.mxu0 0
      %878 = vmatpush1.bf16.msra.mxu0 %v861
      %879 = vmatprep.subr.bf16.mxu0 0
      %880 = vmatpush2.bf16.msra.mxu0 0
      %881 = vmatprep.subr.bf16.mxu0 0
      %882 = vmatpush2.bf16.msra.mxu0 0
      %883 = vmatprep.subr.bf16.mxu0 0
      %884 = vmatpush2.bf16.msra.mxu0 0
      %885 = vmatprep.subr.bf16.mxu0 0
      %886 = vmatpush2.bf16.msra.mxu0 0
      %887 = vmatprep.subr.bf16.mxu0 0
      %888 = vmatpush2.bf16.msra.mxu0 0
      %889 = vmatprep.subr.bf16.mxu0 0
      %890 = vmatpush2.bf16.msra.mxu0 0
      %891 = vmatprep.subr.bf16.mxu0 0
      %892 = vmatpush2.bf16.msra.mxu0 0
      %893 = vmatprep.subr.bf16.mxu0 0
      %894 = vmatpush2.bf16.msra.mxu0 0
      %895 = vmatprep.mubr.bf16.mxu0 0
      %896 = vmatmul.mubr.bf16.gmra.mxu0 %v812
      %v897 = vpop.f32.mrf.mxu0
      %v898 = vadd.f32 0.0, %v897
      %v899 = vpop.f32.mrf.mxu0
      %v900 = vpop.f32.mrf.mxu0
      %v901 = vadd.f32 0.0, %v900
      %v902 = vpop.f32.mrf.mxu0
      %903 = vmatprep.mubr.bf16.mxu0 0
      %904 = vmatmul.mubr.bf16.gmra.mxu0 %v815
      %v905 = vpop.f32.mrf.mxu0
      %v906 = vadd.f32 0.0, %v905
      %v907 = vpop.f32.mrf.mxu0
      %v908 = vpop.f32.mrf.mxu0
      %v909 = vadd.f32 0.0, %v908
      %v910 = vpop.f32.mrf.mxu0
      %911 = vmatprep.mubr.bf16.mxu0 0
      %912 = vmatmul.mubr.bf16.gmra.mxu0 %v818
      %v913 = vpop.f32.mrf.mxu0
      %v914 = vadd.f32 0.0, %v913
      %v915 = vpop.f32.mrf.mxu0
      %v916 = vpop.f32.mrf.mxu0
      %v917 = vadd.f32 0.0, %v916
      %v918 = vpop.f32.mrf.mxu0
      %919 = vmatprep.mubr.bf16.mxu0 0
      %920 = vmatmul.mubr.bf16.gmra.mxu0 %v821
      %v921 = vpop.f32.mrf.mxu0
      %v922 = vadd.f32 0.0, %v921
      %v923 = vpop.f32.mrf.mxu0
      %v924 = vpop.f32.mrf.mxu0
      %v925 = vadd.f32 0.0, %v924
      %v926 = vpop.f32.mrf.mxu0
      %927 = vmatprep.mubr.bf16.mxu0 0
      %928 = vmatmul.mubr.bf16.gmra.mxu0 %v824
      %v929 = vpop.f32.mrf.mxu0
      %v930 = vadd.f32 0.0, %v929
      %v931 = vpop.f32.mrf.mxu0
      %v932 = vpop.f32.mrf.mxu0
      %v933 = vadd.f32 0.0, %v932
      %v934 = vpop.f32.mrf.mxu0
      %935 = vmatprep.mubr.bf16.mxu0 0
      %936 = vmatmul.mubr.bf16.gmra.mxu0 %v827
      %v937 = vpop.f32.mrf.mxu0
      %v938 = vadd.f32 0.0, %v937
      %v939 = vpop.f32.mrf.mxu0
      %v940 = vpop.f32.mrf.mxu0
      %v941 = vadd.f32 0.0, %v940
      %v942 = vpop.f32.mrf.mxu0
      %943 = vmatprep.mubr.bf16.mxu0 0
      %944 = vmatmul.mubr.bf16.gmra.mxu0 %v830
      %v945 = vpop.f32.mrf.mxu0
      %v946 = vadd.f32 0.0, %v945
      %v947 = vpop.f32.mrf.mxu0
      %v948 = vpop.f32.mrf.mxu0
      %v949 = vadd.f32 0.0, %v948
      %v950 = vpop.f32.mrf.mxu0
      %951 = vmatprep.mubr.bf16.mxu0 0
      %952 = vmatmul.mubr.bf16.gmra.mxu0 %v833
      %v953 = vpop.f32.mrf.mxu0
      %v954 = vadd.f32 0.0, %v953
      %v955 = vpop.f32.mrf.mxu0
      %v956 = vpop.f32.mrf.mxu0
      %v957 = vadd.f32 0.0, %v956
      %v958 = vpop.f32.mrf.mxu0
      %959 = vmatprep.mubr.bf16.mxu0 0
      %960 = vmatmul.mubr.bf16.gmra.mxu0 %v836
      %v961 = vpop.f32.mrf.mxu0
      %v962 = vadd.f32 0.0, %v961
      %v963 = vpop.f32.mrf.mxu0
      %v964 = vpop.f32.mrf.mxu0
      %v965 = vadd.f32 0.0, %v964
      %v966 = vpop.f32.mrf.mxu0
      %967 = vmatprep.mubr.bf16.mxu0 0
      %968 = vmatmul.mubr.bf16.gmra.mxu0 %v839
      %v969 = vpop.f32.mrf.mxu0
      %v970 = vadd.f32 0.0, %v969
      %v971 = vpop.f32.mrf.mxu0
      %v972 = vpop.f32.mrf.mxu0
      %v973 = vadd.f32 0.0, %v972
      %v974 = vpop.f32.mrf.mxu0
      %975 = vmatprep.mubr.bf16.mxu0 0
      %976 = vmatmul.mubr.bf16.gmra.mxu0 %v842
      %v977 = vpop.f32.mrf.mxu0
      %v978 = vadd.f32 0.0, %v977
      %v979 = vpop.f32.mrf.mxu0
      %v980 = vpop.f32.mrf.mxu0
      %v981 = vadd.f32 0.0, %v980
      %v982 = vpop.f32.mrf.mxu0
      %983 = vmatprep.mubr.bf16.mxu0 0
      %984 = vmatmul.mubr.bf16.gmra.mxu0 %v845
      %v985 = vpop.f32.mrf.mxu0
      %v986 = vadd.f32 0.0, %v985
      %v987 = vpop.f32.mrf.mxu0
      %v988 = vpop.f32.mrf.mxu0
      %v989 = vadd.f32 0.0, %v988
      %v990 = vpop.f32.mrf.mxu0
      %991 = vmatprep.mubr.bf16.mxu0 0
      %992 = vmatmul.mubr.bf16.gmra.mxu0 %v848
      %v993 = vpop.f32.mrf.mxu0
      %v994 = vadd.f32 0.0, %v993
      %v995 = vpop.f32.mrf.mxu0
      %v996 = vpop.f32.mrf.mxu0
      %v997 = vadd.f32 0.0, %v996
      %v998 = vpop.f32.mrf.mxu0
      %999 = vmatprep.mubr.bf16.mxu0 0
      %1000 = vmatmul.mubr.bf16.gmra.mxu0 %v851
      %v1001 = vpop.f32.mrf.mxu0
      %v1002 = vadd.f32 0.0, %v1001
      %v1003 = vpop.f32.mrf.mxu0
      %v1004 = vpop.f32.mrf.mxu0
      %v1005 = vadd.f32 0.0, %v1004
      %v1006 = vpop.f32.mrf.mxu0
      %1007 = vmatprep.mubr.bf16.mxu0 0
      %1008 = vmatmul.mubr.bf16.gmra.mxu0 %v854
      %v1009 = vpop.f32.mrf.mxu0
      %v1010 = vadd.f32 0.0, %v1009
      %v1011 = vpop.f32.mrf.mxu0
      %v1012 = vpop.f32.mrf.mxu0
      %v1013 = vadd.f32 0.0, %v1012
      %v1014 = vpop.f32.mrf.mxu0
      %1015 = vmatprep.mubr.bf16.mxu0 0
      %1016 = vmatmul.mubr.bf16.gmra.mxu0 %v857
      %v1017 = vpop.f32.mrf.mxu0
      %v1018 = vadd.f32 0.0, %v1017
      %v1019 = vpop.f32.mrf.mxu0
      %v1020 = vpop.f32.mrf.mxu0
      %v1021 = vadd.f32 0.0, %v1020
      %v1022 = vpop.f32.mrf.mxu0
      %1023 = vdwg.mxu0
      %v1056 = vunpack.c.l.b16 %v324
      %v1057 = vunpack.c.l.b16 %v325
      %v1058 = vunpack.c.l.b16 %v326
      %v1059 = vunpack.c.l.b16 %v327
      %v1060 = vunpack.c.l.b16 %v328
      %v1061 = vunpack.c.l.b16 %v329
      %v1062 = vunpack.c.l.b16 %v330
      %v1063 = vunpack.c.l.b16 %v331
      %v1064 = vunpack.c.l.b16 %v332
      %v1065 = vunpack.c.l.b16 %v333
      %v1066 = vunpack.c.l.b16 %v334
      %v1067 = vunpack.c.l.b16 %v335
      %v1068 = vunpack.c.l.b16 %v336
      %v1069 = vunpack.c.l.b16 %v337
      %v1070 = vunpack.c.l.b16 %v338
      %v1071 = vunpack.c.l.b16 %v339
      %v1072 = vunpack.c.l.b16 %v340
      %v1073 = vunpack.c.l.b16 %v341
      %v1074 = vunpack.c.l.b16 %v342
      %v1075 = vunpack.c.l.b16 %v343
      %v1076 = vunpack.c.l.b16 %v344
      %v1077 = vunpack.c.l.b16 %v345
      %v1078 = vunpack.c.l.b16 %v346
      %v1079 = vunpack.c.l.b16 %v347
      %v1080 = vunpack.c.l.b16 %v348
      %v1081 = vunpack.c.l.b16 %v349
      %v1082 = vunpack.c.l.b16 %v350
      %v1083 = vunpack.c.l.b16 %v351
      %v1084 = vunpack.c.l.b16 %v352
      %v1085 = vunpack.c.l.b16 %v353
      %v1086 = vunpack.c.l.b16 %v354
      %v1087 = vunpack.c.l.b16 %v355
      %v1088 = vpack.c.b16 %v1057, %v1056
      %v1089 = vpack.c.b16 %v1059, %v1058
      %v1090 = vpack.c.b16 %v1061, %v1060
      %v1091 = vpack.c.b16 %v1063, %v1062
      %v1092 = vpack.c.b16 %v1065, %v1064
      %v1093 = vpack.c.b16 %v1067, %v1066
      %v1094 = vpack.c.b16 %v1069, %v1068
      %v1095 = vpack.c.b16 %v1071, %v1070
      %v1096 = vpack.c.b16 %v1073, %v1072
      %v1097 = vpack.c.b16 %v1075, %v1074
      %v1098 = vpack.c.b16 %v1077, %v1076
      %v1099 = vpack.c.b16 %v1079, %v1078
      %v1100 = vpack.c.b16 %v1081, %v1080
      %v1101 = vpack.c.b16 %v1083, %v1082
      %v1102 = vpack.c.b16 %v1085, %v1084
      %v1103 = vpack.c.b16 %v1087, %v1086
      %v1105 = vsel %vm810, %v1088, 0
      %v1108 = vsel %vm810, %v1089, 0
      %v1111 = vsel %vm810, %v1090, 0
      %v1114 = vsel %vm810, %v1091, 0
      %v1117 = vsel %vm810, %v1092, 0
      %v1120 = vsel %vm810, %v1093, 0
      %v1123 = vsel %vm810, %v1094, 0
      %v1126 = vsel %vm810, %v1095, 0
      %v1129 = vsel %vm810, %v1096, 0
      %v1132 = vsel %vm810, %v1097, 0
      %v1135 = vsel %vm810, %v1098, 0
      %v1138 = vsel %vm810, %v1099, 0
      %v1141 = vsel %vm810, %v1100, 0
      %v1144 = vsel %vm810, %v1101, 0
      %v1147 = vsel %vm810, %v1102, 0
      %v1150 = vsel %vm810, %v1103, 0
      %v1153 = vsel %vm859, %v356, 0
      %1155 = vmatprep.subr.bf16.mxu0 0
      %1156 = vmatpush1.bf16.msra.mxu0 0
      %1157 = vmatprep.subr.bf16.mxu0 0
      %1158 = vmatpush1.bf16.msra.mxu0 0
      %1159 = vmatprep.subr.bf16.mxu0 0
      %1160 = vmatpush1.bf16.msra.mxu0 0
      %1161 = vmatprep.subr.bf16.mxu0 0
      %1162 = vmatpush1.bf16.msra.mxu0 0
      %1163 = vmatprep.subr.bf16.mxu0 0
      %1164 = vmatpush1.bf16.msra.mxu0 0
      %1165 = vmatprep.subr.bf16.mxu0 0
      %1166 = vmatpush1.bf16.msra.mxu0 0
      %1167 = vmatprep.subr.bf16.mxu0 0
      %1168 = vmatpush1.bf16.msra.mxu0 0
      %1169 = vmatprep.subr.bf16.mxu0 0
      %1170 = vmatpush1.bf16.msra.mxu0 %v1153
      %1171 = vmatprep.subr.bf16.mxu0 0
      %1172 = vmatpush2.bf16.msra.mxu0 0
      %1173 = vmatprep.subr.bf16.mxu0 0
      %1174 = vmatpush2.bf16.msra.mxu0 0
      %1175 = vmatprep.subr.bf16.mxu0 0
      %1176 = vmatpush2.bf16.msra.mxu0 0
      %1177 = vmatprep.subr.bf16.mxu0 0
      %1178 = vmatpush2.bf16.msra.mxu0 0
      %1179 = vmatprep.subr.bf16.mxu0 0
      %1180 = vmatpush2.bf16.msra.mxu0 0
      %1181 = vmatprep.subr.bf16.mxu0 0
      %1182 = vmatpush2.bf16.msra.mxu0 0
      %1183 = vmatprep.subr.bf16.mxu0 0
      %1184 = vmatpush2.bf16.msra.mxu0 0
      %1185 = vmatprep.subr.bf16.mxu0 0
      %1186 = vmatpush2.bf16.msra.mxu0 0
      %1187 = vmatprep.mubr.bf16.mxu0 0
      %1188 = vmatmul.mubr.bf16.gmra.mxu0 %v1105
      %v1189 = vpop.f32.mrf.mxu0
      %v1190 = vadd.f32 %v898, %v1189
      %v1191 = vpop.f32.mrf.mxu0
      %v1192 = vpop.f32.mrf.mxu0
      %v1193 = vadd.f32 %v901, %v1192
      %v1194 = vpop.f32.mrf.mxu0
      %1195 = vmatprep.mubr.bf16.mxu0 0
      %1196 = vmatmul.mubr.bf16.gmra.mxu0 %v1108
      %v1197 = vpop.f32.mrf.mxu0
      %v1198 = vadd.f32 %v906, %v1197
      %v1199 = vpop.f32.mrf.mxu0
      %v1200 = vpop.f32.mrf.mxu0
      %v1201 = vadd.f32 %v909, %v1200
      %v1202 = vpop.f32.mrf.mxu0
      %1203 = vmatprep.mubr.bf16.mxu0 0
      %1204 = vmatmul.mubr.bf16.gmra.mxu0 %v1111
      %v1205 = vpop.f32.mrf.mxu0
      %v1206 = vadd.f32 %v914, %v1205
      %v1207 = vpop.f32.mrf.mxu0
      %v1208 = vpop.f32.mrf.mxu0
      %v1209 = vadd.f32 %v917, %v1208
      %v1210 = vpop.f32.mrf.mxu0
      %1211 = vmatprep.mubr.bf16.mxu0 0
      %1212 = vmatmul.mubr.bf16.gmra.mxu0 %v1114
      %v1213 = vpop.f32.mrf.mxu0
      %v1214 = vadd.f32 %v922, %v1213
      %v1215 = vpop.f32.mrf.mxu0
      %v1216 = vpop.f32.mrf.mxu0
      %v1217 = vadd.f32 %v925, %v1216
      %v1218 = vpop.f32.mrf.mxu0
      %1219 = vmatprep.mubr.bf16.mxu0 0
      %1220 = vmatmul.mubr.bf16.gmra.mxu0 %v1117
      %v1221 = vpop.f32.mrf.mxu0
      %v1222 = vadd.f32 %v930, %v1221
      %v1223 = vpop.f32.mrf.mxu0
      %v1224 = vpop.f32.mrf.mxu0
      %v1225 = vadd.f32 %v933, %v1224
      %v1226 = vpop.f32.mrf.mxu0
      %1227 = vmatprep.mubr.bf16.mxu0 0
      %1228 = vmatmul.mubr.bf16.gmra.mxu0 %v1120
      %v1229 = vpop.f32.mrf.mxu0
      %v1230 = vadd.f32 %v938, %v1229
      %v1231 = vpop.f32.mrf.mxu0
      %v1232 = vpop.f32.mrf.mxu0
      %v1233 = vadd.f32 %v941, %v1232
      %v1234 = vpop.f32.mrf.mxu0
      %1235 = vmatprep.mubr.bf16.mxu0 0
      %1236 = vmatmul.mubr.bf16.gmra.mxu0 %v1123
      %v1237 = vpop.f32.mrf.mxu0
      %v1238 = vadd.f32 %v946, %v1237
      %v1239 = vpop.f32.mrf.mxu0
      %v1240 = vpop.f32.mrf.mxu0
      %v1241 = vadd.f32 %v949, %v1240
      %v1242 = vpop.f32.mrf.mxu0
      %1243 = vmatprep.mubr.bf16.mxu0 0
      %1244 = vmatmul.mubr.bf16.gmra.mxu0 %v1126
      %v1245 = vpop.f32.mrf.mxu0
      %v1246 = vadd.f32 %v954, %v1245
      %v1247 = vpop.f32.mrf.mxu0
      %v1248 = vpop.f32.mrf.mxu0
      %v1249 = vadd.f32 %v957, %v1248
      %v1250 = vpop.f32.mrf.mxu0
      %1251 = vmatprep.mubr.bf16.mxu0 0
      %1252 = vmatmul.mubr.bf16.gmra.mxu0 %v1129
      %v1253 = vpop.f32.mrf.mxu0
      %v1254 = vadd.f32 %v962, %v1253
      %v1255 = vpop.f32.mrf.mxu0
      %v1256 = vpop.f32.mrf.mxu0
      %v1257 = vadd.f32 %v965, %v1256
      %v1258 = vpop.f32.mrf.mxu0
      %1259 = vmatprep.mubr.bf16.mxu0 0
      %1260 = vmatmul.mubr.bf16.gmra.mxu0 %v1132
      %v1261 = vpop.f32.mrf.mxu0
      %v1262 = vadd.f32 %v970, %v1261
      %v1263 = vpop.f32.mrf.mxu0
      %v1264 = vpop.f32.mrf.mxu0
      %v1265 = vadd.f32 %v973, %v1264
      %v1266 = vpop.f32.mrf.mxu0
      %1267 = vmatprep.mubr.bf16.mxu0 0
      %1268 = vmatmul.mubr.bf16.gmra.mxu0 %v1135
      %v1269 = vpop.f32.mrf.mxu0
      %v1270 = vadd.f32 %v978, %v1269
      %v1271 = vpop.f32.mrf.mxu0
      %v1272 = vpop.f32.mrf.mxu0
      %v1273 = vadd.f32 %v981, %v1272
      %v1274 = vpop.f32.mrf.mxu0
      %1275 = vmatprep.mubr.bf16.mxu0 0
      %1276 = vmatmul.mubr.bf16.gmra.mxu0 %v1138
      %v1277 = vpop.f32.mrf.mxu0
      %v1278 = vadd.f32 %v986, %v1277
      %v1279 = vpop.f32.mrf.mxu0
      %v1280 = vpop.f32.mrf.mxu0
      %v1281 = vadd.f32 %v989, %v1280
      %v1282 = vpop.f32.mrf.mxu0
      %1283 = vmatprep.mubr.bf16.mxu0 0
      %1284 = vmatmul.mubr.bf16.gmra.mxu0 %v1141
      %v1285 = vpop.f32.mrf.mxu0
      %v1286 = vadd.f32 %v994, %v1285
      %v1287 = vpop.f32.mrf.mxu0
      %v1288 = vpop.f32.mrf.mxu0
      %v1289 = vadd.f32 %v997, %v1288
      %v1290 = vpop.f32.mrf.mxu0
      %1291 = vmatprep.mubr.bf16.mxu0 0
      %1292 = vmatmul.mubr.bf16.gmra.mxu0 %v1144
      %v1293 = vpop.f32.mrf.mxu0
      %v1294 = vadd.f32 %v1002, %v1293
      %v1295 = vpop.f32.mrf.mxu0
      %v1296 = vpop.f32.mrf.mxu0
      %v1297 = vadd.f32 %v1005, %v1296
      %v1298 = vpop.f32.mrf.mxu0
      %1299 = vmatprep.mubr.bf16.mxu0 0
      %1300 = vmatmul.mubr.bf16.gmra.mxu0 %v1147
      %v1301 = vpop.f32.mrf.mxu0
      %v1302 = vadd.f32 %v1010, %v1301
      %v1303 = vpop.f32.mrf.mxu0
      %v1304 = vpop.f32.mrf.mxu0
      %v1305 = vadd.f32 %v1013, %v1304
      %v1306 = vpop.f32.mrf.mxu0
      %1307 = vmatprep.mubr.bf16.mxu0 0
      %1308 = vmatmul.mubr.bf16.gmra.mxu0 %v1150
      %v1309 = vpop.f32.mrf.mxu0
      %v1310 = vadd.f32 %v1018, %v1309
      %v1311 = vpop.f32.mrf.mxu0
      %v1312 = vpop.f32.mrf.mxu0
      %v1313 = vadd.f32 %v1021, %v1312
      %v1314 = vpop.f32.mrf.mxu0
      %1315 = vdwg.mxu0
      %v1316 = vld [vmem:[%s310] sm:$0xe]
      %v1317 = vld [vmem:[%s310 + $0xc] sm:$0xe]
      %v1318 = vld [vmem:[%s310 + $0x18] sm:$0xe]
      %v1319 = vld [vmem:[%s310 + $0x24] sm:$0xe]
      %v1320 = vld [vmem:[%s310 + $0x30] sm:$0xe]
      %v1321 = vld [vmem:[%s310 + $0x3c] sm:$0xe]
      %v1322 = vld [vmem:[%s310 + $0x48] sm:$0xe]
      %v1323 = vld [vmem:[%s310 + $0x54] sm:$0xe]
      %v1324 = vld [vmem:[%s310 + $0x60] sm:$0xe]
      %v1325 = vld [vmem:[%s310 + $0x6c] sm:$0xe]
      %v1326 = vld [vmem:[%s310 + $0x78] sm:$0xe]
      %v1327 = vld [vmem:[%s310 + $0x84] sm:$0xe]
      %v1328 = vld [vmem:[%s310 + $0x90] sm:$0xe]
      %v1329 = vld [vmem:[%s310 + $0x9c] sm:$0xe]
      %v1330 = vld [vmem:[%s310 + $0xa8] sm:$0xe]
      %v1331 = vld [vmem:[%s310 + $0xb4] sm:$0xe]
      %vm1364 = vcmask 1042432
      %vm1365 = vcmask 1046532
      %vm1366 = vmor %vm1364, %vm1365
      %v1367 = vrot.slane %v1316, 5
      %v1368 = vrot.slane %v1367, 4
      %v1369 = vrot.slane %v325, 5
      %v1370 = vsel %vm1366, %v1368, %v1369
      %v1371 = vrot.slane %v1369, 4
      %v1372 = vrot.slane %v357, 5
      %v1373 = vsel %vm1366, %v1371, %v1372
      %v1374 = vrot.slane %v1317, 5
      %v1375 = vrot.slane %v1374, 4
      %v1376 = vrot.slane %v327, 5
      %v1377 = vsel %vm1366, %v1375, %v1376
      %v1378 = vrot.slane %v1376, 4
      %v1379 = vrot.slane %v358, 5
      %v1380 = vsel %vm1366, %v1378, %v1379
      %v1381 = vrot.slane %v1318, 5
      %v1382 = vrot.slane %v1381, 4
      %v1383 = vrot.slane %v329, 5
      %v1384 = vsel %vm1366, %v1382, %v1383
      %v1385 = vrot.slane %v1383, 4
      %v1386 = vrot.slane %v359, 5
      %v1387 = vsel %vm1366, %v1385, %v1386
      %v1388 = vrot.slane %v1319, 5
      %v1389 = vrot.slane %v1388, 4
      %v1390 = vrot.slane %v331, 5
      %v1391 = vsel %vm1366, %v1389, %v1390
      %v1392 = vrot.slane %v1390, 4
      %v1393 = vrot.slane %v360, 5
      %v1394 = vsel %vm1366, %v1392, %v1393
      %v1395 = vrot.slane %v1320, 5
      %v1396 = vrot.slane %v1395, 4
      %v1397 = vrot.slane %v333, 5
      %v1398 = vsel %vm1366, %v1396, %v1397
      %v1399 = vrot.slane %v1397, 4
      %v1400 = vrot.slane %v361, 5
      %v1401 = vsel %vm1366, %v1399, %v1400
      %v1402 = vrot.slane %v1321, 5
      %v1403 = vrot.slane %v1402, 4
      %v1404 = vrot.slane %v335, 5
      %v1405 = vsel %vm1366, %v1403, %v1404
      %v1406 = vrot.slane %v1404, 4
      %v1407 = vrot.slane %v362, 5
      %v1408 = vsel %vm1366, %v1406, %v1407
      %v1409 = vrot.slane %v1322, 5
      %v1410 = vrot.slane %v1409, 4
      %v1411 = vrot.slane %v337, 5
      %v1412 = vsel %vm1366, %v1410, %v1411
      %v1413 = vrot.slane %v1411, 4
      %v1414 = vrot.slane %v363, 5
      %v1415 = vsel %vm1366, %v1413, %v1414
      %v1416 = vrot.slane %v1323, 5
      %v1417 = vrot.slane %v1416, 4
      %v1418 = vrot.slane %v339, 5
      %v1419 = vsel %vm1366, %v1417, %v1418
      %v1420 = vrot.slane %v1418, 4
      %v1421 = vrot.slane %v364, 5
      %v1422 = vsel %vm1366, %v1420, %v1421
      %v1423 = vrot.slane %v1324, 5
      %v1424 = vrot.slane %v1423, 4
      %v1425 = vrot.slane %v341, 5
      %v1426 = vsel %vm1366, %v1424, %v1425
      %v1427 = vrot.slane %v1425, 4
      %v1428 = vrot.slane %v365, 5
      %v1429 = vsel %vm1366, %v1427, %v1428
      %v1430 = vrot.slane %v1325, 5
      %v1431 = vrot.slane %v1430, 4
      %v1432 = vrot.slane %v343, 5
      %v1433 = vsel %vm1366, %v1431, %v1432
      %v1434 = vrot.slane %v1432, 4
      %v1435 = vrot.slane %v366, 5
      %v1436 = vsel %vm1366, %v1434, %v1435
      %v1437 = vrot.slane %v1326, 5
      %v1438 = vrot.slane %v1437, 4
      %v1439 = vrot.slane %v345, 5
      %v1440 = vsel %vm1366, %v1438, %v1439
      %v1441 = vrot.slane %v1439, 4
      %v1442 = vrot.slane %v367, 5
      %v1443 = vsel %vm1366, %v1441, %v1442
      %v1444 = vrot.slane %v1327, 5
      %v1445 = vrot.slane %v1444, 4
      %v1446 = vrot.slane %v347, 5
      %v1447 = vsel %vm1366, %v1445, %v1446
      %v1448 = vrot.slane %v1446, 4
      %v1449 = vrot.slane %v368, 5
      %v1450 = vsel %vm1366, %v1448, %v1449
      %v1451 = vrot.slane %v1328, 5
      %v1452 = vrot.slane %v1451, 4
      %v1453 = vrot.slane %v349, 5
      %v1454 = vsel %vm1366, %v1452, %v1453
      %v1455 = vrot.slane %v1453, 4
      %v1456 = vrot.slane %v369, 5
      %v1457 = vsel %vm1366, %v1455, %v1456
      %v1458 = vrot.slane %v1329, 5
      %v1459 = vrot.slane %v1458, 4
      %v1460 = vrot.slane %v351, 5
      %v1461 = vsel %vm1366, %v1459, %v1460
      %v1462 = vrot.slane %v1460, 4
      %v1463 = vrot.slane %v370, 5
      %v1464 = vsel %vm1366, %v1462, %v1463
      %v1465 = vrot.slane %v1330, 5
      %v1466 = vrot.slane %v1465, 4
      %v1467 = vrot.slane %v353, 5
      %v1468 = vsel %vm1366, %v1466, %v1467
      %v1469 = vrot.slane %v1467, 4
      %v1470 = vrot.slane %v371, 5
      %v1471 = vsel %vm1366, %v1469, %v1470
      %v1472 = vrot.slane %v1331, 5
      %v1473 = vrot.slane %v1472, 4
      %v1474 = vrot.slane %v355, 5
      %v1475 = vsel %vm1366, %v1473, %v1474
      %v1476 = vrot.slane %v1474, 4
      %v1477 = vrot.slane %v372, 5
      %v1478 = vsel %vm1366, %v1476, %v1477
      %s1479 = scalar_lea.vmem %s1, 4
      %v1480 = vld [vmem:[%s1479] sm:$0x3]
      %v1481 = vunpack.c.l.b16 %v1370
      %v1482 = vunpack.c.l.b16 %v1373
      %v1483 = vunpack.c.l.b16 %v1377
      %v1484 = vunpack.c.l.b16 %v1380
      %v1485 = vunpack.c.l.b16 %v1384
      %v1486 = vunpack.c.l.b16 %v1387
      %v1487 = vunpack.c.l.b16 %v1391
      %v1488 = vunpack.c.l.b16 %v1394
      %v1489 = vunpack.c.l.b16 %v1398
      %v1490 = vunpack.c.l.b16 %v1401
      %v1491 = vunpack.c.l.b16 %v1405
      %v1492 = vunpack.c.l.b16 %v1408
      %v1493 = vunpack.c.l.b16 %v1412
      %v1494 = vunpack.c.l.b16 %v1415
      %v1495 = vunpack.c.l.b16 %v1419
      %v1496 = vunpack.c.l.b16 %v1422
      %v1497 = vunpack.c.l.b16 %v1426
      %v1498 = vunpack.c.l.b16 %v1429
      %v1499 = vunpack.c.l.b16 %v1433
      %v1500 = vunpack.c.l.b16 %v1436
      %v1501 = vunpack.c.l.b16 %v1440
      %v1502 = vunpack.c.l.b16 %v1443
      %v1503 = vunpack.c.l.b16 %v1447
      %v1504 = vunpack.c.l.b16 %v1450
      %v1505 = vunpack.c.l.b16 %v1454
      %v1506 = vunpack.c.l.b16 %v1457
      %v1507 = vunpack.c.l.b16 %v1461
      %v1508 = vunpack.c.l.b16 %v1464
      %v1509 = vunpack.c.l.b16 %v1468
      %v1510 = vunpack.c.l.b16 %v1471
      %v1511 = vunpack.c.l.b16 %v1475
      %v1512 = vunpack.c.l.b16 %v1478
      %v1513 = vpack.c.b16 %v1482, %v1481
      %v1514 = vpack.c.b16 %v1484, %v1483
      %v1515 = vpack.c.b16 %v1486, %v1485
      %v1516 = vpack.c.b16 %v1488, %v1487
      %v1517 = vpack.c.b16 %v1490, %v1489
      %v1518 = vpack.c.b16 %v1492, %v1491
      %v1519 = vpack.c.b16 %v1494, %v1493
      %v1520 = vpack.c.b16 %v1496, %v1495
      %v1521 = vpack.c.b16 %v1498, %v1497
      %v1522 = vpack.c.b16 %v1500, %v1499
      %v1523 = vpack.c.b16 %v1502, %v1501
      %v1524 = vpack.c.b16 %v1504, %v1503
      %v1525 = vpack.c.b16 %v1506, %v1505
      %v1526 = vpack.c.b16 %v1508, %v1507
      %v1527 = vpack.c.b16 %v1510, %v1509
      %v1528 = vpack.c.b16 %v1512, %v1511
      %v1530 = vsel %vm810, %v1513, 0
      %v1533 = vsel %vm810, %v1514, 0
      %v1536 = vsel %vm810, %v1515, 0
      %v1539 = vsel %vm810, %v1516, 0
      %v1542 = vsel %vm810, %v1517, 0
      %v1545 = vsel %vm810, %v1518, 0
      %v1548 = vsel %vm810, %v1519, 0
      %v1551 = vsel %vm810, %v1520, 0
      %v1554 = vsel %vm810, %v1521, 0
      %v1557 = vsel %vm810, %v1522, 0
      %v1560 = vsel %vm810, %v1523, 0
      %v1563 = vsel %vm810, %v1524, 0
      %v1566 = vsel %vm810, %v1525, 0
      %v1569 = vsel %vm810, %v1526, 0
      %v1572 = vsel %vm810, %v1527, 0
      %v1575 = vsel %vm810, %v1528, 0
      %v1578 = vsel %vm859, %v1480, 0
      %1580 = vmatprep.subr.bf16.mxu0 0
      %1581 = vmatpush1.bf16.msra.mxu0 0
      %1582 = vmatprep.subr.bf16.mxu0 0
      %1583 = vmatpush1.bf16.msra.mxu0 0
      %1584 = vmatprep.subr.bf16.mxu0 0
      %1585 = vmatpush1.bf16.msra.mxu0 0
      %1586 = vmatprep.subr.bf16.mxu0 0
      %1587 = vmatpush1.bf16.msra.mxu0 0
      %1588 = vmatprep.subr.bf16.mxu0 0
      %1589 = vmatpush1.bf16.msra.mxu0 0
      %1590 = vmatprep.subr.bf16.mxu0 0
      %1591 = vmatpush1.bf16.msra.mxu0 0
      %1592 = vmatprep.subr.bf16.mxu0 0
      %1593 = vmatpush1.bf16.msra.mxu0 0
      %1594 = vmatprep.subr.bf16.mxu0 0
      %1595 = vmatpush1.bf16.msra.mxu0 %v1578
      %1596 = vmatprep.subr.bf16.mxu0 0
      %1597 = vmatpush2.bf16.msra.mxu0 0
      %1598 = vmatprep.subr.bf16.mxu0 0
      %1599 = vmatpush2.bf16.msra.mxu0 0
      %1600 = vmatprep.subr.bf16.mxu0 0
      %1601 = vmatpush2.bf16.msra.mxu0 0
      %1602 = vmatprep.subr.bf16.mxu0 0
      %1603 = vmatpush2.bf16.msra.mxu0 0
      %1604 = vmatprep.subr.bf16.mxu0 0
      %1605 = vmatpush2.bf16.msra.mxu0 0
      %1606 = vmatprep.subr.bf16.mxu0 0
      %1607 = vmatpush2.bf16.msra.mxu0 0
      %1608 = vmatprep.subr.bf16.mxu0 0
      %1609 = vmatpush2.bf16.msra.mxu0 0
      %1610 = vmatprep.subr.bf16.mxu0 0
      %1611 = vmatpush2.bf16.msra.mxu0 0
      %1612 = vmatprep.mubr.bf16.mxu0 0
      %1613 = vmatmul.mubr.bf16.gmra.mxu0 %v1530
      %v1614 = vpop.f32.mrf.mxu0
      %v1615 = vadd.f32 0.0, %v1614
      %v1616 = vpop.f32.mrf.mxu0
      %v1617 = vpop.f32.mrf.mxu0
      %v1618 = vadd.f32 0.0, %v1617
      %v1619 = vpop.f32.mrf.mxu0
      %1620 = vmatprep.mubr.bf16.mxu0 0
      %1621 = vmatmul.mubr.bf16.gmra.mxu0 %v1533
      %v1622 = vpop.f32.mrf.mxu0
      %v1623 = vadd.f32 0.0, %v1622
      %v1624 = vpop.f32.mrf.mxu0
      %v1625 = vpop.f32.mrf.mxu0
      %v1626 = vadd.f32 0.0, %v1625
      %v1627 = vpop.f32.mrf.mxu0
      %1628 = vmatprep.mubr.bf16.mxu0 0
      %1629 = vmatmul.mubr.bf16.gmra.mxu0 %v1536
      %v1630 = vpop.f32.mrf.mxu0
      %v1631 = vadd.f32 0.0, %v1630
      %v1632 = vpop.f32.mrf.mxu0
      %v1633 = vpop.f32.mrf.mxu0
      %v1634 = vadd.f32 0.0, %v1633
      %v1635 = vpop.f32.mrf.mxu0
      %1636 = vmatprep.mubr.bf16.mxu0 0
      %1637 = vmatmul.mubr.bf16.gmra.mxu0 %v1539
      %v1638 = vpop.f32.mrf.mxu0
      %v1639 = vadd.f32 0.0, %v1638
      %v1640 = vpop.f32.mrf.mxu0
      %v1641 = vpop.f32.mrf.mxu0
      %v1642 = vadd.f32 0.0, %v1641
      %v1643 = vpop.f32.mrf.mxu0
      %1644 = vmatprep.mubr.bf16.mxu0 0
      %1645 = vmatmul.mubr.bf16.gmra.mxu0 %v1542
      %v1646 = vpop.f32.mrf.mxu0
      %v1647 = vadd.f32 0.0, %v1646
      %v1648 = vpop.f32.mrf.mxu0
      %v1649 = vpop.f32.mrf.mxu0
      %v1650 = vadd.f32 0.0, %v1649
      %v1651 = vpop.f32.mrf.mxu0
      %1652 = vmatprep.mubr.bf16.mxu0 0
      %1653 = vmatmul.mubr.bf16.gmra.mxu0 %v1545
      %v1654 = vpop.f32.mrf.mxu0
      %v1655 = vadd.f32 0.0, %v1654
      %v1656 = vpop.f32.mrf.mxu0
      %v1657 = vpop.f32.mrf.mxu0
      %v1658 = vadd.f32 0.0, %v1657
      %v1659 = vpop.f32.mrf.mxu0
      %1660 = vmatprep.mubr.bf16.mxu0 0
      %1661 = vmatmul.mubr.bf16.gmra.mxu0 %v1548
      %v1662 = vpop.f32.mrf.mxu0
      %v1663 = vadd.f32 0.0, %v1662
      %v1664 = vpop.f32.mrf.mxu0
      %v1665 = vpop.f32.mrf.mxu0
      %v1666 = vadd.f32 0.0, %v1665
      %v1667 = vpop.f32.mrf.mxu0
      %1668 = vmatprep.mubr.bf16.mxu0 0
      %1669 = vmatmul.mubr.bf16.gmra.mxu0 %v1551
      %v1670 = vpop.f32.mrf.mxu0
      %v1671 = vadd.f32 0.0, %v1670
      %v1672 = vpop.f32.mrf.mxu0
      %v1673 = vpop.f32.mrf.mxu0
      %v1674 = vadd.f32 0.0, %v1673
      %v1675 = vpop.f32.mrf.mxu0
      %1676 = vmatprep.mubr.bf16.mxu0 0
      %1677 = vmatmul.mubr.bf16.gmra.mxu0 %v1554
      %v1678 = vpop.f32.mrf.mxu0
      %v1679 = vadd.f32 0.0, %v1678
      %v1680 = vpop.f32.mrf.mxu0
      %v1681 = vpop.f32.mrf.mxu0
      %v1682 = vadd.f32 0.0, %v1681
      %v1683 = vpop.f32.mrf.mxu0
      %1684 = vmatprep.mubr.bf16.mxu0 0
      %1685 = vmatmul.mubr.bf16.gmra.mxu0 %v1557
      %v1686 = vpop.f32.mrf.mxu0
      %v1687 = vadd.f32 0.0, %v1686
      %v1688 = vpop.f32.mrf.mxu0
      %v1689 = vpop.f32.mrf.mxu0
      %v1690 = vadd.f32 0.0, %v1689
      %v1691 = vpop.f32.mrf.mxu0
      %1692 = vmatprep.mubr.bf16.mxu0 0
      %1693 = vmatmul.mubr.bf16.gmra.mxu0 %v1560
      %v1694 = vpop.f32.mrf.mxu0
      %v1695 = vadd.f32 0.0, %v1694
      %v1696 = vpop.f32.mrf.mxu0
      %v1697 = vpop.f32.mrf.mxu0
      %v1698 = vadd.f32 0.0, %v1697
      %v1699 = vpop.f32.mrf.mxu0
      %1700 = vmatprep.mubr.bf16.mxu0 0
      %1701 = vmatmul.mubr.bf16.gmra.mxu0 %v1563
      %v1702 = vpop.f32.mrf.mxu0
      %v1703 = vadd.f32 0.0, %v1702
      %v1704 = vpop.f32.mrf.mxu0
      %v1705 = vpop.f32.mrf.mxu0
      %v1706 = vadd.f32 0.0, %v1705
      %v1707 = vpop.f32.mrf.mxu0
      %1708 = vmatprep.mubr.bf16.mxu0 0
      %1709 = vmatmul.mubr.bf16.gmra.mxu0 %v1566
      %v1710 = vpop.f32.mrf.mxu0
      %v1711 = vadd.f32 0.0, %v1710
      %v1712 = vpop.f32.mrf.mxu0
      %v1713 = vpop.f32.mrf.mxu0
      %v1714 = vadd.f32 0.0, %v1713
      %v1715 = vpop.f32.mrf.mxu0
      %1716 = vmatprep.mubr.bf16.mxu0 0
      %1717 = vmatmul.mubr.bf16.gmra.mxu0 %v1569
      %v1718 = vpop.f32.mrf.mxu0
      %v1719 = vadd.f32 0.0, %v1718
      %v1720 = vpop.f32.mrf.mxu0
      %v1721 = vpop.f32.mrf.mxu0
      %v1722 = vadd.f32 0.0, %v1721
      %v1723 = vpop.f32.mrf.mxu0
      %1724 = vmatprep.mubr.bf16.mxu0 0
      %1725 = vmatmul.mubr.bf16.gmra.mxu0 %v1572
      %v1726 = vpop.f32.mrf.mxu0
      %v1727 = vadd.f32 0.0, %v1726
      %v1728 = vpop.f32.mrf.mxu0
      %v1729 = vpop.f32.mrf.mxu0
      %v1730 = vadd.f32 0.0, %v1729
      %v1731 = vpop.f32.mrf.mxu0
      %1732 = vmatprep.mubr.bf16.mxu0 0
      %1733 = vmatmul.mubr.bf16.gmra.mxu0 %v1575
      %v1734 = vpop.f32.mrf.mxu0
      %v1735 = vadd.f32 0.0, %v1734
      %v1736 = vpop.f32.mrf.mxu0
      %v1737 = vpop.f32.mrf.mxu0
      %v1738 = vadd.f32 0.0, %v1737
      %v1739 = vpop.f32.mrf.mxu0
      %1740 = vdwg.mxu0
      %v1741 = vadd.f32 %v1190, %v1615
      %v1742 = vadd.f32 %v1193, %v1618
      %v1743 = vadd.f32 %v1198, %v1623
      %v1744 = vadd.f32 %v1201, %v1626
      %v1745 = vadd.f32 %v1206, %v1631
      %v1746 = vadd.f32 %v1209, %v1634
      %v1747 = vadd.f32 %v1214, %v1639
      %v1748 = vadd.f32 %v1217, %v1642
      %v1749 = vadd.f32 %v1222, %v1647
      %v1750 = vadd.f32 %v1225, %v1650
      %v1751 = vadd.f32 %v1230, %v1655
      %v1752 = vadd.f32 %v1233, %v1658
      %v1753 = vadd.f32 %v1238, %v1663
      %v1754 = vadd.f32 %v1241, %v1666
      %v1755 = vadd.f32 %v1246, %v1671
      %v1756 = vadd.f32 %v1249, %v1674
      %v1757 = vadd.f32 %v1254, %v1679
      %v1758 = vadd.f32 %v1257, %v1682
      %v1759 = vadd.f32 %v1262, %v1687
      %v1760 = vadd.f32 %v1265, %v1690
      %v1761 = vadd.f32 %v1270, %v1695
      %v1762 = vadd.f32 %v1273, %v1698
      %v1763 = vadd.f32 %v1278, %v1703
      %v1764 = vadd.f32 %v1281, %v1706
      %v1765 = vadd.f32 %v1286, %v1711
      %v1766 = vadd.f32 %v1289, %v1714
      %v1767 = vadd.f32 %v1294, %v1719
      %v1768 = vadd.f32 %v1297, %v1722
      %v1769 = vadd.f32 %v1302, %v1727
      %v1770 = vadd.f32 %v1305, %v1730
      %v1771 = vadd.f32 %v1310, %v1735
      %v1772 = vadd.f32 %v1313, %v1738
      %s1773 = scalar_lea.vmem %s310, 12
      %v1774 = vld [vmem:[%s1773] sm:$0xf]
      %v1775 = vld [vmem:[%s1773 + $0x4] sm:$0xf]
      %v1776 = vld [vmem:[%s1773 + $0xc] sm:$0xf]
      %v1777 = vld [vmem:[%s1773 + $0x10] sm:$0xf]
      %v1778 = vld [vmem:[%s1773 + $0x18] sm:$0xf]
      %v1779 = vld [vmem:[%s1773 + $0x1c] sm:$0xf]
      %v1780 = vld [vmem:[%s1773 + $0x24] sm:$0xf]
      %v1781 = vld [vmem:[%s1773 + $0x28] sm:$0xf]
      %v1782 = vld [vmem:[%s1773 + $0x30] sm:$0xf]
      %v1783 = vld [vmem:[%s1773 + $0x34] sm:$0xf]
      %v1784 = vld [vmem:[%s1773 + $0x3c] sm:$0xf]
      %v1785 = vld [vmem:[%s1773 + $0x40] sm:$0xf]
      %v1786 = vld [vmem:[%s1773 + $0x48] sm:$0xf]
      %v1787 = vld [vmem:[%s1773 + $0x4c] sm:$0xf]
      %v1788 = vld [vmem:[%s1773 + $0x54] sm:$0xf]
      %v1789 = vld [vmem:[%s1773 + $0x58] sm:$0xf]
      %v1790 = vld [vmem:[%s1773 + $0x60] sm:$0xf]
      %v1791 = vld [vmem:[%s1773 + $0x64] sm:$0xf]
      %v1792 = vld [vmem:[%s1773 + $0x6c] sm:$0xf]
      %v1793 = vld [vmem:[%s1773 + $0x70] sm:$0xf]
      %v1794 = vld [vmem:[%s1773 + $0x78] sm:$0xf]
      %v1795 = vld [vmem:[%s1773 + $0x7c] sm:$0xf]
      %v1796 = vld [vmem:[%s1773 + $0x84] sm:$0xf]
      %v1797 = vld [vmem:[%s1773 + $0x88] sm:$0xf]
      %v1798 = vld [vmem:[%s1773 + $0x90] sm:$0xf]
      %v1799 = vld [vmem:[%s1773 + $0x94] sm:$0xf]
      %v1800 = vld [vmem:[%s1773 + $0x9c] sm:$0xf]
      %v1801 = vld [vmem:[%s1773 + $0xa0] sm:$0xf]
      %v1802 = vld [vmem:[%s1773 + $0xa8] sm:$0xf]
      %v1803 = vld [vmem:[%s1773 + $0xac] sm:$0xf]
      %v1804 = vld [vmem:[%s1773 + $0xb4] sm:$0xf]
      %v1805 = vld [vmem:[%s1773 + $0xb8] sm:$0xf]
      %s1806 = scalar_lea.vmem %s1, 6
      %v1807 = vld [vmem:[%s1806] sm:$0x3]
      %v1840 = vunpack.c.l.b16 %v1774
      %v1841 = vunpack.c.l.b16 %v1775
      %v1842 = vunpack.c.l.b16 %v1776
      %v1843 = vunpack.c.l.b16 %v1777
      %v1844 = vunpack.c.l.b16 %v1778
      %v1845 = vunpack.c.l.b16 %v1779
      %v1846 = vunpack.c.l.b16 %v1780
      %v1847 = vunpack.c.l.b16 %v1781
      %v1848 = vunpack.c.l.b16 %v1782
      %v1849 = vunpack.c.l.b16 %v1783
      %v1850 = vunpack.c.l.b16 %v1784
      %v1851 = vunpack.c.l.b16 %v1785
      %v1852 = vunpack.c.l.b16 %v1786
      %v1853 = vunpack.c.l.b16 %v1787
      %v1854 = vunpack.c.l.b16 %v1788
      %v1855 = vunpack.c.l.b16 %v1789
      %v1856 = vunpack.c.l.b16 %v1790
      %v1857 = vunpack.c.l.b16 %v1791
      %v1858 = vunpack.c.l.b16 %v1792
      %v1859 = vunpack.c.l.b16 %v1793
      %v1860 = vunpack.c.l.b16 %v1794
      %v1861 = vunpack.c.l.b16 %v1795
      %v1862 = vunpack.c.l.b16 %v1796
      %v1863 = vunpack.c.l.b16 %v1797
      %v1864 = vunpack.c.l.b16 %v1798
      %v1865 = vunpack.c.l.b16 %v1799
      %v1866 = vunpack.c.l.b16 %v1800
      %v1867 = vunpack.c.l.b16 %v1801
      %v1868 = vunpack.c.l.b16 %v1802
      %v1869 = vunpack.c.l.b16 %v1803
      %v1870 = vunpack.c.l.b16 %v1804
      %v1871 = vunpack.c.l.b16 %v1805
      %v1872 = vpack.c.b16 %v1841, %v1840
      %v1873 = vpack.c.b16 %v1843, %v1842
      %v1874 = vpack.c.b16 %v1845, %v1844
      %v1875 = vpack.c.b16 %v1847, %v1846
      %v1876 = vpack.c.b16 %v1849, %v1848
      %v1877 = vpack.c.b16 %v1851, %v1850
      %v1878 = vpack.c.b16 %v1853, %v1852
      %v1879 = vpack.c.b16 %v1855, %v1854
      %v1880 = vpack.c.b16 %v1857, %v1856
      %v1881 = vpack.c.b16 %v1859, %v1858
      %v1882 = vpack.c.b16 %v1861, %v1860
      %v1883 = vpack.c.b16 %v1863, %v1862
      %v1884 = vpack.c.b16 %v1865, %v1864
      %v1885 = vpack.c.b16 %v1867, %v1866
      %v1886 = vpack.c.b16 %v1869, %v1868
      %v1887 = vpack.c.b16 %v1871, %v1870
      %v1889 = vsel %vm810, %v1872, 0
      %v1892 = vsel %vm810, %v1873, 0
      %v1895 = vsel %vm810, %v1874, 0
      %v1898 = vsel %vm810, %v1875, 0
      %v1901 = vsel %vm810, %v1876, 0
      %v1904 = vsel %vm810, %v1877, 0
      %v1907 = vsel %vm810, %v1878, 0
      %v1910 = vsel %vm810, %v1879, 0
      %v1913 = vsel %vm810, %v1880, 0
      %v1916 = vsel %vm810, %v1881, 0
      %v1919 = vsel %vm810, %v1882, 0
      %v1922 = vsel %vm810, %v1883, 0
      %v1925 = vsel %vm810, %v1884, 0
      %v1928 = vsel %vm810, %v1885, 0
      %v1931 = vsel %vm810, %v1886, 0
      %v1934 = vsel %vm810, %v1887, 0
      %v1937 = vsel %vm859, %v1807, 0
      %1939 = vmatprep.subr.bf16.mxu0 0
      %1940 = vmatpush1.bf16.msra.mxu0 0
      %1941 = vmatprep.subr.bf16.mxu0 0
      %1942 = vmatpush1.bf16.msra.mxu0 0
      %1943 = vmatprep.subr.bf16.mxu0 0
      %1944 = vmatpush1.bf16.msra.mxu0 0
      %1945 = vmatprep.subr.bf16.mxu0 0
      %1946 = vmatpush1.bf16.msra.mxu0 0
      %1947 = vmatprep.subr.bf16.mxu0 0
      %1948 = vmatpush1.bf16.msra.mxu0 0
      %1949 = vmatprep.subr.bf16.mxu0 0
      %1950 = vmatpush1.bf16.msra.mxu0 0
      %1951 = vmatprep.subr.bf16.mxu0 0
      %1952 = vmatpush1.bf16.msra.mxu0 0
      %1953 = vmatprep.subr.bf16.mxu0 0
      %1954 = vmatpush1.bf16.msra.mxu0 %v1937
      %1955 = vmatprep.subr.bf16.mxu0 0
      %1956 = vmatpush2.bf16.msra.mxu0 0
      %1957 = vmatprep.subr.bf16.mxu0 0
      %1958 = vmatpush2.bf16.msra.mxu0 0
      %1959 = vmatprep.subr.bf16.mxu0 0
      %1960 = vmatpush2.bf16.msra.mxu0 0
      %1961 = vmatprep.subr.bf16.mxu0 0
      %1962 = vmatpush2.bf16.msra.mxu0 0
      %1963 = vmatprep.subr.bf16.mxu0 0
      %1964 = vmatpush2.bf16.msra.mxu0 0
      %1965 = vmatprep.subr.bf16.mxu0 0
      %1966 = vmatpush2.bf16.msra.mxu0 0
      %1967 = vmatprep.subr.bf16.mxu0 0
      %1968 = vmatpush2.bf16.msra.mxu0 0
      %1969 = vmatprep.subr.bf16.mxu0 0
      %1970 = vmatpush2.bf16.msra.mxu0 0
      %1971 = vmatprep.mubr.bf16.mxu0 0
      %1972 = vmatmul.mubr.bf16.gmra.mxu0 %v1889
      %v1973 = vpop.f32.mrf.mxu0
      %v1974 = vadd.f32 0.0, %v1973
      %v1975 = vpop.f32.mrf.mxu0
      %v1976 = vpop.f32.mrf.mxu0
      %v1977 = vadd.f32 0.0, %v1976
      %v1978 = vpop.f32.mrf.mxu0
      %1979 = vmatprep.mubr.bf16.mxu0 0
      %1980 = vmatmul.mubr.bf16.gmra.mxu0 %v1892
      %v1981 = vpop.f32.mrf.mxu0
      %v1982 = vadd.f32 0.0, %v1981
      %v1983 = vpop.f32.mrf.mxu0
      %v1984 = vpop.f32.mrf.mxu0
      %v1985 = vadd.f32 0.0, %v1984
      %v1986 = vpop.f32.mrf.mxu0
      %1987 = vmatprep.mubr.bf16.mxu0 0
      %1988 = vmatmul.mubr.bf16.gmra.mxu0 %v1895
      %v1989 = vpop.f32.mrf.mxu0
      %v1990 = vadd.f32 0.0, %v1989
      %v1991 = vpop.f32.mrf.mxu0
      %v1992 = vpop.f32.mrf.mxu0
      %v1993 = vadd.f32 0.0, %v1992
      %v1994 = vpop.f32.mrf.mxu0
      %1995 = vmatprep.mubr.bf16.mxu0 0
      %1996 = vmatmul.mubr.bf16.gmra.mxu0 %v1898
      %v1997 = vpop.f32.mrf.mxu0
      %v1998 = vadd.f32 0.0, %v1997
      %v1999 = vpop.f32.mrf.mxu0
      %v2000 = vpop.f32.mrf.mxu0
      %v2001 = vadd.f32 0.0, %v2000
      %v2002 = vpop.f32.mrf.mxu0
      %2003 = vmatprep.mubr.bf16.mxu0 0
      %2004 = vmatmul.mubr.bf16.gmra.mxu0 %v1901
      %v2005 = vpop.f32.mrf.mxu0
      %v2006 = vadd.f32 0.0, %v2005
      %v2007 = vpop.f32.mrf.mxu0
      %v2008 = vpop.f32.mrf.mxu0
      %v2009 = vadd.f32 0.0, %v2008
      %v2010 = vpop.f32.mrf.mxu0
      %2011 = vmatprep.mubr.bf16.mxu0 0
      %2012 = vmatmul.mubr.bf16.gmra.mxu0 %v1904
      %v2013 = vpop.f32.mrf.mxu0
      %v2014 = vadd.f32 0.0, %v2013
      %v2015 = vpop.f32.mrf.mxu0
      %v2016 = vpop.f32.mrf.mxu0
      %v2017 = vadd.f32 0.0, %v2016
      %v2018 = vpop.f32.mrf.mxu0
      %2019 = vmatprep.mubr.bf16.mxu0 0
      %2020 = vmatmul.mubr.bf16.gmra.mxu0 %v1907
      %v2021 = vpop.f32.mrf.mxu0
      %v2022 = vadd.f32 0.0, %v2021
      %v2023 = vpop.f32.mrf.mxu0
      %v2024 = vpop.f32.mrf.mxu0
      %v2025 = vadd.f32 0.0, %v2024
      %v2026 = vpop.f32.mrf.mxu0
      %2027 = vmatprep.mubr.bf16.mxu0 0
      %2028 = vmatmul.mubr.bf16.gmra.mxu0 %v1910
      %v2029 = vpop.f32.mrf.mxu0
      %v2030 = vadd.f32 0.0, %v2029
      %v2031 = vpop.f32.mrf.mxu0
      %v2032 = vpop.f32.mrf.mxu0
      %v2033 = vadd.f32 0.0, %v2032
      %v2034 = vpop.f32.mrf.mxu0
      %2035 = vmatprep.mubr.bf16.mxu0 0
      %2036 = vmatmul.mubr.bf16.gmra.mxu0 %v1913
      %v2037 = vpop.f32.mrf.mxu0
      %v2038 = vadd.f32 0.0, %v2037
      %v2039 = vpop.f32.mrf.mxu0
      %v2040 = vpop.f32.mrf.mxu0
      %v2041 = vadd.f32 0.0, %v2040
      %v2042 = vpop.f32.mrf.mxu0
      %2043 = vmatprep.mubr.bf16.mxu0 0
      %2044 = vmatmul.mubr.bf16.gmra.mxu0 %v1916
      %v2045 = vpop.f32.mrf.mxu0
      %v2046 = vadd.f32 0.0, %v2045
      %v2047 = vpop.f32.mrf.mxu0
      %v2048 = vpop.f32.mrf.mxu0
      %v2049 = vadd.f32 0.0, %v2048
      %v2050 = vpop.f32.mrf.mxu0
      %2051 = vmatprep.mubr.bf16.mxu0 0
      %2052 = vmatmul.mubr.bf16.gmra.mxu0 %v1919
      %v2053 = vpop.f32.mrf.mxu0
      %v2054 = vadd.f32 0.0, %v2053
      %v2055 = vpop.f32.mrf.mxu0
      %v2056 = vpop.f32.mrf.mxu0
      %v2057 = vadd.f32 0.0, %v2056
      %v2058 = vpop.f32.mrf.mxu0
      %2059 = vmatprep.mubr.bf16.mxu0 0
      %2060 = vmatmul.mubr.bf16.gmra.mxu0 %v1922
      %v2061 = vpop.f32.mrf.mxu0
      %v2062 = vadd.f32 0.0, %v2061
      %v2063 = vpop.f32.mrf.mxu0
      %v2064 = vpop.f32.mrf.mxu0
      %v2065 = vadd.f32 0.0, %v2064
      %v2066 = vpop.f32.mrf.mxu0
      %2067 = vmatprep.mubr.bf16.mxu0 0
      %2068 = vmatmul.mubr.bf16.gmra.mxu0 %v1925
      %v2069 = vpop.f32.mrf.mxu0
      %v2070 = vadd.f32 0.0, %v2069
      %v2071 = vpop.f32.mrf.mxu0
      %v2072 = vpop.f32.mrf.mxu0
      %v2073 = vadd.f32 0.0, %v2072
      %v2074 = vpop.f32.mrf.mxu0
      %2075 = vmatprep.mubr.bf16.mxu0 0
      %2076 = vmatmul.mubr.bf16.gmra.mxu0 %v1928
      %v2077 = vpop.f32.mrf.mxu0
      %v2078 = vadd.f32 0.0, %v2077
      %v2079 = vpop.f32.mrf.mxu0
      %v2080 = vpop.f32.mrf.mxu0
      %v2081 = vadd.f32 0.0, %v2080
      %v2082 = vpop.f32.mrf.mxu0
      %2083 = vmatprep.mubr.bf16.mxu0 0
      %2084 = vmatmul.mubr.bf16.gmra.mxu0 %v1931
      %v2085 = vpop.f32.mrf.mxu0
      %v2086 = vadd.f32 0.0, %v2085
      %v2087 = vpop.f32.mrf.mxu0
      %v2088 = vpop.f32.mrf.mxu0
      %v2089 = vadd.f32 0.0, %v2088
      %v2090 = vpop.f32.mrf.mxu0
      %2091 = vmatprep.mubr.bf16.mxu0 0
      %2092 = vmatmul.mubr.bf16.gmra.mxu0 %v1934
      %v2093 = vpop.f32.mrf.mxu0
      %v2094 = vadd.f32 0.0, %v2093
      %v2095 = vpop.f32.mrf.mxu0
      %v2096 = vpop.f32.mrf.mxu0
      %v2097 = vadd.f32 0.0, %v2096
      %v2098 = vpop.f32.mrf.mxu0
      %2099 = vdwg.mxu0
      %v2100 = vadd.f32 %v1741, %v1974
      %v2101 = vadd.f32 %v1742, %v1977
      %v2102 = vadd.f32 %v1743, %v1982
      %v2103 = vadd.f32 %v1744, %v1985
      %v2104 = vadd.f32 %v1745, %v1990
      %v2105 = vadd.f32 %v1746, %v1993
      %v2106 = vadd.f32 %v1747, %v1998
      %v2107 = vadd.f32 %v1748, %v2001
      %v2108 = vadd.f32 %v1749, %v2006
      %v2109 = vadd.f32 %v1750, %v2009
      %v2110 = vadd.f32 %v1751, %v2014
      %v2111 = vadd.f32 %v1752, %v2017
      %v2112 = vadd.f32 %v1753, %v2022
      %v2113 = vadd.f32 %v1754, %v2025
      %v2114 = vadd.f32 %v1755, %v2030
      %v2115 = vadd.f32 %v1756, %v2033
      %v2116 = vadd.f32 %v1757, %v2038
      %v2117 = vadd.f32 %v1758, %v2041
      %v2118 = vadd.f32 %v1759, %v2046
      %v2119 = vadd.f32 %v1760, %v2049
      %v2120 = vadd.f32 %v1761, %v2054
      %v2121 = vadd.f32 %v1762, %v2057
      %v2122 = vadd.f32 %v1763, %v2062
      %v2123 = vadd.f32 %v1764, %v2065
      %v2124 = vadd.f32 %v1765, %v2070
      %v2125 = vadd.f32 %v1766, %v2073
      %v2126 = vadd.f32 %v1767, %v2078
      %v2127 = vadd.f32 %v1768, %v2081
      %v2128 = vadd.f32 %v1769, %v2086
      %v2129 = vadd.f32 %v1770, %v2089
      %v2130 = vadd.f32 %v1771, %v2094
      %v2131 = vadd.f32 %v1772, %v2097
      %v2132 = vld [vmem:[%s1773] sm:$0xf]
      %v2133 = vld [vmem:[%s1773 + $0x4] sm:$0xf]
      %v2134 = vld [vmem:[%s1773 + $0x8] sm:$0x1]
      %v2135 = vld [vmem:[%s1773 + $0xc] sm:$0xf]
      %v2136 = vld [vmem:[%s1773 + $0x10] sm:$0xf]
      %v2137 = vld [vmem:[%s1773 + $0x14] sm:$0x1]
      %v2138 = vld [vmem:[%s1773 + $0x18] sm:$0xf]
      %v2139 = vld [vmem:[%s1773 + $0x1c] sm:$0xf]
      %v2140 = vld [vmem:[%s1773 + $0x20] sm:$0x1]
      %v2141 = vld [vmem:[%s1773 + $0x24] sm:$0xf]
      %v2142 = vld [vmem:[%s1773 + $0x28] sm:$0xf]
      %v2143 = vld [vmem:[%s1773 + $0x2c] sm:$0x1]
      %v2144 = vld [vmem:[%s1773 + $0x30] sm:$0xf]
      %v2145 = vld [vmem:[%s1773 + $0x34] sm:$0xf]
      %v2146 = vld [vmem:[%s1773 + $0x38] sm:$0x1]
      %v2147 = vld [vmem:[%s1773 + $0x3c] sm:$0xf]
      %v2148 = vld [vmem:[%s1773 + $0x40] sm:$0xf]
      %v2149 = vld [vmem:[%s1773 + $0x44] sm:$0x1]
      %v2150 = vld [vmem:[%s1773 + $0x48] sm:$0xf]
      %v2151 = vld [vmem:[%s1773 + $0x4c] sm:$0xf]
      %v2152 = vld [vmem:[%s1773 + $0x50] sm:$0x1]
      %v2153 = vld [vmem:[%s1773 + $0x54] sm:$0xf]
      %v2154 = vld [vmem:[%s1773 + $0x58] sm:$0xf]
      %v2155 = vld [vmem:[%s1773 + $0x5c] sm:$0x1]
      %v2156 = vld [vmem:[%s1773 + $0x60] sm:$0xf]
      %v2157 = vld [vmem:[%s1773 + $0x64] sm:$0xf]
      %v2158 = vld [vmem:[%s1773 + $0x68] sm:$0x1]
      %v2159 = vld [vmem:[%s1773 + $0x6c] sm:$0xf]
      %v2160 = vld [vmem:[%s1773 + $0x70] sm:$0xf]
      %v2161 = vld [vmem:[%s1773 + $0x74] sm:$0x1]
      %v2162 = vld [vmem:[%s1773 + $0x78] sm:$0xf]
      %v2163 = vld [vmem:[%s1773 + $0x7c] sm:$0xf]
      %v2164 = vld [vmem:[%s1773 + $0x80] sm:$0x1]
      %v2165 = vld [vmem:[%s1773 + $0x84] sm:$0xf]
      %v2166 = vld [vmem:[%s1773 + $0x88] sm:$0xf]
      %v2167 = vld [vmem:[%s1773 + $0x8c] sm:$0x1]
      %v2168 = vld [vmem:[%s1773 + $0x90] sm:$0xf]
      %v2169 = vld [vmem:[%s1773 + $0x94] sm:$0xf]
      %v2170 = vld [vmem:[%s1773 + $0x98] sm:$0x1]
      %v2171 = vld [vmem:[%s1773 + $0x9c] sm:$0xf]
      %v2172 = vld [vmem:[%s1773 + $0xa0] sm:$0xf]
      %v2173 = vld [vmem:[%s1773 + $0xa4] sm:$0x1]
      %v2174 = vld [vmem:[%s1773 + $0xa8] sm:$0xf]
      %v2175 = vld [vmem:[%s1773 + $0xac] sm:$0xf]
      %v2176 = vld [vmem:[%s1773 + $0xb0] sm:$0x1]
      %v2177 = vld [vmem:[%s1773 + $0xb4] sm:$0xf]
      %v2178 = vld [vmem:[%s1773 + $0xb8] sm:$0xf]
      %v2179 = vld [vmem:[%s1773 + $0xbc] sm:$0x1]
      %v2181 = vshrl.u32 %v2132, 16
      %v2183 = vrot.slane %v2181, 4
      %v2184 = vshll.u32 %v2132, 16
      %v2186 = vrot.slane %v2184, 5
      %v2187 = vor.u32 %v2183, %v2186
      %v2188 = vrot.slane %v2187, 4
      %v2190 = vshll.u32 %v2133, 16
      %v2192 = vrot.slane %v2190, 5
      %v2193 = vsel %vm375, %v2188, %v2192
      %v2194 = vshrl.u32 %v2133, 16
      %v2196 = vrot.slane %v2194, 4
      %v2197 = vor.u32 %v2196, %v2192
      %v2198 = vrot.slane %v2197, 4
      %v2200 = vshll.u32 %v2134, 16
      %v2202 = vrot.slane %v2200, 5
      %v2203 = vsel %vm375, %v2198, %v2202
      %v2205 = vshrl.u32 %v2135, 16
      %v2207 = vrot.slane %v2205, 4
      %v2208 = vshll.u32 %v2135, 16
      %v2210 = vrot.slane %v2208, 5
      %v2211 = vor.u32 %v2207, %v2210
      %v2212 = vrot.slane %v2211, 4
      %v2214 = vshll.u32 %v2136, 16
      %v2216 = vrot.slane %v2214, 5
      %v2217 = vsel %vm375, %v2212, %v2216
      %v2218 = vshrl.u32 %v2136, 16
      %v2220 = vrot.slane %v2218, 4
      %v2221 = vor.u32 %v2220, %v2216
      %v2222 = vrot.slane %v2221, 4
      %v2224 = vshll.u32 %v2137, 16
      %v2226 = vrot.slane %v2224, 5
      %v2227 = vsel %vm375, %v2222, %v2226
      %v2229 = vshrl.u32 %v2138, 16
      %v2231 = vrot.slane %v2229, 4
      %v2232 = vshll.u32 %v2138, 16
      %v2234 = vrot.slane %v2232, 5
      %v2235 = vor.u32 %v2231, %v2234
      %v2236 = vrot.slane %v2235, 4
      %v2238 = vshll.u32 %v2139, 16
      %v2240 = vrot.slane %v2238, 5
      %v2241 = vsel %vm375, %v2236, %v2240
      %v2242 = vshrl.u32 %v2139, 16
      %v2244 = vrot.slane %v2242, 4
      %v2245 = vor.u32 %v2244, %v2240
      %v2246 = vrot.slane %v2245, 4
      %v2248 = vshll.u32 %v2140, 16
      %v2250 = vrot.slane %v2248, 5
      %v2251 = vsel %vm375, %v2246, %v2250
      %v2253 = vshrl.u32 %v2141, 16
      %v2255 = vrot.slane %v2253, 4
      %v2256 = vshll.u32 %v2141, 16
      %v2258 = vrot.slane %v2256, 5
      %v2259 = vor.u32 %v2255, %v2258
      %v2260 = vrot.slane %v2259, 4
      %v2262 = vshll.u32 %v2142, 16
      %v2264 = vrot.slane %v2262, 5
      %v2265 = vsel %vm375, %v2260, %v2264
      %v2266 = vshrl.u32 %v2142, 16
      %v2268 = vrot.slane %v2266, 4
      %v2269 = vor.u32 %v2268, %v2264
      %v2270 = vrot.slane %v2269, 4
      %v2272 = vshll.u32 %v2143, 16
      %v2274 = vrot.slane %v2272, 5
      %v2275 = vsel %vm375, %v2270, %v2274
      %v2277 = vshrl.u32 %v2144, 16
      %v2279 = vrot.slane %v2277, 4
      %v2280 = vshll.u32 %v2144, 16
      %v2282 = vrot.slane %v2280, 5
      %v2283 = vor.u32 %v2279, %v2282
      %v2284 = vrot.slane %v2283, 4
      %v2286 = vshll.u32 %v2145, 16
      %v2288 = vrot.slane %v2286, 5
      %v2289 = vsel %vm375, %v2284, %v2288
      %v2290 = vshrl.u32 %v2145, 16
      %v2292 = vrot.slane %v2290, 4
      %v2293 = vor.u32 %v2292, %v2288
      %v2294 = vrot.slane %v2293, 4
      %v2296 = vshll.u32 %v2146, 16
      %v2298 = vrot.slane %v2296, 5
      %v2299 = vsel %vm375, %v2294, %v2298
      %v2301 = vshrl.u32 %v2147, 16
      %v2303 = vrot.slane %v2301, 4
      %v2304 = vshll.u32 %v2147, 16
      %v2306 = vrot.slane %v2304, 5
      %v2307 = vor.u32 %v2303, %v2306
      %v2308 = vrot.slane %v2307, 4
      %v2310 = vshll.u32 %v2148, 16
      %v2312 = vrot.slane %v2310, 5
      %v2313 = vsel %vm375, %v2308, %v2312
      %v2314 = vshrl.u32 %v2148, 16
      %v2316 = vrot.slane %v2314, 4
      %v2317 = vor.u32 %v2316, %v2312
      %v2318 = vrot.slane %v2317, 4
      %v2320 = vshll.u32 %v2149, 16
      %v2322 = vrot.slane %v2320, 5
      %v2323 = vsel %vm375, %v2318, %v2322
      %v2325 = vshrl.u32 %v2150, 16
      %v2327 = vrot.slane %v2325, 4
      %v2328 = vshll.u32 %v2150, 16
      %v2330 = vrot.slane %v2328, 5
      %v2331 = vor.u32 %v2327, %v2330
      %v2332 = vrot.slane %v2331, 4
      %v2334 = vshll.u32 %v2151, 16
      %v2336 = vrot.slane %v2334, 5
      %v2337 = vsel %vm375, %v2332, %v2336
      %v2338 = vshrl.u32 %v2151, 16
      %v2340 = vrot.slane %v2338, 4
      %v2341 = vor.u32 %v2340, %v2336
      %v2342 = vrot.slane %v2341, 4
      %v2344 = vshll.u32 %v2152, 16
      %v2346 = vrot.slane %v2344, 5
      %v2347 = vsel %vm375, %v2342, %v2346
      %v2349 = vshrl.u32 %v2153, 16
      %v2351 = vrot.slane %v2349, 4
      %v2352 = vshll.u32 %v2153, 16
      %v2354 = vrot.slane %v2352, 5
      %v2355 = vor.u32 %v2351, %v2354
      %v2356 = vrot.slane %v2355, 4
      %v2358 = vshll.u32 %v2154, 16
      %v2360 = vrot.slane %v2358, 5
      %v2361 = vsel %vm375, %v2356, %v2360
      %v2362 = vshrl.u32 %v2154, 16
      %v2364 = vrot.slane %v2362, 4
      %v2365 = vor.u32 %v2364, %v2360
      %v2366 = vrot.slane %v2365, 4
      %v2368 = vshll.u32 %v2155, 16
      %v2370 = vrot.slane %v2368, 5
      %v2371 = vsel %vm375, %v2366, %v2370
      %v2373 = vshrl.u32 %v2156, 16
      %v2375 = vrot.slane %v2373, 4
      %v2376 = vshll.u32 %v2156, 16
      %v2378 = vrot.slane %v2376, 5
      %v2379 = vor.u32 %v2375, %v2378
      %v2380 = vrot.slane %v2379, 4
      %v2382 = vshll.u32 %v2157, 16
      %v2384 = vrot.slane %v2382, 5
      %v2385 = vsel %vm375, %v2380, %v2384
      %v2386 = vshrl.u32 %v2157, 16
      %v2388 = vrot.slane %v2386, 4
      %v2389 = vor.u32 %v2388, %v2384
      %v2390 = vrot.slane %v2389, 4
      %v2392 = vshll.u32 %v2158, 16
      %v2394 = vrot.slane %v2392, 5
      %v2395 = vsel %vm375, %v2390, %v2394
      %v2397 = vshrl.u32 %v2159, 16
      %v2399 = vrot.slane %v2397, 4
      %v2400 = vshll.u32 %v2159, 16
      %v2402 = vrot.slane %v2400, 5
      %v2403 = vor.u32 %v2399, %v2402
      %v2404 = vrot.slane %v2403, 4
      %v2406 = vshll.u32 %v2160, 16
      %v2408 = vrot.slane %v2406, 5
      %v2409 = vsel %vm375, %v2404, %v2408
      %v2410 = vshrl.u32 %v2160, 16
      %v2412 = vrot.slane %v2410, 4
      %v2413 = vor.u32 %v2412, %v2408
      %v2414 = vrot.slane %v2413, 4
      %v2416 = vshll.u32 %v2161, 16
      %v2418 = vrot.slane %v2416, 5
      %v2419 = vsel %vm375, %v2414, %v2418
      %v2421 = vshrl.u32 %v2162, 16
      %v2423 = vrot.slane %v2421, 4
      %v2424 = vshll.u32 %v2162, 16
      %v2426 = vrot.slane %v2424, 5
      %v2427 = vor.u32 %v2423, %v2426
      %v2428 = vrot.slane %v2427, 4
      %v2430 = vshll.u32 %v2163, 16
      %v2432 = vrot.slane %v2430, 5
      %v2433 = vsel %vm375, %v2428, %v2432
      %v2434 = vshrl.u32 %v2163, 16
      %v2436 = vrot.slane %v2434, 4
      %v2437 = vor.u32 %v2436, %v2432
      %v2438 = vrot.slane %v2437, 4
      %v2440 = vshll.u32 %v2164, 16
      %v2442 = vrot.slane %v2440, 5
      %v2443 = vsel %vm375, %v2438, %v2442
      %v2445 = vshrl.u32 %v2165, 16
      %v2447 = vrot.slane %v2445, 4
      %v2448 = vshll.u32 %v2165, 16
      %v2450 = vrot.slane %v2448, 5
      %v2451 = vor.u32 %v2447, %v2450
      %v2452 = vrot.slane %v2451, 4
      %v2454 = vshll.u32 %v2166, 16
      %v2456 = vrot.slane %v2454, 5
      %v2457 = vsel %vm375, %v2452, %v2456
      %v2458 = vshrl.u32 %v2166, 16
      %v2460 = vrot.slane %v2458, 4
      %v2461 = vor.u32 %v2460, %v2456
      %v2462 = vrot.slane %v2461, 4
      %v2464 = vshll.u32 %v2167, 16
      %v2466 = vrot.slane %v2464, 5
      %v2467 = vsel %vm375, %v2462, %v2466
      %v2469 = vshrl.u32 %v2168, 16
      %v2471 = vrot.slane %v2469, 4
      %v2472 = vshll.u32 %v2168, 16
      %v2474 = vrot.slane %v2472, 5
      %v2475 = vor.u32 %v2471, %v2474
      %v2476 = vrot.slane %v2475, 4
      %v2478 = vshll.u32 %v2169, 16
      %v2480 = vrot.slane %v2478, 5
      %v2481 = vsel %vm375, %v2476, %v2480
      %v2482 = vshrl.u32 %v2169, 16
      %v2484 = vrot.slane %v2482, 4
      %v2485 = vor.u32 %v2484, %v2480
      %v2486 = vrot.slane %v2485, 4
      %v2488 = vshll.u32 %v2170, 16
      %v2490 = vrot.slane %v2488, 5
      %v2491 = vsel %vm375, %v2486, %v2490
      %v2493 = vshrl.u32 %v2171, 16
      %v2495 = vrot.slane %v2493, 4
      %v2496 = vshll.u32 %v2171, 16
      %v2498 = vrot.slane %v2496, 5
      %v2499 = vor.u32 %v2495, %v2498
      %v2500 = vrot.slane %v2499, 4
      %v2502 = vshll.u32 %v2172, 16
      %v2504 = vrot.slane %v2502, 5
      %v2505 = vsel %vm375, %v2500, %v2504
      %v2506 = vshrl.u32 %v2172, 16
      %v2508 = vrot.slane %v2506, 4
      %v2509 = vor.u32 %v2508, %v2504
      %v2510 = vrot.slane %v2509, 4
      %v2512 = vshll.u32 %v2173, 16
      %v2514 = vrot.slane %v2512, 5
      %v2515 = vsel %vm375, %v2510, %v2514
      %v2517 = vshrl.u32 %v2174, 16
      %v2519 = vrot.slane %v2517, 4
      %v2520 = vshll.u32 %v2174, 16
      %v2522 = vrot.slane %v2520, 5
      %v2523 = vor.u32 %v2519, %v2522
      %v2524 = vrot.slane %v2523, 4
      %v2526 = vshll.u32 %v2175, 16
      %v2528 = vrot.slane %v2526, 5
      %v2529 = vsel %vm375, %v2524, %v2528
      %v2530 = vshrl.u32 %v2175, 16
      %v2532 = vrot.slane %v2530, 4
      %v2533 = vor.u32 %v2532, %v2528
      %v2534 = vrot.slane %v2533, 4
      %v2536 = vshll.u32 %v2176, 16
      %v2538 = vrot.slane %v2536, 5
      %v2539 = vsel %vm375, %v2534, %v2538
      %v2541 = vshrl.u32 %v2177, 16
      %v2543 = vrot.slane %v2541, 4
      %v2544 = vshll.u32 %v2177, 16
      %v2546 = vrot.slane %v2544, 5
      %v2547 = vor.u32 %v2543, %v2546
      %v2548 = vrot.slane %v2547, 4
      %v2550 = vshll.u32 %v2178, 16
      %v2552 = vrot.slane %v2550, 5
      %v2553 = vsel %vm375, %v2548, %v2552
      %v2554 = vshrl.u32 %v2178, 16
      %v2556 = vrot.slane %v2554, 4
      %v2557 = vor.u32 %v2556, %v2552
      %v2558 = vrot.slane %v2557, 4
      %v2560 = vshll.u32 %v2179, 16
      %v2562 = vrot.slane %v2560, 5
      %v2563 = vsel %vm375, %v2558, %v2562
      %s2564 = scalar_lea.vmem %s1, 8
      %v2565 = vld [vmem:[%s2564] sm:$0x3]
      %v2566 = vunpack.c.l.b16 %v2193
      %v2567 = vunpack.c.l.b16 %v2203
      %v2568 = vunpack.c.l.b16 %v2217
      %v2569 = vunpack.c.l.b16 %v2227
      %v2570 = vunpack.c.l.b16 %v2241
      %v2571 = vunpack.c.l.b16 %v2251
      %v2572 = vunpack.c.l.b16 %v2265
      %v2573 = vunpack.c.l.b16 %v2275
      %v2574 = vunpack.c.l.b16 %v2289
      %v2575 = vunpack.c.l.b16 %v2299
      %v2576 = vunpack.c.l.b16 %v2313
      %v2577 = vunpack.c.l.b16 %v2323
      %v2578 = vunpack.c.l.b16 %v2337
      %v2579 = vunpack.c.l.b16 %v2347
      %v2580 = vunpack.c.l.b16 %v2361
      %v2581 = vunpack.c.l.b16 %v2371
      %v2582 = vunpack.c.l.b16 %v2385
      %v2583 = vunpack.c.l.b16 %v2395
      %v2584 = vunpack.c.l.b16 %v2409
      %v2585 = vunpack.c.l.b16 %v2419
      %v2586 = vunpack.c.l.b16 %v2433
      %v2587 = vunpack.c.l.b16 %v2443
      %v2588 = vunpack.c.l.b16 %v2457
      %v2589 = vunpack.c.l.b16 %v2467
      %v2590 = vunpack.c.l.b16 %v2481
      %v2591 = vunpack.c.l.b16 %v2491
      %v2592 = vunpack.c.l.b16 %v2505
      %v2593 = vunpack.c.l.b16 %v2515
      %v2594 = vunpack.c.l.b16 %v2529
      %v2595 = vunpack.c.l.b16 %v2539
      %v2596 = vunpack.c.l.b16 %v2553
      %v2597 = vunpack.c.l.b16 %v2563
      %v2598 = vpack.c.b16 %v2567, %v2566
      %v2599 = vpack.c.b16 %v2569, %v2568
      %v2600 = vpack.c.b16 %v2571, %v2570
      %v2601 = vpack.c.b16 %v2573, %v2572
      %v2602 = vpack.c.b16 %v2575, %v2574
      %v2603 = vpack.c.b16 %v2577, %v2576
      %v2604 = vpack.c.b16 %v2579, %v2578
      %v2605 = vpack.c.b16 %v2581, %v2580
      %v2606 = vpack.c.b16 %v2583, %v2582
      %v2607 = vpack.c.b16 %v2585, %v2584
      %v2608 = vpack.c.b16 %v2587, %v2586
      %v2609 = vpack.c.b16 %v2589, %v2588
      %v2610 = vpack.c.b16 %v2591, %v2590
      %v2611 = vpack.c.b16 %v2593, %v2592
      %v2612 = vpack.c.b16 %v2595, %v2594
      %v2613 = vpack.c.b16 %v2597, %v2596
      %v2615 = vsel %vm810, %v2598, 0
      %v2618 = vsel %vm810, %v2599, 0
      %v2621 = vsel %vm810, %v2600, 0
      %v2624 = vsel %vm810, %v2601, 0
      %v2627 = vsel %vm810, %v2602, 0
      %v2630 = vsel %vm810, %v2603, 0
      %v2633 = vsel %vm810, %v2604, 0
      %v2636 = vsel %vm810, %v2605, 0
      %v2639 = vsel %vm810, %v2606, 0
      %v2642 = vsel %vm810, %v2607, 0
      %v2645 = vsel %vm810, %v2608, 0
      %v2648 = vsel %vm810, %v2609, 0
      %v2651 = vsel %vm810, %v2610, 0
      %v2654 = vsel %vm810, %v2611, 0
      %v2657 = vsel %vm810, %v2612, 0
      %v2660 = vsel %vm810, %v2613, 0
      %v2663 = vsel %vm859, %v2565, 0
      %2665 = vmatprep.subr.bf16.mxu0 0
      %2666 = vmatpush1.bf16.msra.mxu0 0
      %2667 = vmatprep.subr.bf16.mxu0 0
      %2668 = vmatpush1.bf16.msra.mxu0 0
      %2669 = vmatprep.subr.bf16.mxu0 0
      %2670 = vmatpush1.bf16.msra.mxu0 0
      %2671 = vmatprep.subr.bf16.mxu0 0
      %2672 = vmatpush1.bf16.msra.mxu0 0
      %2673 = vmatprep.subr.bf16.mxu0 0
      %2674 = vmatpush1.bf16.msra.mxu0 0
      %2675 = vmatprep.subr.bf16.mxu0 0
      %2676 = vmatpush1.bf16.msra.mxu0 0
      %2677 = vmatprep.subr.bf16.mxu0 0
      %2678 = vmatpush1.bf16.msra.mxu0 0
      %2679 = vmatprep.subr.bf16.mxu0 0
      %2680 = vmatpush1.bf16.msra.mxu0 %v2663
      %2681 = vmatprep.subr.bf16.mxu0 0
      %2682 = vmatpush2.bf16.msra.mxu0 0
      %2683 = vmatprep.subr.bf16.mxu0 0
      %2684 = vmatpush2.bf16.msra.mxu0 0
      %2685 = vmatprep.subr.bf16.mxu0 0
      %2686 = vmatpush2.bf16.msra.mxu0 0
      %2687 = vmatprep.subr.bf16.mxu0 0
      %2688 = vmatpush2.bf16.msra.mxu0 0
      %2689 = vmatprep.subr.bf16.mxu0 0
      %2690 = vmatpush2.bf16.msra.mxu0 0
      %2691 = vmatprep.subr.bf16.mxu0 0
      %2692 = vmatpush2.bf16.msra.mxu0 0
      %2693 = vmatprep.subr.bf16.mxu0 0
      %2694 = vmatpush2.bf16.msra.mxu0 0
      %2695 = vmatprep.subr.bf16.mxu0 0
      %2696 = vmatpush2.bf16.msra.mxu0 0
      %2697 = vmatprep.mubr.bf16.mxu0 0
      %2698 = vmatmul.mubr.bf16.gmra.mxu0 %v2615
      %v2699 = vpop.f32.mrf.mxu0
      %v2700 = vadd.f32 0.0, %v2699
      %v2701 = vpop.f32.mrf.mxu0
      %v2702 = vpop.f32.mrf.mxu0
      %v2703 = vadd.f32 0.0, %v2702
      %v2704 = vpop.f32.mrf.mxu0
      %2705 = vmatprep.mubr.bf16.mxu0 0
      %2706 = vmatmul.mubr.bf16.gmra.mxu0 %v2618
      %v2707 = vpop.f32.mrf.mxu0
      %v2708 = vadd.f32 0.0, %v2707
      %v2709 = vpop.f32.mrf.mxu0
      %v2710 = vpop.f32.mrf.mxu0
      %v2711 = vadd.f32 0.0, %v2710
      %v2712 = vpop.f32.mrf.mxu0
      %2713 = vmatprep.mubr.bf16.mxu0 0
      %2714 = vmatmul.mubr.bf16.gmra.mxu0 %v2621
      %v2715 = vpop.f32.mrf.mxu0
      %v2716 = vadd.f32 0.0, %v2715
      %v2717 = vpop.f32.mrf.mxu0
      %v2718 = vpop.f32.mrf.mxu0
      %v2719 = vadd.f32 0.0, %v2718
      %v2720 = vpop.f32.mrf.mxu0
      %2721 = vmatprep.mubr.bf16.mxu0 0
      %2722 = vmatmul.mubr.bf16.gmra.mxu0 %v2624
      %v2723 = vpop.f32.mrf.mxu0
      %v2724 = vadd.f32 0.0, %v2723
      %v2725 = vpop.f32.mrf.mxu0
      %v2726 = vpop.f32.mrf.mxu0
      %v2727 = vadd.f32 0.0, %v2726
      %v2728 = vpop.f32.mrf.mxu0
      %2729 = vmatprep.mubr.bf16.mxu0 0
      %2730 = vmatmul.mubr.bf16.gmra.mxu0 %v2627
      %v2731 = vpop.f32.mrf.mxu0
      %v2732 = vadd.f32 0.0, %v2731
      %v2733 = vpop.f32.mrf.mxu0
      %v2734 = vpop.f32.mrf.mxu0
      %v2735 = vadd.f32 0.0, %v2734
      %v2736 = vpop.f32.mrf.mxu0
      %2737 = vmatprep.mubr.bf16.mxu0 0
      %2738 = vmatmul.mubr.bf16.gmra.mxu0 %v2630
      %v2739 = vpop.f32.mrf.mxu0
      %v2740 = vadd.f32 0.0, %v2739
      %v2741 = vpop.f32.mrf.mxu0
      %v2742 = vpop.f32.mrf.mxu0
      %v2743 = vadd.f32 0.0, %v2742
      %v2744 = vpop.f32.mrf.mxu0
      %2745 = vmatprep.mubr.bf16.mxu0 0
      %2746 = vmatmul.mubr.bf16.gmra.mxu0 %v2633
      %v2747 = vpop.f32.mrf.mxu0
      %v2748 = vadd.f32 0.0, %v2747
      %v2749 = vpop.f32.mrf.mxu0
      %v2750 = vpop.f32.mrf.mxu0
      %v2751 = vadd.f32 0.0, %v2750
      %v2752 = vpop.f32.mrf.mxu0
      %2753 = vmatprep.mubr.bf16.mxu0 0
      %2754 = vmatmul.mubr.bf16.gmra.mxu0 %v2636
      %v2755 = vpop.f32.mrf.mxu0
      %v2756 = vadd.f32 0.0, %v2755
      %v2757 = vpop.f32.mrf.mxu0
      %v2758 = vpop.f32.mrf.mxu0
      %v2759 = vadd.f32 0.0, %v2758
      %v2760 = vpop.f32.mrf.mxu0
      %2761 = vmatprep.mubr.bf16.mxu0 0
      %2762 = vmatmul.mubr.bf16.gmra.mxu0 %v2639
      %v2763 = vpop.f32.mrf.mxu0
      %v2764 = vadd.f32 0.0, %v2763
      %v2765 = vpop.f32.mrf.mxu0
      %v2766 = vpop.f32.mrf.mxu0
      %v2767 = vadd.f32 0.0, %v2766
      %v2768 = vpop.f32.mrf.mxu0
      %2769 = vmatprep.mubr.bf16.mxu0 0
      %2770 = vmatmul.mubr.bf16.gmra.mxu0 %v2642
      %v2771 = vpop.f32.mrf.mxu0
      %v2772 = vadd.f32 0.0, %v2771
      %v2773 = vpop.f32.mrf.mxu0
      %v2774 = vpop.f32.mrf.mxu0
      %v2775 = vadd.f32 0.0, %v2774
      %v2776 = vpop.f32.mrf.mxu0
      %2777 = vmatprep.mubr.bf16.mxu0 0
      %2778 = vmatmul.mubr.bf16.gmra.mxu0 %v2645
      %v2779 = vpop.f32.mrf.mxu0
      %v2780 = vadd.f32 0.0, %v2779
      %v2781 = vpop.f32.mrf.mxu0
      %v2782 = vpop.f32.mrf.mxu0
      %v2783 = vadd.f32 0.0, %v2782
      %v2784 = vpop.f32.mrf.mxu0
      %2785 = vmatprep.mubr.bf16.mxu0 0
      %2786 = vmatmul.mubr.bf16.gmra.mxu0 %v2648
      %v2787 = vpop.f32.mrf.mxu0
      %v2788 = vadd.f32 0.0, %v2787
      %v2789 = vpop.f32.mrf.mxu0
      %v2790 = vpop.f32.mrf.mxu0
      %v2791 = vadd.f32 0.0, %v2790
      %v2792 = vpop.f32.mrf.mxu0
      %2793 = vmatprep.mubr.bf16.mxu0 0
      %2794 = vmatmul.mubr.bf16.gmra.mxu0 %v2651
      %v2795 = vpop.f32.mrf.mxu0
      %v2796 = vadd.f32 0.0, %v2795
      %v2797 = vpop.f32.mrf.mxu0
      %v2798 = vpop.f32.mrf.mxu0
      %v2799 = vadd.f32 0.0, %v2798
      %v2800 = vpop.f32.mrf.mxu0
      %2801 = vmatprep.mubr.bf16.mxu0 0
      %2802 = vmatmul.mubr.bf16.gmra.mxu0 %v2654
      %v2803 = vpop.f32.mrf.mxu0
      %v2804 = vadd.f32 0.0, %v2803
      %v2805 = vpop.f32.mrf.mxu0
      %v2806 = vpop.f32.mrf.mxu0
      %v2807 = vadd.f32 0.0, %v2806
      %v2808 = vpop.f32.mrf.mxu0
      %2809 = vmatprep.mubr.bf16.mxu0 0
      %2810 = vmatmul.mubr.bf16.gmra.mxu0 %v2657
      %v2811 = vpop.f32.mrf.mxu0
      %v2812 = vadd.f32 0.0, %v2811
      %v2813 = vpop.f32.mrf.mxu0
      %v2814 = vpop.f32.mrf.mxu0
      %v2815 = vadd.f32 0.0, %v2814
      %v2816 = vpop.f32.mrf.mxu0
      %2817 = vmatprep.mubr.bf16.mxu0 0
      %2818 = vmatmul.mubr.bf16.gmra.mxu0 %v2660
      %v2819 = vpop.f32.mrf.mxu0
      %v2820 = vadd.f32 0.0, %v2819
      %v2821 = vpop.f32.mrf.mxu0
      %v2822 = vpop.f32.mrf.mxu0
      %v2823 = vadd.f32 0.0, %v2822
      %v2824 = vpop.f32.mrf.mxu0
      %2825 = vdwg.mxu0
      %v2826 = vadd.f32 %v2100, %v2700
      %v2827 = vadd.f32 %v2101, %v2703
      %v2828 = vadd.f32 %v2102, %v2708
      %v2829 = vadd.f32 %v2103, %v2711
      %v2830 = vadd.f32 %v2104, %v2716
      %v2831 = vadd.f32 %v2105, %v2719
      %v2832 = vadd.f32 %v2106, %v2724
      %v2833 = vadd.f32 %v2107, %v2727
      %v2834 = vadd.f32 %v2108, %v2732
      %v2835 = vadd.f32 %v2109, %v2735
      %v2836 = vadd.f32 %v2110, %v2740
      %v2837 = vadd.f32 %v2111, %v2743
      %v2838 = vadd.f32 %v2112, %v2748
      %v2839 = vadd.f32 %v2113, %v2751
      %v2840 = vadd.f32 %v2114, %v2756
      %v2841 = vadd.f32 %v2115, %v2759
      %v2842 = vadd.f32 %v2116, %v2764
      %v2843 = vadd.f32 %v2117, %v2767
      %v2844 = vadd.f32 %v2118, %v2772
      %v2845 = vadd.f32 %v2119, %v2775
      %v2846 = vadd.f32 %v2120, %v2780
      %v2847 = vadd.f32 %v2121, %v2783
      %v2848 = vadd.f32 %v2122, %v2788
      %v2849 = vadd.f32 %v2123, %v2791
      %v2850 = vadd.f32 %v2124, %v2796
      %v2851 = vadd.f32 %v2125, %v2799
      %v2852 = vadd.f32 %v2126, %v2804
      %v2853 = vadd.f32 %v2127, %v2807
      %v2854 = vadd.f32 %v2128, %v2812
      %v2855 = vadd.f32 %v2129, %v2815
      %v2856 = vadd.f32 %v2130, %v2820
      %v2857 = vadd.f32 %v2131, %v2823
      %v2858 = vld [vmem:[%s1773] sm:$0xe]
      %v2859 = vld [vmem:[%s1773 + $0xc] sm:$0xe]
      %v2860 = vld [vmem:[%s1773 + $0x18] sm:$0xe]
      %v2861 = vld [vmem:[%s1773 + $0x24] sm:$0xe]
      %v2862 = vld [vmem:[%s1773 + $0x30] sm:$0xe]
      %v2863 = vld [vmem:[%s1773 + $0x3c] sm:$0xe]
      %v2864 = vld [vmem:[%s1773 + $0x48] sm:$0xe]
      %v2865 = vld [vmem:[%s1773 + $0x54] sm:$0xe]
      %v2866 = vld [vmem:[%s1773 + $0x60] sm:$0xe]
      %v2867 = vld [vmem:[%s1773 + $0x6c] sm:$0xe]
      %v2868 = vld [vmem:[%s1773 + $0x78] sm:$0xe]
      %v2869 = vld [vmem:[%s1773 + $0x84] sm:$0xe]
      %v2870 = vld [vmem:[%s1773 + $0x90] sm:$0xe]
      %v2871 = vld [vmem:[%s1773 + $0x9c] sm:$0xe]
      %v2872 = vld [vmem:[%s1773 + $0xa8] sm:$0xe]
      %v2873 = vld [vmem:[%s1773 + $0xb4] sm:$0xe]
      %v2922 = vrot.slane %v2858, 5
      %v2923 = vrot.slane %v2922, 4
      %v2924 = vrot.slane %v2133, 5
      %v2925 = vsel %vm1366, %v2923, %v2924
      %v2926 = vrot.slane %v2924, 4
      %v2927 = vrot.slane %v2134, 5
      %v2928 = vsel %vm1366, %v2926, %v2927
      %v2929 = vrot.slane %v2859, 5
      %v2930 = vrot.slane %v2929, 4
      %v2931 = vrot.slane %v2136, 5
      %v2932 = vsel %vm1366, %v2930, %v2931
      %v2933 = vrot.slane %v2931, 4
      %v2934 = vrot.slane %v2137, 5
      %v2935 = vsel %vm1366, %v2933, %v2934
      %v2936 = vrot.slane %v2860, 5
      %v2937 = vrot.slane %v2936, 4
      %v2938 = vrot.slane %v2139, 5
      %v2939 = vsel %vm1366, %v2937, %v2938
      %v2940 = vrot.slane %v2938, 4
      %v2941 = vrot.slane %v2140, 5
      %v2942 = vsel %vm1366, %v2940, %v2941
      %v2943 = vrot.slane %v2861, 5
      %v2944 = vrot.slane %v2943, 4
      %v2945 = vrot.slane %v2142, 5
      %v2946 = vsel %vm1366, %v2944, %v2945
      %v2947 = vrot.slane %v2945, 4
      %v2948 = vrot.slane %v2143, 5
      %v2949 = vsel %vm1366, %v2947, %v2948
      %v2950 = vrot.slane %v2862, 5
      %v2951 = vrot.slane %v2950, 4
      %v2952 = vrot.slane %v2145, 5
      %v2953 = vsel %vm1366, %v2951, %v2952
      %v2954 = vrot.slane %v2952, 4
      %v2955 = vrot.slane %v2146, 5
      %v2956 = vsel %vm1366, %v2954, %v2955
      %v2957 = vrot.slane %v2863, 5
      %v2958 = vrot.slane %v2957, 4
      %v2959 = vrot.slane %v2148, 5
      %v2960 = vsel %vm1366, %v2958, %v2959
      %v2961 = vrot.slane %v2959, 4
      %v2962 = vrot.slane %v2149, 5
      %v2963 = vsel %vm1366, %v2961, %v2962
      %v2964 = vrot.slane %v2864, 5
      %v2965 = vrot.slane %v2964, 4
      %v2966 = vrot.slane %v2151, 5
      %v2967 = vsel %vm1366, %v2965, %v2966
      %v2968 = vrot.slane %v2966, 4
      %v2969 = vrot.slane %v2152, 5
      %v2970 = vsel %vm1366, %v2968, %v2969
      %v2971 = vrot.slane %v2865, 5
      %v2972 = vrot.slane %v2971, 4
      %v2973 = vrot.slane %v2154, 5
      %v2974 = vsel %vm1366, %v2972, %v2973
      %v2975 = vrot.slane %v2973, 4
      %v2976 = vrot.slane %v2155, 5
      %v2977 = vsel %vm1366, %v2975, %v2976
      %v2978 = vrot.slane %v2866, 5
      %v2979 = vrot.slane %v2978, 4
      %v2980 = vrot.slane %v2157, 5
      %v2981 = vsel %vm1366, %v2979, %v2980
      %v2982 = vrot.slane %v2980, 4
      %v2983 = vrot.slane %v2158, 5
      %v2984 = vsel %vm1366, %v2982, %v2983
      %v2985 = vrot.slane %v2867, 5
      %v2986 = vrot.slane %v2985, 4
      %v2987 = vrot.slane %v2160, 5
      %v2988 = vsel %vm1366, %v2986, %v2987
      %v2989 = vrot.slane %v2987, 4
      %v2990 = vrot.slane %v2161, 5
      %v2991 = vsel %vm1366, %v2989, %v2990
      %v2992 = vrot.slane %v2868, 5
      %v2993 = vrot.slane %v2992, 4
      %v2994 = vrot.slane %v2163, 5
      %v2995 = vsel %vm1366, %v2993, %v2994
      %v2996 = vrot.slane %v2994, 4
      %v2997 = vrot.slane %v2164, 5
      %v2998 = vsel %vm1366, %v2996, %v2997
      %v2999 = vrot.slane %v2869, 5
      %v3000 = vrot.slane %v2999, 4
      %v3001 = vrot.slane %v2166, 5
      %v3002 = vsel %vm1366, %v3000, %v3001
      %v3003 = vrot.slane %v3001, 4
      %v3004 = vrot.slane %v2167, 5
      %v3005 = vsel %vm1366, %v3003, %v3004
      %v3006 = vrot.slane %v2870, 5
      %v3007 = vrot.slane %v3006, 4
      %v3008 = vrot.slane %v2169, 5
      %v3009 = vsel %vm1366, %v3007, %v3008
      %v3010 = vrot.slane %v3008, 4
      %v3011 = vrot.slane %v2170, 5
      %v3012 = vsel %vm1366, %v3010, %v3011
      %v3013 = vrot.slane %v2871, 5
      %v3014 = vrot.slane %v3013, 4
      %v3015 = vrot.slane %v2172, 5
      %v3016 = vsel %vm1366, %v3014, %v3015
      %v3017 = vrot.slane %v3015, 4
      %v3018 = vrot.slane %v2173, 5
      %v3019 = vsel %vm1366, %v3017, %v3018
      %v3020 = vrot.slane %v2872, 5
      %v3021 = vrot.slane %v3020, 4
      %v3022 = vrot.slane %v2175, 5
      %v3023 = vsel %vm1366, %v3021, %v3022
      %v3024 = vrot.slane %v3022, 4
      %v3025 = vrot.slane %v2176, 5
      %v3026 = vsel %vm1366, %v3024, %v3025
      %v3027 = vrot.slane %v2873, 5
      %v3028 = vrot.slane %v3027, 4
      %v3029 = vrot.slane %v2178, 5
      %v3030 = vsel %vm1366, %v3028, %v3029
      %v3031 = vrot.slane %v3029, 4
      %v3032 = vrot.slane %v2179, 5
      %v3033 = vsel %vm1366, %v3031, %v3032
      %s3034 = scalar_lea.vmem %s1, 10
      %v3035 = vld [vmem:[%s3034] sm:$0x3]
      %v3036 = vunpack.c.l.b16 %v2925
      %v3037 = vunpack.c.l.b16 %v2928
      %v3038 = vunpack.c.l.b16 %v2932
      %v3039 = vunpack.c.l.b16 %v2935
      %v3040 = vunpack.c.l.b16 %v2939
      %v3041 = vunpack.c.l.b16 %v2942
      %v3042 = vunpack.c.l.b16 %v2946
      %v3043 = vunpack.c.l.b16 %v2949
      %v3044 = vunpack.c.l.b16 %v2953
      %v3045 = vunpack.c.l.b16 %v2956
      %v3046 = vunpack.c.l.b16 %v2960
      %v3047 = vunpack.c.l.b16 %v2963
      %v3048 = vunpack.c.l.b16 %v2967
      %v3049 = vunpack.c.l.b16 %v2970
      %v3050 = vunpack.c.l.b16 %v2974
      %v3051 = vunpack.c.l.b16 %v2977
      %v3052 = vunpack.c.l.b16 %v2981
      %v3053 = vunpack.c.l.b16 %v2984
      %v3054 = vunpack.c.l.b16 %v2988
      %v3055 = vunpack.c.l.b16 %v2991
      %v3056 = vunpack.c.l.b16 %v2995
      %v3057 = vunpack.c.l.b16 %v2998
      %v3058 = vunpack.c.l.b16 %v3002
      %v3059 = vunpack.c.l.b16 %v3005
      %v3060 = vunpack.c.l.b16 %v3009
      %v3061 = vunpack.c.l.b16 %v3012
      %v3062 = vunpack.c.l.b16 %v3016
      %v3063 = vunpack.c.l.b16 %v3019
      %v3064 = vunpack.c.l.b16 %v3023
      %v3065 = vunpack.c.l.b16 %v3026
      %v3066 = vunpack.c.l.b16 %v3030
      %v3067 = vunpack.c.l.b16 %v3033
      %v3068 = vpack.c.b16 %v3037, %v3036
      %v3069 = vpack.c.b16 %v3039, %v3038
      %v3070 = vpack.c.b16 %v3041, %v3040
      %v3071 = vpack.c.b16 %v3043, %v3042
      %v3072 = vpack.c.b16 %v3045, %v3044
      %v3073 = vpack.c.b16 %v3047, %v3046
      %v3074 = vpack.c.b16 %v3049, %v3048
      %v3075 = vpack.c.b16 %v3051, %v3050
      %v3076 = vpack.c.b16 %v3053, %v3052
      %v3077 = vpack.c.b16 %v3055, %v3054
      %v3078 = vpack.c.b16 %v3057, %v3056
      %v3079 = vpack.c.b16 %v3059, %v3058
      %v3080 = vpack.c.b16 %v3061, %v3060
      %v3081 = vpack.c.b16 %v3063, %v3062
      %v3082 = vpack.c.b16 %v3065, %v3064
      %v3083 = vpack.c.b16 %v3067, %v3066
      %v3085 = vsel %vm810, %v3068, 0
      %v3088 = vsel %vm810, %v3069, 0
      %v3091 = vsel %vm810, %v3070, 0
      %v3094 = vsel %vm810, %v3071, 0
      %v3097 = vsel %vm810, %v3072, 0
      %v3100 = vsel %vm810, %v3073, 0
      %v3103 = vsel %vm810, %v3074, 0
      %v3106 = vsel %vm810, %v3075, 0
      %v3109 = vsel %vm810, %v3076, 0
      %v3112 = vsel %vm810, %v3077, 0
      %v3115 = vsel %vm810, %v3078, 0
      %v3118 = vsel %vm810, %v3079, 0
      %v3121 = vsel %vm810, %v3080, 0
      %v3124 = vsel %vm810, %v3081, 0
      %v3127 = vsel %vm810, %v3082, 0
      %v3130 = vsel %vm810, %v3083, 0
      %v3133 = vsel %vm859, %v3035, 0
      %3135 = vmatprep.subr.bf16.mxu0 0
      %3136 = vmatpush1.bf16.msra.mxu0 0
      %3137 = vmatprep.subr.bf16.mxu0 0
      %3138 = vmatpush1.bf16.msra.mxu0 0
      %3139 = vmatprep.subr.bf16.mxu0 0
      %3140 = vmatpush1.bf16.msra.mxu0 0
      %3141 = vmatprep.subr.bf16.mxu0 0
      %3142 = vmatpush1.bf16.msra.mxu0 0
      %3143 = vmatprep.subr.bf16.mxu0 0
      %3144 = vmatpush1.bf16.msra.mxu0 0
      %3145 = vmatprep.subr.bf16.mxu0 0
      %3146 = vmatpush1.bf16.msra.mxu0 0
      %3147 = vmatprep.subr.bf16.mxu0 0
      %3148 = vmatpush1.bf16.msra.mxu0 0
      %3149 = vmatprep.subr.bf16.mxu0 0
      %3150 = vmatpush1.bf16.msra.mxu0 %v3133
      %3151 = vmatprep.subr.bf16.mxu0 0
      %3152 = vmatpush2.bf16.msra.mxu0 0
      %3153 = vmatprep.subr.bf16.mxu0 0
      %3154 = vmatpush2.bf16.msra.mxu0 0
      %3155 = vmatprep.subr.bf16.mxu0 0
      %3156 = vmatpush2.bf16.msra.mxu0 0
      %3157 = vmatprep.subr.bf16.mxu0 0
      %3158 = vmatpush2.bf16.msra.mxu0 0
      %3159 = vmatprep.subr.bf16.mxu0 0
      %3160 = vmatpush2.bf16.msra.mxu0 0
      %3161 = vmatprep.subr.bf16.mxu0 0
      %3162 = vmatpush2.bf16.msra.mxu0 0
      %3163 = vmatprep.subr.bf16.mxu0 0
      %3164 = vmatpush2.bf16.msra.mxu0 0
      %3165 = vmatprep.subr.bf16.mxu0 0
      %3166 = vmatpush2.bf16.msra.mxu0 0
      %3167 = vmatprep.mubr.bf16.mxu0 0
      %3168 = vmatmul.mubr.bf16.gmra.mxu0 %v3085
      %v3169 = vpop.f32.mrf.mxu0
      %v3170 = vadd.f32 0.0, %v3169
      %v3171 = vpop.f32.mrf.mxu0
      %v3172 = vpop.f32.mrf.mxu0
      %v3173 = vadd.f32 0.0, %v3172
      %v3174 = vpop.f32.mrf.mxu0
      %3175 = vmatprep.mubr.bf16.mxu0 0
      %3176 = vmatmul.mubr.bf16.gmra.mxu0 %v3088
      %v3177 = vpop.f32.mrf.mxu0
      %v3178 = vadd.f32 0.0, %v3177
      %v3179 = vpop.f32.mrf.mxu0
      %v3180 = vpop.f32.mrf.mxu0
      %v3181 = vadd.f32 0.0, %v3180
      %v3182 = vpop.f32.mrf.mxu0
      %3183 = vmatprep.mubr.bf16.mxu0 0
      %3184 = vmatmul.mubr.bf16.gmra.mxu0 %v3091
      %v3185 = vpop.f32.mrf.mxu0
      %v3186 = vadd.f32 0.0, %v3185
      %v3187 = vpop.f32.mrf.mxu0
      %v3188 = vpop.f32.mrf.mxu0
      %v3189 = vadd.f32 0.0, %v3188
      %v3190 = vpop.f32.mrf.mxu0
      %3191 = vmatprep.mubr.bf16.mxu0 0
      %3192 = vmatmul.mubr.bf16.gmra.mxu0 %v3094
      %v3193 = vpop.f32.mrf.mxu0
      %v3194 = vadd.f32 0.0, %v3193
      %v3195 = vpop.f32.mrf.mxu0
      %v3196 = vpop.f32.mrf.mxu0
      %v3197 = vadd.f32 0.0, %v3196
      %v3198 = vpop.f32.mrf.mxu0
      %3199 = vmatprep.mubr.bf16.mxu0 0
      %3200 = vmatmul.mubr.bf16.gmra.mxu0 %v3097
      %v3201 = vpop.f32.mrf.mxu0
      %v3202 = vadd.f32 0.0, %v3201
      %v3203 = vpop.f32.mrf.mxu0
      %v3204 = vpop.f32.mrf.mxu0
      %v3205 = vadd.f32 0.0, %v3204
      %v3206 = vpop.f32.mrf.mxu0
      %3207 = vmatprep.mubr.bf16.mxu0 0
      %3208 = vmatmul.mubr.bf16.gmra.mxu0 %v3100
      %v3209 = vpop.f32.mrf.mxu0
      %v3210 = vadd.f32 0.0, %v3209
      %v3211 = vpop.f32.mrf.mxu0
      %v3212 = vpop.f32.mrf.mxu0
      %v3213 = vadd.f32 0.0, %v3212
      %v3214 = vpop.f32.mrf.mxu0
      %3215 = vmatprep.mubr.bf16.mxu0 0
      %3216 = vmatmul.mubr.bf16.gmra.mxu0 %v3103
      %v3217 = vpop.f32.mrf.mxu0
      %v3218 = vadd.f32 0.0, %v3217
      %v3219 = vpop.f32.mrf.mxu0
      %v3220 = vpop.f32.mrf.mxu0
      %v3221 = vadd.f32 0.0, %v3220
      %v3222 = vpop.f32.mrf.mxu0
      %3223 = vmatprep.mubr.bf16.mxu0 0
      %3224 = vmatmul.mubr.bf16.gmra.mxu0 %v3106
      %v3225 = vpop.f32.mrf.mxu0
      %v3226 = vadd.f32 0.0, %v3225
      %v3227 = vpop.f32.mrf.mxu0
      %v3228 = vpop.f32.mrf.mxu0
      %v3229 = vadd.f32 0.0, %v3228
      %v3230 = vpop.f32.mrf.mxu0
      %3231 = vmatprep.mubr.bf16.mxu0 0
      %3232 = vmatmul.mubr.bf16.gmra.mxu0 %v3109
      %v3233 = vpop.f32.mrf.mxu0
      %v3234 = vadd.f32 0.0, %v3233
      %v3235 = vpop.f32.mrf.mxu0
      %v3236 = vpop.f32.mrf.mxu0
      %v3237 = vadd.f32 0.0, %v3236
      %v3238 = vpop.f32.mrf.mxu0
      %3239 = vmatprep.mubr.bf16.mxu0 0
      %3240 = vmatmul.mubr.bf16.gmra.mxu0 %v3112
      %v3241 = vpop.f32.mrf.mxu0
      %v3242 = vadd.f32 0.0, %v3241
      %v3243 = vpop.f32.mrf.mxu0
      %v3244 = vpop.f32.mrf.mxu0
      %v3245 = vadd.f32 0.0, %v3244
      %v3246 = vpop.f32.mrf.mxu0
      %3247 = vmatprep.mubr.bf16.mxu0 0
      %3248 = vmatmul.mubr.bf16.gmra.mxu0 %v3115
      %v3249 = vpop.f32.mrf.mxu0
      %v3250 = vadd.f32 0.0, %v3249
      %v3251 = vpop.f32.mrf.mxu0
      %v3252 = vpop.f32.mrf.mxu0
      %v3253 = vadd.f32 0.0, %v3252
      %v3254 = vpop.f32.mrf.mxu0
      %3255 = vmatprep.mubr.bf16.mxu0 0
      %3256 = vmatmul.mubr.bf16.gmra.mxu0 %v3118
      %v3257 = vpop.f32.mrf.mxu0
      %v3258 = vadd.f32 0.0, %v3257
      %v3259 = vpop.f32.mrf.mxu0
      %v3260 = vpop.f32.mrf.mxu0
      %v3261 = vadd.f32 0.0, %v3260
      %v3262 = vpop.f32.mrf.mxu0
      %3263 = vmatprep.mubr.bf16.mxu0 0
      %3264 = vmatmul.mubr.bf16.gmra.mxu0 %v3121
      %v3265 = vpop.f32.mrf.mxu0
      %v3266 = vadd.f32 0.0, %v3265
      %v3267 = vpop.f32.mrf.mxu0
      %v3268 = vpop.f32.mrf.mxu0
      %v3269 = vadd.f32 0.0, %v3268
      %v3270 = vpop.f32.mrf.mxu0
      %3271 = vmatprep.mubr.bf16.mxu0 0
      %3272 = vmatmul.mubr.bf16.gmra.mxu0 %v3124
      %v3273 = vpop.f32.mrf.mxu0
      %v3274 = vadd.f32 0.0, %v3273
      %v3275 = vpop.f32.mrf.mxu0
      %v3276 = vpop.f32.mrf.mxu0
      %v3277 = vadd.f32 0.0, %v3276
      %v3278 = vpop.f32.mrf.mxu0
      %3279 = vmatprep.mubr.bf16.mxu0 0
      %3280 = vmatmul.mubr.bf16.gmra.mxu0 %v3127
      %v3281 = vpop.f32.mrf.mxu0
      %v3282 = vadd.f32 0.0, %v3281
      %v3283 = vpop.f32.mrf.mxu0
      %v3284 = vpop.f32.mrf.mxu0
      %v3285 = vadd.f32 0.0, %v3284
      %v3286 = vpop.f32.mrf.mxu0
      %3287 = vmatprep.mubr.bf16.mxu0 0
      %3288 = vmatmul.mubr.bf16.gmra.mxu0 %v3130
      %v3289 = vpop.f32.mrf.mxu0
      %v3290 = vadd.f32 0.0, %v3289
      %v3291 = vpop.f32.mrf.mxu0
      %v3292 = vpop.f32.mrf.mxu0
      %v3293 = vadd.f32 0.0, %v3292
      %v3294 = vpop.f32.mrf.mxu0
      %3295 = vdwg.mxu0
      %v3296 = vadd.f32 %v2826, %v3170
      %v3297 = vadd.f32 %v2827, %v3173
      %v3298 = vadd.f32 %v2828, %v3178
      %v3299 = vadd.f32 %v2829, %v3181
      %v3300 = vadd.f32 %v2830, %v3186
      %v3301 = vadd.f32 %v2831, %v3189
      %v3302 = vadd.f32 %v2832, %v3194
      %v3303 = vadd.f32 %v2833, %v3197
      %v3304 = vadd.f32 %v2834, %v3202
      %v3305 = vadd.f32 %v2835, %v3205
      %v3306 = vadd.f32 %v2836, %v3210
      %v3307 = vadd.f32 %v2837, %v3213
      %v3308 = vadd.f32 %v2838, %v3218
      %v3309 = vadd.f32 %v2839, %v3221
      %v3310 = vadd.f32 %v2840, %v3226
      %v3311 = vadd.f32 %v2841, %v3229
      %v3312 = vadd.f32 %v2842, %v3234
      %v3313 = vadd.f32 %v2843, %v3237
      %v3314 = vadd.f32 %v2844, %v3242
      %v3315 = vadd.f32 %v2845, %v3245
      %v3316 = vadd.f32 %v2846, %v3250
      %v3317 = vadd.f32 %v2847, %v3253
      %v3318 = vadd.f32 %v2848, %v3258
      %v3319 = vadd.f32 %v2849, %v3261
      %v3320 = vadd.f32 %v2850, %v3266
      %v3321 = vadd.f32 %v2851, %v3269
      %v3322 = vadd.f32 %v2852, %v3274
      %v3323 = vadd.f32 %v2853, %v3277
      %v3324 = vadd.f32 %v2854, %v3282
      %v3325 = vadd.f32 %v2855, %v3285
      %v3326 = vadd.f32 %v2856, %v3290
      %v3327 = vadd.f32 %v2857, %v3293
      %s3328 = scalar_lea.vmem %s310, 24
      %v3329 = vld [vmem:[%s3328] sm:$0xf]
      %v3330 = vld [vmem:[%s3328 + $0x4] sm:$0xf]
      %v3331 = vld [vmem:[%s3328 + $0xc] sm:$0xf]
      %v3332 = vld [vmem:[%s3328 + $0x10] sm:$0xf]
      %v3333 = vld [vmem:[%s3328 + $0x18] sm:$0xf]
      %v3334 = vld [vmem:[%s3328 + $0x1c] sm:$0xf]
      %v3335 = vld [vmem:[%s3328 + $0x24] sm:$0xf]
      %v3336 = vld [vmem:[%s3328 + $0x28] sm:$0xf]
      %v3337 = vld [vmem:[%s3328 + $0x30] sm:$0xf]
      %v3338 = vld [vmem:[%s3328 + $0x34] sm:$0xf]
      %v3339 = vld [vmem:[%s3328 + $0x3c] sm:$0xf]
      %v3340 = vld [vmem:[%s3328 + $0x40] sm:$0xf]
      %v3341 = vld [vmem:[%s3328 + $0x48] sm:$0xf]
      %v3342 = vld [vmem:[%s3328 + $0x4c] sm:$0xf]
      %v3343 = vld [vmem:[%s3328 + $0x54] sm:$0xf]
      %v3344 = vld [vmem:[%s3328 + $0x58] sm:$0xf]
      %v3345 = vld [vmem:[%s3328 + $0x60] sm:$0xf]
      %v3346 = vld [vmem:[%s3328 + $0x64] sm:$0xf]
      %v3347 = vld [vmem:[%s3328 + $0x6c] sm:$0xf]
      %v3348 = vld [vmem:[%s3328 + $0x70] sm:$0xf]
      %v3349 = vld [vmem:[%s3328 + $0x78] sm:$0xf]
      %v3350 = vld [vmem:[%s3328 + $0x7c] sm:$0xf]
      %v3351 = vld [vmem:[%s3328 + $0x84] sm:$0xf]
      %v3352 = vld [vmem:[%s3328 + $0x88] sm:$0xf]
      %v3353 = vld [vmem:[%s3328 + $0x90] sm:$0xf]
      %v3354 = vld [vmem:[%s3328 + $0x94] sm:$0xf]
      %v3355 = vld [vmem:[%s3328 + $0x9c] sm:$0xf]
      %v3356 = vld [vmem:[%s3328 + $0xa0] sm:$0xf]
      %v3357 = vld [vmem:[%s3328 + $0xa8] sm:$0xf]
      %v3358 = vld [vmem:[%s3328 + $0xac] sm:$0xf]
      %v3359 = vld [vmem:[%s3328 + $0xb4] sm:$0xf]
      %v3360 = vld [vmem:[%s3328 + $0xb8] sm:$0xf]
      %s3361 = scalar_lea.vmem %s1, 12
      %v3362 = vld [vmem:[%s3361] sm:$0x3]
      %v3395 = vunpack.c.l.b16 %v3329
      %v3396 = vunpack.c.l.b16 %v3330
      %v3397 = vunpack.c.l.b16 %v3331
      %v3398 = vunpack.c.l.b16 %v3332
      %v3399 = vunpack.c.l.b16 %v3333
      %v3400 = vunpack.c.l.b16 %v3334
      %v3401 = vunpack.c.l.b16 %v3335
      %v3402 = vunpack.c.l.b16 %v3336
      %v3403 = vunpack.c.l.b16 %v3337
      %v3404 = vunpack.c.l.b16 %v3338
      %v3405 = vunpack.c.l.b16 %v3339
      %v3406 = vunpack.c.l.b16 %v3340
      %v3407 = vunpack.c.l.b16 %v3341
      %v3408 = vunpack.c.l.b16 %v3342
      %v3409 = vunpack.c.l.b16 %v3343
      %v3410 = vunpack.c.l.b16 %v3344
      %v3411 = vunpack.c.l.b16 %v3345
      %v3412 = vunpack.c.l.b16 %v3346
      %v3413 = vunpack.c.l.b16 %v3347
      %v3414 = vunpack.c.l.b16 %v3348
      %v3415 = vunpack.c.l.b16 %v3349
      %v3416 = vunpack.c.l.b16 %v3350
      %v3417 = vunpack.c.l.b16 %v3351
      %v3418 = vunpack.c.l.b16 %v3352
      %v3419 = vunpack.c.l.b16 %v3353
      %v3420 = vunpack.c.l.b16 %v3354
      %v3421 = vunpack.c.l.b16 %v3355
      %v3422 = vunpack.c.l.b16 %v3356
      %v3423 = vunpack.c.l.b16 %v3357
      %v3424 = vunpack.c.l.b16 %v3358
      %v3425 = vunpack.c.l.b16 %v3359
      %v3426 = vunpack.c.l.b16 %v3360
      %v3427 = vpack.c.b16 %v3396, %v3395
      %v3428 = vpack.c.b16 %v3398, %v3397
      %v3429 = vpack.c.b16 %v3400, %v3399
      %v3430 = vpack.c.b16 %v3402, %v3401
      %v3431 = vpack.c.b16 %v3404, %v3403
      %v3432 = vpack.c.b16 %v3406, %v3405
      %v3433 = vpack.c.b16 %v3408, %v3407
      %v3434 = vpack.c.b16 %v3410, %v3409
      %v3435 = vpack.c.b16 %v3412, %v3411
      %v3436 = vpack.c.b16 %v3414, %v3413
      %v3437 = vpack.c.b16 %v3416, %v3415
      %v3438 = vpack.c.b16 %v3418, %v3417
      %v3439 = vpack.c.b16 %v3420, %v3419
      %v3440 = vpack.c.b16 %v3422, %v3421
      %v3441 = vpack.c.b16 %v3424, %v3423
      %v3442 = vpack.c.b16 %v3426, %v3425
      %v3444 = vsel %vm810, %v3427, 0
      %v3447 = vsel %vm810, %v3428, 0
      %v3450 = vsel %vm810, %v3429, 0
      %v3453 = vsel %vm810, %v3430, 0
      %v3456 = vsel %vm810, %v3431, 0
      %v3459 = vsel %vm810, %v3432, 0
      %v3462 = vsel %vm810, %v3433, 0
      %v3465 = vsel %vm810, %v3434, 0
      %v3468 = vsel %vm810, %v3435, 0
      %v3471 = vsel %vm810, %v3436, 0
      %v3474 = vsel %vm810, %v3437, 0
      %v3477 = vsel %vm810, %v3438, 0
      %v3480 = vsel %vm810, %v3439, 0
      %v3483 = vsel %vm810, %v3440, 0
      %v3486 = vsel %vm810, %v3441, 0
      %v3489 = vsel %vm810, %v3442, 0
      %v3492 = vsel %vm859, %v3362, 0
      %3494 = vmatprep.subr.bf16.mxu0 0
      %3495 = vmatpush1.bf16.msra.mxu0 0
      %3496 = vmatprep.subr.bf16.mxu0 0
      %3497 = vmatpush1.bf16.msra.mxu0 0
      %3498 = vmatprep.subr.bf16.mxu0 0
      %3499 = vmatpush1.bf16.msra.mxu0 0
      %3500 = vmatprep.subr.bf16.mxu0 0
      %3501 = vmatpush1.bf16.msra.mxu0 0
      %3502 = vmatprep.subr.bf16.mxu0 0
      %3503 = vmatpush1.bf16.msra.mxu0 0
      %3504 = vmatprep.subr.bf16.mxu0 0
      %3505 = vmatpush1.bf16.msra.mxu0 0
      %3506 = vmatprep.subr.bf16.mxu0 0
      %3507 = vmatpush1.bf16.msra.mxu0 0
      %3508 = vmatprep.subr.bf16.mxu0 0
      %3509 = vmatpush1.bf16.msra.mxu0 %v3492
      %3510 = vmatprep.subr.bf16.mxu0 0
      %3511 = vmatpush2.bf16.msra.mxu0 0
      %3512 = vmatprep.subr.bf16.mxu0 0
      %3513 = vmatpush2.bf16.msra.mxu0 0
      %3514 = vmatprep.subr.bf16.mxu0 0
      %3515 = vmatpush2.bf16.msra.mxu0 0
      %3516 = vmatprep.subr.bf16.mxu0 0
      %3517 = vmatpush2.bf16.msra.mxu0 0
      %3518 = vmatprep.subr.bf16.mxu0 0
      %3519 = vmatpush2.bf16.msra.mxu0 0
      %3520 = vmatprep.subr.bf16.mxu0 0
      %3521 = vmatpush2.bf16.msra.mxu0 0
      %3522 = vmatprep.subr.bf16.mxu0 0
      %3523 = vmatpush2.bf16.msra.mxu0 0
      %3524 = vmatprep.subr.bf16.mxu0 0
      %3525 = vmatpush2.bf16.msra.mxu0 0
      %3526 = vmatprep.mubr.bf16.mxu0 0
      %3527 = vmatmul.mubr.bf16.gmra.mxu0 %v3444
      %v3528 = vpop.f32.mrf.mxu0
      %v3529 = vadd.f32 0.0, %v3528
      %v3530 = vpop.f32.mrf.mxu0
      %v3531 = vpop.f32.mrf.mxu0
      %v3532 = vadd.f32 0.0, %v3531
      %v3533 = vpop.f32.mrf.mxu0
      %3534 = vmatprep.mubr.bf16.mxu0 0
      %3535 = vmatmul.mubr.bf16.gmra.mxu0 %v3447
      %v3536 = vpop.f32.mrf.mxu0
      %v3537 = vadd.f32 0.0, %v3536
      %v3538 = vpop.f32.mrf.mxu0
      %v3539 = vpop.f32.mrf.mxu0
      %v3540 = vadd.f32 0.0, %v3539
      %v3541 = vpop.f32.mrf.mxu0
      %3542 = vmatprep.mubr.bf16.mxu0 0
      %3543 = vmatmul.mubr.bf16.gmra.mxu0 %v3450
      %v3544 = vpop.f32.mrf.mxu0
      %v3545 = vadd.f32 0.0, %v3544
      %v3546 = vpop.f32.mrf.mxu0
      %v3547 = vpop.f32.mrf.mxu0
      %v3548 = vadd.f32 0.0, %v3547
      %v3549 = vpop.f32.mrf.mxu0
      %3550 = vmatprep.mubr.bf16.mxu0 0
      %3551 = vmatmul.mubr.bf16.gmra.mxu0 %v3453
      %v3552 = vpop.f32.mrf.mxu0
      %v3553 = vadd.f32 0.0, %v3552
      %v3554 = vpop.f32.mrf.mxu0
      %v3555 = vpop.f32.mrf.mxu0
      %v3556 = vadd.f32 0.0, %v3555
      %v3557 = vpop.f32.mrf.mxu0
      %3558 = vmatprep.mubr.bf16.mxu0 0
      %3559 = vmatmul.mubr.bf16.gmra.mxu0 %v3456
      %v3560 = vpop.f32.mrf.mxu0
      %v3561 = vadd.f32 0.0, %v3560
      %v3562 = vpop.f32.mrf.mxu0
      %v3563 = vpop.f32.mrf.mxu0
      %v3564 = vadd.f32 0.0, %v3563
      %v3565 = vpop.f32.mrf.mxu0
      %3566 = vmatprep.mubr.bf16.mxu0 0
      %3567 = vmatmul.mubr.bf16.gmra.mxu0 %v3459
      %v3568 = vpop.f32.mrf.mxu0
      %v3569 = vadd.f32 0.0, %v3568
      %v3570 = vpop.f32.mrf.mxu0
      %v3571 = vpop.f32.mrf.mxu0
      %v3572 = vadd.f32 0.0, %v3571
      %v3573 = vpop.f32.mrf.mxu0
      %3574 = vmatprep.mubr.bf16.mxu0 0
      %3575 = vmatmul.mubr.bf16.gmra.mxu0 %v3462
      %v3576 = vpop.f32.mrf.mxu0
      %v3577 = vadd.f32 0.0, %v3576
      %v3578 = vpop.f32.mrf.mxu0
      %v3579 = vpop.f32.mrf.mxu0
      %v3580 = vadd.f32 0.0, %v3579
      %v3581 = vpop.f32.mrf.mxu0
      %3582 = vmatprep.mubr.bf16.mxu0 0
      %3583 = vmatmul.mubr.bf16.gmra.mxu0 %v3465
      %v3584 = vpop.f32.mrf.mxu0
      %v3585 = vadd.f32 0.0, %v3584
      %v3586 = vpop.f32.mrf.mxu0
      %v3587 = vpop.f32.mrf.mxu0
      %v3588 = vadd.f32 0.0, %v3587
      %v3589 = vpop.f32.mrf.mxu0
      %3590 = vmatprep.mubr.bf16.mxu0 0
      %3591 = vmatmul.mubr.bf16.gmra.mxu0 %v3468
      %v3592 = vpop.f32.mrf.mxu0
      %v3593 = vadd.f32 0.0, %v3592
      %v3594 = vpop.f32.mrf.mxu0
      %v3595 = vpop.f32.mrf.mxu0
      %v3596 = vadd.f32 0.0, %v3595
      %v3597 = vpop.f32.mrf.mxu0
      %3598 = vmatprep.mubr.bf16.mxu0 0
      %3599 = vmatmul.mubr.bf16.gmra.mxu0 %v3471
      %v3600 = vpop.f32.mrf.mxu0
      %v3601 = vadd.f32 0.0, %v3600
      %v3602 = vpop.f32.mrf.mxu0
      %v3603 = vpop.f32.mrf.mxu0
      %v3604 = vadd.f32 0.0, %v3603
      %v3605 = vpop.f32.mrf.mxu0
      %3606 = vmatprep.mubr.bf16.mxu0 0
      %3607 = vmatmul.mubr.bf16.gmra.mxu0 %v3474
      %v3608 = vpop.f32.mrf.mxu0
      %v3609 = vadd.f32 0.0, %v3608
      %v3610 = vpop.f32.mrf.mxu0
      %v3611 = vpop.f32.mrf.mxu0
      %v3612 = vadd.f32 0.0, %v3611
      %v3613 = vpop.f32.mrf.mxu0
      %3614 = vmatprep.mubr.bf16.mxu0 0
      %3615 = vmatmul.mubr.bf16.gmra.mxu0 %v3477
      %v3616 = vpop.f32.mrf.mxu0
      %v3617 = vadd.f32 0.0, %v3616
      %v3618 = vpop.f32.mrf.mxu0
      %v3619 = vpop.f32.mrf.mxu0
      %v3620 = vadd.f32 0.0, %v3619
      %v3621 = vpop.f32.mrf.mxu0
      %3622 = vmatprep.mubr.bf16.mxu0 0
      %3623 = vmatmul.mubr.bf16.gmra.mxu0 %v3480
      %v3624 = vpop.f32.mrf.mxu0
      %v3625 = vadd.f32 0.0, %v3624
      %v3626 = vpop.f32.mrf.mxu0
      %v3627 = vpop.f32.mrf.mxu0
      %v3628 = vadd.f32 0.0, %v3627
      %v3629 = vpop.f32.mrf.mxu0
      %3630 = vmatprep.mubr.bf16.mxu0 0
      %3631 = vmatmul.mubr.bf16.gmra.mxu0 %v3483
      %v3632 = vpop.f32.mrf.mxu0
      %v3633 = vadd.f32 0.0, %v3632
      %v3634 = vpop.f32.mrf.mxu0
      %v3635 = vpop.f32.mrf.mxu0
      %v3636 = vadd.f32 0.0, %v3635
      %v3637 = vpop.f32.mrf.mxu0
      %3638 = vmatprep.mubr.bf16.mxu0 0
      %3639 = vmatmul.mubr.bf16.gmra.mxu0 %v3486
      %v3640 = vpop.f32.mrf.mxu0
      %v3641 = vadd.f32 0.0, %v3640
      %v3642 = vpop.f32.mrf.mxu0
      %v3643 = vpop.f32.mrf.mxu0
      %v3644 = vadd.f32 0.0, %v3643
      %v3645 = vpop.f32.mrf.mxu0
      %3646 = vmatprep.mubr.bf16.mxu0 0
      %3647 = vmatmul.mubr.bf16.gmra.mxu0 %v3489
      %v3648 = vpop.f32.mrf.mxu0
      %v3649 = vadd.f32 0.0, %v3648
      %v3650 = vpop.f32.mrf.mxu0
      %v3651 = vpop.f32.mrf.mxu0
      %v3652 = vadd.f32 0.0, %v3651
      %v3653 = vpop.f32.mrf.mxu0
      %3654 = vdwg.mxu0
      %v3655 = vadd.f32 %v3296, %v3529
      %v3656 = vadd.f32 %v3297, %v3532
      %v3657 = vadd.f32 %v3298, %v3537
      %v3658 = vadd.f32 %v3299, %v3540
      %v3659 = vadd.f32 %v3300, %v3545
      %v3660 = vadd.f32 %v3301, %v3548
      %v3661 = vadd.f32 %v3302, %v3553
      %v3662 = vadd.f32 %v3303, %v3556
      %v3663 = vadd.f32 %v3304, %v3561
      %v3664 = vadd.f32 %v3305, %v3564
      %v3665 = vadd.f32 %v3306, %v3569
      %v3666 = vadd.f32 %v3307, %v3572
      %v3667 = vadd.f32 %v3308, %v3577
      %v3668 = vadd.f32 %v3309, %v3580
      %v3669 = vadd.f32 %v3310, %v3585
      %v3670 = vadd.f32 %v3311, %v3588
      %v3671 = vadd.f32 %v3312, %v3593
      %v3672 = vadd.f32 %v3313, %v3596
      %v3673 = vadd.f32 %v3314, %v3601
      %v3674 = vadd.f32 %v3315, %v3604
      %v3675 = vadd.f32 %v3316, %v3609
      %v3676 = vadd.f32 %v3317, %v3612
      %v3677 = vadd.f32 %v3318, %v3617
      %v3678 = vadd.f32 %v3319, %v3620
      %v3679 = vadd.f32 %v3320, %v3625
      %v3680 = vadd.f32 %v3321, %v3628
      %v3681 = vadd.f32 %v3322, %v3633
      %v3682 = vadd.f32 %v3323, %v3636
      %v3683 = vadd.f32 %v3324, %v3641
      %v3684 = vadd.f32 %v3325, %v3644
      %v3685 = vadd.f32 %v3326, %v3649
      %v3686 = vadd.f32 %v3327, %v3652
      %v3687 = vld [vmem:[%s3328] sm:$0xf]
      %v3688 = vld [vmem:[%s3328 + $0x4] sm:$0xf]
      %v3689 = vld [vmem:[%s3328 + $0x8] sm:$0x1]
      %v3690 = vld [vmem:[%s3328 + $0xc] sm:$0xf]
      %v3691 = vld [vmem:[%s3328 + $0x10] sm:$0xf]
      %v3692 = vld [vmem:[%s3328 + $0x14] sm:$0x1]
      %v3693 = vld [vmem:[%s3328 + $0x18] sm:$0xf]
      %v3694 = vld [vmem:[%s3328 + $0x1c] sm:$0xf]
      %v3695 = vld [vmem:[%s3328 + $0x20] sm:$0x1]
      %v3696 = vld [vmem:[%s3328 + $0x24] sm:$0xf]
      %v3697 = vld [vmem:[%s3328 + $0x28] sm:$0xf]
      %v3698 = vld [vmem:[%s3328 + $0x2c] sm:$0x1]
      %v3699 = vld [vmem:[%s3328 + $0x30] sm:$0xf]
      %v3700 = vld [vmem:[%s3328 + $0x34] sm:$0xf]
      %v3701 = vld [vmem:[%s3328 + $0x38] sm:$0x1]
      %v3702 = vld [vmem:[%s3328 + $0x3c] sm:$0xf]
      %v3703 = vld [vmem:[%s3328 + $0x40] sm:$0xf]
      %v3704 = vld [vmem:[%s3328 + $0x44] sm:$0x1]
      %v3705 = vld [vmem:[%s3328 + $0x48] sm:$0xf]
      %v3706 = vld [vmem:[%s3328 + $0x4c] sm:$0xf]
      %v3707 = vld [vmem:[%s3328 + $0x50] sm:$0x1]
      %v3708 = vld [vmem:[%s3328 + $0x54] sm:$0xf]
      %v3709 = vld [vmem:[%s3328 + $0x58] sm:$0xf]
      %v3710 = vld [vmem:[%s3328 + $0x5c] sm:$0x1]
      %v3711 = vld [vmem:[%s3328 + $0x60] sm:$0xf]
      %v3712 = vld [vmem:[%s3328 + $0x64] sm:$0xf]
      %v3713 = vld [vmem:[%s3328 + $0x68] sm:$0x1]
      %v3714 = vld [vmem:[%s3328 + $0x6c] sm:$0xf]
      %v3715 = vld [vmem:[%s3328 + $0x70] sm:$0xf]
      %v3716 = vld [vmem:[%s3328 + $0x74] sm:$0x1]
      %v3717 = vld [vmem:[%s3328 + $0x78] sm:$0xf]
      %v3718 = vld [vmem:[%s3328 + $0x7c] sm:$0xf]
      %v3719 = vld [vmem:[%s3328 + $0x80] sm:$0x1]
      %v3720 = vld [vmem:[%s3328 + $0x84] sm:$0xf]
      %v3721 = vld [vmem:[%s3328 + $0x88] sm:$0xf]
      %v3722 = vld [vmem:[%s3328 + $0x8c] sm:$0x1]
      %v3723 = vld [vmem:[%s3328 + $0x90] sm:$0xf]
      %v3724 = vld [vmem:[%s3328 + $0x94] sm:$0xf]
      %v3725 = vld [vmem:[%s3328 + $0x98] sm:$0x1]
      %v3726 = vld [vmem:[%s3328 + $0x9c] sm:$0xf]
      %v3727 = vld [vmem:[%s3328 + $0xa0] sm:$0xf]
      %v3728 = vld [vmem:[%s3328 + $0xa4] sm:$0x1]
      %v3729 = vld [vmem:[%s3328 + $0xa8] sm:$0xf]
      %v3730 = vld [vmem:[%s3328 + $0xac] sm:$0xf]
      %v3731 = vld [vmem:[%s3328 + $0xb0] sm:$0x1]
      %v3732 = vld [vmem:[%s3328 + $0xb4] sm:$0xf]
      %v3733 = vld [vmem:[%s3328 + $0xb8] sm:$0xf]
      %v3734 = vld [vmem:[%s3328 + $0xbc] sm:$0x1]
      %v3736 = vshrl.u32 %v3687, 16
      %v3738 = vrot.slane %v3736, 4
      %v3739 = vshll.u32 %v3687, 16
      %v3741 = vrot.slane %v3739, 5
      %v3742 = vor.u32 %v3738, %v3741
      %v3743 = vrot.slane %v3742, 4
      %v3745 = vshll.u32 %v3688, 16
      %v3747 = vrot.slane %v3745, 5
      %v3748 = vsel %vm375, %v3743, %v3747
      %v3749 = vshrl.u32 %v3688, 16
      %v3751 = vrot.slane %v3749, 4
      %v3752 = vor.u32 %v3751, %v3747
      %v3753 = vrot.slane %v3752, 4
      %v3755 = vshll.u32 %v3689, 16
      %v3757 = vrot.slane %v3755, 5
      %v3758 = vsel %vm375, %v3753, %v3757
      %v3760 = vshrl.u32 %v3690, 16
      %v3762 = vrot.slane %v3760, 4
      %v3763 = vshll.u32 %v3690, 16
      %v3765 = vrot.slane %v3763, 5
      %v3766 = vor.u32 %v3762, %v3765
      %v3767 = vrot.slane %v3766, 4
      %v3769 = vshll.u32 %v3691, 16
      %v3771 = vrot.slane %v3769, 5
      %v3772 = vsel %vm375, %v3767, %v3771
      %v3773 = vshrl.u32 %v3691, 16
      %v3775 = vrot.slane %v3773, 4
      %v3776 = vor.u32 %v3775, %v3771
      %v3777 = vrot.slane %v3776, 4
      %v3779 = vshll.u32 %v3692, 16
      %v3781 = vrot.slane %v3779, 5
      %v3782 = vsel %vm375, %v3777, %v3781
      %v3784 = vshrl.u32 %v3693, 16
      %v3786 = vrot.slane %v3784, 4
      %v3787 = vshll.u32 %v3693, 16
      %v3789 = vrot.slane %v3787, 5
      %v3790 = vor.u32 %v3786, %v3789
      %v3791 = vrot.slane %v3790, 4
      %v3793 = vshll.u32 %v3694, 16
      %v3795 = vrot.slane %v3793, 5
      %v3796 = vsel %vm375, %v3791, %v3795
      %v3797 = vshrl.u32 %v3694, 16
      %v3799 = vrot.slane %v3797, 4
      %v3800 = vor.u32 %v3799, %v3795
      %v3801 = vrot.slane %v3800, 4
      %v3803 = vshll.u32 %v3695, 16
      %v3805 = vrot.slane %v3803, 5
      %v3806 = vsel %vm375, %v3801, %v3805
      %v3808 = vshrl.u32 %v3696, 16
      %v3810 = vrot.slane %v3808, 4
      %v3811 = vshll.u32 %v3696, 16
      %v3813 = vrot.slane %v3811, 5
      %v3814 = vor.u32 %v3810, %v3813
      %v3815 = vrot.slane %v3814, 4
      %v3817 = vshll.u32 %v3697, 16
      %v3819 = vrot.slane %v3817, 5
      %v3820 = vsel %vm375, %v3815, %v3819
      %v3821 = vshrl.u32 %v3697, 16
      %v3823 = vrot.slane %v3821, 4
      %v3824 = vor.u32 %v3823, %v3819
      %v3825 = vrot.slane %v3824, 4
      %v3827 = vshll.u32 %v3698, 16
      %v3829 = vrot.slane %v3827, 5
      %v3830 = vsel %vm375, %v3825, %v3829
      %v3832 = vshrl.u32 %v3699, 16
      %v3834 = vrot.slane %v3832, 4
      %v3835 = vshll.u32 %v3699, 16
      %v3837 = vrot.slane %v3835, 5
      %v3838 = vor.u32 %v3834, %v3837
      %v3839 = vrot.slane %v3838, 4
      %v3841 = vshll.u32 %v3700, 16
      %v3843 = vrot.slane %v3841, 5
      %v3844 = vsel %vm375, %v3839, %v3843
      %v3845 = vshrl.u32 %v3700, 16
      %v3847 = vrot.slane %v3845, 4
      %v3848 = vor.u32 %v3847, %v3843
      %v3849 = vrot.slane %v3848, 4
      %v3851 = vshll.u32 %v3701, 16
      %v3853 = vrot.slane %v3851, 5
      %v3854 = vsel %vm375, %v3849, %v3853
      %v3856 = vshrl.u32 %v3702, 16
      %v3858 = vrot.slane %v3856, 4
      %v3859 = vshll.u32 %v3702, 16
      %v3861 = vrot.slane %v3859, 5
      %v3862 = vor.u32 %v3858, %v3861
      %v3863 = vrot.slane %v3862, 4
      %v3865 = vshll.u32 %v3703, 16
      %v3867 = vrot.slane %v3865, 5
      %v3868 = vsel %vm375, %v3863, %v3867
      %v3869 = vshrl.u32 %v3703, 16
      %v3871 = vrot.slane %v3869, 4
      %v3872 = vor.u32 %v3871, %v3867
      %v3873 = vrot.slane %v3872, 4
      %v3875 = vshll.u32 %v3704, 16
      %v3877 = vrot.slane %v3875, 5
      %v3878 = vsel %vm375, %v3873, %v3877
      %v3880 = vshrl.u32 %v3705, 16
      %v3882 = vrot.slane %v3880, 4
      %v3883 = vshll.u32 %v3705, 16
      %v3885 = vrot.slane %v3883, 5
      %v3886 = vor.u32 %v3882, %v3885
      %v3887 = vrot.slane %v3886, 4
      %v3889 = vshll.u32 %v3706, 16
      %v3891 = vrot.slane %v3889, 5
      %v3892 = vsel %vm375, %v3887, %v3891
      %v3893 = vshrl.u32 %v3706, 16
      %v3895 = vrot.slane %v3893, 4
      %v3896 = vor.u32 %v3895, %v3891
      %v3897 = vrot.slane %v3896, 4
      %v3899 = vshll.u32 %v3707, 16
      %v3901 = vrot.slane %v3899, 5
      %v3902 = vsel %vm375, %v3897, %v3901
      %v3904 = vshrl.u32 %v3708, 16
      %v3906 = vrot.slane %v3904, 4
      %v3907 = vshll.u32 %v3708, 16
      %v3909 = vrot.slane %v3907, 5
      %v3910 = vor.u32 %v3906, %v3909
      %v3911 = vrot.slane %v3910, 4
      %v3913 = vshll.u32 %v3709, 16
      %v3915 = vrot.slane %v3913, 5
      %v3916 = vsel %vm375, %v3911, %v3915
      %v3917 = vshrl.u32 %v3709, 16
      %v3919 = vrot.slane %v3917, 4
      %v3920 = vor.u32 %v3919, %v3915
      %v3921 = vrot.slane %v3920, 4
      %v3923 = vshll.u32 %v3710, 16
      %v3925 = vrot.slane %v3923, 5
      %v3926 = vsel %vm375, %v3921, %v3925
      %v3928 = vshrl.u32 %v3711, 16
      %v3930 = vrot.slane %v3928, 4
      %v3931 = vshll.u32 %v3711, 16
      %v3933 = vrot.slane %v3931, 5
      %v3934 = vor.u32 %v3930, %v3933
      %v3935 = vrot.slane %v3934, 4
      %v3937 = vshll.u32 %v3712, 16
      %v3939 = vrot.slane %v3937, 5
      %v3940 = vsel %vm375, %v3935, %v3939
      %v3941 = vshrl.u32 %v3712, 16
      %v3943 = vrot.slane %v3941, 4
      %v3944 = vor.u32 %v3943, %v3939
      %v3945 = vrot.slane %v3944, 4
      %v3947 = vshll.u32 %v3713, 16
      %v3949 = vrot.slane %v3947, 5
      %v3950 = vsel %vm375, %v3945, %v3949
      %v3952 = vshrl.u32 %v3714, 16
      %v3954 = vrot.slane %v3952, 4
      %v3955 = vshll.u32 %v3714, 16
      %v3957 = vrot.slane %v3955, 5
      %v3958 = vor.u32 %v3954, %v3957
      %v3959 = vrot.slane %v3958, 4
      %v3961 = vshll.u32 %v3715, 16
      %v3963 = vrot.slane %v3961, 5
      %v3964 = vsel %vm375, %v3959, %v3963
      %v3965 = vshrl.u32 %v3715, 16
      %v3967 = vrot.slane %v3965, 4
      %v3968 = vor.u32 %v3967, %v3963
      %v3969 = vrot.slane %v3968, 4
      %v3971 = vshll.u32 %v3716, 16
      %v3973 = vrot.slane %v3971, 5
      %v3974 = vsel %vm375, %v3969, %v3973
      %v3976 = vshrl.u32 %v3717, 16
      %v3978 = vrot.slane %v3976, 4
      %v3979 = vshll.u32 %v3717, 16
      %v3981 = vrot.slane %v3979, 5
      %v3982 = vor.u32 %v3978, %v3981
      %v3983 = vrot.slane %v3982, 4
      %v3985 = vshll.u32 %v3718, 16
      %v3987 = vrot.slane %v3985, 5
      %v3988 = vsel %vm375, %v3983, %v3987
      %v3989 = vshrl.u32 %v3718, 16
      %v3991 = vrot.slane %v3989, 4
      %v3992 = vor.u32 %v3991, %v3987
      %v3993 = vrot.slane %v3992, 4
      %v3995 = vshll.u32 %v3719, 16
      %v3997 = vrot.slane %v3995, 5
      %v3998 = vsel %vm375, %v3993, %v3997
      %v4000 = vshrl.u32 %v3720, 16
      %v4002 = vrot.slane %v4000, 4
      %v4003 = vshll.u32 %v3720, 16
      %v4005 = vrot.slane %v4003, 5
      %v4006 = vor.u32 %v4002, %v4005
      %v4007 = vrot.slane %v4006, 4
      %v4009 = vshll.u32 %v3721, 16
      %v4011 = vrot.slane %v4009, 5
      %v4012 = vsel %vm375, %v4007, %v4011
      %v4013 = vshrl.u32 %v3721, 16
      %v4015 = vrot.slane %v4013, 4
      %v4016 = vor.u32 %v4015, %v4011
      %v4017 = vrot.slane %v4016, 4
      %v4019 = vshll.u32 %v3722, 16
      %v4021 = vrot.slane %v4019, 5
      %v4022 = vsel %vm375, %v4017, %v4021
      %v4024 = vshrl.u32 %v3723, 16
      %v4026 = vrot.slane %v4024, 4
      %v4027 = vshll.u32 %v3723, 16
      %v4029 = vrot.slane %v4027, 5
      %v4030 = vor.u32 %v4026, %v4029
      %v4031 = vrot.slane %v4030, 4
      %v4033 = vshll.u32 %v3724, 16
      %v4035 = vrot.slane %v4033, 5
      %v4036 = vsel %vm375, %v4031, %v4035
      %v4037 = vshrl.u32 %v3724, 16
      %v4039 = vrot.slane %v4037, 4
      %v4040 = vor.u32 %v4039, %v4035
      %v4041 = vrot.slane %v4040, 4
      %v4043 = vshll.u32 %v3725, 16
      %v4045 = vrot.slane %v4043, 5
      %v4046 = vsel %vm375, %v4041, %v4045
      %v4048 = vshrl.u32 %v3726, 16
      %v4050 = vrot.slane %v4048, 4
      %v4051 = vshll.u32 %v3726, 16
      %v4053 = vrot.slane %v4051, 5
      %v4054 = vor.u32 %v4050, %v4053
      %v4055 = vrot.slane %v4054, 4
      %v4057 = vshll.u32 %v3727, 16
      %v4059 = vrot.slane %v4057, 5
      %v4060 = vsel %vm375, %v4055, %v4059
      %v4061 = vshrl.u32 %v3727, 16
      %v4063 = vrot.slane %v4061, 4
      %v4064 = vor.u32 %v4063, %v4059
      %v4065 = vrot.slane %v4064, 4
      %v4067 = vshll.u32 %v3728, 16
      %v4069 = vrot.slane %v4067, 5
      %v4070 = vsel %vm375, %v4065, %v4069
      %v4072 = vshrl.u32 %v3729, 16
      %v4074 = vrot.slane %v4072, 4
      %v4075 = vshll.u32 %v3729, 16
      %v4077 = vrot.slane %v4075, 5
      %v4078 = vor.u32 %v4074, %v4077
      %v4079 = vrot.slane %v4078, 4
      %v4081 = vshll.u32 %v3730, 16
      %v4083 = vrot.slane %v4081, 5
      %v4084 = vsel %vm375, %v4079, %v4083
      %v4085 = vshrl.u32 %v3730, 16
      %v4087 = vrot.slane %v4085, 4
      %v4088 = vor.u32 %v4087, %v4083
      %v4089 = vrot.slane %v4088, 4
      %v4091 = vshll.u32 %v3731, 16
      %v4093 = vrot.slane %v4091, 5
      %v4094 = vsel %vm375, %v4089, %v4093
      %v4096 = vshrl.u32 %v3732, 16
      %v4098 = vrot.slane %v4096, 4
      %v4099 = vshll.u32 %v3732, 16
      %v4101 = vrot.slane %v4099, 5
      %v4102 = vor.u32 %v4098, %v4101
      %v4103 = vrot.slane %v4102, 4
      %v4105 = vshll.u32 %v3733, 16
      %v4107 = vrot.slane %v4105, 5
      %v4108 = vsel %vm375, %v4103, %v4107
      %v4109 = vshrl.u32 %v3733, 16
      %v4111 = vrot.slane %v4109, 4
      %v4112 = vor.u32 %v4111, %v4107
      %v4113 = vrot.slane %v4112, 4
      %v4115 = vshll.u32 %v3734, 16
      %v4117 = vrot.slane %v4115, 5
      %v4118 = vsel %vm375, %v4113, %v4117
      %s4119 = scalar_lea.vmem %s1, 14
      %v4120 = vld [vmem:[%s4119] sm:$0x3]
      %v4121 = vunpack.c.l.b16 %v3748
      %v4122 = vunpack.c.l.b16 %v3758
      %v4123 = vunpack.c.l.b16 %v3772
      %v4124 = vunpack.c.l.b16 %v3782
      %v4125 = vunpack.c.l.b16 %v3796
      %v4126 = vunpack.c.l.b16 %v3806
      %v4127 = vunpack.c.l.b16 %v3820
      %v4128 = vunpack.c.l.b16 %v3830
      %v4129 = vunpack.c.l.b16 %v3844
      %v4130 = vunpack.c.l.b16 %v3854
      %v4131 = vunpack.c.l.b16 %v3868
      %v4132 = vunpack.c.l.b16 %v3878
      %v4133 = vunpack.c.l.b16 %v3892
      %v4134 = vunpack.c.l.b16 %v3902
      %v4135 = vunpack.c.l.b16 %v3916
      %v4136 = vunpack.c.l.b16 %v3926
      %v4137 = vunpack.c.l.b16 %v3940
      %v4138 = vunpack.c.l.b16 %v3950
      %v4139 = vunpack.c.l.b16 %v3964
      %v4140 = vunpack.c.l.b16 %v3974
      %v4141 = vunpack.c.l.b16 %v3988
      %v4142 = vunpack.c.l.b16 %v3998
      %v4143 = vunpack.c.l.b16 %v4012
      %v4144 = vunpack.c.l.b16 %v4022
      %v4145 = vunpack.c.l.b16 %v4036
      %v4146 = vunpack.c.l.b16 %v4046
      %v4147 = vunpack.c.l.b16 %v4060
      %v4148 = vunpack.c.l.b16 %v4070
      %v4149 = vunpack.c.l.b16 %v4084
      %v4150 = vunpack.c.l.b16 %v4094
      %v4151 = vunpack.c.l.b16 %v4108
      %v4152 = vunpack.c.l.b16 %v4118
      %v4153 = vpack.c.b16 %v4122, %v4121
      %v4154 = vpack.c.b16 %v4124, %v4123
      %v4155 = vpack.c.b16 %v4126, %v4125
      %v4156 = vpack.c.b16 %v4128, %v4127
      %v4157 = vpack.c.b16 %v4130, %v4129
      %v4158 = vpack.c.b16 %v4132, %v4131
      %v4159 = vpack.c.b16 %v4134, %v4133
      %v4160 = vpack.c.b16 %v4136, %v4135
      %v4161 = vpack.c.b16 %v4138, %v4137
      %v4162 = vpack.c.b16 %v4140, %v4139
      %v4163 = vpack.c.b16 %v4142, %v4141
      %v4164 = vpack.c.b16 %v4144, %v4143
      %v4165 = vpack.c.b16 %v4146, %v4145
      %v4166 = vpack.c.b16 %v4148, %v4147
      %v4167 = vpack.c.b16 %v4150, %v4149
      %v4168 = vpack.c.b16 %v4152, %v4151
      %v4170 = vsel %vm810, %v4153, 0
      %v4173 = vsel %vm810, %v4154, 0
      %v4176 = vsel %vm810, %v4155, 0
      %v4179 = vsel %vm810, %v4156, 0
      %v4182 = vsel %vm810, %v4157, 0
      %v4185 = vsel %vm810, %v4158, 0
      %v4188 = vsel %vm810, %v4159, 0
      %v4191 = vsel %vm810, %v4160, 0
      %v4194 = vsel %vm810, %v4161, 0
      %v4197 = vsel %vm810, %v4162, 0
      %v4200 = vsel %vm810, %v4163, 0
      %v4203 = vsel %vm810, %v4164, 0
      %v4206 = vsel %vm810, %v4165, 0
      %v4209 = vsel %vm810, %v4166, 0
      %v4212 = vsel %vm810, %v4167, 0
      %v4215 = vsel %vm810, %v4168, 0
      %v4218 = vsel %vm859, %v4120, 0
      %4220 = vmatprep.subr.bf16.mxu0 0
      %4221 = vmatpush1.bf16.msra.mxu0 0
      %4222 = vmatprep.subr.bf16.mxu0 0
      %4223 = vmatpush1.bf16.msra.mxu0 0
      %4224 = vmatprep.subr.bf16.mxu0 0
      %4225 = vmatpush1.bf16.msra.mxu0 0
      %4226 = vmatprep.subr.bf16.mxu0 0
      %4227 = vmatpush1.bf16.msra.mxu0 0
      %4228 = vmatprep.subr.bf16.mxu0 0
      %4229 = vmatpush1.bf16.msra.mxu0 0
      %4230 = vmatprep.subr.bf16.mxu0 0
      %4231 = vmatpush1.bf16.msra.mxu0 0
      %4232 = vmatprep.subr.bf16.mxu0 0
      %4233 = vmatpush1.bf16.msra.mxu0 0
      %4234 = vmatprep.subr.bf16.mxu0 0
      %4235 = vmatpush1.bf16.msra.mxu0 %v4218
      %4236 = vmatprep.subr.bf16.mxu0 0
      %4237 = vmatpush2.bf16.msra.mxu0 0
      %4238 = vmatprep.subr.bf16.mxu0 0
      %4239 = vmatpush2.bf16.msra.mxu0 0
      %4240 = vmatprep.subr.bf16.mxu0 0
      %4241 = vmatpush2.bf16.msra.mxu0 0
      %4242 = vmatprep.subr.bf16.mxu0 0
      %4243 = vmatpush2.bf16.msra.mxu0 0
      %4244 = vmatprep.subr.bf16.mxu0 0
      %4245 = vmatpush2.bf16.msra.mxu0 0
      %4246 = vmatprep.subr.bf16.mxu0 0
      %4247 = vmatpush2.bf16.msra.mxu0 0
      %4248 = vmatprep.subr.bf16.mxu0 0
      %4249 = vmatpush2.bf16.msra.mxu0 0
      %4250 = vmatprep.subr.bf16.mxu0 0
      %4251 = vmatpush2.bf16.msra.mxu0 0
      %4252 = vmatprep.mubr.bf16.mxu0 0
      %4253 = vmatmul.mubr.bf16.gmra.mxu0 %v4170
      %v4254 = vpop.f32.mrf.mxu0
      %v4255 = vadd.f32 0.0, %v4254
      %v4256 = vpop.f32.mrf.mxu0
      %v4257 = vpop.f32.mrf.mxu0
      %v4258 = vadd.f32 0.0, %v4257
      %v4259 = vpop.f32.mrf.mxu0
      %4260 = vmatprep.mubr.bf16.mxu0 0
      %4261 = vmatmul.mubr.bf16.gmra.mxu0 %v4173
      %v4262 = vpop.f32.mrf.mxu0
      %v4263 = vadd.f32 0.0, %v4262
      %v4264 = vpop.f32.mrf.mxu0
      %v4265 = vpop.f32.mrf.mxu0
      %v4266 = vadd.f32 0.0, %v4265
      %v4267 = vpop.f32.mrf.mxu0
      %4268 = vmatprep.mubr.bf16.mxu0 0
      %4269 = vmatmul.mubr.bf16.gmra.mxu0 %v4176
      %v4270 = vpop.f32.mrf.mxu0
      %v4271 = vadd.f32 0.0, %v4270
      %v4272 = vpop.f32.mrf.mxu0
      %v4273 = vpop.f32.mrf.mxu0
      %v4274 = vadd.f32 0.0, %v4273
      %v4275 = vpop.f32.mrf.mxu0
      %4276 = vmatprep.mubr.bf16.mxu0 0
      %4277 = vmatmul.mubr.bf16.gmra.mxu0 %v4179
      %v4278 = vpop.f32.mrf.mxu0
      %v4279 = vadd.f32 0.0, %v4278
      %v4280 = vpop.f32.mrf.mxu0
      %v4281 = vpop.f32.mrf.mxu0
      %v4282 = vadd.f32 0.0, %v4281
      %v4283 = vpop.f32.mrf.mxu0
      %4284 = vmatprep.mubr.bf16.mxu0 0
      %4285 = vmatmul.mubr.bf16.gmra.mxu0 %v4182
      %v4286 = vpop.f32.mrf.mxu0
      %v4287 = vadd.f32 0.0, %v4286
      %v4288 = vpop.f32.mrf.mxu0
      %v4289 = vpop.f32.mrf.mxu0
      %v4290 = vadd.f32 0.0, %v4289
      %v4291 = vpop.f32.mrf.mxu0
      %4292 = vmatprep.mubr.bf16.mxu0 0
      %4293 = vmatmul.mubr.bf16.gmra.mxu0 %v4185
      %v4294 = vpop.f32.mrf.mxu0
      %v4295 = vadd.f32 0.0, %v4294
      %v4296 = vpop.f32.mrf.mxu0
      %v4297 = vpop.f32.mrf.mxu0
      %v4298 = vadd.f32 0.0, %v4297
      %v4299 = vpop.f32.mrf.mxu0
      %4300 = vmatprep.mubr.bf16.mxu0 0
      %4301 = vmatmul.mubr.bf16.gmra.mxu0 %v4188
      %v4302 = vpop.f32.mrf.mxu0
      %v4303 = vadd.f32 0.0, %v4302
      %v4304 = vpop.f32.mrf.mxu0
      %v4305 = vpop.f32.mrf.mxu0
      %v4306 = vadd.f32 0.0, %v4305
      %v4307 = vpop.f32.mrf.mxu0
      %4308 = vmatprep.mubr.bf16.mxu0 0
      %4309 = vmatmul.mubr.bf16.gmra.mxu0 %v4191
      %v4310 = vpop.f32.mrf.mxu0
      %v4311 = vadd.f32 0.0, %v4310
      %v4312 = vpop.f32.mrf.mxu0
      %v4313 = vpop.f32.mrf.mxu0
      %v4314 = vadd.f32 0.0, %v4313
      %v4315 = vpop.f32.mrf.mxu0
      %4316 = vmatprep.mubr.bf16.mxu0 0
      %4317 = vmatmul.mubr.bf16.gmra.mxu0 %v4194
      %v4318 = vpop.f32.mrf.mxu0
      %v4319 = vadd.f32 0.0, %v4318
      %v4320 = vpop.f32.mrf.mxu0
      %v4321 = vpop.f32.mrf.mxu0
      %v4322 = vadd.f32 0.0, %v4321
      %v4323 = vpop.f32.mrf.mxu0
      %4324 = vmatprep.mubr.bf16.mxu0 0
      %4325 = vmatmul.mubr.bf16.gmra.mxu0 %v4197
      %v4326 = vpop.f32.mrf.mxu0
      %v4327 = vadd.f32 0.0, %v4326
      %v4328 = vpop.f32.mrf.mxu0
      %v4329 = vpop.f32.mrf.mxu0
      %v4330 = vadd.f32 0.0, %v4329
      %v4331 = vpop.f32.mrf.mxu0
      %4332 = vmatprep.mubr.bf16.mxu0 0
      %4333 = vmatmul.mubr.bf16.gmra.mxu0 %v4200
      %v4334 = vpop.f32.mrf.mxu0
      %v4335 = vadd.f32 0.0, %v4334
      %v4336 = vpop.f32.mrf.mxu0
      %v4337 = vpop.f32.mrf.mxu0
      %v4338 = vadd.f32 0.0, %v4337
      %v4339 = vpop.f32.mrf.mxu0
      %4340 = vmatprep.mubr.bf16.mxu0 0
      %4341 = vmatmul.mubr.bf16.gmra.mxu0 %v4203
      %v4342 = vpop.f32.mrf.mxu0
      %v4343 = vadd.f32 0.0, %v4342
      %v4344 = vpop.f32.mrf.mxu0
      %v4345 = vpop.f32.mrf.mxu0
      %v4346 = vadd.f32 0.0, %v4345
      %v4347 = vpop.f32.mrf.mxu0
      %4348 = vmatprep.mubr.bf16.mxu0 0
      %4349 = vmatmul.mubr.bf16.gmra.mxu0 %v4206
      %v4350 = vpop.f32.mrf.mxu0
      %v4351 = vadd.f32 0.0, %v4350
      %v4352 = vpop.f32.mrf.mxu0
      %v4353 = vpop.f32.mrf.mxu0
      %v4354 = vadd.f32 0.0, %v4353
      %v4355 = vpop.f32.mrf.mxu0
      %4356 = vmatprep.mubr.bf16.mxu0 0
      %4357 = vmatmul.mubr.bf16.gmra.mxu0 %v4209
      %v4358 = vpop.f32.mrf.mxu0
      %v4359 = vadd.f32 0.0, %v4358
      %v4360 = vpop.f32.mrf.mxu0
      %v4361 = vpop.f32.mrf.mxu0
      %v4362 = vadd.f32 0.0, %v4361
      %v4363 = vpop.f32.mrf.mxu0
      %4364 = vmatprep.mubr.bf16.mxu0 0
      %4365 = vmatmul.mubr.bf16.gmra.mxu0 %v4212
      %v4366 = vpop.f32.mrf.mxu0
      %v4367 = vadd.f32 0.0, %v4366
      %v4368 = vpop.f32.mrf.mxu0
      %v4369 = vpop.f32.mrf.mxu0
      %v4370 = vadd.f32 0.0, %v4369
      %v4371 = vpop.f32.mrf.mxu0
      %4372 = vmatprep.mubr.bf16.mxu0 0
      %4373 = vmatmul.mubr.bf16.gmra.mxu0 %v4215
      %v4374 = vpop.f32.mrf.mxu0
      %v4375 = vadd.f32 0.0, %v4374
      %v4376 = vpop.f32.mrf.mxu0
      %v4377 = vpop.f32.mrf.mxu0
      %v4378 = vadd.f32 0.0, %v4377
      %v4379 = vpop.f32.mrf.mxu0
      %4380 = vdwg.mxu0
      %v4381 = vadd.f32 %v3655, %v4255
      %v4382 = vadd.f32 %v3656, %v4258
      %v4383 = vadd.f32 %v3657, %v4263
      %v4384 = vadd.f32 %v3658, %v4266
      %v4385 = vadd.f32 %v3659, %v4271
      %v4386 = vadd.f32 %v3660, %v4274
      %v4387 = vadd.f32 %v3661, %v4279
      %v4388 = vadd.f32 %v3662, %v4282
      %v4389 = vadd.f32 %v3663, %v4287
      %v4390 = vadd.f32 %v3664, %v4290
      %v4391 = vadd.f32 %v3665, %v4295
      %v4392 = vadd.f32 %v3666, %v4298
      %v4393 = vadd.f32 %v3667, %v4303
      %v4394 = vadd.f32 %v3668, %v4306
      %v4395 = vadd.f32 %v3669, %v4311
      %v4396 = vadd.f32 %v3670, %v4314
      %v4397 = vadd.f32 %v3671, %v4319
      %v4398 = vadd.f32 %v3672, %v4322
      %v4399 = vadd.f32 %v3673, %v4327
      %v4400 = vadd.f32 %v3674, %v4330
      %v4401 = vadd.f32 %v3675, %v4335
      %v4402 = vadd.f32 %v3676, %v4338
      %v4403 = vadd.f32 %v3677, %v4343
      %v4404 = vadd.f32 %v3678, %v4346
      %v4405 = vadd.f32 %v3679, %v4351
      %v4406 = vadd.f32 %v3680, %v4354
      %v4407 = vadd.f32 %v3681, %v4359
      %v4408 = vadd.f32 %v3682, %v4362
      %v4409 = vadd.f32 %v3683, %v4367
      %v4410 = vadd.f32 %v3684, %v4370
      %v4411 = vadd.f32 %v3685, %v4375
      %v4412 = vadd.f32 %v3686, %v4378
      %v4413 = vld [vmem:[%s3328] sm:$0xe]
      %v4414 = vld [vmem:[%s3328 + $0xc] sm:$0xe]
      %v4415 = vld [vmem:[%s3328 + $0x18] sm:$0xe]
      %v4416 = vld [vmem:[%s3328 + $0x24] sm:$0xe]
      %v4417 = vld [vmem:[%s3328 + $0x30] sm:$0xe]
      %v4418 = vld [vmem:[%s3328 + $0x3c] sm:$0xe]
      %v4419 = vld [vmem:[%s3328 + $0x48] sm:$0xe]
      %v4420 = vld [vmem:[%s3328 + $0x54] sm:$0xe]
      %v4421 = vld [vmem:[%s3328 + $0x60] sm:$0xe]
      %v4422 = vld [vmem:[%s3328 + $0x6c] sm:$0xe]
      %v4423 = vld [vmem:[%s3328 + $0x78] sm:$0xe]
      %v4424 = vld [vmem:[%s3328 + $0x84] sm:$0xe]
      %v4425 = vld [vmem:[%s3328 + $0x90] sm:$0xe]
      %v4426 = vld [vmem:[%s3328 + $0x9c] sm:$0xe]
      %v4427 = vld [vmem:[%s3328 + $0xa8] sm:$0xe]
      %v4428 = vld [vmem:[%s3328 + $0xb4] sm:$0xe]
      %v4477 = vrot.slane %v4413, 5
      %v4478 = vrot.slane %v4477, 4
      %v4479 = vrot.slane %v3688, 5
      %v4480 = vsel %vm1366, %v4478, %v4479
      %v4481 = vrot.slane %v4479, 4
      %v4482 = vrot.slane %v3689, 5
      %v4483 = vsel %vm1366, %v4481, %v4482
      %v4484 = vrot.slane %v4414, 5
      %v4485 = vrot.slane %v4484, 4
      %v4486 = vrot.slane %v3691, 5
      %v4487 = vsel %vm1366, %v4485, %v4486
      %v4488 = vrot.slane %v4486, 4
      %v4489 = vrot.slane %v3692, 5
      %v4490 = vsel %vm1366, %v4488, %v4489
      %v4491 = vrot.slane %v4415, 5
      %v4492 = vrot.slane %v4491, 4
      %v4493 = vrot.slane %v3694, 5
      %v4494 = vsel %vm1366, %v4492, %v4493
      %v4495 = vrot.slane %v4493, 4
      %v4496 = vrot.slane %v3695, 5
      %v4497 = vsel %vm1366, %v4495, %v4496
      %v4498 = vrot.slane %v4416, 5
      %v4499 = vrot.slane %v4498, 4
      %v4500 = vrot.slane %v3697, 5
      %v4501 = vsel %vm1366, %v4499, %v4500
      %v4502 = vrot.slane %v4500, 4
      %v4503 = vrot.slane %v3698, 5
      %v4504 = vsel %vm1366, %v4502, %v4503
      %v4505 = vrot.slane %v4417, 5
      %v4506 = vrot.slane %v4505, 4
      %v4507 = vrot.slane %v3700, 5
      %v4508 = vsel %vm1366, %v4506, %v4507
      %v4509 = vrot.slane %v4507, 4
      %v4510 = vrot.slane %v3701, 5
      %v4511 = vsel %vm1366, %v4509, %v4510
      %v4512 = vrot.slane %v4418, 5
      %v4513 = vrot.slane %v4512, 4
      %v4514 = vrot.slane %v3703, 5
      %v4515 = vsel %vm1366, %v4513, %v4514
      %v4516 = vrot.slane %v4514, 4
      %v4517 = vrot.slane %v3704, 5
      %v4518 = vsel %vm1366, %v4516, %v4517
      %v4519 = vrot.slane %v4419, 5
      %v4520 = vrot.slane %v4519, 4
      %v4521 = vrot.slane %v3706, 5
      %v4522 = vsel %vm1366, %v4520, %v4521
      %v4523 = vrot.slane %v4521, 4
      %v4524 = vrot.slane %v3707, 5
      %v4525 = vsel %vm1366, %v4523, %v4524
      %v4526 = vrot.slane %v4420, 5
      %v4527 = vrot.slane %v4526, 4
      %v4528 = vrot.slane %v3709, 5
      %v4529 = vsel %vm1366, %v4527, %v4528
      %v4530 = vrot.slane %v4528, 4
      %v4531 = vrot.slane %v3710, 5
      %v4532 = vsel %vm1366, %v4530, %v4531
      %v4533 = vrot.slane %v4421, 5
      %v4534 = vrot.slane %v4533, 4
      %v4535 = vrot.slane %v3712, 5
      %v4536 = vsel %vm1366, %v4534, %v4535
      %v4537 = vrot.slane %v4535, 4
      %v4538 = vrot.slane %v3713, 5
      %v4539 = vsel %vm1366, %v4537, %v4538
      %v4540 = vrot.slane %v4422, 5
      %v4541 = vrot.slane %v4540, 4
      %v4542 = vrot.slane %v3715, 5
      %v4543 = vsel %vm1366, %v4541, %v4542
      %v4544 = vrot.slane %v4542, 4
      %v4545 = vrot.slane %v3716, 5
      %v4546 = vsel %vm1366, %v4544, %v4545
      %v4547 = vrot.slane %v4423, 5
      %v4548 = vrot.slane %v4547, 4
      %v4549 = vrot.slane %v3718, 5
      %v4550 = vsel %vm1366, %v4548, %v4549
      %v4551 = vrot.slane %v4549, 4
      %v4552 = vrot.slane %v3719, 5
      %v4553 = vsel %vm1366, %v4551, %v4552
      %v4554 = vrot.slane %v4424, 5
      %v4555 = vrot.slane %v4554, 4
      %v4556 = vrot.slane %v3721, 5
      %v4557 = vsel %vm1366, %v4555, %v4556
      %v4558 = vrot.slane %v4556, 4
      %v4559 = vrot.slane %v3722, 5
      %v4560 = vsel %vm1366, %v4558, %v4559
      %v4561 = vrot.slane %v4425, 5
      %v4562 = vrot.slane %v4561, 4
      %v4563 = vrot.slane %v3724, 5
      %v4564 = vsel %vm1366, %v4562, %v4563
      %v4565 = vrot.slane %v4563, 4
      %v4566 = vrot.slane %v3725, 5
      %v4567 = vsel %vm1366, %v4565, %v4566
      %v4568 = vrot.slane %v4426, 5
      %v4569 = vrot.slane %v4568, 4
      %v4570 = vrot.slane %v3727, 5
      %v4571 = vsel %vm1366, %v4569, %v4570
      %v4572 = vrot.slane %v4570, 4
      %v4573 = vrot.slane %v3728, 5
      %v4574 = vsel %vm1366, %v4572, %v4573
      %v4575 = vrot.slane %v4427, 5
      %v4576 = vrot.slane %v4575, 4
      %v4577 = vrot.slane %v3730, 5
      %v4578 = vsel %vm1366, %v4576, %v4577
      %v4579 = vrot.slane %v4577, 4
      %v4580 = vrot.slane %v3731, 5
      %v4581 = vsel %vm1366, %v4579, %v4580
      %v4582 = vrot.slane %v4428, 5
      %v4583 = vrot.slane %v4582, 4
      %v4584 = vrot.slane %v3733, 5
      %v4585 = vsel %vm1366, %v4583, %v4584
      %v4586 = vrot.slane %v4584, 4
      %v4587 = vrot.slane %v3734, 5
      %v4588 = vsel %vm1366, %v4586, %v4587
      %s4589 = scalar_lea.vmem %s1, 16
      %v4590 = vld [vmem:[%s4589] sm:$0x3]
      %v4591 = vunpack.c.l.b16 %v4480
      %v4592 = vunpack.c.l.b16 %v4483
      %v4593 = vunpack.c.l.b16 %v4487
      %v4594 = vunpack.c.l.b16 %v4490
      %v4595 = vunpack.c.l.b16 %v4494
      %v4596 = vunpack.c.l.b16 %v4497
      %v4597 = vunpack.c.l.b16 %v4501
      %v4598 = vunpack.c.l.b16 %v4504
      %v4599 = vunpack.c.l.b16 %v4508
      %v4600 = vunpack.c.l.b16 %v4511
      %v4601 = vunpack.c.l.b16 %v4515
      %v4602 = vunpack.c.l.b16 %v4518
      %v4603 = vunpack.c.l.b16 %v4522
      %v4604 = vunpack.c.l.b16 %v4525
      %v4605 = vunpack.c.l.b16 %v4529
      %v4606 = vunpack.c.l.b16 %v4532
      %v4607 = vunpack.c.l.b16 %v4536
      %v4608 = vunpack.c.l.b16 %v4539
      %v4609 = vunpack.c.l.b16 %v4543
      %v4610 = vunpack.c.l.b16 %v4546
      %v4611 = vunpack.c.l.b16 %v4550
      %v4612 = vunpack.c.l.b16 %v4553
      %v4613 = vunpack.c.l.b16 %v4557
      %v4614 = vunpack.c.l.b16 %v4560
      %v4615 = vunpack.c.l.b16 %v4564
      %v4616 = vunpack.c.l.b16 %v4567
      %v4617 = vunpack.c.l.b16 %v4571
      %v4618 = vunpack.c.l.b16 %v4574
      %v4619 = vunpack.c.l.b16 %v4578
      %v4620 = vunpack.c.l.b16 %v4581
      %v4621 = vunpack.c.l.b16 %v4585
      %v4622 = vunpack.c.l.b16 %v4588
      %v4623 = vpack.c.b16 %v4592, %v4591
      %v4624 = vpack.c.b16 %v4594, %v4593
      %v4625 = vpack.c.b16 %v4596, %v4595
      %v4626 = vpack.c.b16 %v4598, %v4597
      %v4627 = vpack.c.b16 %v4600, %v4599
      %v4628 = vpack.c.b16 %v4602, %v4601
      %v4629 = vpack.c.b16 %v4604, %v4603
      %v4630 = vpack.c.b16 %v4606, %v4605
      %v4631 = vpack.c.b16 %v4608, %v4607
      %v4632 = vpack.c.b16 %v4610, %v4609
      %v4633 = vpack.c.b16 %v4612, %v4611
      %v4634 = vpack.c.b16 %v4614, %v4613
      %v4635 = vpack.c.b16 %v4616, %v4615
      %v4636 = vpack.c.b16 %v4618, %v4617
      %v4637 = vpack.c.b16 %v4620, %v4619
      %v4638 = vpack.c.b16 %v4622, %v4621
      %v4640 = vsel %vm810, %v4623, 0
      %v4643 = vsel %vm810, %v4624, 0
      %v4646 = vsel %vm810, %v4625, 0
      %v4649 = vsel %vm810, %v4626, 0
      %v4652 = vsel %vm810, %v4627, 0
      %v4655 = vsel %vm810, %v4628, 0
      %v4658 = vsel %vm810, %v4629, 0
      %v4661 = vsel %vm810, %v4630, 0
      %v4664 = vsel %vm810, %v4631, 0
      %v4667 = vsel %vm810, %v4632, 0
      %v4670 = vsel %vm810, %v4633, 0
      %v4673 = vsel %vm810, %v4634, 0
      %v4676 = vsel %vm810, %v4635, 0
      %v4679 = vsel %vm810, %v4636, 0
      %v4682 = vsel %vm810, %v4637, 0
      %v4685 = vsel %vm810, %v4638, 0
      %v4688 = vsel %vm859, %v4590, 0
      %4690 = vmatprep.subr.bf16.mxu0 0
      %4691 = vmatpush1.bf16.msra.mxu0 0
      %4692 = vmatprep.subr.bf16.mxu0 0
      %4693 = vmatpush1.bf16.msra.mxu0 0
      %4694 = vmatprep.subr.bf16.mxu0 0
      %4695 = vmatpush1.bf16.msra.mxu0 0
      %4696 = vmatprep.subr.bf16.mxu0 0
      %4697 = vmatpush1.bf16.msra.mxu0 0
      %4698 = vmatprep.subr.bf16.mxu0 0
      %4699 = vmatpush1.bf16.msra.mxu0 0
      %4700 = vmatprep.subr.bf16.mxu0 0
      %4701 = vmatpush1.bf16.msra.mxu0 0
      %4702 = vmatprep.subr.bf16.mxu0 0
      %4703 = vmatpush1.bf16.msra.mxu0 0
      %4704 = vmatprep.subr.bf16.mxu0 0
      %4705 = vmatpush1.bf16.msra.mxu0 %v4688
      %4706 = vmatprep.subr.bf16.mxu0 0
      %4707 = vmatpush2.bf16.msra.mxu0 0
      %4708 = vmatprep.subr.bf16.mxu0 0
      %4709 = vmatpush2.bf16.msra.mxu0 0
      %4710 = vmatprep.subr.bf16.mxu0 0
      %4711 = vmatpush2.bf16.msra.mxu0 0
      %4712 = vmatprep.subr.bf16.mxu0 0
      %4713 = vmatpush2.bf16.msra.mxu0 0
      %4714 = vmatprep.subr.bf16.mxu0 0
      %4715 = vmatpush2.bf16.msra.mxu0 0
      %4716 = vmatprep.subr.bf16.mxu0 0
      %4717 = vmatpush2.bf16.msra.mxu0 0
      %4718 = vmatprep.subr.bf16.mxu0 0
      %4719 = vmatpush2.bf16.msra.mxu0 0
      %4720 = vmatprep.subr.bf16.mxu0 0
      %4721 = vmatpush2.bf16.msra.mxu0 0
      %4722 = vmatprep.mubr.bf16.mxu0 0
      %4723 = vmatmul.mubr.bf16.gmra.mxu0 %v4640
      %v4724 = vpop.f32.mrf.mxu0
      %v4725 = vadd.f32 0.0, %v4724
      %v4726 = vpop.f32.mrf.mxu0
      %v4727 = vpop.f32.mrf.mxu0
      %v4728 = vadd.f32 0.0, %v4727
      %v4729 = vpop.f32.mrf.mxu0
      %4730 = vmatprep.mubr.bf16.mxu0 0
      %4731 = vmatmul.mubr.bf16.gmra.mxu0 %v4643
      %v4732 = vpop.f32.mrf.mxu0
      %v4733 = vadd.f32 0.0, %v4732
      %v4734 = vpop.f32.mrf.mxu0
      %v4735 = vpop.f32.mrf.mxu0
      %v4736 = vadd.f32 0.0, %v4735
      %v4737 = vpop.f32.mrf.mxu0
      %4738 = vmatprep.mubr.bf16.mxu0 0
      %4739 = vmatmul.mubr.bf16.gmra.mxu0 %v4646
      %v4740 = vpop.f32.mrf.mxu0
      %v4741 = vadd.f32 0.0, %v4740
      %v4742 = vpop.f32.mrf.mxu0
      %v4743 = vpop.f32.mrf.mxu0
      %v4744 = vadd.f32 0.0, %v4743
      %v4745 = vpop.f32.mrf.mxu0
      %4746 = vmatprep.mubr.bf16.mxu0 0
      %4747 = vmatmul.mubr.bf16.gmra.mxu0 %v4649
      %v4748 = vpop.f32.mrf.mxu0
      %v4749 = vadd.f32 0.0, %v4748
      %v4750 = vpop.f32.mrf.mxu0
      %v4751 = vpop.f32.mrf.mxu0
      %v4752 = vadd.f32 0.0, %v4751
      %v4753 = vpop.f32.mrf.mxu0
      %4754 = vmatprep.mubr.bf16.mxu0 0
      %4755 = vmatmul.mubr.bf16.gmra.mxu0 %v4652
      %v4756 = vpop.f32.mrf.mxu0
      %v4757 = vadd.f32 0.0, %v4756
      %v4758 = vpop.f32.mrf.mxu0
      %v4759 = vpop.f32.mrf.mxu0
      %v4760 = vadd.f32 0.0, %v4759
      %v4761 = vpop.f32.mrf.mxu0
      %4762 = vmatprep.mubr.bf16.mxu0 0
      %4763 = vmatmul.mubr.bf16.gmra.mxu0 %v4655
      %v4764 = vpop.f32.mrf.mxu0
      %v4765 = vadd.f32 0.0, %v4764
      %v4766 = vpop.f32.mrf.mxu0
      %v4767 = vpop.f32.mrf.mxu0
      %v4768 = vadd.f32 0.0, %v4767
      %v4769 = vpop.f32.mrf.mxu0
      %4770 = vmatprep.mubr.bf16.mxu0 0
      %4771 = vmatmul.mubr.bf16.gmra.mxu0 %v4658
      %v4772 = vpop.f32.mrf.mxu0
      %v4773 = vadd.f32 0.0, %v4772
      %v4774 = vpop.f32.mrf.mxu0
      %v4775 = vpop.f32.mrf.mxu0
      %v4776 = vadd.f32 0.0, %v4775
      %v4777 = vpop.f32.mrf.mxu0
      %4778 = vmatprep.mubr.bf16.mxu0 0
      %4779 = vmatmul.mubr.bf16.gmra.mxu0 %v4661
      %v4780 = vpop.f32.mrf.mxu0
      %v4781 = vadd.f32 0.0, %v4780
      %v4782 = vpop.f32.mrf.mxu0
      %v4783 = vpop.f32.mrf.mxu0
      %v4784 = vadd.f32 0.0, %v4783
      %v4785 = vpop.f32.mrf.mxu0
      %4786 = vmatprep.mubr.bf16.mxu0 0
      %4787 = vmatmul.mubr.bf16.gmra.mxu0 %v4664
      %v4788 = vpop.f32.mrf.mxu0
      %v4789 = vadd.f32 0.0, %v4788
      %v4790 = vpop.f32.mrf.mxu0
      %v4791 = vpop.f32.mrf.mxu0
      %v4792 = vadd.f32 0.0, %v4791
      %v4793 = vpop.f32.mrf.mxu0
      %4794 = vmatprep.mubr.bf16.mxu0 0
      %4795 = vmatmul.mubr.bf16.gmra.mxu0 %v4667
      %v4796 = vpop.f32.mrf.mxu0
      %v4797 = vadd.f32 0.0, %v4796
      %v4798 = vpop.f32.mrf.mxu0
      %v4799 = vpop.f32.mrf.mxu0
      %v4800 = vadd.f32 0.0, %v4799
      %v4801 = vpop.f32.mrf.mxu0
      %4802 = vmatprep.mubr.bf16.mxu0 0
      %4803 = vmatmul.mubr.bf16.gmra.mxu0 %v4670
      %v4804 = vpop.f32.mrf.mxu0
      %v4805 = vadd.f32 0.0, %v4804
      %v4806 = vpop.f32.mrf.mxu0
      %v4807 = vpop.f32.mrf.mxu0
      %v4808 = vadd.f32 0.0, %v4807
      %v4809 = vpop.f32.mrf.mxu0
      %4810 = vmatprep.mubr.bf16.mxu0 0
      %4811 = vmatmul.mubr.bf16.gmra.mxu0 %v4673
      %v4812 = vpop.f32.mrf.mxu0
      %v4813 = vadd.f32 0.0, %v4812
      %v4814 = vpop.f32.mrf.mxu0
      %v4815 = vpop.f32.mrf.mxu0
      %v4816 = vadd.f32 0.0, %v4815
      %v4817 = vpop.f32.mrf.mxu0
      %4818 = vmatprep.mubr.bf16.mxu0 0
      %4819 = vmatmul.mubr.bf16.gmra.mxu0 %v4676
      %v4820 = vpop.f32.mrf.mxu0
      %v4821 = vadd.f32 0.0, %v4820
      %v4822 = vpop.f32.mrf.mxu0
      %v4823 = vpop.f32.mrf.mxu0
      %v4824 = vadd.f32 0.0, %v4823
      %v4825 = vpop.f32.mrf.mxu0
      %4826 = vmatprep.mubr.bf16.mxu0 0
      %4827 = vmatmul.mubr.bf16.gmra.mxu0 %v4679
      %v4828 = vpop.f32.mrf.mxu0
      %v4829 = vadd.f32 0.0, %v4828
      %v4830 = vpop.f32.mrf.mxu0
      %v4831 = vpop.f32.mrf.mxu0
      %v4832 = vadd.f32 0.0, %v4831
      %v4833 = vpop.f32.mrf.mxu0
      %4834 = vmatprep.mubr.bf16.mxu0 0
      %4835 = vmatmul.mubr.bf16.gmra.mxu0 %v4682
      %v4836 = vpop.f32.mrf.mxu0
      %v4837 = vadd.f32 0.0, %v4836
      %v4838 = vpop.f32.mrf.mxu0
      %v4839 = vpop.f32.mrf.mxu0
      %v4840 = vadd.f32 0.0, %v4839
      %v4841 = vpop.f32.mrf.mxu0
      %4842 = vmatprep.mubr.bf16.mxu0 0
      %4843 = vmatmul.mubr.bf16.gmra.mxu0 %v4685
      %v4844 = vpop.f32.mrf.mxu0
      %v4845 = vadd.f32 0.0, %v4844
      %v4846 = vpop.f32.mrf.mxu0
      %v4847 = vpop.f32.mrf.mxu0
      %v4848 = vadd.f32 0.0, %v4847
      %v4849 = vpop.f32.mrf.mxu0
      %4850 = vdwg.mxu0
      %v4851 = vadd.f32 %v4381, %v4725
      %v4852 = vadd.f32 %v4382, %v4728
      %v4853 = vadd.f32 %v4383, %v4733
      %v4854 = vadd.f32 %v4384, %v4736
      %v4855 = vadd.f32 %v4385, %v4741
      %v4856 = vadd.f32 %v4386, %v4744
      %v4857 = vadd.f32 %v4387, %v4749
      %v4858 = vadd.f32 %v4388, %v4752
      %v4859 = vadd.f32 %v4389, %v4757
      %v4860 = vadd.f32 %v4390, %v4760
      %v4861 = vadd.f32 %v4391, %v4765
      %v4862 = vadd.f32 %v4392, %v4768
      %v4863 = vadd.f32 %v4393, %v4773
      %v4864 = vadd.f32 %v4394, %v4776
      %v4865 = vadd.f32 %v4395, %v4781
      %v4866 = vadd.f32 %v4396, %v4784
      %v4867 = vadd.f32 %v4397, %v4789
      %v4868 = vadd.f32 %v4398, %v4792
      %v4869 = vadd.f32 %v4399, %v4797
      %v4870 = vadd.f32 %v4400, %v4800
      %v4871 = vadd.f32 %v4401, %v4805
      %v4872 = vadd.f32 %v4402, %v4808
      %v4873 = vadd.f32 %v4403, %v4813
      %v4874 = vadd.f32 %v4404, %v4816
      %v4875 = vadd.f32 %v4405, %v4821
      %v4876 = vadd.f32 %v4406, %v4824
      %v4877 = vadd.f32 %v4407, %v4829
      %v4878 = vadd.f32 %v4408, %v4832
      %v4879 = vadd.f32 %v4409, %v4837
      %v4880 = vadd.f32 %v4410, %v4840
      %v4881 = vadd.f32 %v4411, %v4845
      %v4882 = vadd.f32 %v4412, %v4848
      %v4883 = vld [vmem:[%s2] sm:$0x1]
      %v4885 = vlaneseq
      %v4886 = vshrl.u32 %v4885, 7
      %v4887 = vsub.s32 0, %v4886
      %v4888 = vrot.slane %v4883, %v4887
      %v4890 = vmul.f32 %v4851, %v4888
      %v4891 = vmul.f32 %v4852, %v4888
      %v4892 = vmul.f32 %v4853, %v4888
      %v4893 = vmul.f32 %v4854, %v4888
      %v4894 = vmul.f32 %v4855, %v4888
      %v4895 = vmul.f32 %v4856, %v4888
      %v4896 = vmul.f32 %v4857, %v4888
      %v4897 = vmul.f32 %v4858, %v4888
      %v4898 = vmul.f32 %v4859, %v4888
      %v4899 = vmul.f32 %v4860, %v4888
      %v4900 = vmul.f32 %v4861, %v4888
      %v4901 = vmul.f32 %v4862, %v4888
      %v4902 = vmul.f32 %v4863, %v4888
      %v4903 = vmul.f32 %v4864, %v4888
      %v4904 = vmul.f32 %v4865, %v4888
      %v4905 = vmul.f32 %v4866, %v4888
      %v4906 = vmul.f32 %v4867, %v4888
      %v4907 = vmul.f32 %v4868, %v4888
      %v4908 = vmul.f32 %v4869, %v4888
      %v4909 = vmul.f32 %v4870, %v4888
      %v4910 = vmul.f32 %v4871, %v4888
      %v4911 = vmul.f32 %v4872, %v4888
      %v4912 = vmul.f32 %v4873, %v4888
      %v4913 = vmul.f32 %v4874, %v4888
      %v4914 = vmul.f32 %v4875, %v4888
      %v4915 = vmul.f32 %v4876, %v4888
      %v4916 = vmul.f32 %v4877, %v4888
      %v4917 = vmul.f32 %v4878, %v4888
      %v4918 = vmul.f32 %v4879, %v4888
      %v4919 = vmul.f32 %v4880, %v4888
      %v4920 = vmul.f32 %v4881, %v4888
      %v4921 = vmul.f32 %v4882, %v4888
      %v4922 = vld [vmem:[%s3] sm:$0x1]
      %v4924 = vlaneseq
      %v4925 = vshrl.u32 %v4924, 7
      %v4926 = vsub.s32 0, %v4925
      %v4927 = vrot.slane %v4922, %v4926
      %v4929 = vadd.f32 %v4890, %v4927
      %v4930 = vadd.f32 %v4891, %v4927
      %v4931 = vadd.f32 %v4892, %v4927
      %v4932 = vadd.f32 %v4893, %v4927
      %v4933 = vadd.f32 %v4894, %v4927
      %v4934 = vadd.f32 %v4895, %v4927
      %v4935 = vadd.f32 %v4896, %v4927
      %v4936 = vadd.f32 %v4897, %v4927
      %v4937 = vadd.f32 %v4898, %v4927
      %v4938 = vadd.f32 %v4899, %v4927
      %v4939 = vadd.f32 %v4900, %v4927
      %v4940 = vadd.f32 %v4901, %v4927
      %v4941 = vadd.f32 %v4902, %v4927
      %v4942 = vadd.f32 %v4903, %v4927
      %v4943 = vadd.f32 %v4904, %v4927
      %v4944 = vadd.f32 %v4905, %v4927
      %v4945 = vadd.f32 %v4906, %v4927
      %v4946 = vadd.f32 %v4907, %v4927
      %v4947 = vadd.f32 %v4908, %v4927
      %v4948 = vadd.f32 %v4909, %v4927
      %v4949 = vadd.f32 %v4910, %v4927
      %v4950 = vadd.f32 %v4911, %v4927
      %v4951 = vadd.f32 %v4912, %v4927
      %v4952 = vadd.f32 %v4913, %v4927
      %v4953 = vadd.f32 %v4914, %v4927
      %v4954 = vadd.f32 %v4915, %v4927
      %v4955 = vadd.f32 %v4916, %v4927
      %v4956 = vadd.f32 %v4917, %v4927
      %v4957 = vadd.f32 %v4918, %v4927
      %v4958 = vadd.f32 %v4919, %v4927
      %v4959 = vadd.f32 %v4920, %v4927
      %v4960 = vadd.f32 %v4921, %v4927
      %v4961 = vmax.f32 %v4929, 0.0
      %v4962 = vmax.f32 %v4930, 0.0
      %v4963 = vmax.f32 %v4931, 0.0
      %v4964 = vmax.f32 %v4932, 0.0
      %v4965 = vmax.f32 %v4933, 0.0
      %v4966 = vmax.f32 %v4934, 0.0
      %v4967 = vmax.f32 %v4935, 0.0
      %v4968 = vmax.f32 %v4936, 0.0
      %v4969 = vmax.f32 %v4937, 0.0
      %v4970 = vmax.f32 %v4938, 0.0
      %v4971 = vmax.f32 %v4939, 0.0
      %v4972 = vmax.f32 %v4940, 0.0
      %v4973 = vmax.f32 %v4941, 0.0
      %v4974 = vmax.f32 %v4942, 0.0
      %v4975 = vmax.f32 %v4943, 0.0
      %v4976 = vmax.f32 %v4944, 0.0
      %v4977 = vmax.f32 %v4945, 0.0
      %v4978 = vmax.f32 %v4946, 0.0
      %v4979 = vmax.f32 %v4947, 0.0
      %v4980 = vmax.f32 %v4948, 0.0
      %v4981 = vmax.f32 %v4949, 0.0
      %v4982 = vmax.f32 %v4950, 0.0
      %v4983 = vmax.f32 %v4951, 0.0
      %v4984 = vmax.f32 %v4952, 0.0
      %v4985 = vmax.f32 %v4953, 0.0
      %v4986 = vmax.f32 %v4954, 0.0
      %v4987 = vmax.f32 %v4955, 0.0
      %v4988 = vmax.f32 %v4956, 0.0
      %v4989 = vmax.f32 %v4957, 0.0
      %v4990 = vmax.f32 %v4958, 0.0
      %v4991 = vmax.f32 %v4959, 0.0
      %v4992 = vmax.f32 %v4960, 0.0
      %v4993 = vpack.c.bf16 %v4962, %v4961
      %v4994 = vpack.c.bf16 %v4964, %v4963
      %v4995 = vpack.c.bf16 %v4966, %v4965
      %v4996 = vpack.c.bf16 %v4968, %v4967
      %v4997 = vpack.c.bf16 %v4970, %v4969
      %v4998 = vpack.c.bf16 %v4972, %v4971
      %v4999 = vpack.c.bf16 %v4974, %v4973
      %v5000 = vpack.c.bf16 %v4976, %v4975
      %v5001 = vpack.c.bf16 %v4978, %v4977
      %v5002 = vpack.c.bf16 %v4980, %v4979
      %v5003 = vpack.c.bf16 %v4982, %v4981
      %v5004 = vpack.c.bf16 %v4984, %v4983
      %v5005 = vpack.c.bf16 %v4986, %v4985
      %v5006 = vpack.c.bf16 %v4988, %v4987
      %v5007 = vpack.c.bf16 %v4990, %v4989
      %v5008 = vpack.c.bf16 %v4992, %v4991
      %v5025 = vunpack.c.l.b16 %v4993
      %v5026 = vunpack.c.h.b16 %v4993
      %v5027 = vunpack.c.l.b16 %v4994
      %v5028 = vunpack.c.h.b16 %v4994
      %v5029 = vunpack.c.l.b16 %v4995
      %v5030 = vunpack.c.h.b16 %v4995
      %v5031 = vunpack.c.l.b16 %v4996
      %v5032 = vunpack.c.h.b16 %v4996
      %v5033 = vunpack.c.l.b16 %v4997
      %v5034 = vunpack.c.h.b16 %v4997
      %v5035 = vunpack.c.l.b16 %v4998
      %v5036 = vunpack.c.h.b16 %v4998
      %v5037 = vunpack.c.l.b16 %v4999
      %v5038 = vunpack.c.h.b16 %v4999
      %v5039 = vunpack.c.l.b16 %v5000
      %v5040 = vunpack.c.h.b16 %v5000
      %v5041 = vunpack.c.l.b16 %v5001
      %v5042 = vunpack.c.h.b16 %v5001
      %v5043 = vunpack.c.l.b16 %v5002
      %v5044 = vunpack.c.h.b16 %v5002
      %v5045 = vunpack.c.l.b16 %v5003
      %v5046 = vunpack.c.h.b16 %v5003
      %v5047 = vunpack.c.l.b16 %v5004
      %v5048 = vunpack.c.h.b16 %v5004
      %v5049 = vunpack.c.l.b16 %v5005
      %v5050 = vunpack.c.h.b16 %v5005
      %v5051 = vunpack.c.l.b16 %v5006
      %v5052 = vunpack.c.h.b16 %v5006
      %v5053 = vunpack.c.l.b16 %v5007
      %v5054 = vunpack.c.h.b16 %v5007
      %v5055 = vunpack.c.l.b16 %v5008
      %v5056 = vunpack.c.h.b16 %v5008
      %v5057 = vpack.c.b16 %v5025, %v5025
      %v5058 = vpack.c.b16 %v5026, %v5026
      %v5059 = vpack.c.b16 %v5027, %v5027
      %v5060 = vpack.c.b16 %v5028, %v5028
      %v5061 = vpack.c.b16 %v5029, %v5029
      %v5062 = vpack.c.b16 %v5030, %v5030
      %v5063 = vpack.c.b16 %v5031, %v5031
      %v5064 = vpack.c.b16 %v5032, %v5032
      %v5065 = vpack.c.b16 %v5033, %v5033
      %v5066 = vpack.c.b16 %v5034, %v5034
      %v5067 = vpack.c.b16 %v5035, %v5035
      %v5068 = vpack.c.b16 %v5036, %v5036
      %v5069 = vpack.c.b16 %v5037, %v5037
      %v5070 = vpack.c.b16 %v5038, %v5038
      %v5071 = vpack.c.b16 %v5039, %v5039
      %v5072 = vpack.c.b16 %v5040, %v5040
      %v5073 = vpack.c.b16 %v5041, %v5041
      %v5074 = vpack.c.b16 %v5042, %v5042
      %v5075 = vpack.c.b16 %v5043, %v5043
      %v5076 = vpack.c.b16 %v5044, %v5044
      %v5077 = vpack.c.b16 %v5045, %v5045
      %v5078 = vpack.c.b16 %v5046, %v5046
      %v5079 = vpack.c.b16 %v5047, %v5047
      %v5080 = vpack.c.b16 %v5048, %v5048
      %v5081 = vpack.c.b16 %v5049, %v5049
      %v5082 = vpack.c.b16 %v5050, %v5050
      %v5083 = vpack.c.b16 %v5051, %v5051
      %v5084 = vpack.c.b16 %v5052, %v5052
      %v5085 = vpack.c.b16 %v5053, %v5053
      %v5086 = vpack.c.b16 %v5054, %v5054
      %v5087 = vpack.c.b16 %v5055, %v5055
      %v5088 = vpack.c.b16 %v5056, %v5056
      %vm5121 = vcmask 60416
      %5122 = vst.msk [vmem:[#allocation2 + $0x4] sm:$0xf] %vm5121, %v5057
      %5123 = vst.msk [vmem:[#allocation2 + $0x8] sm:$0xf] %vm5121, %v5058
      %5124 = vst.msk [vmem:[#allocation2 + $0x14] sm:$0xf] %vm5121, %v5059
      %5125 = vst.msk [vmem:[#allocation2 + $0x18] sm:$0xf] %vm5121, %v5060
      %5126 = vst.msk [vmem:[#allocation2 + $0x24] sm:$0xf] %vm5121, %v5061
      %5127 = vst.msk [vmem:[#allocation2 + $0x28] sm:$0xf] %vm5121, %v5062
      %5128 = vst.msk [vmem:[#allocation2 + $0x34] sm:$0xf] %vm5121, %v5063
      %5129 = vst.msk [vmem:[#allocation2 + $0x38] sm:$0xf] %vm5121, %v5064
      %5130 = vst.msk [vmem:[#allocation2 + $0x44] sm:$0xf] %vm5121, %v5065
      %5131 = vst.msk [vmem:[#allocation2 + $0x48] sm:$0xf] %vm5121, %v5066
      %5132 = vst.msk [vmem:[#allocation2 + $0x54] sm:$0xf] %vm5121, %v5067
      %5133 = vst.msk [vmem:[#allocation2 + $0x58] sm:$0xf] %vm5121, %v5068
      %5134 = vst.msk [vmem:[#allocation2 + $0x64] sm:$0xf] %vm5121, %v5069
      %5135 = vst.msk [vmem:[#allocation2 + $0x68] sm:$0xf] %vm5121, %v5070
      %5136 = vst.msk [vmem:[#allocation2 + $0x74] sm:$0xf] %vm5121, %v5071
      %5137 = vst.msk [vmem:[#allocation2 + $0x78] sm:$0xf] %vm5121, %v5072
      %5138 = vst.msk [vmem:[#allocation2 + $0x84] sm:$0xf] %vm5121, %v5073
      %5139 = vst.msk [vmem:[#allocation2 + $0x88] sm:$0xf] %vm5121, %v5074
      %5140 = vst.msk [vmem:[#allocation2 + $0x94] sm:$0xf] %vm5121, %v5075
      %5141 = vst.msk [vmem:[#allocation2 + $0x98] sm:$0xf] %vm5121, %v5076
      %5142 = vst.msk [vmem:[#allocation2 + $0xa4] sm:$0xf] %vm5121, %v5077
      %5143 = vst.msk [vmem:[#allocation2 + $0xa8] sm:$0xf] %vm5121, %v5078
      %5144 = vst.msk [vmem:[#allocation2 + $0xb4] sm:$0xf] %vm5121, %v5079
      %5145 = vst.msk [vmem:[#allocation2 + $0xb8] sm:$0xf] %vm5121, %v5080
      %5146 = vst.msk [vmem:[#allocation2 + $0xc4] sm:$0xf] %vm5121, %v5081
      %5147 = vst.msk [vmem:[#allocation2 + $0xc8] sm:$0xf] %vm5121, %v5082
      %5148 = vst.msk [vmem:[#allocation2 + $0xd4] sm:$0xf] %vm5121, %v5083
      %5149 = vst.msk [vmem:[#allocation2 + $0xd8] sm:$0xf] %vm5121, %v5084
      %5150 = vst.msk [vmem:[#allocation2 + $0xe4] sm:$0xf] %vm5121, %v5085
      %5151 = vst.msk [vmem:[#allocation2 + $0xe8] sm:$0xf] %vm5121, %v5086
      %5152 = vst.msk [vmem:[#allocation2 + $0xf4] sm:$0xf] %vm5121, %v5087
      %5153 = vst.msk [vmem:[#allocation2 + $0xf8] sm:$0xf] %vm5121, %v5088
      %s5154 = scalar_lea.vmem %s310, 192
      %v5155 = vld [vmem:[%s5154] sm:$0xf]
      %v5156 = vld [vmem:[%s5154 + $0x4] sm:$0xf]
      %v5157 = vld [vmem:[%s5154 + $0xc] sm:$0xf]
      %v5158 = vld [vmem:[%s5154 + $0x10] sm:$0xf]
      %v5159 = vld [vmem:[%s1] sm:$0x3]
      %v5160 = vld [vmem:[%s5154 + $0x8] sm:$0x1]
      %v5161 = vld [vmem:[%s5154 + $0x14] sm:$0x1]
      %v5163 = vshrl.u32 %v5155, 16
      %v5165 = vrot.slane %v5163, 4
      %v5166 = vshll.u32 %v5155, 16
      %v5168 = vrot.slane %v5166, 5
      %v5169 = vor.u32 %v5165, %v5168
      %v5170 = vrot.slane %v5169, 4
      %v5172 = vshll.u32 %v5156, 16
      %v5174 = vrot.slane %v5172, 5
      %v5175 = vsel %vm375, %v5170, %v5174
      %v5176 = vshrl.u32 %v5156, 16
      %v5178 = vrot.slane %v5176, 4
      %v5179 = vor.u32 %v5178, %v5174
      %v5180 = vrot.slane %v5179, 4
      %v5182 = vshll.u32 %v5160, 16
      %v5184 = vrot.slane %v5182, 5
      %v5185 = vsel %vm375, %v5180, %v5184
      %v5187 = vshrl.u32 %v5157, 16
      %v5189 = vrot.slane %v5187, 4
      %v5190 = vshll.u32 %v5157, 16
      %v5192 = vrot.slane %v5190, 5
      %v5193 = vor.u32 %v5189, %v5192
      %v5194 = vrot.slane %v5193, 4
      %v5196 = vshll.u32 %v5158, 16
      %v5198 = vrot.slane %v5196, 5
      %v5199 = vsel %vm375, %v5194, %v5198
      %v5200 = vshrl.u32 %v5158, 16
      %v5202 = vrot.slane %v5200, 4
      %v5203 = vor.u32 %v5202, %v5198
      %v5204 = vrot.slane %v5203, 4
      %v5206 = vshll.u32 %v5161, 16
      %v5208 = vrot.slane %v5206, 5
      %v5209 = vsel %vm375, %v5204, %v5208
      %v5210 = vld [vmem:[%s760] sm:$0x3]
      %v5211 = vunpack.c.l.b16 %v5175
      %v5212 = vunpack.c.l.b16 %v5185
      %v5213 = vunpack.c.l.b16 %v5199
      %v5214 = vunpack.c.l.b16 %v5209
      %v5215 = vpack.c.b16 %v5212, %v5211
      %v5216 = vpack.c.b16 %v5214, %v5213
      %v5218 = vsel %vm810, %v5215, 0
      %v5221 = vsel %vm810, %v5216, 0
      %v5224 = vsel %vm859, %v5210, 0
      %5226 = vmatprep.subr.bf16.mxu0 0
      %5227 = vmatpush1.bf16.msra.mxu0 0
      %5228 = vmatprep.subr.bf16.mxu0 0
      %5229 = vmatpush1.bf16.msra.mxu0 0
      %5230 = vmatprep.subr.bf16.mxu0 0
      %5231 = vmatpush1.bf16.msra.mxu0 0
      %5232 = vmatprep.subr.bf16.mxu0 0
      %5233 = vmatpush1.bf16.msra.mxu0 0
      %5234 = vmatprep.subr.bf16.mxu0 0
      %5235 = vmatpush1.bf16.msra.mxu0 0
      %5236 = vmatprep.subr.bf16.mxu0 0
      %5237 = vmatpush1.bf16.msra.mxu0 0
      %5238 = vmatprep.subr.bf16.mxu0 0
      %5239 = vmatpush1.bf16.msra.mxu0 0
      %5240 = vmatprep.subr.bf16.mxu0 0
      %5241 = vmatpush1.bf16.msra.mxu0 %v5224
      %5242 = vmatprep.subr.bf16.mxu0 0
      %5243 = vmatpush2.bf16.msra.mxu0 0
      %5244 = vmatprep.subr.bf16.mxu0 0
      %5245 = vmatpush2.bf16.msra.mxu0 0
      %5246 = vmatprep.subr.bf16.mxu0 0
      %5247 = vmatpush2.bf16.msra.mxu0 0
      %5248 = vmatprep.subr.bf16.mxu0 0
      %5249 = vmatpush2.bf16.msra.mxu0 0
      %5250 = vmatprep.subr.bf16.mxu0 0
      %5251 = vmatpush2.bf16.msra.mxu0 0
      %5252 = vmatprep.subr.bf16.mxu0 0
      %5253 = vmatpush2.bf16.msra.mxu0 0
      %5254 = vmatprep.subr.bf16.mxu0 0
      %5255 = vmatpush2.bf16.msra.mxu0 0
      %5256 = vmatprep.subr.bf16.mxu0 0
      %5257 = vmatpush2.bf16.msra.mxu0 0
      %5258 = vmatprep.mubr.bf16.mxu0 0
      %5259 = vmatmul.mubr.bf16.gmra.mxu0 %v5218
      %v5260 = vpop.f32.mrf.mxu0
      %v5261 = vadd.f32 0.0, %v5260
      %v5262 = vpop.f32.mrf.mxu0
      %v5263 = vpop.f32.mrf.mxu0
      %v5264 = vadd.f32 0.0, %v5263
      %v5265 = vpop.f32.mrf.mxu0
      %5266 = vmatprep.mubr.bf16.mxu0 0
      %5267 = vmatmul.mubr.bf16.gmra.mxu0 %v5221
      %v5268 = vpop.f32.mrf.mxu0
      %v5269 = vadd.f32 0.0, %v5268
      %v5270 = vpop.f32.mrf.mxu0
      %v5271 = vpop.f32.mrf.mxu0
      %v5272 = vadd.f32 0.0, %v5271
      %v5273 = vpop.f32.mrf.mxu0
      %5274 = vdwg.mxu0
      %v5279 = vunpack.c.l.b16 %v5155
      %v5280 = vunpack.c.l.b16 %v5156
      %v5281 = vunpack.c.l.b16 %v5157
      %v5282 = vunpack.c.l.b16 %v5158
      %v5283 = vpack.c.b16 %v5280, %v5279
      %v5284 = vpack.c.b16 %v5282, %v5281
      %v5286 = vsel %vm810, %v5283, 0
      %v5289 = vsel %vm810, %v5284, 0
      %v5292 = vsel %vm859, %v5159, 0
      %5294 = vmatprep.subr.bf16.mxu0 0
      %5295 = vmatpush1.bf16.msra.mxu0 0
      %5296 = vmatprep.subr.bf16.mxu0 0
      %5297 = vmatpush1.bf16.msra.mxu0 0
      %5298 = vmatprep.subr.bf16.mxu0 0
      %5299 = vmatpush1.bf16.msra.mxu0 0
      %5300 = vmatprep.subr.bf16.mxu0 0
      %5301 = vmatpush1.bf16.msra.mxu0 0
      %5302 = vmatprep.subr.bf16.mxu0 0
      %5303 = vmatpush1.bf16.msra.mxu0 0
      %5304 = vmatprep.subr.bf16.mxu0 0
      %5305 = vmatpush1.bf16.msra.mxu0 0
      %5306 = vmatprep.subr.bf16.mxu0 0
      %5307 = vmatpush1.bf16.msra.mxu0 0
      %5308 = vmatprep.subr.bf16.mxu0 0
      %5309 = vmatpush1.bf16.msra.mxu0 %v5292
      %5310 = vmatprep.subr.bf16.mxu0 0
      %5311 = vmatpush2.bf16.msra.mxu0 0
      %5312 = vmatprep.subr.bf16.mxu0 0
      %5313 = vmatpush2.bf16.msra.mxu0 0
      %5314 = vmatprep.subr.bf16.mxu0 0
      %5315 = vmatpush2.bf16.msra.mxu0 0
      %5316 = vmatprep.subr.bf16.mxu0 0
      %5317 = vmatpush2.bf16.msra.mxu0 0
      %5318 = vmatprep.subr.bf16.mxu0 0
      %5319 = vmatpush2.bf16.msra.mxu0 0
      %5320 = vmatprep.subr.bf16.mxu0 0
      %5321 = vmatpush2.bf16.msra.mxu0 0
      %5322 = vmatprep.subr.bf16.mxu0 0
      %5323 = vmatpush2.bf16.msra.mxu0 0
      %5324 = vmatprep.subr.bf16.mxu0 0
      %5325 = vmatpush2.bf16.msra.mxu0 0
      %5326 = vmatprep.mubr.bf16.mxu0 0
      %5327 = vmatmul.mubr.bf16.gmra.mxu0 %v5286
      %v5328 = vpop.f32.mrf.mxu0
      %v5329 = vadd.f32 %v5261, %v5328
      %v5330 = vpop.f32.mrf.mxu0
      %v5331 = vpop.f32.mrf.mxu0
      %v5332 = vadd.f32 %v5264, %v5331
      %v5333 = vpop.f32.mrf.mxu0
      %5334 = vmatprep.mubr.bf16.mxu0 0
      %5335 = vmatmul.mubr.bf16.gmra.mxu0 %v5289
      %v5336 = vpop.f32.mrf.mxu0
      %v5337 = vadd.f32 %v5269, %v5336
      %v5338 = vpop.f32.mrf.mxu0
      %v5339 = vpop.f32.mrf.mxu0
      %v5340 = vadd.f32 %v5272, %v5339
      %v5341 = vpop.f32.mrf.mxu0
      %5342 = vdwg.mxu0
      %v5343 = vld [vmem:[%s5154] sm:$0xe]
      %v5344 = vld [vmem:[%s5154 + $0xc] sm:$0xe]
      %v5349 = vrot.slane %v5343, 5
      %v5350 = vrot.slane %v5349, 4
      %v5351 = vrot.slane %v5156, 5
      %v5352 = vsel %vm1366, %v5350, %v5351
      %v5353 = vrot.slane %v5351, 4
      %v5354 = vrot.slane %v5160, 5
      %v5355 = vsel %vm1366, %v5353, %v5354
      %v5356 = vrot.slane %v5344, 5
      %v5357 = vrot.slane %v5356, 4
      %v5358 = vrot.slane %v5158, 5
      %v5359 = vsel %vm1366, %v5357, %v5358
      %v5360 = vrot.slane %v5358, 4
      %v5361 = vrot.slane %v5161, 5
      %v5362 = vsel %vm1366, %v5360, %v5361
      %v5363 = vld [vmem:[%s1479] sm:$0x3]
      %v5364 = vunpack.c.l.b16 %v5352
      %v5365 = vunpack.c.l.b16 %v5355
      %v5366 = vunpack.c.l.b16 %v5359
      %v5367 = vunpack.c.l.b16 %v5362
      %v5368 = vpack.c.b16 %v5365, %v5364
      %v5369 = vpack.c.b16 %v5367, %v5366
      %v5371 = vsel %vm810, %v5368, 0
      %v5374 = vsel %vm810, %v5369, 0
      %v5377 = vsel %vm859, %v5363, 0
      %5379 = vmatprep.subr.bf16.mxu0 0
      %5380 = vmatpush1.bf16.msra.mxu0 0
      %5381 = vmatprep.subr.bf16.mxu0 0
      %5382 = vmatpush1.bf16.msra.mxu0 0
      %5383 = vmatprep.subr.bf16.mxu0 0
      %5384 = vmatpush1.bf16.msra.mxu0 0
      %5385 = vmatprep.subr.bf16.mxu0 0
      %5386 = vmatpush1.bf16.msra.mxu0 0
      %5387 = vmatprep.subr.bf16.mxu0 0
      %5388 = vmatpush1.bf16.msra.mxu0 0
      %5389 = vmatprep.subr.bf16.mxu0 0
      %5390 = vmatpush1.bf16.msra.mxu0 0
      %5391 = vmatprep.subr.bf16.mxu0 0
      %5392 = vmatpush1.bf16.msra.mxu0 0
      %5393 = vmatprep.subr.bf16.mxu0 0
      %5394 = vmatpush1.bf16.msra.mxu0 %v5377
      %5395 = vmatprep.subr.bf16.mxu0 0
      %5396 = vmatpush2.bf16.msra.mxu0 0
      %5397 = vmatprep.subr.bf16.mxu0 0
      %5398 = vmatpush2.bf16.msra.mxu0 0
      %5399 = vmatprep.subr.bf16.mxu0 0
      %5400 = vmatpush2.bf16.msra.mxu0 0
      %5401 = vmatprep.subr.bf16.mxu0 0
      %5402 = vmatpush2.bf16.msra.mxu0 0
      %5403 = vmatprep.subr.bf16.mxu0 0
      %5404 = vmatpush2.bf16.msra.mxu0 0
      %5405 = vmatprep.subr.bf16.mxu0 0
      %5406 = vmatpush2.bf16.msra.mxu0 0
      %5407 = vmatprep.subr.bf16.mxu0 0
      %5408 = vmatpush2.bf16.msra.mxu0 0
      %5409 = vmatprep.subr.bf16.mxu0 0
      %5410 = vmatpush2.bf16.msra.mxu0 0
      %5411 = vmatprep.mubr.bf16.mxu0 0
      %5412 = vmatmul.mubr.bf16.gmra.mxu0 %v5371
      %v5413 = vpop.f32.mrf.mxu0
      %v5414 = vadd.f32 0.0, %v5413
      %v5415 = vpop.f32.mrf.mxu0
      %v5416 = vpop.f32.mrf.mxu0
      %v5417 = vadd.f32 0.0, %v5416
      %v5418 = vpop.f32.mrf.mxu0
      %5419 = vmatprep.mubr.bf16.mxu0 0
      %5420 = vmatmul.mubr.bf16.gmra.mxu0 %v5374
      %v5421 = vpop.f32.mrf.mxu0
      %v5422 = vadd.f32 0.0, %v5421
      %v5423 = vpop.f32.mrf.mxu0
      %v5424 = vpop.f32.mrf.mxu0
      %v5425 = vadd.f32 0.0, %v5424
      %v5426 = vpop.f32.mrf.mxu0
      %5427 = vdwg.mxu0
      %v5428 = vadd.f32 %v5329, %v5414
      %v5429 = vadd.f32 %v5332, %v5417
      %v5430 = vadd.f32 %v5337, %v5422
      %v5431 = vadd.f32 %v5340, %v5425
      %s5432 = scalar_lea.vmem %s310, 204
      %v5433 = vld [vmem:[%s5432] sm:$0xf]
      %v5434 = vld [vmem:[%s5432 + $0x4] sm:$0xf]
      %v5435 = vld [vmem:[%s5432 + $0xc] sm:$0xf]
      %v5436 = vld [vmem:[%s5432 + $0x10] sm:$0xf]
      %v5437 = vld [vmem:[%s1806] sm:$0x3]
      %v5442 = vunpack.c.l.b16 %v5433
      %v5443 = vunpack.c.l.b16 %v5434
      %v5444 = vunpack.c.l.b16 %v5435
      %v5445 = vunpack.c.l.b16 %v5436
      %v5446 = vpack.c.b16 %v5443, %v5442
      %v5447 = vpack.c.b16 %v5445, %v5444
      %v5449 = vsel %vm810, %v5446, 0
      %v5452 = vsel %vm810, %v5447, 0
      %v5455 = vsel %vm859, %v5437, 0
      %5457 = vmatprep.subr.bf16.mxu0 0
      %5458 = vmatpush1.bf16.msra.mxu0 0
      %5459 = vmatprep.subr.bf16.mxu0 0
      %5460 = vmatpush1.bf16.msra.mxu0 0
      %5461 = vmatprep.subr.bf16.mxu0 0
      %5462 = vmatpush1.bf16.msra.mxu0 0
      %5463 = vmatprep.subr.bf16.mxu0 0
      %5464 = vmatpush1.bf16.msra.mxu0 0
      %5465 = vmatprep.subr.bf16.mxu0 0
      %5466 = vmatpush1.bf16.msra.mxu0 0
      %5467 = vmatprep.subr.bf16.mxu0 0
      %5468 = vmatpush1.bf16.msra.mxu0 0
      %5469 = vmatprep.subr.bf16.mxu0 0
      %5470 = vmatpush1.bf16.msra.mxu0 0
      %5471 = vmatprep.subr.bf16.mxu0 0
      %5472 = vmatpush1.bf16.msra.mxu0 %v5455
      %5473 = vmatprep.subr.bf16.mxu0 0
      %5474 = vmatpush2.bf16.msra.mxu0 0
      %5475 = vmatprep.subr.bf16.mxu0 0
      %5476 = vmatpush2.bf16.msra.mxu0 0
      %5477 = vmatprep.subr.bf16.mxu0 0
      %5478 = vmatpush2.bf16.msra.mxu0 0
      %5479 = vmatprep.subr.bf16.mxu0 0
      %5480 = vmatpush2.bf16.msra.mxu0 0
      %5481 = vmatprep.subr.bf16.mxu0 0
      %5482 = vmatpush2.bf16.msra.mxu0 0
      %5483 = vmatprep.subr.bf16.mxu0 0
      %5484 = vmatpush2.bf16.msra.mxu0 0
      %5485 = vmatprep.subr.bf16.mxu0 0
      %5486 = vmatpush2.bf16.msra.mxu0 0
      %5487 = vmatprep.subr.bf16.mxu0 0
      %5488 = vmatpush2.bf16.msra.mxu0 0
      %5489 = vmatprep.mubr.bf16.mxu0 0
      %5490 = vmatmul.mubr.bf16.gmra.mxu0 %v5449
      %v5491 = vpop.f32.mrf.mxu0
      %v5492 = vadd.f32 0.0, %v5491
      %v5493 = vpop.f32.mrf.mxu0
      %v5494 = vpop.f32.mrf.mxu0
      %v5495 = vadd.f32 0.0, %v5494
      %v5496 = vpop.f32.mrf.mxu0
      %5497 = vmatprep.mubr.bf16.mxu0 0
      %5498 = vmatmul.mubr.bf16.gmra.mxu0 %v5452
      %v5499 = vpop.f32.mrf.mxu0
      %v5500 = vadd.f32 0.0, %v5499
      %v5501 = vpop.f32.mrf.mxu0
      %v5502 = vpop.f32.mrf.mxu0
      %v5503 = vadd.f32 0.0, %v5502
      %v5504 = vpop.f32.mrf.mxu0
      %5505 = vdwg.mxu0
      %v5506 = vadd.f32 %v5428, %v5492
      %v5507 = vadd.f32 %v5429, %v5495
      %v5508 = vadd.f32 %v5430, %v5500
      %v5509 = vadd.f32 %v5431, %v5503
      %v5510 = vld [vmem:[%s5432] sm:$0xf]
      %v5511 = vld [vmem:[%s5432 + $0x4] sm:$0xf]
      %v5512 = vld [vmem:[%s5432 + $0x8] sm:$0x1]
      %v5513 = vld [vmem:[%s5432 + $0xc] sm:$0xf]
      %v5514 = vld [vmem:[%s5432 + $0x10] sm:$0xf]
      %v5515 = vld [vmem:[%s5432 + $0x14] sm:$0x1]
      %v5517 = vshrl.u32 %v5510, 16
      %v5519 = vrot.slane %v5517, 4
      %v5520 = vshll.u32 %v5510, 16
      %v5522 = vrot.slane %v5520, 5
      %v5523 = vor.u32 %v5519, %v5522
      %v5524 = vrot.slane %v5523, 4
      %v5526 = vshll.u32 %v5511, 16
      %v5528 = vrot.slane %v5526, 5
      %v5529 = vsel %vm375, %v5524, %v5528
      %v5530 = vshrl.u32 %v5511, 16
      %v5532 = vrot.slane %v5530, 4
      %v5533 = vor.u32 %v5532, %v5528
      %v5534 = vrot.slane %v5533, 4
      %v5536 = vshll.u32 %v5512, 16
      %v5538 = vrot.slane %v5536, 5
      %v5539 = vsel %vm375, %v5534, %v5538
      %v5541 = vshrl.u32 %v5513, 16
      %v5543 = vrot.slane %v5541, 4
      %v5544 = vshll.u32 %v5513, 16
      %v5546 = vrot.slane %v5544, 5
      %v5547 = vor.u32 %v5543, %v5546
      %v5548 = vrot.slane %v5547, 4
      %v5550 = vshll.u32 %v5514, 16
      %v5552 = vrot.slane %v5550, 5
      %v5553 = vsel %vm375, %v5548, %v5552
      %v5554 = vshrl.u32 %v5514, 16
      %v5556 = vrot.slane %v5554, 4
      %v5557 = vor.u32 %v5556, %v5552
      %v5558 = vrot.slane %v5557, 4
      %v5560 = vshll.u32 %v5515, 16
      %v5562 = vrot.slane %v5560, 5
      %v5563 = vsel %vm375, %v5558, %v5562
      %v5564 = vld [vmem:[%s2564] sm:$0x3]
      %v5565 = vunpack.c.l.b16 %v5529
      %v5566 = vunpack.c.l.b16 %v5539
      %v5567 = vunpack.c.l.b16 %v5553
      %v5568 = vunpack.c.l.b16 %v5563
      %v5569 = vpack.c.b16 %v5566, %v5565
      %v5570 = vpack.c.b16 %v5568, %v5567
      %v5572 = vsel %vm810, %v5569, 0
      %v5575 = vsel %vm810, %v5570, 0
      %v5578 = vsel %vm859, %v5564, 0
      %5580 = vmatprep.subr.bf16.mxu0 0
      %5581 = vmatpush1.bf16.msra.mxu0 0
      %5582 = vmatprep.subr.bf16.mxu0 0
      %5583 = vmatpush1.bf16.msra.mxu0 0
      %5584 = vmatprep.subr.bf16.mxu0 0
      %5585 = vmatpush1.bf16.msra.mxu0 0
      %5586 = vmatprep.subr.bf16.mxu0 0
      %5587 = vmatpush1.bf16.msra.mxu0 0
      %5588 = vmatprep.subr.bf16.mxu0 0
      %5589 = vmatpush1.bf16.msra.mxu0 0
      %5590 = vmatprep.subr.bf16.mxu0 0
      %5591 = vmatpush1.bf16.msra.mxu0 0
      %5592 = vmatprep.subr.bf16.mxu0 0
      %5593 = vmatpush1.bf16.msra.mxu0 0
      %5594 = vmatprep.subr.bf16.mxu0 0
      %5595 = vmatpush1.bf16.msra.mxu0 %v5578
      %5596 = vmatprep.subr.bf16.mxu0 0
      %5597 = vmatpush2.bf16.msra.mxu0 0
      %5598 = vmatprep.subr.bf16.mxu0 0
      %5599 = vmatpush2.bf16.msra.mxu0 0
      %5600 = vmatprep.subr.bf16.mxu0 0
      %5601 = vmatpush2.bf16.msra.mxu0 0
      %5602 = vmatprep.subr.bf16.mxu0 0
      %5603 = vmatpush2.bf16.msra.mxu0 0
      %5604 = vmatprep.subr.bf16.mxu0 0
      %5605 = vmatpush2.bf16.msra.mxu0 0
      %5606 = vmatprep.subr.bf16.mxu0 0
      %5607 = vmatpush2.bf16.msra.mxu0 0
      %5608 = vmatprep.subr.bf16.mxu0 0
      %5609 = vmatpush2.bf16.msra.mxu0 0
      %5610 = vmatprep.subr.bf16.mxu0 0
      %5611 = vmatpush2.bf16.msra.mxu0 0
      %5612 = vmatprep.mubr.bf16.mxu0 0
      %5613 = vmatmul.mubr.bf16.gmra.mxu0 %v5572
      %v5614 = vpop.f32.mrf.mxu0
      %v5615 = vadd.f32 0.0, %v5614
      %v5616 = vpop.f32.mrf.mxu0
      %v5617 = vpop.f32.mrf.mxu0
      %v5618 = vadd.f32 0.0, %v5617
      %v5619 = vpop.f32.mrf.mxu0
      %5620 = vmatprep.mubr.bf16.mxu0 0
      %5621 = vmatmul.mubr.bf16.gmra.mxu0 %v5575
      %v5622 = vpop.f32.mrf.mxu0
      %v5623 = vadd.f32 0.0, %v5622
      %v5624 = vpop.f32.mrf.mxu0
      %v5625 = vpop.f32.mrf.mxu0
      %v5626 = vadd.f32 0.0, %v5625
      %v5627 = vpop.f32.mrf.mxu0
      %5628 = vdwg.mxu0
      %v5629 = vadd.f32 %v5506, %v5615
      %v5630 = vadd.f32 %v5507, %v5618
      %v5631 = vadd.f32 %v5508, %v5623
      %v5632 = vadd.f32 %v5509, %v5626
      %v5633 = vld [vmem:[%s5432] sm:$0xe]
      %v5634 = vld [vmem:[%s5432 + $0xc] sm:$0xe]
      %v5641 = vrot.slane %v5633, 5
      %v5642 = vrot.slane %v5641, 4
      %v5643 = vrot.slane %v5511, 5
      %v5644 = vsel %vm1366, %v5642, %v5643
      %v5645 = vrot.slane %v5643, 4
      %v5646 = vrot.slane %v5512, 5
      %v5647 = vsel %vm1366, %v5645, %v5646
      %v5648 = vrot.slane %v5634, 5
      %v5649 = vrot.slane %v5648, 4
      %v5650 = vrot.slane %v5514, 5
      %v5651 = vsel %vm1366, %v5649, %v5650
      %v5652 = vrot.slane %v5650, 4
      %v5653 = vrot.slane %v5515, 5
      %v5654 = vsel %vm1366, %v5652, %v5653
      %v5655 = vld [vmem:[%s3034] sm:$0x3]
      %v5656 = vunpack.c.l.b16 %v5644
      %v5657 = vunpack.c.l.b16 %v5647
      %v5658 = vunpack.c.l.b16 %v5651
      %v5659 = vunpack.c.l.b16 %v5654
      %v5660 = vpack.c.b16 %v5657, %v5656
      %v5661 = vpack.c.b16 %v5659, %v5658
      %v5663 = vsel %vm810, %v5660, 0
      %v5666 = vsel %vm810, %v5661, 0
      %v5669 = vsel %vm859, %v5655, 0
      %5671 = vmatprep.subr.bf16.mxu0 0
      %5672 = vmatpush1.bf16.msra.mxu0 0
      %5673 = vmatprep.subr.bf16.mxu0 0
      %5674 = vmatpush1.bf16.msra.mxu0 0
      %5675 = vmatprep.subr.bf16.mxu0 0
      %5676 = vmatpush1.bf16.msra.mxu0 0
      %5677 = vmatprep.subr.bf16.mxu0 0
      %5678 = vmatpush1.bf16.msra.mxu0 0
      %5679 = vmatprep.subr.bf16.mxu0 0
      %5680 = vmatpush1.bf16.msra.mxu0 0
      %5681 = vmatprep.subr.bf16.mxu0 0
      %5682 = vmatpush1.bf16.msra.mxu0 0
      %5683 = vmatprep.subr.bf16.mxu0 0
      %5684 = vmatpush1.bf16.msra.mxu0 0
      %5685 = vmatprep.subr.bf16.mxu0 0
      %5686 = vmatpush1.bf16.msra.mxu0 %v5669
      %5687 = vmatprep.subr.bf16.mxu0 0
      %5688 = vmatpush2.bf16.msra.mxu0 0
      %5689 = vmatprep.subr.bf16.mxu0 0
      %5690 = vmatpush2.bf16.msra.mxu0 0
      %5691 = vmatprep.subr.bf16.mxu0 0
      %5692 = vmatpush2.bf16.msra.mxu0 0
      %5693 = vmatprep.subr.bf16.mxu0 0
      %5694 = vmatpush2.bf16.msra.mxu0 0
      %5695 = vmatprep.subr.bf16.mxu0 0
      %5696 = vmatpush2.bf16.msra.mxu0 0
      %5697 = vmatprep.subr.bf16.mxu0 0
      %5698 = vmatpush2.bf16.msra.mxu0 0
      %5699 = vmatprep.subr.bf16.mxu0 0
      %5700 = vmatpush2.bf16.msra.mxu0 0
      %5701 = vmatprep.subr.bf16.mxu0 0
      %5702 = vmatpush2.bf16.msra.mxu0 0
      %5703 = vmatprep.mubr.bf16.mxu0 0
      %5704 = vmatmul.mubr.bf16.gmra.mxu0 %v5663
      %v5705 = vpop.f32.mrf.mxu0
      %v5706 = vadd.f32 0.0, %v5705
      %v5707 = vpop.f32.mrf.mxu0
      %v5708 = vpop.f32.mrf.mxu0
      %v5709 = vadd.f32 0.0, %v5708
      %v5710 = vpop.f32.mrf.mxu0
      %5711 = vmatprep.mubr.bf16.mxu0 0
      %5712 = vmatmul.mubr.bf16.gmra.mxu0 %v5666
      %v5713 = vpop.f32.mrf.mxu0
      %v5714 = vadd.f32 0.0, %v5713
      %v5715 = vpop.f32.mrf.mxu0
      %v5716 = vpop.f32.mrf.mxu0
      %v5717 = vadd.f32 0.0, %v5716
      %v5718 = vpop.f32.mrf.mxu0
      %5719 = vdwg.mxu0
      %v5720 = vadd.f32 %v5629, %v5706
      %v5721 = vadd.f32 %v5630, %v5709
      %v5722 = vadd.f32 %v5631, %v5714
      %v5723 = vadd.f32 %v5632, %v5717
      %s5724 = scalar_lea.vmem %s310, 216
      %v5725 = vld [vmem:[%s5724] sm:$0xf]
      %v5726 = vld [vmem:[%s5724 + $0x4] sm:$0xf]
      %v5727 = vld [vmem:[%s5724 + $0xc] sm:$0xf]
      %v5728 = vld [vmem:[%s5724 + $0x10] sm:$0xf]
      %v5729 = vld [vmem:[%s3361] sm:$0x3]
      %v5734 = vunpack.c.l.b16 %v5725
      %v5735 = vunpack.c.l.b16 %v5726
      %v5736 = vunpack.c.l.b16 %v5727
      %v5737 = vunpack.c.l.b16 %v5728
      %v5738 = vpack.c.b16 %v5735, %v5734
      %v5739 = vpack.c.b16 %v5737, %v5736
      %v5741 = vsel %vm810, %v5738, 0
      %v5744 = vsel %vm810, %v5739, 0
      %v5747 = vsel %vm859, %v5729, 0
      %5749 = vmatprep.subr.bf16.mxu0 0
      %5750 = vmatpush1.bf16.msra.mxu0 0
      %5751 = vmatprep.subr.bf16.mxu0 0
      %5752 = vmatpush1.bf16.msra.mxu0 0
      %5753 = vmatprep.subr.bf16.mxu0 0
      %5754 = vmatpush1.bf16.msra.mxu0 0
      %5755 = vmatprep.subr.bf16.mxu0 0
      %5756 = vmatpush1.bf16.msra.mxu0 0
      %5757 = vmatprep.subr.bf16.mxu0 0
      %5758 = vmatpush1.bf16.msra.mxu0 0
      %5759 = vmatprep.subr.bf16.mxu0 0
      %5760 = vmatpush1.bf16.msra.mxu0 0
      %5761 = vmatprep.subr.bf16.mxu0 0
      %5762 = vmatpush1.bf16.msra.mxu0 0
      %5763 = vmatprep.subr.bf16.mxu0 0
      %5764 = vmatpush1.bf16.msra.mxu0 %v5747
      %5765 = vmatprep.subr.bf16.mxu0 0
      %5766 = vmatpush2.bf16.msra.mxu0 0
      %5767 = vmatprep.subr.bf16.mxu0 0
      %5768 = vmatpush2.bf16.msra.mxu0 0
      %5769 = vmatprep.subr.bf16.mxu0 0
      %5770 = vmatpush2.bf16.msra.mxu0 0
      %5771 = vmatprep.subr.bf16.mxu0 0
      %5772 = vmatpush2.bf16.msra.mxu0 0
      %5773 = vmatprep.subr.bf16.mxu0 0
      %5774 = vmatpush2.bf16.msra.mxu0 0
      %5775 = vmatprep.subr.bf16.mxu0 0
      %5776 = vmatpush2.bf16.msra.mxu0 0
      %5777 = vmatprep.subr.bf16.mxu0 0
      %5778 = vmatpush2.bf16.msra.mxu0 0
      %5779 = vmatprep.subr.bf16.mxu0 0
      %5780 = vmatpush2.bf16.msra.mxu0 0
      %5781 = vmatprep.mubr.bf16.mxu0 0
      %5782 = vmatmul.mubr.bf16.gmra.mxu0 %v5741
      %v5783 = vpop.f32.mrf.mxu0
      %v5784 = vadd.f32 0.0, %v5783
      %v5785 = vpop.f32.mrf.mxu0
      %v5786 = vpop.f32.mrf.mxu0
      %v5787 = vadd.f32 0.0, %v5786
      %v5788 = vpop.f32.mrf.mxu0
      %5789 = vmatprep.mubr.bf16.mxu0 0
      %5790 = vmatmul.mubr.bf16.gmra.mxu0 %v5744
      %v5791 = vpop.f32.mrf.mxu0
      %v5792 = vadd.f32 0.0, %v5791
      %v5793 = vpop.f32.mrf.mxu0
      %v5794 = vpop.f32.mrf.mxu0
      %v5795 = vadd.f32 0.0, %v5794
      %v5796 = vpop.f32.mrf.mxu0
      %5797 = vdwg.mxu0
      %v5798 = vadd.f32 %v5720, %v5784
      %v5799 = vadd.f32 %v5721, %v5787
      %v5800 = vadd.f32 %v5722, %v5792
      %v5801 = vadd.f32 %v5723, %v5795
      %v5802 = vld [vmem:[%s5724] sm:$0xf]
      %v5803 = vld [vmem:[%s5724 + $0x4] sm:$0xf]
      %v5804 = vld [vmem:[%s5724 + $0x8] sm:$0x1]
      %v5805 = vld [vmem:[%s5724 + $0xc] sm:$0xf]
      %v5806 = vld [vmem:[%s5724 + $0x10] sm:$0xf]
      %v5807 = vld [vmem:[%s5724 + $0x14] sm:$0x1]
      %v5809 = vshrl.u32 %v5802, 16
      %v5811 = vrot.slane %v5809, 4
      %v5812 = vshll.u32 %v5802, 16
      %v5814 = vrot.slane %v5812, 5
      %v5815 = vor.u32 %v5811, %v5814
      %v5816 = vrot.slane %v5815, 4
      %v5818 = vshll.u32 %v5803, 16
      %v5820 = vrot.slane %v5818, 5
      %v5821 = vsel %vm375, %v5816, %v5820
      %v5822 = vshrl.u32 %v5803, 16
      %v5824 = vrot.slane %v5822, 4
      %v5825 = vor.u32 %v5824, %v5820
      %v5826 = vrot.slane %v5825, 4
      %v5828 = vshll.u32 %v5804, 16
      %v5830 = vrot.slane %v5828, 5
      %v5831 = vsel %vm375, %v5826, %v5830
      %v5833 = vshrl.u32 %v5805, 16
      %v5835 = vrot.slane %v5833, 4
      %v5836 = vshll.u32 %v5805, 16
      %v5838 = vrot.slane %v5836, 5
      %v5839 = vor.u32 %v5835, %v5838
      %v5840 = vrot.slane %v5839, 4
      %v5842 = vshll.u32 %v5806, 16
      %v5844 = vrot.slane %v5842, 5
      %v5845 = vsel %vm375, %v5840, %v5844
      %v5846 = vshrl.u32 %v5806, 16
      %v5848 = vrot.slane %v5846, 4
      %v5849 = vor.u32 %v5848, %v5844
      %v5850 = vrot.slane %v5849, 4
      %v5852 = vshll.u32 %v5807, 16
      %v5854 = vrot.slane %v5852, 5
      %v5855 = vsel %vm375, %v5850, %v5854
      %v5856 = vld [vmem:[%s4119] sm:$0x3]
      %v5857 = vunpack.c.l.b16 %v5821
      %v5858 = vunpack.c.l.b16 %v5831
      %v5859 = vunpack.c.l.b16 %v5845
      %v5860 = vunpack.c.l.b16 %v5855
      %v5861 = vpack.c.b16 %v5858, %v5857
      %v5862 = vpack.c.b16 %v5860, %v5859
      %v5864 = vsel %vm810, %v5861, 0
      %v5867 = vsel %vm810, %v5862, 0
      %v5870 = vsel %vm859, %v5856, 0
      %5872 = vmatprep.subr.bf16.mxu0 0
      %5873 = vmatpush1.bf16.msra.mxu0 0
      %5874 = vmatprep.subr.bf16.mxu0 0
      %5875 = vmatpush1.bf16.msra.mxu0 0
      %5876 = vmatprep.subr.bf16.mxu0 0
      %5877 = vmatpush1.bf16.msra.mxu0 0
      %5878 = vmatprep.subr.bf16.mxu0 0
      %5879 = vmatpush1.bf16.msra.mxu0 0
      %5880 = vmatprep.subr.bf16.mxu0 0
      %5881 = vmatpush1.bf16.msra.mxu0 0
      %5882 = vmatprep.subr.bf16.mxu0 0
      %5883 = vmatpush1.bf16.msra.mxu0 0
      %5884 = vmatprep.subr.bf16.mxu0 0
      %5885 = vmatpush1.bf16.msra.mxu0 0
      %5886 = vmatprep.subr.bf16.mxu0 0
      %5887 = vmatpush1.bf16.msra.mxu0 %v5870
      %5888 = vmatprep.subr.bf16.mxu0 0
      %5889 = vmatpush2.bf16.msra.mxu0 0
      %5890 = vmatprep.subr.bf16.mxu0 0
      %5891 = vmatpush2.bf16.msra.mxu0 0
      %5892 = vmatprep.subr.bf16.mxu0 0
      %5893 = vmatpush2.bf16.msra.mxu0 0
      %5894 = vmatprep.subr.bf16.mxu0 0
      %5895 = vmatpush2.bf16.msra.mxu0 0
      %5896 = vmatprep.subr.bf16.mxu0 0
      %5897 = vmatpush2.bf16.msra.mxu0 0
      %5898 = vmatprep.subr.bf16.mxu0 0
      %5899 = vmatpush2.bf16.msra.mxu0 0
      %5900 = vmatprep.subr.bf16.mxu0 0
      %5901 = vmatpush2.bf16.msra.mxu0 0
      %5902 = vmatprep.subr.bf16.mxu0 0
      %5903 = vmatpush2.bf16.msra.mxu0 0
      %5904 = vmatprep.mubr.bf16.mxu0 0
      %5905 = vmatmul.mubr.bf16.gmra.mxu0 %v5864
      %v5906 = vpop.f32.mrf.mxu0
      %v5907 = vadd.f32 0.0, %v5906
      %v5908 = vpop.f32.mrf.mxu0
      %v5909 = vpop.f32.mrf.mxu0
      %v5910 = vadd.f32 0.0, %v5909
      %v5911 = vpop.f32.mrf.mxu0
      %5912 = vmatprep.mubr.bf16.mxu0 0
      %5913 = vmatmul.mubr.bf16.gmra.mxu0 %v5867
      %v5914 = vpop.f32.mrf.mxu0
      %v5915 = vadd.f32 0.0, %v5914
      %v5916 = vpop.f32.mrf.mxu0
      %v5917 = vpop.f32.mrf.mxu0
      %v5918 = vadd.f32 0.0, %v5917
      %v5919 = vpop.f32.mrf.mxu0
      %5920 = vdwg.mxu0
      %v5921 = vadd.f32 %v5798, %v5907
      %v5922 = vadd.f32 %v5799, %v5910
      %v5923 = vadd.f32 %v5800, %v5915
      %v5924 = vadd.f32 %v5801, %v5918
      %v5925 = vld [vmem:[%s5724] sm:$0xe]
      %v5926 = vld [vmem:[%s5724 + $0xc] sm:$0xe]
      %v5933 = vrot.slane %v5925, 5
      %v5934 = vrot.slane %v5933, 4
      %v5935 = vrot.slane %v5803, 5
      %v5936 = vsel %vm1366, %v5934, %v5935
      %v5937 = vrot.slane %v5935, 4
      %v5938 = vrot.slane %v5804, 5
      %v5939 = vsel %vm1366, %v5937, %v5938
      %v5940 = vrot.slane %v5926, 5
      %v5941 = vrot.slane %v5940, 4
      %v5942 = vrot.slane %v5806, 5
      %v5943 = vsel %vm1366, %v5941, %v5942
      %v5944 = vrot.slane %v5942, 4
      %v5945 = vrot.slane %v5807, 5
      %v5946 = vsel %vm1366, %v5944, %v5945
      %v5947 = vld [vmem:[%s4589] sm:$0x3]
      %v5948 = vunpack.c.l.b16 %v5936
      %v5949 = vunpack.c.l.b16 %v5939
      %v5950 = vunpack.c.l.b16 %v5943
      %v5951 = vunpack.c.l.b16 %v5946
      %v5952 = vpack.c.b16 %v5949, %v5948
      %v5953 = vpack.c.b16 %v5951, %v5950
      %v5955 = vsel %vm810, %v5952, 0
      %v5958 = vsel %vm810, %v5953, 0
      %v5961 = vsel %vm859, %v5947, 0
      %5963 = vmatprep.subr.bf16.mxu0 0
      %5964 = vmatpush1.bf16.msra.mxu0 0
      %5965 = vmatprep.subr.bf16.mxu0 0
      %5966 = vmatpush1.bf16.msra.mxu0 0
      %5967 = vmatprep.subr.bf16.mxu0 0
      %5968 = vmatpush1.bf16.msra.mxu0 0
      %5969 = vmatprep.subr.bf16.mxu0 0
      %5970 = vmatpush1.bf16.msra.mxu0 0
      %5971 = vmatprep.subr.bf16.mxu0 0
      %5972 = vmatpush1.bf16.msra.mxu0 0
      %5973 = vmatprep.subr.bf16.mxu0 0
      %5974 = vmatpush1.bf16.msra.mxu0 0
      %5975 = vmatprep.subr.bf16.mxu0 0
      %5976 = vmatpush1.bf16.msra.mxu0 0
      %5977 = vmatprep.subr.bf16.mxu0 0
      %5978 = vmatpush1.bf16.msra.mxu0 %v5961
      %5979 = vmatprep.subr.bf16.mxu0 0
      %5980 = vmatpush2.bf16.msra.mxu0 0
      %5981 = vmatprep.subr.bf16.mxu0 0
      %5982 = vmatpush2.bf16.msra.mxu0 0
      %5983 = vmatprep.subr.bf16.mxu0 0
      %5984 = vmatpush2.bf16.msra.mxu0 0
      %5985 = vmatprep.subr.bf16.mxu0 0
      %5986 = vmatpush2.bf16.msra.mxu0 0
      %5987 = vmatprep.subr.bf16.mxu0 0
      %5988 = vmatpush2.bf16.msra.mxu0 0
      %5989 = vmatprep.subr.bf16.mxu0 0
      %5990 = vmatpush2.bf16.msra.mxu0 0
      %5991 = vmatprep.subr.bf16.mxu0 0
      %5992 = vmatpush2.bf16.msra.mxu0 0
      %5993 = vmatprep.subr.bf16.mxu0 0
      %5994 = vmatpush2.bf16.msra.mxu0 0
      %5995 = vmatprep.mubr.bf16.mxu0 0
      %5996 = vmatmul.mubr.bf16.gmra.mxu0 %v5955
      %v5997 = vpop.f32.mrf.mxu0
      %v5998 = vadd.f32 0.0, %v5997
      %v5999 = vpop.f32.mrf.mxu0
      %v6000 = vpop.f32.mrf.mxu0
      %v6001 = vadd.f32 0.0, %v6000
      %v6002 = vpop.f32.mrf.mxu0
      %6003 = vmatprep.mubr.bf16.mxu0 0
      %6004 = vmatmul.mubr.bf16.gmra.mxu0 %v5958
      %v6005 = vpop.f32.mrf.mxu0
      %v6006 = vadd.f32 0.0, %v6005
      %v6007 = vpop.f32.mrf.mxu0
      %v6008 = vpop.f32.mrf.mxu0
      %v6009 = vadd.f32 0.0, %v6008
      %v6010 = vpop.f32.mrf.mxu0
      %6011 = vdwg.mxu0
      %v6012 = vadd.f32 %v5921, %v5998
      %v6013 = vadd.f32 %v5922, %v6001
      %v6014 = vadd.f32 %v5923, %v6006
      %v6015 = vadd.f32 %v5924, %v6009
      %v6016 = vld [vmem:[%s2] sm:$0x1]
      %v6018 = vlaneseq
      %v6019 = vshrl.u32 %v6018, 7
      %v6020 = vsub.s32 0, %v6019
      %v6021 = vrot.slane %v6016, %v6020
      %v6023 = vmul.f32 %v6012, %v6021
      %v6024 = vmul.f32 %v6013, %v6021
      %v6025 = vmul.f32 %v6014, %v6021
      %v6026 = vmul.f32 %v6015, %v6021
      %v6027 = vld [vmem:[%s3] sm:$0x1]
      %v6029 = vlaneseq
      %v6030 = vshrl.u32 %v6029, 7
      %v6031 = vsub.s32 0, %v6030
      %v6032 = vrot.slane %v6027, %v6031
      %v6034 = vadd.f32 %v6023, %v6032
      %v6035 = vadd.f32 %v6024, %v6032
      %v6036 = vadd.f32 %v6025, %v6032
      %v6037 = vadd.f32 %v6026, %v6032
      %v6038 = vmax.f32 %v6034, 0.0
      %v6039 = vmax.f32 %v6035, 0.0
      %v6040 = vmax.f32 %v6036, 0.0
      %v6041 = vmax.f32 %v6037, 0.0
      %v6042 = vpack.c.bf16 %v6039, %v6038
      %v6043 = vpack.c.bf16 %v6041, %v6040
      %v6046 = vunpack.c.l.b16 %v6042
      %v6047 = vunpack.c.h.b16 %v6042
      %v6048 = vunpack.c.l.b16 %v6043
      %v6049 = vunpack.c.h.b16 %v6043
      %v6050 = vpack.c.b16 %v6046, %v6046
      %v6051 = vpack.c.b16 %v6047, %v6047
      %v6052 = vpack.c.b16 %v6048, %v6048
      %v6053 = vpack.c.b16 %v6049, %v6049
      %s6058 = scalar_lea.vmem [#allocation2], 256
      %6059 = vst.msk [vmem:[%s6058 + $0x4] sm:$0xf] %vm5121, %v6050
      %6060 = vst.msk [vmem:[%s6058 + $0x8] sm:$0xf] %vm5121, %v6051
      %6061 = vst.msk [vmem:[%s6058 + $0x14] sm:$0xf] %vm5121, %v6052
      %6062 = vst.msk [vmem:[%s6058 + $0x18] sm:$0xf] %vm5121, %v6053
      %6063 = vst.msk [vmem:[#allocation2] sm:$0xf] %vm5121, 0
      %6064 = vst.msk [vmem:[#allocation2 + $0x10] sm:$0xf] %vm5121, 0
      %6065 = vst.msk [vmem:[#allocation2 + $0x20] sm:$0xf] %vm5121, 0
      %6066 = vst.msk [vmem:[#allocation2 + $0x30] sm:$0xf] %vm5121, 0
      %6067 = vst.msk [vmem:[#allocation2 + $0x40] sm:$0xf] %vm5121, 0
      %6068 = vst.msk [vmem:[#allocation2 + $0x50] sm:$0xf] %vm5121, 0
      %6069 = vst.msk [vmem:[#allocation2 + $0x60] sm:$0xf] %vm5121, 0
      %6070 = vst.msk [vmem:[#allocation2 + $0x70] sm:$0xf] %vm5121, 0
      %6071 = vst.msk [vmem:[#allocation2 + $0x80] sm:$0xf] %vm5121, 0
      %6072 = vst.msk [vmem:[#allocation2 + $0x90] sm:$0xf] %vm5121, 0
      %6073 = vst.msk [vmem:[#allocation2 + $0xa0] sm:$0xf] %vm5121, 0
      %6074 = vst.msk [vmem:[#allocation2 + $0xb0] sm:$0xf] %vm5121, 0
      %6075 = vst.msk [vmem:[#allocation2 + $0xc0] sm:$0xf] %vm5121, 0
      %6076 = vst.msk [vmem:[#allocation2 + $0xd0] sm:$0xf] %vm5121, 0
      %6077 = vst.msk [vmem:[#allocation2 + $0xe0] sm:$0xf] %vm5121, 0
      %6078 = vst.msk [vmem:[#allocation2 + $0xf0] sm:$0xf] %vm5121, 0
      %6079 = vst.msk [vmem:[#allocation2 + $0x100] sm:$0xf] %vm5121, 0
      %6080 = vst.msk [vmem:[#allocation2 + $0x110] sm:$0xf] %vm5121, 0
      %vm6081 = vcmask 57344
      %vm6082 = vsmask.f32 256
      %vm6083 = vmand %vm6081, %vm6082
      %v6084 = vld [vmem:[#allocation2 + $0xc] sm:$0x1]
      %v6085 = vsel %vm6083, 0, %v6084
      %6086 = vst [vmem:[#allocation2 + $0xc] sm:$0x1] %v6085
      %v6087 = vld [vmem:[#allocation2 + $0x1c] sm:$0x1]
      %v6088 = vsel %vm6083, 0, %v6087
      %6089 = vst [vmem:[#allocation2 + $0x1c] sm:$0x1] %v6088
      %v6090 = vld [vmem:[#allocation2 + $0x2c] sm:$0x1]
      %v6091 = vsel %vm6083, 0, %v6090
      %6092 = vst [vmem:[#allocation2 + $0x2c] sm:$0x1] %v6091
      %v6093 = vld [vmem:[#allocation2 + $0x3c] sm:$0x1]
      %v6094 = vsel %vm6083, 0, %v6093
      %6095 = vst [vmem:[#allocation2 + $0x3c] sm:$0x1] %v6094
      %v6096 = vld [vmem:[#allocation2 + $0x4c] sm:$0x1]
      %v6097 = vsel %vm6083, 0, %v6096
      %6098 = vst [vmem:[#allocation2 + $0x4c] sm:$0x1] %v6097
      %v6099 = vld [vmem:[#allocation2 + $0x5c] sm:$0x1]
      %v6100 = vsel %vm6083, 0, %v6099
      %6101 = vst [vmem:[#allocation2 + $0x5c] sm:$0x1] %v6100
      %v6102 = vld [vmem:[#allocation2 + $0x6c] sm:$0x1]
      %v6103 = vsel %vm6083, 0, %v6102
      %6104 = vst [vmem:[#allocation2 + $0x6c] sm:$0x1] %v6103
      %v6105 = vld [vmem:[#allocation2 + $0x7c] sm:$0x1]
      %v6106 = vsel %vm6083, 0, %v6105
      %6107 = vst [vmem:[#allocation2 + $0x7c] sm:$0x1] %v6106
      %v6108 = vld [vmem:[#allocation2 + $0x8c] sm:$0x1]
      %v6109 = vsel %vm6083, 0, %v6108
      %6110 = vst [vmem:[#allocation2 + $0x8c] sm:$0x1] %v6109
      %v6111 = vld [vmem:[#allocation2 + $0x9c] sm:$0x1]
      %v6112 = vsel %vm6083, 0, %v6111
      %6113 = vst [vmem:[#allocation2 + $0x9c] sm:$0x1] %v6112
      %v6114 = vld [vmem:[#allocation2 + $0xac] sm:$0x1]
      %v6115 = vsel %vm6083, 0, %v6114
      %6116 = vst [vmem:[#allocation2 + $0xac] sm:$0x1] %v6115
      %v6117 = vld [vmem:[#allocation2 + $0xbc] sm:$0x1]
      %v6118 = vsel %vm6083, 0, %v6117
      %6119 = vst [vmem:[#allocation2 + $0xbc] sm:$0x1] %v6118
      %v6120 = vld [vmem:[#allocation2 + $0xcc] sm:$0x1]
      %v6121 = vsel %vm6083, 0, %v6120
      %6122 = vst [vmem:[#allocation2 + $0xcc] sm:$0x1] %v6121
      %v6123 = vld [vmem:[#allocation2 + $0xdc] sm:$0x1]
      %v6124 = vsel %vm6083, 0, %v6123
      %6125 = vst [vmem:[#allocation2 + $0xdc] sm:$0x1] %v6124
      %v6126 = vld [vmem:[#allocation2 + $0xec] sm:$0x1]
      %v6127 = vsel %vm6083, 0, %v6126
      %6128 = vst [vmem:[#allocation2 + $0xec] sm:$0x1] %v6127
      %v6129 = vld [vmem:[#allocation2 + $0xfc] sm:$0x1]
      %v6130 = vsel %vm6083, 0, %v6129
      %6131 = vst [vmem:[#allocation2 + $0xfc] sm:$0x1] %v6130
      %v6132 = vld [vmem:[#allocation2 + $0x10c] sm:$0x1]
      %v6133 = vsel %vm6083, 0, %v6132
      %6134 = vst [vmem:[#allocation2 + $0x10c] sm:$0x1] %v6133
      %v6135 = vld [vmem:[#allocation2 + $0x11c] sm:$0x1]
      %v6136 = vsel %vm6083, 0, %v6135
      %6137 = vst [vmem:[#allocation2 + $0x11c] sm:$0x1] %v6136
      %p6138 = scmp.eq.s32.totalorder %s23, 0
      // Predicated region
      $region49: #{a_call__.1} parent=47 // pred_check
        %p6139 = pneg %p6138
      $region50: #{a_call__.1} parent=47 // pred_check_branch
        %6141 = sbr.rel (%p6139) target = $region52
      $region51: #{a_call__.1} parent=47 // pred_region
        %6142 = vst.msk [vmem:[#allocation2] sm:$0xf] %vm5121, 0
        %6143 = vst.msk [vmem:[#allocation2 + $0x4] sm:$0xf] %vm5121, 0
        %6144 = vst.msk [vmem:[#allocation2 + $0x8] sm:$0xf] %vm5121, 0
        %v6145 = vld [vmem:[#allocation2 + $0xc] sm:$0x1]
        %v6146 = vsel %vm6083, 0, %v6145
        %6147 = vst [vmem:[#allocation2 + $0xc] sm:$0x1] %v6146
        %s6148 = scalar_lea.vmem [#allocation2], 272
        %6149 = vst.msk [vmem:[%s6148] sm:$0xf] %vm5121, 0
        %6150 = vst.msk [vmem:[%s6148 + $0x4] sm:$0xf] %vm5121, 0
        %6151 = vst.msk [vmem:[%s6148 + $0x8] sm:$0xf] %vm5121, 0
        %v6152 = vld [vmem:[%s6148 + $0xc] sm:$0x1]
        %v6153 = vsel %vm6083, 0, %v6152
        %6154 = vst [vmem:[%s6148 + $0xc] sm:$0x1] %v6153
      $region52: #{a_call__.1} parent=47 // pred_fallthru
        _
      %v6155 = vld [vmem:[#allocation2] sm:$0x8]
      %v6156 = vld [vmem:[#allocation2 + $0x4] sm:$0xf]
      %v6157 = vld [vmem:[#allocation2 + $0x8] sm:$0xf]
      %v6158 = vld [vmem:[#allocation2 + $0x10] sm:$0x8]
      %v6159 = vld [vmem:[#allocation2 + $0x14] sm:$0xf]
      %v6160 = vld [vmem:[#allocation2 + $0x18] sm:$0xf]
      %v6161 = vld [vmem:[#allocation2 + $0x20] sm:$0x8]
      %v6162 = vld [vmem:[#allocation2 + $0x24] sm:$0xf]
      %v6163 = vld [vmem:[#allocation2 + $0x28] sm:$0xf]
      %v6164 = vld [vmem:[#allocation2 + $0x30] sm:$0x8]
      %v6165 = vld [vmem:[#allocation2 + $0x34] sm:$0xf]
      %v6166 = vld [vmem:[#allocation2 + $0x38] sm:$0xf]
      %v6167 = vld [vmem:[#allocation2 + $0x40] sm:$0x8]
      %v6168 = vld [vmem:[#allocation2 + $0x44] sm:$0xf]
      %v6169 = vld [vmem:[#allocation2 + $0x48] sm:$0xf]
      %v6170 = vld [vmem:[#allocation2 + $0x50] sm:$0x8]
      %v6171 = vld [vmem:[#allocation2 + $0x54] sm:$0xf]
      %v6172 = vld [vmem:[#allocation2 + $0x58] sm:$0xf]
      %v6173 = vld [vmem:[#allocation2 + $0x60] sm:$0x8]
      %v6174 = vld [vmem:[#allocation2 + $0x64] sm:$0xf]
      %v6175 = vld [vmem:[#allocation2 + $0x68] sm:$0xf]
      %v6176 = vld [vmem:[#allocation2 + $0x70] sm:$0x8]
      %v6177 = vld [vmem:[#allocation2 + $0x74] sm:$0xf]
      %v6178 = vld [vmem:[#allocation2 + $0x78] sm:$0xf]
      %v6179 = vld [vmem:[#allocation2 + $0x80] sm:$0x8]
      %v6180 = vld [vmem:[#allocation2 + $0x84] sm:$0xf]
      %v6181 = vld [vmem:[#allocation2 + $0x88] sm:$0xf]
      %v6182 = vld [vmem:[#allocation2 + $0x90] sm:$0x8]
      %v6183 = vld [vmem:[#allocation2 + $0x94] sm:$0xf]
      %v6184 = vld [vmem:[#allocation2 + $0x98] sm:$0xf]
      %v6185 = vld [vmem:[#allocation2 + $0xa0] sm:$0x8]
      %v6186 = vld [vmem:[#allocation2 + $0xa4] sm:$0xf]
      %v6187 = vld [vmem:[#allocation2 + $0xa8] sm:$0xf]
      %v6188 = vld [vmem:[#allocation2 + $0xb0] sm:$0x8]
      %v6189 = vld [vmem:[#allocation2 + $0xb4] sm:$0xf]
      %v6190 = vld [vmem:[#allocation2 + $0xb8] sm:$0xf]
      %v6191 = vld [vmem:[#allocation2 + $0xc0] sm:$0x8]
      %v6192 = vld [vmem:[#allocation2 + $0xc4] sm:$0xf]
      %v6193 = vld [vmem:[#allocation2 + $0xc8] sm:$0xf]
      %v6194 = vld [vmem:[#allocation2 + $0xd0] sm:$0x8]
      %v6195 = vld [vmem:[#allocation2 + $0xd4] sm:$0xf]
      %v6196 = vld [vmem:[#allocation2 + $0xd8] sm:$0xf]
      %v6197 = vld [vmem:[#allocation2 + $0xe0] sm:$0x8]
      %v6198 = vld [vmem:[#allocation2 + $0xe4] sm:$0xf]
      %v6199 = vld [vmem:[#allocation2 + $0xe8] sm:$0xf]
      %v6200 = vld [vmem:[#allocation2 + $0xf0] sm:$0x8]
      %v6201 = vld [vmem:[#allocation2 + $0xf4] sm:$0xf]
      %v6202 = vld [vmem:[#allocation2 + $0xf8] sm:$0xf]
      %vm6203 = vsmask.f32 4368
      %vm6204 = vmor %vm6082, %vm6203
      %v6206 = vshrl.u32 %v6155, 16
      %v6208 = vrot.slane %v6206, 7
      %v6209 = vrot.slane %v6208, 4
      %v6211 = vshrl.u32 %v6156, 16
      %v6213 = vrot.slane %v6211, 7
      %v6214 = vshll.u32 %v6156, 16
      %v6216 = vor.u32 %v6213, %v6214
      %v6217 = vsel %vm6204, %v6209, %v6216
      %v6218 = vrot.slane %v6213, 4
      %v6220 = vshrl.u32 %v6157, 16
      %v6222 = vrot.slane %v6220, 7
      %v6223 = vshll.u32 %v6157, 16
      %v6225 = vor.u32 %v6222, %v6223
      %v6226 = vsel %vm6204, %v6218, %v6225
      %v6228 = vshrl.u32 %v6158, 16
      %v6230 = vrot.slane %v6228, 7
      %v6231 = vrot.slane %v6230, 4
      %v6233 = vshrl.u32 %v6159, 16
      %v6235 = vrot.slane %v6233, 7
      %v6236 = vshll.u32 %v6159, 16
      %v6238 = vor.u32 %v6235, %v6236
      %v6239 = vsel %vm6204, %v6231, %v6238
      %v6240 = vrot.slane %v6235, 4
      %v6242 = vshrl.u32 %v6160, 16
      %v6244 = vrot.slane %v6242, 7
      %v6245 = vshll.u32 %v6160, 16
      %v6247 = vor.u32 %v6244, %v6245
      %v6248 = vsel %vm6204, %v6240, %v6247
      %v6250 = vshrl.u32 %v6161, 16
      %v6252 = vrot.slane %v6250, 7
      %v6253 = vrot.slane %v6252, 4
      %v6255 = vshrl.u32 %v6162, 16
      %v6257 = vrot.slane %v6255, 7
      %v6258 = vshll.u32 %v6162, 16
      %v6260 = vor.u32 %v6257, %v6258
      %v6261 = vsel %vm6204, %v6253, %v6260
      %v6262 = vrot.slane %v6257, 4
      %v6264 = vshrl.u32 %v6163, 16
      %v6266 = vrot.slane %v6264, 7
      %v6267 = vshll.u32 %v6163, 16
      %v6269 = vor.u32 %v6266, %v6267
      %v6270 = vsel %vm6204, %v6262, %v6269
      %v6272 = vshrl.u32 %v6164, 16
      %v6274 = vrot.slane %v6272, 7
      %v6275 = vrot.slane %v6274, 4
      %v6277 = vshrl.u32 %v6165, 16
      %v6279 = vrot.slane %v6277, 7
      %v6280 = vshll.u32 %v6165, 16
      %v6282 = vor.u32 %v6279, %v6280
      %v6283 = vsel %vm6204, %v6275, %v6282
      %v6284 = vrot.slane %v6279, 4
      %v6286 = vshrl.u32 %v6166, 16
      %v6288 = vrot.slane %v6286, 7
      %v6289 = vshll.u32 %v6166, 16
      %v6291 = vor.u32 %v6288, %v6289
      %v6292 = vsel %vm6204, %v6284, %v6291
      %v6294 = vshrl.u32 %v6167, 16
      %v6296 = vrot.slane %v6294, 7
      %v6297 = vrot.slane %v6296, 4
      %v6299 = vshrl.u32 %v6168, 16
      %v6301 = vrot.slane %v6299, 7
      %v6302 = vshll.u32 %v6168, 16
      %v6304 = vor.u32 %v6301, %v6302
      %v6305 = vsel %vm6204, %v6297, %v6304
      %v6306 = vrot.slane %v6301, 4
      %v6308 = vshrl.u32 %v6169, 16
      %v6310 = vrot.slane %v6308, 7
      %v6311 = vshll.u32 %v6169, 16
      %v6313 = vor.u32 %v6310, %v6311
      %v6314 = vsel %vm6204, %v6306, %v6313
      %v6316 = vshrl.u32 %v6170, 16
      %v6318 = vrot.slane %v6316, 7
      %v6319 = vrot.slane %v6318, 4
      %v6321 = vshrl.u32 %v6171, 16
      %v6323 = vrot.slane %v6321, 7
      %v6324 = vshll.u32 %v6171, 16
      %v6326 = vor.u32 %v6323, %v6324
      %v6327 = vsel %vm6204, %v6319, %v6326
      %v6328 = vrot.slane %v6323, 4
      %v6330 = vshrl.u32 %v6172, 16
      %v6332 = vrot.slane %v6330, 7
      %v6333 = vshll.u32 %v6172, 16
      %v6335 = vor.u32 %v6332, %v6333
      %v6336 = vsel %vm6204, %v6328, %v6335
      %v6338 = vshrl.u32 %v6173, 16
      %v6340 = vrot.slane %v6338, 7
      %v6341 = vrot.slane %v6340, 4
      %v6343 = vshrl.u32 %v6174, 16
      %v6345 = vrot.slane %v6343, 7
      %v6346 = vshll.u32 %v6174, 16
      %v6348 = vor.u32 %v6345, %v6346
      %v6349 = vsel %vm6204, %v6341, %v6348
      %v6350 = vrot.slane %v6345, 4
      %v6352 = vshrl.u32 %v6175, 16
      %v6354 = vrot.slane %v6352, 7
      %v6355 = vshll.u32 %v6175, 16
      %v6357 = vor.u32 %v6354, %v6355
      %v6358 = vsel %vm6204, %v6350, %v6357
      %v6360 = vshrl.u32 %v6176, 16
      %v6362 = vrot.slane %v6360, 7
      %v6363 = vrot.slane %v6362, 4
      %v6365 = vshrl.u32 %v6177, 16
      %v6367 = vrot.slane %v6365, 7
      %v6368 = vshll.u32 %v6177, 16
      %v6370 = vor.u32 %v6367, %v6368
      %v6371 = vsel %vm6204, %v6363, %v6370
      %v6372 = vrot.slane %v6367, 4
      %v6374 = vshrl.u32 %v6178, 16
      %v6376 = vrot.slane %v6374, 7
      %v6377 = vshll.u32 %v6178, 16
      %v6379 = vor.u32 %v6376, %v6377
      %v6380 = vsel %vm6204, %v6372, %v6379
      %v6382 = vshrl.u32 %v6179, 16
      %v6384 = vrot.slane %v6382, 7
      %v6385 = vrot.slane %v6384, 4
      %v6387 = vshrl.u32 %v6180, 16
      %v6389 = vrot.slane %v6387, 7
      %v6390 = vshll.u32 %v6180, 16
      %v6392 = vor.u32 %v6389, %v6390
      %v6393 = vsel %vm6204, %v6385, %v6392
      %v6394 = vrot.slane %v6389, 4
      %v6396 = vshrl.u32 %v6181, 16
      %v6398 = vrot.slane %v6396, 7
      %v6399 = vshll.u32 %v6181, 16
      %v6401 = vor.u32 %v6398, %v6399
      %v6402 = vsel %vm6204, %v6394, %v6401
      %v6404 = vshrl.u32 %v6182, 16
      %v6406 = vrot.slane %v6404, 7
      %v6407 = vrot.slane %v6406, 4
      %v6409 = vshrl.u32 %v6183, 16
      %v6411 = vrot.slane %v6409, 7
      %v6412 = vshll.u32 %v6183, 16
      %v6414 = vor.u32 %v6411, %v6412
      %v6415 = vsel %vm6204, %v6407, %v6414
      %v6416 = vrot.slane %v6411, 4
      %v6418 = vshrl.u32 %v6184, 16
      %v6420 = vrot.slane %v6418, 7
      %v6421 = vshll.u32 %v6184, 16
      %v6423 = vor.u32 %v6420, %v6421
      %v6424 = vsel %vm6204, %v6416, %v6423
      %v6426 = vshrl.u32 %v6185, 16
      %v6428 = vrot.slane %v6426, 7
      %v6429 = vrot.slane %v6428, 4
      %v6431 = vshrl.u32 %v6186, 16
      %v6433 = vrot.slane %v6431, 7
      %v6434 = vshll.u32 %v6186, 16
      %v6436 = vor.u32 %v6433, %v6434
      %v6437 = vsel %vm6204, %v6429, %v6436
      %v6438 = vrot.slane %v6433, 4
      %v6440 = vshrl.u32 %v6187, 16
      %v6442 = vrot.slane %v6440, 7
      %v6443 = vshll.u32 %v6187, 16
      %v6445 = vor.u32 %v6442, %v6443
      %v6446 = vsel %vm6204, %v6438, %v6445
      %v6448 = vshrl.u32 %v6188, 16
      %v6450 = vrot.slane %v6448, 7
      %v6451 = vrot.slane %v6450, 4
      %v6453 = vshrl.u32 %v6189, 16
      %v6455 = vrot.slane %v6453, 7
      %v6456 = vshll.u32 %v6189, 16
      %v6458 = vor.u32 %v6455, %v6456
      %v6459 = vsel %vm6204, %v6451, %v6458
      %v6460 = vrot.slane %v6455, 4
      %v6462 = vshrl.u32 %v6190, 16
      %v6464 = vrot.slane %v6462, 7
      %v6465 = vshll.u32 %v6190, 16
      %v6467 = vor.u32 %v6464, %v6465
      %v6468 = vsel %vm6204, %v6460, %v6467
      %v6470 = vshrl.u32 %v6191, 16
      %v6472 = vrot.slane %v6470, 7
      %v6473 = vrot.slane %v6472, 4
      %v6475 = vshrl.u32 %v6192, 16
      %v6477 = vrot.slane %v6475, 7
      %v6478 = vshll.u32 %v6192, 16
      %v6480 = vor.u32 %v6477, %v6478
      %v6481 = vsel %vm6204, %v6473, %v6480
      %v6482 = vrot.slane %v6477, 4
      %v6484 = vshrl.u32 %v6193, 16
      %v6486 = vrot.slane %v6484, 7
      %v6487 = vshll.u32 %v6193, 16
      %v6489 = vor.u32 %v6486, %v6487
      %v6490 = vsel %vm6204, %v6482, %v6489
      %v6492 = vshrl.u32 %v6194, 16
      %v6494 = vrot.slane %v6492, 7
      %v6495 = vrot.slane %v6494, 4
      %v6497 = vshrl.u32 %v6195, 16
      %v6499 = vrot.slane %v6497, 7
      %v6500 = vshll.u32 %v6195, 16
      %v6502 = vor.u32 %v6499, %v6500
      %v6503 = vsel %vm6204, %v6495, %v6502
      %v6504 = vrot.slane %v6499, 4
      %v6506 = vshrl.u32 %v6196, 16
      %v6508 = vrot.slane %v6506, 7
      %v6509 = vshll.u32 %v6196, 16
      %v6511 = vor.u32 %v6508, %v6509
      %v6512 = vsel %vm6204, %v6504, %v6511
      %v6514 = vshrl.u32 %v6197, 16
      %v6516 = vrot.slane %v6514, 7
      %v6517 = vrot.slane %v6516, 4
      %v6519 = vshrl.u32 %v6198, 16
      %v6521 = vrot.slane %v6519, 7
      %v6522 = vshll.u32 %v6198, 16
      %v6524 = vor.u32 %v6521, %v6522
      %v6525 = vsel %vm6204, %v6517, %v6524
      %v6526 = vrot.slane %v6521, 4
      %v6528 = vshrl.u32 %v6199, 16
      %v6530 = vrot.slane %v6528, 7
      %v6531 = vshll.u32 %v6199, 16
      %v6533 = vor.u32 %v6530, %v6531
      %v6534 = vsel %vm6204, %v6526, %v6533
      %v6536 = vshrl.u32 %v6200, 16
      %v6538 = vrot.slane %v6536, 7
      %v6539 = vrot.slane %v6538, 4
      %v6541 = vshrl.u32 %v6201, 16
      %v6543 = vrot.slane %v6541, 7
      %v6544 = vshll.u32 %v6201, 16
      %v6546 = vor.u32 %v6543, %v6544
      %v6547 = vsel %vm6204, %v6539, %v6546
      %v6548 = vrot.slane %v6543, 4
      %v6550 = vshrl.u32 %v6202, 16
      %v6552 = vrot.slane %v6550, 7
      %v6553 = vshll.u32 %v6202, 16
      %v6555 = vor.u32 %v6552, %v6553
      %v6556 = vsel %vm6204, %v6548, %v6555
      %v6557 = vld [vmem:[%s4] sm:$0xf]
      %s6558 = scalar_lea.vmem %s4, 4
      %v6559 = vld [vmem:[%s6558] sm:$0xf]
      %v6592 = vunpack.c.l.b16 %v6156
      %v6593 = vunpack.c.l.b16 %v6157
      %v6594 = vunpack.c.l.b16 %v6159
      %v6595 = vunpack.c.l.b16 %v6160
      %v6596 = vunpack.c.l.b16 %v6162
      %v6597 = vunpack.c.l.b16 %v6163
      %v6598 = vunpack.c.l.b16 %v6165
      %v6599 = vunpack.c.l.b16 %v6166
      %v6600 = vunpack.c.l.b16 %v6168
      %v6601 = vunpack.c.l.b16 %v6169
      %v6602 = vunpack.c.l.b16 %v6171
      %v6603 = vunpack.c.l.b16 %v6172
      %v6604 = vunpack.c.l.b16 %v6174
      %v6605 = vunpack.c.l.b16 %v6175
      %v6606 = vunpack.c.l.b16 %v6177
      %v6607 = vunpack.c.l.b16 %v6178
      %v6608 = vunpack.c.l.b16 %v6180
      %v6609 = vunpack.c.l.b16 %v6181
      %v6610 = vunpack.c.l.b16 %v6183
      %v6611 = vunpack.c.l.b16 %v6184
      %v6612 = vunpack.c.l.b16 %v6186
      %v6613 = vunpack.c.l.b16 %v6187
      %v6614 = vunpack.c.l.b16 %v6189
      %v6615 = vunpack.c.l.b16 %v6190
      %v6616 = vunpack.c.l.b16 %v6192
      %v6617 = vunpack.c.l.b16 %v6193
      %v6618 = vunpack.c.l.b16 %v6195
      %v6619 = vunpack.c.l.b16 %v6196
      %v6620 = vunpack.c.l.b16 %v6198
      %v6621 = vunpack.c.l.b16 %v6199
      %v6622 = vunpack.c.l.b16 %v6201
      %v6623 = vunpack.c.l.b16 %v6202
      %v6624 = vpack.c.b16 %v6593, %v6592
      %v6625 = vpack.c.b16 %v6595, %v6594
      %v6626 = vpack.c.b16 %v6597, %v6596
      %v6627 = vpack.c.b16 %v6599, %v6598
      %v6628 = vpack.c.b16 %v6601, %v6600
      %v6629 = vpack.c.b16 %v6603, %v6602
      %v6630 = vpack.c.b16 %v6605, %v6604
      %v6631 = vpack.c.b16 %v6607, %v6606
      %v6632 = vpack.c.b16 %v6609, %v6608
      %v6633 = vpack.c.b16 %v6611, %v6610
      %v6634 = vpack.c.b16 %v6613, %v6612
      %v6635 = vpack.c.b16 %v6615, %v6614
      %v6636 = vpack.c.b16 %v6617, %v6616
      %v6637 = vpack.c.b16 %v6619, %v6618
      %v6638 = vpack.c.b16 %v6621, %v6620
      %v6639 = vpack.c.b16 %v6623, %v6622
      %vm6640 = vcmask 64512
      %v6642 = vsel %vm6640, %v6624, 0
      %v6645 = vsel %vm6640, %v6625, 0
      %v6648 = vsel %vm6640, %v6626, 0
      %v6651 = vsel %vm6640, %v6627, 0
      %v6654 = vsel %vm6640, %v6628, 0
      %v6657 = vsel %vm6640, %v6629, 0
      %v6660 = vsel %vm6640, %v6630, 0
      %v6663 = vsel %vm6640, %v6631, 0
      %v6666 = vsel %vm6640, %v6632, 0
      %v6669 = vsel %vm6640, %v6633, 0
      %v6672 = vsel %vm6640, %v6634, 0
      %v6675 = vsel %vm6640, %v6635, 0
      %v6678 = vsel %vm6640, %v6636, 0
      %v6681 = vsel %vm6640, %v6637, 0
      %v6684 = vsel %vm6640, %v6638, 0
      %v6687 = vsel %vm6640, %v6639, 0
      %vm6689 = vcmask 1043456
      %v6691 = vsel %vm6689, %v6559, 0
      %6693 = vmatprep.subr.bf16.mxu0 0
      %6694 = vmatpush1.bf16.msra.mxu0 0
      %6695 = vmatprep.subr.bf16.mxu0 0
      %6696 = vmatpush1.bf16.msra.mxu0 0
      %6697 = vmatprep.subr.bf16.mxu0 0
      %6698 = vmatpush1.bf16.msra.mxu0 0
      %6699 = vmatprep.subr.bf16.mxu0 0
      %6700 = vmatpush1.bf16.msra.mxu0 0
      %6701 = vmatprep.subr.bf16.mxu0 0
      %6702 = vmatpush1.bf16.msra.mxu0 0
      %6703 = vmatprep.subr.bf16.mxu0 0
      %6704 = vmatpush1.bf16.msra.mxu0 0
      %6705 = vmatprep.subr.bf16.mxu0 0
      %6706 = vmatpush1.bf16.msra.mxu0 0
      %6707 = vmatprep.subr.bf16.mxu0 0
      %6708 = vmatpush1.bf16.msra.mxu0 %v6691
      %6709 = vmatprep.subr.bf16.mxu0 0
      %6710 = vmatpush2.bf16.msra.mxu0 0
      %6711 = vmatprep.subr.bf16.mxu0 0
      %6712 = vmatpush2.bf16.msra.mxu0 0
      %6713 = vmatprep.subr.bf16.mxu0 0
      %6714 = vmatpush2.bf16.msra.mxu0 0
      %6715 = vmatprep.subr.bf16.mxu0 0
      %6716 = vmatpush2.bf16.msra.mxu0 0
      %6717 = vmatprep.subr.bf16.mxu0 0
      %6718 = vmatpush2.bf16.msra.mxu0 0
      %6719 = vmatprep.subr.bf16.mxu0 0
      %6720 = vmatpush2.bf16.msra.mxu0 0
      %6721 = vmatprep.subr.bf16.mxu0 0
      %6722 = vmatpush2.bf16.msra.mxu0 0
      %6723 = vmatprep.subr.bf16.mxu0 0
      %6724 = vmatpush2.bf16.msra.mxu0 0
      %6725 = vmatprep.mubr.bf16.mxu0 0
      %6726 = vmatmul.mubr.bf16.gmra.mxu0 %v6642
      %v6727 = vpop.f32.mrf.mxu0
      %v6728 = vadd.f32 0.0, %v6727
      %v6729 = vpop.f32.mrf.mxu0
      %v6730 = vpop.f32.mrf.mxu0
      %v6731 = vadd.f32 0.0, %v6730
      %v6732 = vpop.f32.mrf.mxu0
      %6733 = vmatprep.mubr.bf16.mxu0 0
      %6734 = vmatmul.mubr.bf16.gmra.mxu0 %v6645
      %v6735 = vpop.f32.mrf.mxu0
      %v6736 = vadd.f32 0.0, %v6735
      %v6737 = vpop.f32.mrf.mxu0
      %v6738 = vpop.f32.mrf.mxu0
      %v6739 = vadd.f32 0.0, %v6738
      %v6740 = vpop.f32.mrf.mxu0
      %6741 = vmatprep.mubr.bf16.mxu0 0
      %6742 = vmatmul.mubr.bf16.gmra.mxu0 %v6648
      %v6743 = vpop.f32.mrf.mxu0
      %v6744 = vadd.f32 0.0, %v6743
      %v6745 = vpop.f32.mrf.mxu0
      %v6746 = vpop.f32.mrf.mxu0
      %v6747 = vadd.f32 0.0, %v6746
      %v6748 = vpop.f32.mrf.mxu0
      %6749 = vmatprep.mubr.bf16.mxu0 0
      %6750 = vmatmul.mubr.bf16.gmra.mxu0 %v6651
      %v6751 = vpop.f32.mrf.mxu0
      %v6752 = vadd.f32 0.0, %v6751
      %v6753 = vpop.f32.mrf.mxu0
      %v6754 = vpop.f32.mrf.mxu0
      %v6755 = vadd.f32 0.0, %v6754
      %v6756 = vpop.f32.mrf.mxu0
      %6757 = vmatprep.mubr.bf16.mxu0 0
      %6758 = vmatmul.mubr.bf16.gmra.mxu0 %v6654
      %v6759 = vpop.f32.mrf.mxu0
      %v6760 = vadd.f32 0.0, %v6759
      %v6761 = vpop.f32.mrf.mxu0
      %v6762 = vpop.f32.mrf.mxu0
      %v6763 = vadd.f32 0.0, %v6762
      %v6764 = vpop.f32.mrf.mxu0
      %6765 = vmatprep.mubr.bf16.mxu0 0
      %6766 = vmatmul.mubr.bf16.gmra.mxu0 %v6657
      %v6767 = vpop.f32.mrf.mxu0
      %v6768 = vadd.f32 0.0, %v6767
      %v6769 = vpop.f32.mrf.mxu0
      %v6770 = vpop.f32.mrf.mxu0
      %v6771 = vadd.f32 0.0, %v6770
      %v6772 = vpop.f32.mrf.mxu0
      %6773 = vmatprep.mubr.bf16.mxu0 0
      %6774 = vmatmul.mubr.bf16.gmra.mxu0 %v6660
      %v6775 = vpop.f32.mrf.mxu0
      %v6776 = vadd.f32 0.0, %v6775
      %v6777 = vpop.f32.mrf.mxu0
      %v6778 = vpop.f32.mrf.mxu0
      %v6779 = vadd.f32 0.0, %v6778
      %v6780 = vpop.f32.mrf.mxu0
      %6781 = vmatprep.mubr.bf16.mxu0 0
      %6782 = vmatmul.mubr.bf16.gmra.mxu0 %v6663
      %v6783 = vpop.f32.mrf.mxu0
      %v6784 = vadd.f32 0.0, %v6783
      %v6785 = vpop.f32.mrf.mxu0
      %v6786 = vpop.f32.mrf.mxu0
      %v6787 = vadd.f32 0.0, %v6786
      %v6788 = vpop.f32.mrf.mxu0
      %6789 = vmatprep.mubr.bf16.mxu0 0
      %6790 = vmatmul.mubr.bf16.gmra.mxu0 %v6666
      %v6791 = vpop.f32.mrf.mxu0
      %v6792 = vadd.f32 0.0, %v6791
      %v6793 = vpop.f32.mrf.mxu0
      %v6794 = vpop.f32.mrf.mxu0
      %v6795 = vadd.f32 0.0, %v6794
      %v6796 = vpop.f32.mrf.mxu0
      %6797 = vmatprep.mubr.bf16.mxu0 0
      %6798 = vmatmul.mubr.bf16.gmra.mxu0 %v6669
      %v6799 = vpop.f32.mrf.mxu0
      %v6800 = vadd.f32 0.0, %v6799
      %v6801 = vpop.f32.mrf.mxu0
      %v6802 = vpop.f32.mrf.mxu0
      %v6803 = vadd.f32 0.0, %v6802
      %v6804 = vpop.f32.mrf.mxu0
      %6805 = vmatprep.mubr.bf16.mxu0 0
      %6806 = vmatmul.mubr.bf16.gmra.mxu0 %v6672
      %v6807 = vpop.f32.mrf.mxu0
      %v6808 = vadd.f32 0.0, %v6807
      %v6809 = vpop.f32.mrf.mxu0
      %v6810 = vpop.f32.mrf.mxu0
      %v6811 = vadd.f32 0.0, %v6810
      %v6812 = vpop.f32.mrf.mxu0
      %6813 = vmatprep.mubr.bf16.mxu0 0
      %6814 = vmatmul.mubr.bf16.gmra.mxu0 %v6675
      %v6815 = vpop.f32.mrf.mxu0
      %v6816 = vadd.f32 0.0, %v6815
      %v6817 = vpop.f32.mrf.mxu0
      %v6818 = vpop.f32.mrf.mxu0
      %v6819 = vadd.f32 0.0, %v6818
      %v6820 = vpop.f32.mrf.mxu0
      %6821 = vmatprep.mubr.bf16.mxu0 0
      %6822 = vmatmul.mubr.bf16.gmra.mxu0 %v6678
      %v6823 = vpop.f32.mrf.mxu0
      %v6824 = vadd.f32 0.0, %v6823
      %v6825 = vpop.f32.mrf.mxu0
      %v6826 = vpop.f32.mrf.mxu0
      %v6827 = vadd.f32 0.0, %v6826
      %v6828 = vpop.f32.mrf.mxu0
      %6829 = vmatprep.mubr.bf16.mxu0 0
      %6830 = vmatmul.mubr.bf16.gmra.mxu0 %v6681
      %v6831 = vpop.f32.mrf.mxu0
      %v6832 = vadd.f32 0.0, %v6831
      %v6833 = vpop.f32.mrf.mxu0
      %v6834 = vpop.f32.mrf.mxu0
      %v6835 = vadd.f32 0.0, %v6834
      %v6836 = vpop.f32.mrf.mxu0
      %6837 = vmatprep.mubr.bf16.mxu0 0
      %6838 = vmatmul.mubr.bf16.gmra.mxu0 %v6684
      %v6839 = vpop.f32.mrf.mxu0
      %v6840 = vadd.f32 0.0, %v6839
      %v6841 = vpop.f32.mrf.mxu0
      %v6842 = vpop.f32.mrf.mxu0
      %v6843 = vadd.f32 0.0, %v6842
      %v6844 = vpop.f32.mrf.mxu0
      %6845 = vmatprep.mubr.bf16.mxu0 0
      %6846 = vmatmul.mubr.bf16.gmra.mxu0 %v6687
      %v6847 = vpop.f32.mrf.mxu0
      %v6848 = vadd.f32 0.0, %v6847
      %v6849 = vpop.f32.mrf.mxu0
      %v6850 = vpop.f32.mrf.mxu0
      %v6851 = vadd.f32 0.0, %v6850
      %v6852 = vpop.f32.mrf.mxu0
      %6853 = vdwg.mxu0
      %v6854 = vunpack.c.l.b16 %v6217
      %v6855 = vunpack.c.l.b16 %v6226
      %v6856 = vunpack.c.l.b16 %v6239
      %v6857 = vunpack.c.l.b16 %v6248
      %v6858 = vunpack.c.l.b16 %v6261
      %v6859 = vunpack.c.l.b16 %v6270
      %v6860 = vunpack.c.l.b16 %v6283
      %v6861 = vunpack.c.l.b16 %v6292
      %v6862 = vunpack.c.l.b16 %v6305
      %v6863 = vunpack.c.l.b16 %v6314
      %v6864 = vunpack.c.l.b16 %v6327
      %v6865 = vunpack.c.l.b16 %v6336
      %v6866 = vunpack.c.l.b16 %v6349
      %v6867 = vunpack.c.l.b16 %v6358
      %v6868 = vunpack.c.l.b16 %v6371
      %v6869 = vunpack.c.l.b16 %v6380
      %v6870 = vunpack.c.l.b16 %v6393
      %v6871 = vunpack.c.l.b16 %v6402
      %v6872 = vunpack.c.l.b16 %v6415
      %v6873 = vunpack.c.l.b16 %v6424
      %v6874 = vunpack.c.l.b16 %v6437
      %v6875 = vunpack.c.l.b16 %v6446
      %v6876 = vunpack.c.l.b16 %v6459
      %v6877 = vunpack.c.l.b16 %v6468
      %v6878 = vunpack.c.l.b16 %v6481
      %v6879 = vunpack.c.l.b16 %v6490
      %v6880 = vunpack.c.l.b16 %v6503
      %v6881 = vunpack.c.l.b16 %v6512
      %v6882 = vunpack.c.l.b16 %v6525
      %v6883 = vunpack.c.l.b16 %v6534
      %v6884 = vunpack.c.l.b16 %v6547
      %v6885 = vunpack.c.l.b16 %v6556
      %v6886 = vpack.c.b16 %v6855, %v6854
      %v6887 = vpack.c.b16 %v6857, %v6856
      %v6888 = vpack.c.b16 %v6859, %v6858
      %v6889 = vpack.c.b16 %v6861, %v6860
      %v6890 = vpack.c.b16 %v6863, %v6862
      %v6891 = vpack.c.b16 %v6865, %v6864
      %v6892 = vpack.c.b16 %v6867, %v6866
      %v6893 = vpack.c.b16 %v6869, %v6868
      %v6894 = vpack.c.b16 %v6871, %v6870
      %v6895 = vpack.c.b16 %v6873, %v6872
      %v6896 = vpack.c.b16 %v6875, %v6874
      %v6897 = vpack.c.b16 %v6877, %v6876
      %v6898 = vpack.c.b16 %v6879, %v6878
      %v6899 = vpack.c.b16 %v6881, %v6880
      %v6900 = vpack.c.b16 %v6883, %v6882
      %v6901 = vpack.c.b16 %v6885, %v6884
      %v6903 = vsel %vm6640, %v6886, 0
      %v6906 = vsel %vm6640, %v6887, 0
      %v6909 = vsel %vm6640, %v6888, 0
      %v6912 = vsel %vm6640, %v6889, 0
      %v6915 = vsel %vm6640, %v6890, 0
      %v6918 = vsel %vm6640, %v6891, 0
      %v6921 = vsel %vm6640, %v6892, 0
      %v6924 = vsel %vm6640, %v6893, 0
      %v6927 = vsel %vm6640, %v6894, 0
      %v6930 = vsel %vm6640, %v6895, 0
      %v6933 = vsel %vm6640, %v6896, 0
      %v6936 = vsel %vm6640, %v6897, 0
      %v6939 = vsel %vm6640, %v6898, 0
      %v6942 = vsel %vm6640, %v6899, 0
      %v6945 = vsel %vm6640, %v6900, 0
      %v6948 = vsel %vm6640, %v6901, 0
      %v6951 = vsel %vm6689, %v6557, 0
      %6953 = vmatprep.subr.bf16.mxu0 0
      %6954 = vmatpush1.bf16.msra.mxu0 0
      %6955 = vmatprep.subr.bf16.mxu0 0
      %6956 = vmatpush1.bf16.msra.mxu0 0
      %6957 = vmatprep.subr.bf16.mxu0 0
      %6958 = vmatpush1.bf16.msra.mxu0 0
      %6959 = vmatprep.subr.bf16.mxu0 0
      %6960 = vmatpush1.bf16.msra.mxu0 0
      %6961 = vmatprep.subr.bf16.mxu0 0
      %6962 = vmatpush1.bf16.msra.mxu0 0
      %6963 = vmatprep.subr.bf16.mxu0 0
      %6964 = vmatpush1.bf16.msra.mxu0 0
      %6965 = vmatprep.subr.bf16.mxu0 0
      %6966 = vmatpush1.bf16.msra.mxu0 0
      %6967 = vmatprep.subr.bf16.mxu0 0
      %6968 = vmatpush1.bf16.msra.mxu0 %v6951
      %6969 = vmatprep.subr.bf16.mxu0 0
      %6970 = vmatpush2.bf16.msra.mxu0 0
      %6971 = vmatprep.subr.bf16.mxu0 0
      %6972 = vmatpush2.bf16.msra.mxu0 0
      %6973 = vmatprep.subr.bf16.mxu0 0
      %6974 = vmatpush2.bf16.msra.mxu0 0
      %6975 = vmatprep.subr.bf16.mxu0 0
      %6976 = vmatpush2.bf16.msra.mxu0 0
      %6977 = vmatprep.subr.bf16.mxu0 0
      %6978 = vmatpush2.bf16.msra.mxu0 0
      %6979 = vmatprep.subr.bf16.mxu0 0
      %6980 = vmatpush2.bf16.msra.mxu0 0
      %6981 = vmatprep.subr.bf16.mxu0 0
      %6982 = vmatpush2.bf16.msra.mxu0 0
      %6983 = vmatprep.subr.bf16.mxu0 0
      %6984 = vmatpush2.bf16.msra.mxu0 0
      %6985 = vmatprep.mubr.bf16.mxu0 0
      %6986 = vmatmul.mubr.bf16.gmra.mxu0 %v6903
      %v6987 = vpop.f32.mrf.mxu0
      %v6988 = vadd.f32 %v6728, %v6987
      %v6989 = vpop.f32.mrf.mxu0
      %v6990 = vpop.f32.mrf.mxu0
      %v6991 = vadd.f32 %v6731, %v6990
      %v6992 = vpop.f32.mrf.mxu0
      %6993 = vmatprep.mubr.bf16.mxu0 0
      %6994 = vmatmul.mubr.bf16.gmra.mxu0 %v6906
      %v6995 = vpop.f32.mrf.mxu0
      %v6996 = vadd.f32 %v6736, %v6995
      %v6997 = vpop.f32.mrf.mxu0
      %v6998 = vpop.f32.mrf.mxu0
      %v6999 = vadd.f32 %v6739, %v6998
      %v7000 = vpop.f32.mrf.mxu0
      %7001 = vmatprep.mubr.bf16.mxu0 0
      %7002 = vmatmul.mubr.bf16.gmra.mxu0 %v6909
      %v7003 = vpop.f32.mrf.mxu0
      %v7004 = vadd.f32 %v6744, %v7003
      %v7005 = vpop.f32.mrf.mxu0
      %v7006 = vpop.f32.mrf.mxu0
      %v7007 = vadd.f32 %v6747, %v7006
      %v7008 = vpop.f32.mrf.mxu0
      %7009 = vmatprep.mubr.bf16.mxu0 0
      %7010 = vmatmul.mubr.bf16.gmra.mxu0 %v6912
      %v7011 = vpop.f32.mrf.mxu0
      %v7012 = vadd.f32 %v6752, %v7011
      %v7013 = vpop.f32.mrf.mxu0
      %v7014 = vpop.f32.mrf.mxu0
      %v7015 = vadd.f32 %v6755, %v7014
      %v7016 = vpop.f32.mrf.mxu0
      %7017 = vmatprep.mubr.bf16.mxu0 0
      %7018 = vmatmul.mubr.bf16.gmra.mxu0 %v6915
      %v7019 = vpop.f32.mrf.mxu0
      %v7020 = vadd.f32 %v6760, %v7019
      %v7021 = vpop.f32.mrf.mxu0
      %v7022 = vpop.f32.mrf.mxu0
      %v7023 = vadd.f32 %v6763, %v7022
      %v7024 = vpop.f32.mrf.mxu0
      %7025 = vmatprep.mubr.bf16.mxu0 0
      %7026 = vmatmul.mubr.bf16.gmra.mxu0 %v6918
      %v7027 = vpop.f32.mrf.mxu0
      %v7028 = vadd.f32 %v6768, %v7027
      %v7029 = vpop.f32.mrf.mxu0
      %v7030 = vpop.f32.mrf.mxu0
      %v7031 = vadd.f32 %v6771, %v7030
      %v7032 = vpop.f32.mrf.mxu0
      %7033 = vmatprep.mubr.bf16.mxu0 0
      %7034 = vmatmul.mubr.bf16.gmra.mxu0 %v6921
      %v7035 = vpop.f32.mrf.mxu0
      %v7036 = vadd.f32 %v6776, %v7035
      %v7037 = vpop.f32.mrf.mxu0
      %v7038 = vpop.f32.mrf.mxu0
      %v7039 = vadd.f32 %v6779, %v7038
      %v7040 = vpop.f32.mrf.mxu0
      %7041 = vmatprep.mubr.bf16.mxu0 0
      %7042 = vmatmul.mubr.bf16.gmra.mxu0 %v6924
      %v7043 = vpop.f32.mrf.mxu0
      %v7044 = vadd.f32 %v6784, %v7043
      %v7045 = vpop.f32.mrf.mxu0
      %v7046 = vpop.f32.mrf.mxu0
      %v7047 = vadd.f32 %v6787, %v7046
      %v7048 = vpop.f32.mrf.mxu0
      %7049 = vmatprep.mubr.bf16.mxu0 0
      %7050 = vmatmul.mubr.bf16.gmra.mxu0 %v6927
      %v7051 = vpop.f32.mrf.mxu0
      %v7052 = vadd.f32 %v6792, %v7051
      %v7053 = vpop.f32.mrf.mxu0
      %v7054 = vpop.f32.mrf.mxu0
      %v7055 = vadd.f32 %v6795, %v7054
      %v7056 = vpop.f32.mrf.mxu0
      %7057 = vmatprep.mubr.bf16.mxu0 0
      %7058 = vmatmul.mubr.bf16.gmra.mxu0 %v6930
      %v7059 = vpop.f32.mrf.mxu0
      %v7060 = vadd.f32 %v6800, %v7059
      %v7061 = vpop.f32.mrf.mxu0
      %v7062 = vpop.f32.mrf.mxu0
      %v7063 = vadd.f32 %v6803, %v7062
      %v7064 = vpop.f32.mrf.mxu0
      %7065 = vmatprep.mubr.bf16.mxu0 0
      %7066 = vmatmul.mubr.bf16.gmra.mxu0 %v6933
      %v7067 = vpop.f32.mrf.mxu0
      %v7068 = vadd.f32 %v6808, %v7067
      %v7069 = vpop.f32.mrf.mxu0
      %v7070 = vpop.f32.mrf.mxu0
      %v7071 = vadd.f32 %v6811, %v7070
      %v7072 = vpop.f32.mrf.mxu0
      %7073 = vmatprep.mubr.bf16.mxu0 0
      %7074 = vmatmul.mubr.bf16.gmra.mxu0 %v6936
      %v7075 = vpop.f32.mrf.mxu0
      %v7076 = vadd.f32 %v6816, %v7075
      %v7077 = vpop.f32.mrf.mxu0
      %v7078 = vpop.f32.mrf.mxu0
      %v7079 = vadd.f32 %v6819, %v7078
      %v7080 = vpop.f32.mrf.mxu0
      %7081 = vmatprep.mubr.bf16.mxu0 0
      %7082 = vmatmul.mubr.bf16.gmra.mxu0 %v6939
      %v7083 = vpop.f32.mrf.mxu0
      %v7084 = vadd.f32 %v6824, %v7083
      %v7085 = vpop.f32.mrf.mxu0
      %v7086 = vpop.f32.mrf.mxu0
      %v7087 = vadd.f32 %v6827, %v7086
      %v7088 = vpop.f32.mrf.mxu0
      %7089 = vmatprep.mubr.bf16.mxu0 0
      %7090 = vmatmul.mubr.bf16.gmra.mxu0 %v6942
      %v7091 = vpop.f32.mrf.mxu0
      %v7092 = vadd.f32 %v6832, %v7091
      %v7093 = vpop.f32.mrf.mxu0
      %v7094 = vpop.f32.mrf.mxu0
      %v7095 = vadd.f32 %v6835, %v7094
      %v7096 = vpop.f32.mrf.mxu0
      %7097 = vmatprep.mubr.bf16.mxu0 0
      %7098 = vmatmul.mubr.bf16.gmra.mxu0 %v6945
      %v7099 = vpop.f32.mrf.mxu0
      %v7100 = vadd.f32 %v6840, %v7099
      %v7101 = vpop.f32.mrf.mxu0
      %v7102 = vpop.f32.mrf.mxu0
      %v7103 = vadd.f32 %v6843, %v7102
      %v7104 = vpop.f32.mrf.mxu0
      %7105 = vmatprep.mubr.bf16.mxu0 0
      %7106 = vmatmul.mubr.bf16.gmra.mxu0 %v6948
      %v7107 = vpop.f32.mrf.mxu0
      %v7108 = vadd.f32 %v6848, %v7107
      %v7109 = vpop.f32.mrf.mxu0
      %v7110 = vpop.f32.mrf.mxu0
      %v7111 = vadd.f32 %v6851, %v7110
      %v7112 = vpop.f32.mrf.mxu0
      %7113 = vdwg.mxu0
      %v7114 = vld [vmem:[#allocation2 + $0x4] sm:$0xf]
      %v7115 = vld [vmem:[#allocation2 + $0x8] sm:$0xf]
      %v7116 = vld [vmem:[#allocation2 + $0xc] sm:$0x1]
      %v7117 = vld [vmem:[#allocation2 + $0x14] sm:$0xf]
      %v7118 = vld [vmem:[#allocation2 + $0x18] sm:$0xf]
      %v7119 = vld [vmem:[#allocation2 + $0x1c] sm:$0x1]
      %v7120 = vld [vmem:[#allocation2 + $0x24] sm:$0xf]
      %v7121 = vld [vmem:[#allocation2 + $0x28] sm:$0xf]
      %v7122 = vld [vmem:[#allocation2 + $0x2c] sm:$0x1]
      %v7123 = vld [vmem:[#allocation2 + $0x34] sm:$0xf]
      %v7124 = vld [vmem:[#allocation2 + $0x38] sm:$0xf]
      %v7125 = vld [vmem:[#allocation2 + $0x3c] sm:$0x1]
      %v7126 = vld [vmem:[#allocation2 + $0x44] sm:$0xf]
      %v7127 = vld [vmem:[#allocation2 + $0x48] sm:$0xf]
      %v7128 = vld [vmem:[#allocation2 + $0x4c] sm:$0x1]
      %v7129 = vld [vmem:[#allocation2 + $0x54] sm:$0xf]
      %v7130 = vld [vmem:[#allocation2 + $0x58] sm:$0xf]
      %v7131 = vld [vmem:[#allocation2 + $0x5c] sm:$0x1]
      %v7132 = vld [vmem:[#allocation2 + $0x64] sm:$0xf]
      %v7133 = vld [vmem:[#allocation2 + $0x68] sm:$0xf]
      %v7134 = vld [vmem:[#allocation2 + $0x6c] sm:$0x1]
      %v7135 = vld [vmem:[#allocation2 + $0x74] sm:$0xf]
      %v7136 = vld [vmem:[#allocation2 + $0x78] sm:$0xf]
      %v7137 = vld [vmem:[#allocation2 + $0x7c] sm:$0x1]
      %v7138 = vld [vmem:[#allocation2 + $0x84] sm:$0xf]
      %v7139 = vld [vmem:[#allocation2 + $0x88] sm:$0xf]
      %v7140 = vld [vmem:[#allocation2 + $0x8c] sm:$0x1]
      %v7141 = vld [vmem:[#allocation2 + $0x94] sm:$0xf]
      %v7142 = vld [vmem:[#allocation2 + $0x98] sm:$0xf]
      %v7143 = vld [vmem:[#allocation2 + $0x9c] sm:$0x1]
      %v7144 = vld [vmem:[#allocation2 + $0xa4] sm:$0xf]
      %v7145 = vld [vmem:[#allocation2 + $0xa8] sm:$0xf]
      %v7146 = vld [vmem:[#allocation2 + $0xac] sm:$0x1]
      %v7147 = vld [vmem:[#allocation2 + $0xb4] sm:$0xf]
      %v7148 = vld [vmem:[#allocation2 + $0xb8] sm:$0xf]
      %v7149 = vld [vmem:[#allocation2 + $0xbc] sm:$0x1]
      %v7150 = vld [vmem:[#allocation2 + $0xc4] sm:$0xf]
      %v7151 = vld [vmem:[#allocation2 + $0xc8] sm:$0xf]
      %v7152 = vld [vmem:[#allocation2 + $0xcc] sm:$0x1]
      %v7153 = vld [vmem:[#allocation2 + $0xd4] sm:$0xf]
      %v7154 = vld [vmem:[#allocation2 + $0xd8] sm:$0xf]
      %v7155 = vld [vmem:[#allocation2 + $0xdc] sm:$0x1]
      %v7156 = vld [vmem:[#allocation2 + $0xe4] sm:$0xf]
      %v7157 = vld [vmem:[#allocation2 + $0xe8] sm:$0xf]
      %v7158 = vld [vmem:[#allocation2 + $0xec] sm:$0x1]
      %v7159 = vld [vmem:[#allocation2 + $0xf4] sm:$0xf]
      %v7160 = vld [vmem:[#allocation2 + $0xf8] sm:$0xf]
      %v7161 = vld [vmem:[#allocation2 + $0xfc] sm:$0x1]
      %v7163 = vshrl.u32 %v7114, 16
      %v7165 = vrot.slane %v7163, 4
      %v7166 = vshll.u32 %v7114, 16
      %v7168 = vrot.slane %v7166, 5
      %v7169 = vor.u32 %v7165, %v7168
      %v7170 = vrot.slane %v7169, 4
      %v7172 = vshll.u32 %v7115, 16
      %v7174 = vrot.slane %v7172, 5
      %v7175 = vsel %vm375, %v7170, %v7174
      %v7176 = vshrl.u32 %v7115, 16
      %v7178 = vrot.slane %v7176, 4
      %v7179 = vor.u32 %v7178, %v7174
      %v7180 = vrot.slane %v7179, 4
      %v7182 = vshll.u32 %v7116, 16
      %v7184 = vrot.slane %v7182, 5
      %v7185 = vsel %vm375, %v7180, %v7184
      %v7187 = vshrl.u32 %v7117, 16
      %v7189 = vrot.slane %v7187, 4
      %v7190 = vshll.u32 %v7117, 16
      %v7192 = vrot.slane %v7190, 5
      %v7193 = vor.u32 %v7189, %v7192
      %v7194 = vrot.slane %v7193, 4
      %v7196 = vshll.u32 %v7118, 16
      %v7198 = vrot.slane %v7196, 5
      %v7199 = vsel %vm375, %v7194, %v7198
      %v7200 = vshrl.u32 %v7118, 16
      %v7202 = vrot.slane %v7200, 4
      %v7203 = vor.u32 %v7202, %v7198
      %v7204 = vrot.slane %v7203, 4
      %v7206 = vshll.u32 %v7119, 16
      %v7208 = vrot.slane %v7206, 5
      %v7209 = vsel %vm375, %v7204, %v7208
      %v7211 = vshrl.u32 %v7120, 16
      %v7213 = vrot.slane %v7211, 4
      %v7214 = vshll.u32 %v7120, 16
      %v7216 = vrot.slane %v7214, 5
      %v7217 = vor.u32 %v7213, %v7216
      %v7218 = vrot.slane %v7217, 4
      %v7220 = vshll.u32 %v7121, 16
      %v7222 = vrot.slane %v7220, 5
      %v7223 = vsel %vm375, %v7218, %v7222
      %v7224 = vshrl.u32 %v7121, 16
      %v7226 = vrot.slane %v7224, 4
      %v7227 = vor.u32 %v7226, %v7222
      %v7228 = vrot.slane %v7227, 4
      %v7230 = vshll.u32 %v7122, 16
      %v7232 = vrot.slane %v7230, 5
      %v7233 = vsel %vm375, %v7228, %v7232
      %v7235 = vshrl.u32 %v7123, 16
      %v7237 = vrot.slane %v7235, 4
      %v7238 = vshll.u32 %v7123, 16
      %v7240 = vrot.slane %v7238, 5
      %v7241 = vor.u32 %v7237, %v7240
      %v7242 = vrot.slane %v7241, 4
      %v7244 = vshll.u32 %v7124, 16
      %v7246 = vrot.slane %v7244, 5
      %v7247 = vsel %vm375, %v7242, %v7246
      %v7248 = vshrl.u32 %v7124, 16
      %v7250 = vrot.slane %v7248, 4
      %v7251 = vor.u32 %v7250, %v7246
      %v7252 = vrot.slane %v7251, 4
      %v7254 = vshll.u32 %v7125, 16
      %v7256 = vrot.slane %v7254, 5
      %v7257 = vsel %vm375, %v7252, %v7256
      %v7259 = vshrl.u32 %v7126, 16
      %v7261 = vrot.slane %v7259, 4
      %v7262 = vshll.u32 %v7126, 16
      %v7264 = vrot.slane %v7262, 5
      %v7265 = vor.u32 %v7261, %v7264
      %v7266 = vrot.slane %v7265, 4
      %v7268 = vshll.u32 %v7127, 16
      %v7270 = vrot.slane %v7268, 5
      %v7271 = vsel %vm375, %v7266, %v7270
      %v7272 = vshrl.u32 %v7127, 16
      %v7274 = vrot.slane %v7272, 4
      %v7275 = vor.u32 %v7274, %v7270
      %v7276 = vrot.slane %v7275, 4
      %v7278 = vshll.u32 %v7128, 16
      %v7280 = vrot.slane %v7278, 5
      %v7281 = vsel %vm375, %v7276, %v7280
      %v7283 = vshrl.u32 %v7129, 16
      %v7285 = vrot.slane %v7283, 4
      %v7286 = vshll.u32 %v7129, 16
      %v7288 = vrot.slane %v7286, 5
      %v7289 = vor.u32 %v7285, %v7288
      %v7290 = vrot.slane %v7289, 4
      %v7292 = vshll.u32 %v7130, 16
      %v7294 = vrot.slane %v7292, 5
      %v7295 = vsel %vm375, %v7290, %v7294
      %v7296 = vshrl.u32 %v7130, 16
      %v7298 = vrot.slane %v7296, 4
      %v7299 = vor.u32 %v7298, %v7294
      %v7300 = vrot.slane %v7299, 4
      %v7302 = vshll.u32 %v7131, 16
      %v7304 = vrot.slane %v7302, 5
      %v7305 = vsel %vm375, %v7300, %v7304
      %v7307 = vshrl.u32 %v7132, 16
      %v7309 = vrot.slane %v7307, 4
      %v7310 = vshll.u32 %v7132, 16
      %v7312 = vrot.slane %v7310, 5
      %v7313 = vor.u32 %v7309, %v7312
      %v7314 = vrot.slane %v7313, 4
      %v7316 = vshll.u32 %v7133, 16
      %v7318 = vrot.slane %v7316, 5
      %v7319 = vsel %vm375, %v7314, %v7318
      %v7320 = vshrl.u32 %v7133, 16
      %v7322 = vrot.slane %v7320, 4
      %v7323 = vor.u32 %v7322, %v7318
      %v7324 = vrot.slane %v7323, 4
      %v7326 = vshll.u32 %v7134, 16
      %v7328 = vrot.slane %v7326, 5
      %v7329 = vsel %vm375, %v7324, %v7328
      %v7331 = vshrl.u32 %v7135, 16
      %v7333 = vrot.slane %v7331, 4
      %v7334 = vshll.u32 %v7135, 16
      %v7336 = vrot.slane %v7334, 5
      %v7337 = vor.u32 %v7333, %v7336
      %v7338 = vrot.slane %v7337, 4
      %v7340 = vshll.u32 %v7136, 16
      %v7342 = vrot.slane %v7340, 5
      %v7343 = vsel %vm375, %v7338, %v7342
      %v7344 = vshrl.u32 %v7136, 16
      %v7346 = vrot.slane %v7344, 4
      %v7347 = vor.u32 %v7346, %v7342
      %v7348 = vrot.slane %v7347, 4
      %v7350 = vshll.u32 %v7137, 16
      %v7352 = vrot.slane %v7350, 5
      %v7353 = vsel %vm375, %v7348, %v7352
      %v7355 = vshrl.u32 %v7138, 16
      %v7357 = vrot.slane %v7355, 4
      %v7358 = vshll.u32 %v7138, 16
      %v7360 = vrot.slane %v7358, 5
      %v7361 = vor.u32 %v7357, %v7360
      %v7362 = vrot.slane %v7361, 4
      %v7364 = vshll.u32 %v7139, 16
      %v7366 = vrot.slane %v7364, 5
      %v7367 = vsel %vm375, %v7362, %v7366
      %v7368 = vshrl.u32 %v7139, 16
      %v7370 = vrot.slane %v7368, 4
      %v7371 = vor.u32 %v7370, %v7366
      %v7372 = vrot.slane %v7371, 4
      %v7374 = vshll.u32 %v7140, 16
      %v7376 = vrot.slane %v7374, 5
      %v7377 = vsel %vm375, %v7372, %v7376
      %v7379 = vshrl.u32 %v7141, 16
      %v7381 = vrot.slane %v7379, 4
      %v7382 = vshll.u32 %v7141, 16
      %v7384 = vrot.slane %v7382, 5
      %v7385 = vor.u32 %v7381, %v7384
      %v7386 = vrot.slane %v7385, 4
      %v7388 = vshll.u32 %v7142, 16
      %v7390 = vrot.slane %v7388, 5
      %v7391 = vsel %vm375, %v7386, %v7390
      %v7392 = vshrl.u32 %v7142, 16
      %v7394 = vrot.slane %v7392, 4
      %v7395 = vor.u32 %v7394, %v7390
      %v7396 = vrot.slane %v7395, 4
      %v7398 = vshll.u32 %v7143, 16
      %v7400 = vrot.slane %v7398, 5
      %v7401 = vsel %vm375, %v7396, %v7400
      %v7403 = vshrl.u32 %v7144, 16
      %v7405 = vrot.slane %v7403, 4
      %v7406 = vshll.u32 %v7144, 16
      %v7408 = vrot.slane %v7406, 5
      %v7409 = vor.u32 %v7405, %v7408
      %v7410 = vrot.slane %v7409, 4
      %v7412 = vshll.u32 %v7145, 16
      %v7414 = vrot.slane %v7412, 5
      %v7415 = vsel %vm375, %v7410, %v7414
      %v7416 = vshrl.u32 %v7145, 16
      %v7418 = vrot.slane %v7416, 4
      %v7419 = vor.u32 %v7418, %v7414
      %v7420 = vrot.slane %v7419, 4
      %v7422 = vshll.u32 %v7146, 16
      %v7424 = vrot.slane %v7422, 5
      %v7425 = vsel %vm375, %v7420, %v7424
      %v7427 = vshrl.u32 %v7147, 16
      %v7429 = vrot.slane %v7427, 4
      %v7430 = vshll.u32 %v7147, 16
      %v7432 = vrot.slane %v7430, 5
      %v7433 = vor.u32 %v7429, %v7432
      %v7434 = vrot.slane %v7433, 4
      %v7436 = vshll.u32 %v7148, 16
      %v7438 = vrot.slane %v7436, 5
      %v7439 = vsel %vm375, %v7434, %v7438
      %v7440 = vshrl.u32 %v7148, 16
      %v7442 = vrot.slane %v7440, 4
      %v7443 = vor.u32 %v7442, %v7438
      %v7444 = vrot.slane %v7443, 4
      %v7446 = vshll.u32 %v7149, 16
      %v7448 = vrot.slane %v7446, 5
      %v7449 = vsel %vm375, %v7444, %v7448
      %v7451 = vshrl.u32 %v7150, 16
      %v7453 = vrot.slane %v7451, 4
      %v7454 = vshll.u32 %v7150, 16
      %v7456 = vrot.slane %v7454, 5
      %v7457 = vor.u32 %v7453, %v7456
      %v7458 = vrot.slane %v7457, 4
      %v7460 = vshll.u32 %v7151, 16
      %v7462 = vrot.slane %v7460, 5
      %v7463 = vsel %vm375, %v7458, %v7462
      %v7464 = vshrl.u32 %v7151, 16
      %v7466 = vrot.slane %v7464, 4
      %v7467 = vor.u32 %v7466, %v7462
      %v7468 = vrot.slane %v7467, 4
      %v7470 = vshll.u32 %v7152, 16
      %v7472 = vrot.slane %v7470, 5
      %v7473 = vsel %vm375, %v7468, %v7472
      %v7475 = vshrl.u32 %v7153, 16
      %v7477 = vrot.slane %v7475, 4
      %v7478 = vshll.u32 %v7153, 16
      %v7480 = vrot.slane %v7478, 5
      %v7481 = vor.u32 %v7477, %v7480
      %v7482 = vrot.slane %v7481, 4
      %v7484 = vshll.u32 %v7154, 16
      %v7486 = vrot.slane %v7484, 5
      %v7487 = vsel %vm375, %v7482, %v7486
      %v7488 = vshrl.u32 %v7154, 16
      %v7490 = vrot.slane %v7488, 4
      %v7491 = vor.u32 %v7490, %v7486
      %v7492 = vrot.slane %v7491, 4
      %v7494 = vshll.u32 %v7155, 16
      %v7496 = vrot.slane %v7494, 5
      %v7497 = vsel %vm375, %v7492, %v7496
      %v7499 = vshrl.u32 %v7156, 16
      %v7501 = vrot.slane %v7499, 4
      %v7502 = vshll.u32 %v7156, 16
      %v7504 = vrot.slane %v7502, 5
      %v7505 = vor.u32 %v7501, %v7504
      %v7506 = vrot.slane %v7505, 4
      %v7508 = vshll.u32 %v7157, 16
      %v7510 = vrot.slane %v7508, 5
      %v7511 = vsel %vm375, %v7506, %v7510
      %v7512 = vshrl.u32 %v7157, 16
      %v7514 = vrot.slane %v7512, 4
      %v7515 = vor.u32 %v7514, %v7510
      %v7516 = vrot.slane %v7515, 4
      %v7518 = vshll.u32 %v7158, 16
      %v7520 = vrot.slane %v7518, 5
      %v7521 = vsel %vm375, %v7516, %v7520
      %v7523 = vshrl.u32 %v7159, 16
      %v7525 = vrot.slane %v7523, 4
      %v7526 = vshll.u32 %v7159, 16
      %v7528 = vrot.slane %v7526, 5
      %v7529 = vor.u32 %v7525, %v7528
      %v7530 = vrot.slane %v7529, 4
      %v7532 = vshll.u32 %v7160, 16
      %v7534 = vrot.slane %v7532, 5
      %v7535 = vsel %vm375, %v7530, %v7534
      %v7536 = vshrl.u32 %v7160, 16
      %v7538 = vrot.slane %v7536, 4
      %v7539 = vor.u32 %v7538, %v7534
      %v7540 = vrot.slane %v7539, 4
      %v7542 = vshll.u32 %v7161, 16
      %v7544 = vrot.slane %v7542, 5
      %v7545 = vsel %vm375, %v7540, %v7544
      %s7546 = scalar_lea.vmem %s4, 8
      %v7547 = vld [vmem:[%s7546] sm:$0xf]
      %v7548 = vunpack.c.l.b16 %v7175
      %v7549 = vunpack.c.l.b16 %v7185
      %v7550 = vunpack.c.l.b16 %v7199
      %v7551 = vunpack.c.l.b16 %v7209
      %v7552 = vunpack.c.l.b16 %v7223
      %v7553 = vunpack.c.l.b16 %v7233
      %v7554 = vunpack.c.l.b16 %v7247
      %v7555 = vunpack.c.l.b16 %v7257
      %v7556 = vunpack.c.l.b16 %v7271
      %v7557 = vunpack.c.l.b16 %v7281
      %v7558 = vunpack.c.l.b16 %v7295
      %v7559 = vunpack.c.l.b16 %v7305
      %v7560 = vunpack.c.l.b16 %v7319
      %v7561 = vunpack.c.l.b16 %v7329
      %v7562 = vunpack.c.l.b16 %v7343
      %v7563 = vunpack.c.l.b16 %v7353
      %v7564 = vunpack.c.l.b16 %v7367
      %v7565 = vunpack.c.l.b16 %v7377
      %v7566 = vunpack.c.l.b16 %v7391
      %v7567 = vunpack.c.l.b16 %v7401
      %v7568 = vunpack.c.l.b16 %v7415
      %v7569 = vunpack.c.l.b16 %v7425
      %v7570 = vunpack.c.l.b16 %v7439
      %v7571 = vunpack.c.l.b16 %v7449
      %v7572 = vunpack.c.l.b16 %v7463
      %v7573 = vunpack.c.l.b16 %v7473
      %v7574 = vunpack.c.l.b16 %v7487
      %v7575 = vunpack.c.l.b16 %v7497
      %v7576 = vunpack.c.l.b16 %v7511
      %v7577 = vunpack.c.l.b16 %v7521
      %v7578 = vunpack.c.l.b16 %v7535
      %v7579 = vunpack.c.l.b16 %v7545
      %v7580 = vpack.c.b16 %v7549, %v7548
      %v7581 = vpack.c.b16 %v7551, %v7550
      %v7582 = vpack.c.b16 %v7553, %v7552
      %v7583 = vpack.c.b16 %v7555, %v7554
      %v7584 = vpack.c.b16 %v7557, %v7556
      %v7585 = vpack.c.b16 %v7559, %v7558
      %v7586 = vpack.c.b16 %v7561, %v7560
      %v7587 = vpack.c.b16 %v7563, %v7562
      %v7588 = vpack.c.b16 %v7565, %v7564
      %v7589 = vpack.c.b16 %v7567, %v7566
      %v7590 = vpack.c.b16 %v7569, %v7568
      %v7591 = vpack.c.b16 %v7571, %v7570
      %v7592 = vpack.c.b16 %v7573, %v7572
      %v7593 = vpack.c.b16 %v7575, %v7574
      %v7594 = vpack.c.b16 %v7577, %v7576
      %v7595 = vpack.c.b16 %v7579, %v7578
      %v7597 = vsel %vm6640, %v7580, 0
      %v7600 = vsel %vm6640, %v7581, 0
      %v7603 = vsel %vm6640, %v7582, 0
      %v7606 = vsel %vm6640, %v7583, 0
      %v7609 = vsel %vm6640, %v7584, 0
      %v7612 = vsel %vm6640, %v7585, 0
      %v7615 = vsel %vm6640, %v7586, 0
      %v7618 = vsel %vm6640, %v7587, 0
      %v7621 = vsel %vm6640, %v7588, 0
      %v7624 = vsel %vm6640, %v7589, 0
      %v7627 = vsel %vm6640, %v7590, 0
      %v7630 = vsel %vm6640, %v7591, 0
      %v7633 = vsel %vm6640, %v7592, 0
      %v7636 = vsel %vm6640, %v7593, 0
      %v7639 = vsel %vm6640, %v7594, 0
      %v7642 = vsel %vm6640, %v7595, 0
      %v7645 = vsel %vm6689, %v7547, 0
      %7647 = vmatprep.subr.bf16.mxu0 0
      %7648 = vmatpush1.bf16.msra.mxu0 0
      %7649 = vmatprep.subr.bf16.mxu0 0
      %7650 = vmatpush1.bf16.msra.mxu0 0
      %7651 = vmatprep.subr.bf16.mxu0 0
      %7652 = vmatpush1.bf16.msra.mxu0 0
      %7653 = vmatprep.subr.bf16.mxu0 0
      %7654 = vmatpush1.bf16.msra.mxu0 0
      %7655 = vmatprep.subr.bf16.mxu0 0
      %7656 = vmatpush1.bf16.msra.mxu0 0
      %7657 = vmatprep.subr.bf16.mxu0 0
      %7658 = vmatpush1.bf16.msra.mxu0 0
      %7659 = vmatprep.subr.bf16.mxu0 0
      %7660 = vmatpush1.bf16.msra.mxu0 0
      %7661 = vmatprep.subr.bf16.mxu0 0
      %7662 = vmatpush1.bf16.msra.mxu0 %v7645
      %7663 = vmatprep.subr.bf16.mxu0 0
      %7664 = vmatpush2.bf16.msra.mxu0 0
      %7665 = vmatprep.subr.bf16.mxu0 0
      %7666 = vmatpush2.bf16.msra.mxu0 0
      %7667 = vmatprep.subr.bf16.mxu0 0
      %7668 = vmatpush2.bf16.msra.mxu0 0
      %7669 = vmatprep.subr.bf16.mxu0 0
      %7670 = vmatpush2.bf16.msra.mxu0 0
      %7671 = vmatprep.subr.bf16.mxu0 0
      %7672 = vmatpush2.bf16.msra.mxu0 0
      %7673 = vmatprep.subr.bf16.mxu0 0
      %7674 = vmatpush2.bf16.msra.mxu0 0
      %7675 = vmatprep.subr.bf16.mxu0 0
      %7676 = vmatpush2.bf16.msra.mxu0 0
      %7677 = vmatprep.subr.bf16.mxu0 0
      %7678 = vmatpush2.bf16.msra.mxu0 0
      %7679 = vmatprep.mubr.bf16.mxu0 0
      %7680 = vmatmul.mubr.bf16.gmra.mxu0 %v7597
      %v7681 = vpop.f32.mrf.mxu0
      %v7682 = vadd.f32 0.0, %v7681
      %v7683 = vpop.f32.mrf.mxu0
      %v7684 = vpop.f32.mrf.mxu0
      %v7685 = vadd.f32 0.0, %v7684
      %v7686 = vpop.f32.mrf.mxu0
      %7687 = vmatprep.mubr.bf16.mxu0 0
      %7688 = vmatmul.mubr.bf16.gmra.mxu0 %v7600
      %v7689 = vpop.f32.mrf.mxu0
      %v7690 = vadd.f32 0.0, %v7689
      %v7691 = vpop.f32.mrf.mxu0
      %v7692 = vpop.f32.mrf.mxu0
      %v7693 = vadd.f32 0.0, %v7692
      %v7694 = vpop.f32.mrf.mxu0
      %7695 = vmatprep.mubr.bf16.mxu0 0
      %7696 = vmatmul.mubr.bf16.gmra.mxu0 %v7603
      %v7697 = vpop.f32.mrf.mxu0
      %v7698 = vadd.f32 0.0, %v7697
      %v7699 = vpop.f32.mrf.mxu0
      %v7700 = vpop.f32.mrf.mxu0
      %v7701 = vadd.f32 0.0, %v7700
      %v7702 = vpop.f32.mrf.mxu0
      %7703 = vmatprep.mubr.bf16.mxu0 0
      %7704 = vmatmul.mubr.bf16.gmra.mxu0 %v7606
      %v7705 = vpop.f32.mrf.mxu0
      %v7706 = vadd.f32 0.0, %v7705
      %v7707 = vpop.f32.mrf.mxu0
      %v7708 = vpop.f32.mrf.mxu0
      %v7709 = vadd.f32 0.0, %v7708
      %v7710 = vpop.f32.mrf.mxu0
      %7711 = vmatprep.mubr.bf16.mxu0 0
      %7712 = vmatmul.mubr.bf16.gmra.mxu0 %v7609
      %v7713 = vpop.f32.mrf.mxu0
      %v7714 = vadd.f32 0.0, %v7713
      %v7715 = vpop.f32.mrf.mxu0
      %v7716 = vpop.f32.mrf.mxu0
      %v7717 = vadd.f32 0.0, %v7716
      %v7718 = vpop.f32.mrf.mxu0
      %7719 = vmatprep.mubr.bf16.mxu0 0
      %7720 = vmatmul.mubr.bf16.gmra.mxu0 %v7612
      %v7721 = vpop.f32.mrf.mxu0
      %v7722 = vadd.f32 0.0, %v7721
      %v7723 = vpop.f32.mrf.mxu0
      %v7724 = vpop.f32.mrf.mxu0
      %v7725 = vadd.f32 0.0, %v7724
      %v7726 = vpop.f32.mrf.mxu0
      %7727 = vmatprep.mubr.bf16.mxu0 0
      %7728 = vmatmul.mubr.bf16.gmra.mxu0 %v7615
      %v7729 = vpop.f32.mrf.mxu0
      %v7730 = vadd.f32 0.0, %v7729
      %v7731 = vpop.f32.mrf.mxu0
      %v7732 = vpop.f32.mrf.mxu0
      %v7733 = vadd.f32 0.0, %v7732
      %v7734 = vpop.f32.mrf.mxu0
      %7735 = vmatprep.mubr.bf16.mxu0 0
      %7736 = vmatmul.mubr.bf16.gmra.mxu0 %v7618
      %v7737 = vpop.f32.mrf.mxu0
      %v7738 = vadd.f32 0.0, %v7737
      %v7739 = vpop.f32.mrf.mxu0
      %v7740 = vpop.f32.mrf.mxu0
      %v7741 = vadd.f32 0.0, %v7740
      %v7742 = vpop.f32.mrf.mxu0
      %7743 = vmatprep.mubr.bf16.mxu0 0
      %7744 = vmatmul.mubr.bf16.gmra.mxu0 %v7621
      %v7745 = vpop.f32.mrf.mxu0
      %v7746 = vadd.f32 0.0, %v7745
      %v7747 = vpop.f32.mrf.mxu0
      %v7748 = vpop.f32.mrf.mxu0
      %v7749 = vadd.f32 0.0, %v7748
      %v7750 = vpop.f32.mrf.mxu0
      %7751 = vmatprep.mubr.bf16.mxu0 0
      %7752 = vmatmul.mubr.bf16.gmra.mxu0 %v7624
      %v7753 = vpop.f32.mrf.mxu0
      %v7754 = vadd.f32 0.0, %v7753
      %v7755 = vpop.f32.mrf.mxu0
      %v7756 = vpop.f32.mrf.mxu0
      %v7757 = vadd.f32 0.0, %v7756
      %v7758 = vpop.f32.mrf.mxu0
      %7759 = vmatprep.mubr.bf16.mxu0 0
      %7760 = vmatmul.mubr.bf16.gmra.mxu0 %v7627
      %v7761 = vpop.f32.mrf.mxu0
      %v7762 = vadd.f32 0.0, %v7761
      %v7763 = vpop.f32.mrf.mxu0
      %v7764 = vpop.f32.mrf.mxu0
      %v7765 = vadd.f32 0.0, %v7764
      %v7766 = vpop.f32.mrf.mxu0
      %7767 = vmatprep.mubr.bf16.mxu0 0
      %7768 = vmatmul.mubr.bf16.gmra.mxu0 %v7630
      %v7769 = vpop.f32.mrf.mxu0
      %v7770 = vadd.f32 0.0, %v7769
      %v7771 = vpop.f32.mrf.mxu0
      %v7772 = vpop.f32.mrf.mxu0
      %v7773 = vadd.f32 0.0, %v7772
      %v7774 = vpop.f32.mrf.mxu0
      %7775 = vmatprep.mubr.bf16.mxu0 0
      %7776 = vmatmul.mubr.bf16.gmra.mxu0 %v7633
      %v7777 = vpop.f32.mrf.mxu0
      %v7778 = vadd.f32 0.0, %v7777
      %v7779 = vpop.f32.mrf.mxu0
      %v7780 = vpop.f32.mrf.mxu0
      %v7781 = vadd.f32 0.0, %v7780
      %v7782 = vpop.f32.mrf.mxu0
      %7783 = vmatprep.mubr.bf16.mxu0 0
      %7784 = vmatmul.mubr.bf16.gmra.mxu0 %v7636
      %v7785 = vpop.f32.mrf.mxu0
      %v7786 = vadd.f32 0.0, %v7785
      %v7787 = vpop.f32.mrf.mxu0
      %v7788 = vpop.f32.mrf.mxu0
      %v7789 = vadd.f32 0.0, %v7788
      %v7790 = vpop.f32.mrf.mxu0
      %7791 = vmatprep.mubr.bf16.mxu0 0
      %7792 = vmatmul.mubr.bf16.gmra.mxu0 %v7639
      %v7793 = vpop.f32.mrf.mxu0
      %v7794 = vadd.f32 0.0, %v7793
      %v7795 = vpop.f32.mrf.mxu0
      %v7796 = vpop.f32.mrf.mxu0
      %v7797 = vadd.f32 0.0, %v7796
      %v7798 = vpop.f32.mrf.mxu0
      %7799 = vmatprep.mubr.bf16.mxu0 0
      %7800 = vmatmul.mubr.bf16.gmra.mxu0 %v7642
      %v7801 = vpop.f32.mrf.mxu0
      %v7802 = vadd.f32 0.0, %v7801
      %v7803 = vpop.f32.mrf.mxu0
      %v7804 = vpop.f32.mrf.mxu0
      %v7805 = vadd.f32 0.0, %v7804
      %v7806 = vpop.f32.mrf.mxu0
      %7807 = vdwg.mxu0
      %v7808 = vadd.f32 %v6988, %v7682
      %v7809 = vadd.f32 %v6991, %v7685
      %v7810 = vadd.f32 %v6996, %v7690
      %v7811 = vadd.f32 %v6999, %v7693
      %v7812 = vadd.f32 %v7004, %v7698
      %v7813 = vadd.f32 %v7007, %v7701
      %v7814 = vadd.f32 %v7012, %v7706
      %v7815 = vadd.f32 %v7015, %v7709
      %v7816 = vadd.f32 %v7020, %v7714
      %v7817 = vadd.f32 %v7023, %v7717
      %v7818 = vadd.f32 %v7028, %v7722
      %v7819 = vadd.f32 %v7031, %v7725
      %v7820 = vadd.f32 %v7036, %v7730
      %v7821 = vadd.f32 %v7039, %v7733
      %v7822 = vadd.f32 %v7044, %v7738
      %v7823 = vadd.f32 %v7047, %v7741
      %v7824 = vadd.f32 %v7052, %v7746
      %v7825 = vadd.f32 %v7055, %v7749
      %v7826 = vadd.f32 %v7060, %v7754
      %v7827 = vadd.f32 %v7063, %v7757
      %v7828 = vadd.f32 %v7068, %v7762
      %v7829 = vadd.f32 %v7071, %v7765
      %v7830 = vadd.f32 %v7076, %v7770
      %v7831 = vadd.f32 %v7079, %v7773
      %v7832 = vadd.f32 %v7084, %v7778
      %v7833 = vadd.f32 %v7087, %v7781
      %v7834 = vadd.f32 %v7092, %v7786
      %v7835 = vadd.f32 %v7095, %v7789
      %v7836 = vadd.f32 %v7100, %v7794
      %v7837 = vadd.f32 %v7103, %v7797
      %v7838 = vadd.f32 %v7108, %v7802
      %v7839 = vadd.f32 %v7111, %v7805
      %s7840 = scalar_lea.vmem [#allocation2], 16
      %v7841 = vld [vmem:[%s7840] sm:$0x8]
      %v7842 = vld [vmem:[%s7840 + $0x4] sm:$0xf]
      %v7843 = vld [vmem:[%s7840 + $0x8] sm:$0xf]
      %v7844 = vld [vmem:[%s7840 + $0x10] sm:$0x8]
      %v7845 = vld [vmem:[%s7840 + $0x14] sm:$0xf]
      %v7846 = vld [vmem:[%s7840 + $0x18] sm:$0xf]
      %v7847 = vld [vmem:[%s7840 + $0x20] sm:$0x8]
      %v7848 = vld [vmem:[%s7840 + $0x24] sm:$0xf]
      %v7849 = vld [vmem:[%s7840 + $0x28] sm:$0xf]
      %v7850 = vld [vmem:[%s7840 + $0x30] sm:$0x8]
      %v7851 = vld [vmem:[%s7840 + $0x34] sm:$0xf]
      %v7852 = vld [vmem:[%s7840 + $0x38] sm:$0xf]
      %v7853 = vld [vmem:[%s7840 + $0x40] sm:$0x8]
      %v7854 = vld [vmem:[%s7840 + $0x44] sm:$0xf]
      %v7855 = vld [vmem:[%s7840 + $0x48] sm:$0xf]
      %v7856 = vld [vmem:[%s7840 + $0x50] sm:$0x8]
      %v7857 = vld [vmem:[%s7840 + $0x54] sm:$0xf]
      %v7858 = vld [vmem:[%s7840 + $0x58] sm:$0xf]
      %v7859 = vld [vmem:[%s7840 + $0x60] sm:$0x8]
      %v7860 = vld [vmem:[%s7840 + $0x64] sm:$0xf]
      %v7861 = vld [vmem:[%s7840 + $0x68] sm:$0xf]
      %v7862 = vld [vmem:[%s7840 + $0x70] sm:$0x8]
      %v7863 = vld [vmem:[%s7840 + $0x74] sm:$0xf]
      %v7864 = vld [vmem:[%s7840 + $0x78] sm:$0xf]
      %v7865 = vld [vmem:[%s7840 + $0x80] sm:$0x8]
      %v7866 = vld [vmem:[%s7840 + $0x84] sm:$0xf]
      %v7867 = vld [vmem:[%s7840 + $0x88] sm:$0xf]
      %v7868 = vld [vmem:[%s7840 + $0x90] sm:$0x8]
      %v7869 = vld [vmem:[%s7840 + $0x94] sm:$0xf]
      %v7870 = vld [vmem:[%s7840 + $0x98] sm:$0xf]
      %v7871 = vld [vmem:[%s7840 + $0xa0] sm:$0x8]
      %v7872 = vld [vmem:[%s7840 + $0xa4] sm:$0xf]
      %v7873 = vld [vmem:[%s7840 + $0xa8] sm:$0xf]
      %v7874 = vld [vmem:[%s7840 + $0xb0] sm:$0x8]
      %v7875 = vld [vmem:[%s7840 + $0xb4] sm:$0xf]
      %v7876 = vld [vmem:[%s7840 + $0xb8] sm:$0xf]
      %v7877 = vld [vmem:[%s7840 + $0xc0] sm:$0x8]
      %v7878 = vld [vmem:[%s7840 + $0xc4] sm:$0xf]
      %v7879 = vld [vmem:[%s7840 + $0xc8] sm:$0xf]
      %v7880 = vld [vmem:[%s7840 + $0xd0] sm:$0x8]
      %v7881 = vld [vmem:[%s7840 + $0xd4] sm:$0xf]
      %v7882 = vld [vmem:[%s7840 + $0xd8] sm:$0xf]
      %v7883 = vld [vmem:[%s7840 + $0xe0] sm:$0x8]
      %v7884 = vld [vmem:[%s7840 + $0xe4] sm:$0xf]
      %v7885 = vld [vmem:[%s7840 + $0xe8] sm:$0xf]
      %v7886 = vld [vmem:[%s7840 + $0xf0] sm:$0x8]
      %v7887 = vld [vmem:[%s7840 + $0xf4] sm:$0xf]
      %v7888 = vld [vmem:[%s7840 + $0xf8] sm:$0xf]
      %v7890 = vshrl.u32 %v7841, 16
      %v7892 = vrot.slane %v7890, 7
      %v7893 = vrot.slane %v7892, 4
      %v7895 = vshrl.u32 %v7842, 16
      %v7897 = vrot.slane %v7895, 7
      %v7898 = vshll.u32 %v7842, 16
      %v7900 = vor.u32 %v7897, %v7898
      %v7901 = vsel %vm6204, %v7893, %v7900
      %v7902 = vrot.slane %v7897, 4
      %v7904 = vshrl.u32 %v7843, 16
      %v7906 = vrot.slane %v7904, 7
      %v7907 = vshll.u32 %v7843, 16
      %v7909 = vor.u32 %v7906, %v7907
      %v7910 = vsel %vm6204, %v7902, %v7909
      %v7912 = vshrl.u32 %v7844, 16
      %v7914 = vrot.slane %v7912, 7
      %v7915 = vrot.slane %v7914, 4
      %v7917 = vshrl.u32 %v7845, 16
      %v7919 = vrot.slane %v7917, 7
      %v7920 = vshll.u32 %v7845, 16
      %v7922 = vor.u32 %v7919, %v7920
      %v7923 = vsel %vm6204, %v7915, %v7922
      %v7924 = vrot.slane %v7919, 4
      %v7926 = vshrl.u32 %v7846, 16
      %v7928 = vrot.slane %v7926, 7
      %v7929 = vshll.u32 %v7846, 16
      %v7931 = vor.u32 %v7928, %v7929
      %v7932 = vsel %vm6204, %v7924, %v7931
      %v7934 = vshrl.u32 %v7847, 16
      %v7936 = vrot.slane %v7934, 7
      %v7937 = vrot.slane %v7936, 4
      %v7939 = vshrl.u32 %v7848, 16
      %v7941 = vrot.slane %v7939, 7
      %v7942 = vshll.u32 %v7848, 16
      %v7944 = vor.u32 %v7941, %v7942
      %v7945 = vsel %vm6204, %v7937, %v7944
      %v7946 = vrot.slane %v7941, 4
      %v7948 = vshrl.u32 %v7849, 16
      %v7950 = vrot.slane %v7948, 7
      %v7951 = vshll.u32 %v7849, 16
      %v7953 = vor.u32 %v7950, %v7951
      %v7954 = vsel %vm6204, %v7946, %v7953
      %v7956 = vshrl.u32 %v7850, 16
      %v7958 = vrot.slane %v7956, 7
      %v7959 = vrot.slane %v7958, 4
      %v7961 = vshrl.u32 %v7851, 16
      %v7963 = vrot.slane %v7961, 7
      %v7964 = vshll.u32 %v7851, 16
      %v7966 = vor.u32 %v7963, %v7964
      %v7967 = vsel %vm6204, %v7959, %v7966
      %v7968 = vrot.slane %v7963, 4
      %v7970 = vshrl.u32 %v7852, 16
      %v7972 = vrot.slane %v7970, 7
      %v7973 = vshll.u32 %v7852, 16
      %v7975 = vor.u32 %v7972, %v7973
      %v7976 = vsel %vm6204, %v7968, %v7975
      %v7978 = vshrl.u32 %v7853, 16
      %v7980 = vrot.slane %v7978, 7
      %v7981 = vrot.slane %v7980, 4
      %v7983 = vshrl.u32 %v7854, 16
      %v7985 = vrot.slane %v7983, 7
      %v7986 = vshll.u32 %v7854, 16
      %v7988 = vor.u32 %v7985, %v7986
      %v7989 = vsel %vm6204, %v7981, %v7988
      %v7990 = vrot.slane %v7985, 4
      %v7992 = vshrl.u32 %v7855, 16
      %v7994 = vrot.slane %v7992, 7
      %v7995 = vshll.u32 %v7855, 16
      %v7997 = vor.u32 %v7994, %v7995
      %v7998 = vsel %vm6204, %v7990, %v7997
      %v8000 = vshrl.u32 %v7856, 16
      %v8002 = vrot.slane %v8000, 7
      %v8003 = vrot.slane %v8002, 4
      %v8005 = vshrl.u32 %v7857, 16
      %v8007 = vrot.slane %v8005, 7
      %v8008 = vshll.u32 %v7857, 16
      %v8010 = vor.u32 %v8007, %v8008
      %v8011 = vsel %vm6204, %v8003, %v8010
      %v8012 = vrot.slane %v8007, 4
      %v8014 = vshrl.u32 %v7858, 16
      %v8016 = vrot.slane %v8014, 7
      %v8017 = vshll.u32 %v7858, 16
      %v8019 = vor.u32 %v8016, %v8017
      %v8020 = vsel %vm6204, %v8012, %v8019
      %v8022 = vshrl.u32 %v7859, 16
      %v8024 = vrot.slane %v8022, 7
      %v8025 = vrot.slane %v8024, 4
      %v8027 = vshrl.u32 %v7860, 16
      %v8029 = vrot.slane %v8027, 7
      %v8030 = vshll.u32 %v7860, 16
      %v8032 = vor.u32 %v8029, %v8030
      %v8033 = vsel %vm6204, %v8025, %v8032
      %v8034 = vrot.slane %v8029, 4
      %v8036 = vshrl.u32 %v7861, 16
      %v8038 = vrot.slane %v8036, 7
      %v8039 = vshll.u32 %v7861, 16
      %v8041 = vor.u32 %v8038, %v8039
      %v8042 = vsel %vm6204, %v8034, %v8041
      %v8044 = vshrl.u32 %v7862, 16
      %v8046 = vrot.slane %v8044, 7
      %v8047 = vrot.slane %v8046, 4
      %v8049 = vshrl.u32 %v7863, 16
      %v8051 = vrot.slane %v8049, 7
      %v8052 = vshll.u32 %v7863, 16
      %v8054 = vor.u32 %v8051, %v8052
      %v8055 = vsel %vm6204, %v8047, %v8054
      %v8056 = vrot.slane %v8051, 4
      %v8058 = vshrl.u32 %v7864, 16
      %v8060 = vrot.slane %v8058, 7
      %v8061 = vshll.u32 %v7864, 16
      %v8063 = vor.u32 %v8060, %v8061
      %v8064 = vsel %vm6204, %v8056, %v8063
      %v8066 = vshrl.u32 %v7865, 16
      %v8068 = vrot.slane %v8066, 7
      %v8069 = vrot.slane %v8068, 4
      %v8071 = vshrl.u32 %v7866, 16
      %v8073 = vrot.slane %v8071, 7
      %v8074 = vshll.u32 %v7866, 16
      %v8076 = vor.u32 %v8073, %v8074
      %v8077 = vsel %vm6204, %v8069, %v8076
      %v8078 = vrot.slane %v8073, 4
      %v8080 = vshrl.u32 %v7867, 16
      %v8082 = vrot.slane %v8080, 7
      %v8083 = vshll.u32 %v7867, 16
      %v8085 = vor.u32 %v8082, %v8083
      %v8086 = vsel %vm6204, %v8078, %v8085
      %v8088 = vshrl.u32 %v7868, 16
      %v8090 = vrot.slane %v8088, 7
      %v8091 = vrot.slane %v8090, 4
      %v8093 = vshrl.u32 %v7869, 16
      %v8095 = vrot.slane %v8093, 7
      %v8096 = vshll.u32 %v7869, 16
      %v8098 = vor.u32 %v8095, %v8096
      %v8099 = vsel %vm6204, %v8091, %v8098
      %v8100 = vrot.slane %v8095, 4
      %v8102 = vshrl.u32 %v7870, 16
      %v8104 = vrot.slane %v8102, 7
      %v8105 = vshll.u32 %v7870, 16
      %v8107 = vor.u32 %v8104, %v8105
      %v8108 = vsel %vm6204, %v8100, %v8107
      %v8110 = vshrl.u32 %v7871, 16
      %v8112 = vrot.slane %v8110, 7
      %v8113 = vrot.slane %v8112, 4
      %v8115 = vshrl.u32 %v7872, 16
      %v8117 = vrot.slane %v8115, 7
      %v8118 = vshll.u32 %v7872, 16
      %v8120 = vor.u32 %v8117, %v8118
      %v8121 = vsel %vm6204, %v8113, %v8120
      %v8122 = vrot.slane %v8117, 4
      %v8124 = vshrl.u32 %v7873, 16
      %v8126 = vrot.slane %v8124, 7
      %v8127 = vshll.u32 %v7873, 16
      %v8129 = vor.u32 %v8126, %v8127
      %v8130 = vsel %vm6204, %v8122, %v8129
      %v8132 = vshrl.u32 %v7874, 16
      %v8134 = vrot.slane %v8132, 7
      %v8135 = vrot.slane %v8134, 4
      %v8137 = vshrl.u32 %v7875, 16
      %v8139 = vrot.slane %v8137, 7
      %v8140 = vshll.u32 %v7875, 16
      %v8142 = vor.u32 %v8139, %v8140
      %v8143 = vsel %vm6204, %v8135, %v8142
      %v8144 = vrot.slane %v8139, 4
      %v8146 = vshrl.u32 %v7876, 16
      %v8148 = vrot.slane %v8146, 7
      %v8149 = vshll.u32 %v7876, 16
      %v8151 = vor.u32 %v8148, %v8149
      %v8152 = vsel %vm6204, %v8144, %v8151
      %v8154 = vshrl.u32 %v7877, 16
      %v8156 = vrot.slane %v8154, 7
      %v8157 = vrot.slane %v8156, 4
      %v8159 = vshrl.u32 %v7878, 16
      %v8161 = vrot.slane %v8159, 7
      %v8162 = vshll.u32 %v7878, 16
      %v8164 = vor.u32 %v8161, %v8162
      %v8165 = vsel %vm6204, %v8157, %v8164
      %v8166 = vrot.slane %v8161, 4
      %v8168 = vshrl.u32 %v7879, 16
      %v8170 = vrot.slane %v8168, 7
      %v8171 = vshll.u32 %v7879, 16
      %v8173 = vor.u32 %v8170, %v8171
      %v8174 = vsel %vm6204, %v8166, %v8173
      %v8176 = vshrl.u32 %v7880, 16
      %v8178 = vrot.slane %v8176, 7
      %v8179 = vrot.slane %v8178, 4
      %v8181 = vshrl.u32 %v7881, 16
      %v8183 = vrot.slane %v8181, 7
      %v8184 = vshll.u32 %v7881, 16
      %v8186 = vor.u32 %v8183, %v8184
      %v8187 = vsel %vm6204, %v8179, %v8186
      %v8188 = vrot.slane %v8183, 4
      %v8190 = vshrl.u32 %v7882, 16
      %v8192 = vrot.slane %v8190, 7
      %v8193 = vshll.u32 %v7882, 16
      %v8195 = vor.u32 %v8192, %v8193
      %v8196 = vsel %vm6204, %v8188, %v8195
      %v8198 = vshrl.u32 %v7883, 16
      %v8200 = vrot.slane %v8198, 7
      %v8201 = vrot.slane %v8200, 4
      %v8203 = vshrl.u32 %v7884, 16
      %v8205 = vrot.slane %v8203, 7
      %v8206 = vshll.u32 %v7884, 16
      %v8208 = vor.u32 %v8205, %v8206
      %v8209 = vsel %vm6204, %v8201, %v8208
      %v8210 = vrot.slane %v8205, 4
      %v8212 = vshrl.u32 %v7885, 16
      %v8214 = vrot.slane %v8212, 7
      %v8215 = vshll.u32 %v7885, 16
      %v8217 = vor.u32 %v8214, %v8215
      %v8218 = vsel %vm6204, %v8210, %v8217
      %v8220 = vshrl.u32 %v7886, 16
      %v8222 = vrot.slane %v8220, 7
      %v8223 = vrot.slane %v8222, 4
      %v8225 = vshrl.u32 %v7887, 16
      %v8227 = vrot.slane %v8225, 7
      %v8228 = vshll.u32 %v7887, 16
      %v8230 = vor.u32 %v8227, %v8228
      %v8231 = vsel %vm6204, %v8223, %v8230
      %v8232 = vrot.slane %v8227, 4
      %v8234 = vshrl.u32 %v7888, 16
      %v8236 = vrot.slane %v8234, 7
      %v8237 = vshll.u32 %v7888, 16
      %v8239 = vor.u32 %v8236, %v8237
      %v8240 = vsel %vm6204, %v8232, %v8239
      %s8241 = scalar_lea.vmem %s4, 12
      %v8242 = vld [vmem:[%s8241] sm:$0xf]
      %v8243 = vunpack.c.l.b16 %v7901
      %v8244 = vunpack.c.l.b16 %v7910
      %v8245 = vunpack.c.l.b16 %v7923
      %v8246 = vunpack.c.l.b16 %v7932
      %v8247 = vunpack.c.l.b16 %v7945
      %v8248 = vunpack.c.l.b16 %v7954
      %v8249 = vunpack.c.l.b16 %v7967
      %v8250 = vunpack.c.l.b16 %v7976
      %v8251 = vunpack.c.l.b16 %v7989
      %v8252 = vunpack.c.l.b16 %v7998
      %v8253 = vunpack.c.l.b16 %v8011
      %v8254 = vunpack.c.l.b16 %v8020
      %v8255 = vunpack.c.l.b16 %v8033
      %v8256 = vunpack.c.l.b16 %v8042
      %v8257 = vunpack.c.l.b16 %v8055
      %v8258 = vunpack.c.l.b16 %v8064
      %v8259 = vunpack.c.l.b16 %v8077
      %v8260 = vunpack.c.l.b16 %v8086
      %v8261 = vunpack.c.l.b16 %v8099
      %v8262 = vunpack.c.l.b16 %v8108
      %v8263 = vunpack.c.l.b16 %v8121
      %v8264 = vunpack.c.l.b16 %v8130
      %v8265 = vunpack.c.l.b16 %v8143
      %v8266 = vunpack.c.l.b16 %v8152
      %v8267 = vunpack.c.l.b16 %v8165
      %v8268 = vunpack.c.l.b16 %v8174
      %v8269 = vunpack.c.l.b16 %v8187
      %v8270 = vunpack.c.l.b16 %v8196
      %v8271 = vunpack.c.l.b16 %v8209
      %v8272 = vunpack.c.l.b16 %v8218
      %v8273 = vunpack.c.l.b16 %v8231
      %v8274 = vunpack.c.l.b16 %v8240
      %v8275 = vpack.c.b16 %v8244, %v8243
      %v8276 = vpack.c.b16 %v8246, %v8245
      %v8277 = vpack.c.b16 %v8248, %v8247
      %v8278 = vpack.c.b16 %v8250, %v8249
      %v8279 = vpack.c.b16 %v8252, %v8251
      %v8280 = vpack.c.b16 %v8254, %v8253
      %v8281 = vpack.c.b16 %v8256, %v8255
      %v8282 = vpack.c.b16 %v8258, %v8257
      %v8283 = vpack.c.b16 %v8260, %v8259
      %v8284 = vpack.c.b16 %v8262, %v8261
      %v8285 = vpack.c.b16 %v8264, %v8263
      %v8286 = vpack.c.b16 %v8266, %v8265
      %v8287 = vpack.c.b16 %v8268, %v8267
      %v8288 = vpack.c.b16 %v8270, %v8269
      %v8289 = vpack.c.b16 %v8272, %v8271
      %v8290 = vpack.c.b16 %v8274, %v8273
      %v8292 = vsel %vm6640, %v8275, 0
      %v8295 = vsel %vm6640, %v8276, 0
      %v8298 = vsel %vm6640, %v8277, 0
      %v8301 = vsel %vm6640, %v8278, 0
      %v8304 = vsel %vm6640, %v8279, 0
      %v8307 = vsel %vm6640, %v8280, 0
      %v8310 = vsel %vm6640, %v8281, 0
      %v8313 = vsel %vm6640, %v8282, 0
      %v8316 = vsel %vm6640, %v8283, 0
      %v8319 = vsel %vm6640, %v8284, 0
      %v8322 = vsel %vm6640, %v8285, 0
      %v8325 = vsel %vm6640, %v8286, 0
      %v8328 = vsel %vm6640, %v8287, 0
      %v8331 = vsel %vm6640, %v8288, 0
      %v8334 = vsel %vm6640, %v8289, 0
      %v8337 = vsel %vm6640, %v8290, 0
      %v8340 = vsel %vm6689, %v8242, 0
      %8342 = vmatprep.subr.bf16.mxu0 0
      %8343 = vmatpush1.bf16.msra.mxu0 0
      %8344 = vmatprep.subr.bf16.mxu0 0
      %8345 = vmatpush1.bf16.msra.mxu0 0
      %8346 = vmatprep.subr.bf16.mxu0 0
      %8347 = vmatpush1.bf16.msra.mxu0 0
      %8348 = vmatprep.subr.bf16.mxu0 0
      %8349 = vmatpush1.bf16.msra.mxu0 0
      %8350 = vmatprep.subr.bf16.mxu0 0
      %8351 = vmatpush1.bf16.msra.mxu0 0
      %8352 = vmatprep.subr.bf16.mxu0 0
      %8353 = vmatpush1.bf16.msra.mxu0 0
      %8354 = vmatprep.subr.bf16.mxu0 0
      %8355 = vmatpush1.bf16.msra.mxu0 0
      %8356 = vmatprep.subr.bf16.mxu0 0
      %8357 = vmatpush1.bf16.msra.mxu0 %v8340
      %8358 = vmatprep.subr.bf16.mxu0 0
      %8359 = vmatpush2.bf16.msra.mxu0 0
      %8360 = vmatprep.subr.bf16.mxu0 0
      %8361 = vmatpush2.bf16.msra.mxu0 0
      %8362 = vmatprep.subr.bf16.mxu0 0
      %8363 = vmatpush2.bf16.msra.mxu0 0
      %8364 = vmatprep.subr.bf16.mxu0 0
      %8365 = vmatpush2.bf16.msra.mxu0 0
      %8366 = vmatprep.subr.bf16.mxu0 0
      %8367 = vmatpush2.bf16.msra.mxu0 0
      %8368 = vmatprep.subr.bf16.mxu0 0
      %8369 = vmatpush2.bf16.msra.mxu0 0
      %8370 = vmatprep.subr.bf16.mxu0 0
      %8371 = vmatpush2.bf16.msra.mxu0 0
      %8372 = vmatprep.subr.bf16.mxu0 0
      %8373 = vmatpush2.bf16.msra.mxu0 0
      %8374 = vmatprep.mubr.bf16.mxu0 0
      %8375 = vmatmul.mubr.bf16.gmra.mxu0 %v8292
      %v8376 = vpop.f32.mrf.mxu0
      %v8377 = vadd.f32 0.0, %v8376
      %v8378 = vpop.f32.mrf.mxu0
      %v8379 = vpop.f32.mrf.mxu0
      %v8380 = vadd.f32 0.0, %v8379
      %v8381 = vpop.f32.mrf.mxu0
      %8382 = vmatprep.mubr.bf16.mxu0 0
      %8383 = vmatmul.mubr.bf16.gmra.mxu0 %v8295
      %v8384 = vpop.f32.mrf.mxu0
      %v8385 = vadd.f32 0.0, %v8384
      %v8386 = vpop.f32.mrf.mxu0
      %v8387 = vpop.f32.mrf.mxu0
      %v8388 = vadd.f32 0.0, %v8387
      %v8389 = vpop.f32.mrf.mxu0
      %8390 = vmatprep.mubr.bf16.mxu0 0
      %8391 = vmatmul.mubr.bf16.gmra.mxu0 %v8298
      %v8392 = vpop.f32.mrf.mxu0
      %v8393 = vadd.f32 0.0, %v8392
      %v8394 = vpop.f32.mrf.mxu0
      %v8395 = vpop.f32.mrf.mxu0
      %v8396 = vadd.f32 0.0, %v8395
      %v8397 = vpop.f32.mrf.mxu0
      %8398 = vmatprep.mubr.bf16.mxu0 0
      %8399 = vmatmul.mubr.bf16.gmra.mxu0 %v8301
      %v8400 = vpop.f32.mrf.mxu0
      %v8401 = vadd.f32 0.0, %v8400
      %v8402 = vpop.f32.mrf.mxu0
      %v8403 = vpop.f32.mrf.mxu0
      %v8404 = vadd.f32 0.0, %v8403
      %v8405 = vpop.f32.mrf.mxu0
      %8406 = vmatprep.mubr.bf16.mxu0 0
      %8407 = vmatmul.mubr.bf16.gmra.mxu0 %v8304
      %v8408 = vpop.f32.mrf.mxu0
      %v8409 = vadd.f32 0.0, %v8408
      %v8410 = vpop.f32.mrf.mxu0
      %v8411 = vpop.f32.mrf.mxu0
      %v8412 = vadd.f32 0.0, %v8411
      %v8413 = vpop.f32.mrf.mxu0
      %8414 = vmatprep.mubr.bf16.mxu0 0
      %8415 = vmatmul.mubr.bf16.gmra.mxu0 %v8307
      %v8416 = vpop.f32.mrf.mxu0
      %v8417 = vadd.f32 0.0, %v8416
      %v8418 = vpop.f32.mrf.mxu0
      %v8419 = vpop.f32.mrf.mxu0
      %v8420 = vadd.f32 0.0, %v8419
      %v8421 = vpop.f32.mrf.mxu0
      %8422 = vmatprep.mubr.bf16.mxu0 0
      %8423 = vmatmul.mubr.bf16.gmra.mxu0 %v8310
      %v8424 = vpop.f32.mrf.mxu0
      %v8425 = vadd.f32 0.0, %v8424
      %v8426 = vpop.f32.mrf.mxu0
      %v8427 = vpop.f32.mrf.mxu0
      %v8428 = vadd.f32 0.0, %v8427
      %v8429 = vpop.f32.mrf.mxu0
      %8430 = vmatprep.mubr.bf16.mxu0 0
      %8431 = vmatmul.mubr.bf16.gmra.mxu0 %v8313
      %v8432 = vpop.f32.mrf.mxu0
      %v8433 = vadd.f32 0.0, %v8432
      %v8434 = vpop.f32.mrf.mxu0
      %v8435 = vpop.f32.mrf.mxu0
      %v8436 = vadd.f32 0.0, %v8435
      %v8437 = vpop.f32.mrf.mxu0
      %8438 = vmatprep.mubr.bf16.mxu0 0
      %8439 = vmatmul.mubr.bf16.gmra.mxu0 %v8316
      %v8440 = vpop.f32.mrf.mxu0
      %v8441 = vadd.f32 0.0, %v8440
      %v8442 = vpop.f32.mrf.mxu0
      %v8443 = vpop.f32.mrf.mxu0
      %v8444 = vadd.f32 0.0, %v8443
      %v8445 = vpop.f32.mrf.mxu0
      %8446 = vmatprep.mubr.bf16.mxu0 0
      %8447 = vmatmul.mubr.bf16.gmra.mxu0 %v8319
      %v8448 = vpop.f32.mrf.mxu0
      %v8449 = vadd.f32 0.0, %v8448
      %v8450 = vpop.f32.mrf.mxu0
      %v8451 = vpop.f32.mrf.mxu0
      %v8452 = vadd.f32 0.0, %v8451
      %v8453 = vpop.f32.mrf.mxu0
      %8454 = vmatprep.mubr.bf16.mxu0 0
      %8455 = vmatmul.mubr.bf16.gmra.mxu0 %v8322
      %v8456 = vpop.f32.mrf.mxu0
      %v8457 = vadd.f32 0.0, %v8456
      %v8458 = vpop.f32.mrf.mxu0
      %v8459 = vpop.f32.mrf.mxu0
      %v8460 = vadd.f32 0.0, %v8459
      %v8461 = vpop.f32.mrf.mxu0
      %8462 = vmatprep.mubr.bf16.mxu0 0
      %8463 = vmatmul.mubr.bf16.gmra.mxu0 %v8325
      %v8464 = vpop.f32.mrf.mxu0
      %v8465 = vadd.f32 0.0, %v8464
      %v8466 = vpop.f32.mrf.mxu0
      %v8467 = vpop.f32.mrf.mxu0
      %v8468 = vadd.f32 0.0, %v8467
      %v8469 = vpop.f32.mrf.mxu0
      %8470 = vmatprep.mubr.bf16.mxu0 0
      %8471 = vmatmul.mubr.bf16.gmra.mxu0 %v8328
      %v8472 = vpop.f32.mrf.mxu0
      %v8473 = vadd.f32 0.0, %v8472
      %v8474 = vpop.f32.mrf.mxu0
      %v8475 = vpop.f32.mrf.mxu0
      %v8476 = vadd.f32 0.0, %v8475
      %v8477 = vpop.f32.mrf.mxu0
      %8478 = vmatprep.mubr.bf16.mxu0 0
      %8479 = vmatmul.mubr.bf16.gmra.mxu0 %v8331
      %v8480 = vpop.f32.mrf.mxu0
      %v8481 = vadd.f32 0.0, %v8480
      %v8482 = vpop.f32.mrf.mxu0
      %v8483 = vpop.f32.mrf.mxu0
      %v8484 = vadd.f32 0.0, %v8483
      %v8485 = vpop.f32.mrf.mxu0
      %8486 = vmatprep.mubr.bf16.mxu0 0
      %8487 = vmatmul.mubr.bf16.gmra.mxu0 %v8334
      %v8488 = vpop.f32.mrf.mxu0
      %v8489 = vadd.f32 0.0, %v8488
      %v8490 = vpop.f32.mrf.mxu0
      %v8491 = vpop.f32.mrf.mxu0
      %v8492 = vadd.f32 0.0, %v8491
      %v8493 = vpop.f32.mrf.mxu0
      %8494 = vmatprep.mubr.bf16.mxu0 0
      %8495 = vmatmul.mubr.bf16.gmra.mxu0 %v8337
      %v8496 = vpop.f32.mrf.mxu0
      %v8497 = vadd.f32 0.0, %v8496
      %v8498 = vpop.f32.mrf.mxu0
      %v8499 = vpop.f32.mrf.mxu0
      %v8500 = vadd.f32 0.0, %v8499
      %v8501 = vpop.f32.mrf.mxu0
      %8502 = vdwg.mxu0
      %v8503 = vadd.f32 %v7808, %v8377
      %v8504 = vadd.f32 %v7809, %v8380
      %v8505 = vadd.f32 %v7810, %v8385
      %v8506 = vadd.f32 %v7811, %v8388
      %v8507 = vadd.f32 %v7812, %v8393
      %v8508 = vadd.f32 %v7813, %v8396
      %v8509 = vadd.f32 %v7814, %v8401
      %v8510 = vadd.f32 %v7815, %v8404
      %v8511 = vadd.f32 %v7816, %v8409
      %v8512 = vadd.f32 %v7817, %v8412
      %v8513 = vadd.f32 %v7818, %v8417
      %v8514 = vadd.f32 %v7819, %v8420
      %v8515 = vadd.f32 %v7820, %v8425
      %v8516 = vadd.f32 %v7821, %v8428
      %v8517 = vadd.f32 %v7822, %v8433
      %v8518 = vadd.f32 %v7823, %v8436
      %v8519 = vadd.f32 %v7824, %v8441
      %v8520 = vadd.f32 %v7825, %v8444
      %v8521 = vadd.f32 %v7826, %v8449
      %v8522 = vadd.f32 %v7827, %v8452
      %v8523 = vadd.f32 %v7828, %v8457
      %v8524 = vadd.f32 %v7829, %v8460
      %v8525 = vadd.f32 %v7830, %v8465
      %v8526 = vadd.f32 %v7831, %v8468
      %v8527 = vadd.f32 %v7832, %v8473
      %v8528 = vadd.f32 %v7833, %v8476
      %v8529 = vadd.f32 %v7834, %v8481
      %v8530 = vadd.f32 %v7835, %v8484
      %v8531 = vadd.f32 %v7836, %v8489
      %v8532 = vadd.f32 %v7837, %v8492
      %v8533 = vadd.f32 %v7838, %v8497
      %v8534 = vadd.f32 %v7839, %v8500
      %s8535 = scalar_lea.vmem %s4, 16
      %v8536 = vld [vmem:[%s8535] sm:$0xf]
      %v8569 = vunpack.c.l.b16 %v7842
      %v8570 = vunpack.c.l.b16 %v7843
      %v8571 = vunpack.c.l.b16 %v7845
      %v8572 = vunpack.c.l.b16 %v7846
      %v8573 = vunpack.c.l.b16 %v7848
      %v8574 = vunpack.c.l.b16 %v7849
      %v8575 = vunpack.c.l.b16 %v7851
      %v8576 = vunpack.c.l.b16 %v7852
      %v8577 = vunpack.c.l.b16 %v7854
      %v8578 = vunpack.c.l.b16 %v7855
      %v8579 = vunpack.c.l.b16 %v7857
      %v8580 = vunpack.c.l.b16 %v7858
      %v8581 = vunpack.c.l.b16 %v7860
      %v8582 = vunpack.c.l.b16 %v7861
      %v8583 = vunpack.c.l.b16 %v7863
      %v8584 = vunpack.c.l.b16 %v7864
      %v8585 = vunpack.c.l.b16 %v7866
      %v8586 = vunpack.c.l.b16 %v7867
      %v8587 = vunpack.c.l.b16 %v7869
      %v8588 = vunpack.c.l.b16 %v7870
      %v8589 = vunpack.c.l.b16 %v7872
      %v8590 = vunpack.c.l.b16 %v7873
      %v8591 = vunpack.c.l.b16 %v7875
      %v8592 = vunpack.c.l.b16 %v7876
      %v8593 = vunpack.c.l.b16 %v7878
      %v8594 = vunpack.c.l.b16 %v7879
      %v8595 = vunpack.c.l.b16 %v7881
      %v8596 = vunpack.c.l.b16 %v7882
      %v8597 = vunpack.c.l.b16 %v7884
      %v8598 = vunpack.c.l.b16 %v7885
      %v8599 = vunpack.c.l.b16 %v7887
      %v8600 = vunpack.c.l.b16 %v7888
      %v8601 = vpack.c.b16 %v8570, %v8569
      %v8602 = vpack.c.b16 %v8572, %v8571
      %v8603 = vpack.c.b16 %v8574, %v8573
      %v8604 = vpack.c.b16 %v8576, %v8575
      %v8605 = vpack.c.b16 %v8578, %v8577
      %v8606 = vpack.c.b16 %v8580, %v8579
      %v8607 = vpack.c.b16 %v8582, %v8581
      %v8608 = vpack.c.b16 %v8584, %v8583
      %v8609 = vpack.c.b16 %v8586, %v8585
      %v8610 = vpack.c.b16 %v8588, %v8587
      %v8611 = vpack.c.b16 %v8590, %v8589
      %v8612 = vpack.c.b16 %v8592, %v8591
      %v8613 = vpack.c.b16 %v8594, %v8593
      %v8614 = vpack.c.b16 %v8596, %v8595
      %v8615 = vpack.c.b16 %v8598, %v8597
      %v8616 = vpack.c.b16 %v8600, %v8599
      %v8618 = vsel %vm6640, %v8601, 0
      %v8621 = vsel %vm6640, %v8602, 0
      %v8624 = vsel %vm6640, %v8603, 0
      %v8627 = vsel %vm6640, %v8604, 0
      %v8630 = vsel %vm6640, %v8605, 0
      %v8633 = vsel %vm6640, %v8606, 0
      %v8636 = vsel %vm6640, %v8607, 0
      %v8639 = vsel %vm6640, %v8608, 0
      %v8642 = vsel %vm6640, %v8609, 0
      %v8645 = vsel %vm6640, %v8610, 0
      %v8648 = vsel %vm6640, %v8611, 0
      %v8651 = vsel %vm6640, %v8612, 0
      %v8654 = vsel %vm6640, %v8613, 0
      %v8657 = vsel %vm6640, %v8614, 0
      %v8660 = vsel %vm6640, %v8615, 0
      %v8663 = vsel %vm6640, %v8616, 0
      %v8666 = vsel %vm6689, %v8536, 0
      %8668 = vmatprep.subr.bf16.mxu0 0
      %8669 = vmatpush1.bf16.msra.mxu0 0
      %8670 = vmatprep.subr.bf16.mxu0 0
      %8671 = vmatpush1.bf16.msra.mxu0 0
      %8672 = vmatprep.subr.bf16.mxu0 0
      %8673 = vmatpush1.bf16.msra.mxu0 0
      %8674 = vmatprep.subr.bf16.mxu0 0
      %8675 = vmatpush1.bf16.msra.mxu0 0
      %8676 = vmatprep.subr.bf16.mxu0 0
      %8677 = vmatpush1.bf16.msra.mxu0 0
      %8678 = vmatprep.subr.bf16.mxu0 0
      %8679 = vmatpush1.bf16.msra.mxu0 0
      %8680 = vmatprep.subr.bf16.mxu0 0
      %8681 = vmatpush1.bf16.msra.mxu0 0
      %8682 = vmatprep.subr.bf16.mxu0 0
      %8683 = vmatpush1.bf16.msra.mxu0 %v8666
      %8684 = vmatprep.subr.bf16.mxu0 0
      %8685 = vmatpush2.bf16.msra.mxu0 0
      %8686 = vmatprep.subr.bf16.mxu0 0
      %8687 = vmatpush2.bf16.msra.mxu0 0
      %8688 = vmatprep.subr.bf16.mxu0 0
      %8689 = vmatpush2.bf16.msra.mxu0 0
      %8690 = vmatprep.subr.bf16.mxu0 0
      %8691 = vmatpush2.bf16.msra.mxu0 0
      %8692 = vmatprep.subr.bf16.mxu0 0
      %8693 = vmatpush2.bf16.msra.mxu0 0
      %8694 = vmatprep.subr.bf16.mxu0 0
      %8695 = vmatpush2.bf16.msra.mxu0 0
      %8696 = vmatprep.subr.bf16.mxu0 0
      %8697 = vmatpush2.bf16.msra.mxu0 0
      %8698 = vmatprep.subr.bf16.mxu0 0
      %8699 = vmatpush2.bf16.msra.mxu0 0
      %8700 = vmatprep.mubr.bf16.mxu0 0
      %8701 = vmatmul.mubr.bf16.gmra.mxu0 %v8618
      %v8702 = vpop.f32.mrf.mxu0
      %v8703 = vadd.f32 0.0, %v8702
      %v8704 = vpop.f32.mrf.mxu0
      %v8705 = vpop.f32.mrf.mxu0
      %v8706 = vadd.f32 0.0, %v8705
      %v8707 = vpop.f32.mrf.mxu0
      %8708 = vmatprep.mubr.bf16.mxu0 0
      %8709 = vmatmul.mubr.bf16.gmra.mxu0 %v8621
      %v8710 = vpop.f32.mrf.mxu0
      %v8711 = vadd.f32 0.0, %v8710
      %v8712 = vpop.f32.mrf.mxu0
      %v8713 = vpop.f32.mrf.mxu0
      %v8714 = vadd.f32 0.0, %v8713
      %v8715 = vpop.f32.mrf.mxu0
      %8716 = vmatprep.mubr.bf16.mxu0 0
      %8717 = vmatmul.mubr.bf16.gmra.mxu0 %v8624
      %v8718 = vpop.f32.mrf.mxu0
      %v8719 = vadd.f32 0.0, %v8718
      %v8720 = vpop.f32.mrf.mxu0
      %v8721 = vpop.f32.mrf.mxu0
      %v8722 = vadd.f32 0.0, %v8721
      %v8723 = vpop.f32.mrf.mxu0
      %8724 = vmatprep.mubr.bf16.mxu0 0
      %8725 = vmatmul.mubr.bf16.gmra.mxu0 %v8627
      %v8726 = vpop.f32.mrf.mxu0
      %v8727 = vadd.f32 0.0, %v8726
      %v8728 = vpop.f32.mrf.mxu0
      %v8729 = vpop.f32.mrf.mxu0
      %v8730 = vadd.f32 0.0, %v8729
      %v8731 = vpop.f32.mrf.mxu0
      %8732 = vmatprep.mubr.bf16.mxu0 0
      %8733 = vmatmul.mubr.bf16.gmra.mxu0 %v8630
      %v8734 = vpop.f32.mrf.mxu0
      %v8735 = vadd.f32 0.0, %v8734
      %v8736 = vpop.f32.mrf.mxu0
      %v8737 = vpop.f32.mrf.mxu0
      %v8738 = vadd.f32 0.0, %v8737
      %v8739 = vpop.f32.mrf.mxu0
      %8740 = vmatprep.mubr.bf16.mxu0 0
      %8741 = vmatmul.mubr.bf16.gmra.mxu0 %v8633
      %v8742 = vpop.f32.mrf.mxu0
      %v8743 = vadd.f32 0.0, %v8742
      %v8744 = vpop.f32.mrf.mxu0
      %v8745 = vpop.f32.mrf.mxu0
      %v8746 = vadd.f32 0.0, %v8745
      %v8747 = vpop.f32.mrf.mxu0
      %8748 = vmatprep.mubr.bf16.mxu0 0
      %8749 = vmatmul.mubr.bf16.gmra.mxu0 %v8636
      %v8750 = vpop.f32.mrf.mxu0
      %v8751 = vadd.f32 0.0, %v8750
      %v8752 = vpop.f32.mrf.mxu0
      %v8753 = vpop.f32.mrf.mxu0
      %v8754 = vadd.f32 0.0, %v8753
      %v8755 = vpop.f32.mrf.mxu0
      %8756 = vmatprep.mubr.bf16.mxu0 0
      %8757 = vmatmul.mubr.bf16.gmra.mxu0 %v8639
      %v8758 = vpop.f32.mrf.mxu0
      %v8759 = vadd.f32 0.0, %v8758
      %v8760 = vpop.f32.mrf.mxu0
      %v8761 = vpop.f32.mrf.mxu0
      %v8762 = vadd.f32 0.0, %v8761
      %v8763 = vpop.f32.mrf.mxu0
      %8764 = vmatprep.mubr.bf16.mxu0 0
      %8765 = vmatmul.mubr.bf16.gmra.mxu0 %v8642
      %v8766 = vpop.f32.mrf.mxu0
      %v8767 = vadd.f32 0.0, %v8766
      %v8768 = vpop.f32.mrf.mxu0
      %v8769 = vpop.f32.mrf.mxu0
      %v8770 = vadd.f32 0.0, %v8769
      %v8771 = vpop.f32.mrf.mxu0
      %8772 = vmatprep.mubr.bf16.mxu0 0
      %8773 = vmatmul.mubr.bf16.gmra.mxu0 %v8645
      %v8774 = vpop.f32.mrf.mxu0
      %v8775 = vadd.f32 0.0, %v8774
      %v8776 = vpop.f32.mrf.mxu0
      %v8777 = vpop.f32.mrf.mxu0
      %v8778 = vadd.f32 0.0, %v8777
      %v8779 = vpop.f32.mrf.mxu0
      %8780 = vmatprep.mubr.bf16.mxu0 0
      %8781 = vmatmul.mubr.bf16.gmra.mxu0 %v8648
      %v8782 = vpop.f32.mrf.mxu0
      %v8783 = vadd.f32 0.0, %v8782
      %v8784 = vpop.f32.mrf.mxu0
      %v8785 = vpop.f32.mrf.mxu0
      %v8786 = vadd.f32 0.0, %v8785
      %v8787 = vpop.f32.mrf.mxu0
      %8788 = vmatprep.mubr.bf16.mxu0 0
      %8789 = vmatmul.mubr.bf16.gmra.mxu0 %v8651
      %v8790 = vpop.f32.mrf.mxu0
      %v8791 = vadd.f32 0.0, %v8790
      %v8792 = vpop.f32.mrf.mxu0
      %v8793 = vpop.f32.mrf.mxu0
      %v8794 = vadd.f32 0.0, %v8793
      %v8795 = vpop.f32.mrf.mxu0
      %8796 = vmatprep.mubr.bf16.mxu0 0
      %8797 = vmatmul.mubr.bf16.gmra.mxu0 %v8654
      %v8798 = vpop.f32.mrf.mxu0
      %v8799 = vadd.f32 0.0, %v8798
      %v8800 = vpop.f32.mrf.mxu0
      %v8801 = vpop.f32.mrf.mxu0
      %v8802 = vadd.f32 0.0, %v8801
      %v8803 = vpop.f32.mrf.mxu0
      %8804 = vmatprep.mubr.bf16.mxu0 0
      %8805 = vmatmul.mubr.bf16.gmra.mxu0 %v8657
      %v8806 = vpop.f32.mrf.mxu0
      %v8807 = vadd.f32 0.0, %v8806
      %v8808 = vpop.f32.mrf.mxu0
      %v8809 = vpop.f32.mrf.mxu0
      %v8810 = vadd.f32 0.0, %v8809
      %v8811 = vpop.f32.mrf.mxu0
      %8812 = vmatprep.mubr.bf16.mxu0 0
      %8813 = vmatmul.mubr.bf16.gmra.mxu0 %v8660
      %v8814 = vpop.f32.mrf.mxu0
      %v8815 = vadd.f32 0.0, %v8814
      %v8816 = vpop.f32.mrf.mxu0
      %v8817 = vpop.f32.mrf.mxu0
      %v8818 = vadd.f32 0.0, %v8817
      %v8819 = vpop.f32.mrf.mxu0
      %8820 = vmatprep.mubr.bf16.mxu0 0
      %8821 = vmatmul.mubr.bf16.gmra.mxu0 %v8663
      %v8822 = vpop.f32.mrf.mxu0
      %v8823 = vadd.f32 0.0, %v8822
      %v8824 = vpop.f32.mrf.mxu0
      %v8825 = vpop.f32.mrf.mxu0
      %v8826 = vadd.f32 0.0, %v8825
      %v8827 = vpop.f32.mrf.mxu0
      %8828 = vdwg.mxu0
      %v8829 = vadd.f32 %v8503, %v8703
      %v8830 = vadd.f32 %v8504, %v8706
      %v8831 = vadd.f32 %v8505, %v8711
      %v8832 = vadd.f32 %v8506, %v8714
      %v8833 = vadd.f32 %v8507, %v8719
      %v8834 = vadd.f32 %v8508, %v8722
      %v8835 = vadd.f32 %v8509, %v8727
      %v8836 = vadd.f32 %v8510, %v8730
      %v8837 = vadd.f32 %v8511, %v8735
      %v8838 = vadd.f32 %v8512, %v8738
      %v8839 = vadd.f32 %v8513, %v8743
      %v8840 = vadd.f32 %v8514, %v8746
      %v8841 = vadd.f32 %v8515, %v8751
      %v8842 = vadd.f32 %v8516, %v8754
      %v8843 = vadd.f32 %v8517, %v8759
      %v8844 = vadd.f32 %v8518, %v8762
      %v8845 = vadd.f32 %v8519, %v8767
      %v8846 = vadd.f32 %v8520, %v8770
      %v8847 = vadd.f32 %v8521, %v8775
      %v8848 = vadd.f32 %v8522, %v8778
      %v8849 = vadd.f32 %v8523, %v8783
      %v8850 = vadd.f32 %v8524, %v8786
      %v8851 = vadd.f32 %v8525, %v8791
      %v8852 = vadd.f32 %v8526, %v8794
      %v8853 = vadd.f32 %v8527, %v8799
      %v8854 = vadd.f32 %v8528, %v8802
      %v8855 = vadd.f32 %v8529, %v8807
      %v8856 = vadd.f32 %v8530, %v8810
      %v8857 = vadd.f32 %v8531, %v8815
      %v8858 = vadd.f32 %v8532, %v8818
      %v8859 = vadd.f32 %v8533, %v8823
      %v8860 = vadd.f32 %v8534, %v8826
      %v8861 = vld [vmem:[%s7840 + $0x4] sm:$0xf]
      %v8862 = vld [vmem:[%s7840 + $0x8] sm:$0xf]
      %v8863 = vld [vmem:[%s7840 + $0xc] sm:$0x1]
      %v8864 = vld [vmem:[%s7840 + $0x14] sm:$0xf]
      %v8865 = vld [vmem:[%s7840 + $0x18] sm:$0xf]
      %v8866 = vld [vmem:[%s7840 + $0x1c] sm:$0x1]
      %v8867 = vld [vmem:[%s7840 + $0x24] sm:$0xf]
      %v8868 = vld [vmem:[%s7840 + $0x28] sm:$0xf]
      %v8869 = vld [vmem:[%s7840 + $0x2c] sm:$0x1]
      %v8870 = vld [vmem:[%s7840 + $0x34] sm:$0xf]
      %v8871 = vld [vmem:[%s7840 + $0x38] sm:$0xf]
      %v8872 = vld [vmem:[%s7840 + $0x3c] sm:$0x1]
      %v8873 = vld [vmem:[%s7840 + $0x44] sm:$0xf]
      %v8874 = vld [vmem:[%s7840 + $0x48] sm:$0xf]
      %v8875 = vld [vmem:[%s7840 + $0x4c] sm:$0x1]
      %v8876 = vld [vmem:[%s7840 + $0x54] sm:$0xf]
      %v8877 = vld [vmem:[%s7840 + $0x58] sm:$0xf]
      %v8878 = vld [vmem:[%s7840 + $0x5c] sm:$0x1]
      %v8879 = vld [vmem:[%s7840 + $0x64] sm:$0xf]
      %v8880 = vld [vmem:[%s7840 + $0x68] sm:$0xf]
      %v8881 = vld [vmem:[%s7840 + $0x6c] sm:$0x1]
      %v8882 = vld [vmem:[%s7840 + $0x74] sm:$0xf]
      %v8883 = vld [vmem:[%s7840 + $0x78] sm:$0xf]
      %v8884 = vld [vmem:[%s7840 + $0x7c] sm:$0x1]
      %v8885 = vld [vmem:[%s7840 + $0x84] sm:$0xf]
      %v8886 = vld [vmem:[%s7840 + $0x88] sm:$0xf]
      %v8887 = vld [vmem:[%s7840 + $0x8c] sm:$0x1]
      %v8888 = vld [vmem:[%s7840 + $0x94] sm:$0xf]
      %v8889 = vld [vmem:[%s7840 + $0x98] sm:$0xf]
      %v8890 = vld [vmem:[%s7840 + $0x9c] sm:$0x1]
      %v8891 = vld [vmem:[%s7840 + $0xa4] sm:$0xf]
      %v8892 = vld [vmem:[%s7840 + $0xa8] sm:$0xf]
      %v8893 = vld [vmem:[%s7840 + $0xac] sm:$0x1]
      %v8894 = vld [vmem:[%s7840 + $0xb4] sm:$0xf]
      %v8895 = vld [vmem:[%s7840 + $0xb8] sm:$0xf]
      %v8896 = vld [vmem:[%s7840 + $0xbc] sm:$0x1]
      %v8897 = vld [vmem:[%s7840 + $0xc4] sm:$0xf]
      %v8898 = vld [vmem:[%s7840 + $0xc8] sm:$0xf]
      %v8899 = vld [vmem:[%s7840 + $0xcc] sm:$0x1]
      %v8900 = vld [vmem:[%s7840 + $0xd4] sm:$0xf]
      %v8901 = vld [vmem:[%s7840 + $0xd8] sm:$0xf]
      %v8902 = vld [vmem:[%s7840 + $0xdc] sm:$0x1]
      %v8903 = vld [vmem:[%s7840 + $0xe4] sm:$0xf]
      %v8904 = vld [vmem:[%s7840 + $0xe8] sm:$0xf]
      %v8905 = vld [vmem:[%s7840 + $0xec] sm:$0x1]
      %v8906 = vld [vmem:[%s7840 + $0xf4] sm:$0xf]
      %v8907 = vld [vmem:[%s7840 + $0xf8] sm:$0xf]
      %v8908 = vld [vmem:[%s7840 + $0xfc] sm:$0x1]
      %v8910 = vshrl.u32 %v8861, 16
      %v8912 = vrot.slane %v8910, 4
      %v8913 = vshll.u32 %v8861, 16
      %v8915 = vrot.slane %v8913, 5
      %v8916 = vor.u32 %v8912, %v8915
      %v8917 = vrot.slane %v8916, 4
      %v8919 = vshll.u32 %v8862, 16
      %v8921 = vrot.slane %v8919, 5
      %v8922 = vsel %vm375, %v8917, %v8921
      %v8923 = vshrl.u32 %v8862, 16
      %v8925 = vrot.slane %v8923, 4
      %v8926 = vor.u32 %v8925, %v8921
      %v8927 = vrot.slane %v8926, 4
      %v8929 = vshll.u32 %v8863, 16
      %v8931 = vrot.slane %v8929, 5
      %v8932 = vsel %vm375, %v8927, %v8931
      %v8934 = vshrl.u32 %v8864, 16
      %v8936 = vrot.slane %v8934, 4
      %v8937 = vshll.u32 %v8864, 16
      %v8939 = vrot.slane %v8937, 5
      %v8940 = vor.u32 %v8936, %v8939
      %v8941 = vrot.slane %v8940, 4
      %v8943 = vshll.u32 %v8865, 16
      %v8945 = vrot.slane %v8943, 5
      %v8946 = vsel %vm375, %v8941, %v8945
      %v8947 = vshrl.u32 %v8865, 16
      %v8949 = vrot.slane %v8947, 4
      %v8950 = vor.u32 %v8949, %v8945
      %v8951 = vrot.slane %v8950, 4
      %v8953 = vshll.u32 %v8866, 16
      %v8955 = vrot.slane %v8953, 5
      %v8956 = vsel %vm375, %v8951, %v8955
      %v8958 = vshrl.u32 %v8867, 16
      %v8960 = vrot.slane %v8958, 4
      %v8961 = vshll.u32 %v8867, 16
      %v8963 = vrot.slane %v8961, 5
      %v8964 = vor.u32 %v8960, %v8963
      %v8965 = vrot.slane %v8964, 4
      %v8967 = vshll.u32 %v8868, 16
      %v8969 = vrot.slane %v8967, 5
      %v8970 = vsel %vm375, %v8965, %v8969
      %v8971 = vshrl.u32 %v8868, 16
      %v8973 = vrot.slane %v8971, 4
      %v8974 = vor.u32 %v8973, %v8969
      %v8975 = vrot.slane %v8974, 4
      %v8977 = vshll.u32 %v8869, 16
      %v8979 = vrot.slane %v8977, 5
      %v8980 = vsel %vm375, %v8975, %v8979
      %v8982 = vshrl.u32 %v8870, 16
      %v8984 = vrot.slane %v8982, 4
      %v8985 = vshll.u32 %v8870, 16
      %v8987 = vrot.slane %v8985, 5
      %v8988 = vor.u32 %v8984, %v8987
      %v8989 = vrot.slane %v8988, 4
      %v8991 = vshll.u32 %v8871, 16
      %v8993 = vrot.slane %v8991, 5
      %v8994 = vsel %vm375, %v8989, %v8993
      %v8995 = vshrl.u32 %v8871, 16
      %v8997 = vrot.slane %v8995, 4
      %v8998 = vor.u32 %v8997, %v8993
      %v8999 = vrot.slane %v8998, 4
      %v9001 = vshll.u32 %v8872, 16
      %v9003 = vrot.slane %v9001, 5
      %v9004 = vsel %vm375, %v8999, %v9003
      %v9006 = vshrl.u32 %v8873, 16
      %v9008 = vrot.slane %v9006, 4
      %v9009 = vshll.u32 %v8873, 16
      %v9011 = vrot.slane %v9009, 5
      %v9012 = vor.u32 %v9008, %v9011
      %v9013 = vrot.slane %v9012, 4
      %v9015 = vshll.u32 %v8874, 16
      %v9017 = vrot.slane %v9015, 5
      %v9018 = vsel %vm375, %v9013, %v9017
      %v9019 = vshrl.u32 %v8874, 16
      %v9021 = vrot.slane %v9019, 4
      %v9022 = vor.u32 %v9021, %v9017
      %v9023 = vrot.slane %v9022, 4
      %v9025 = vshll.u32 %v8875, 16
      %v9027 = vrot.slane %v9025, 5
      %v9028 = vsel %vm375, %v9023, %v9027
      %v9030 = vshrl.u32 %v8876, 16
      %v9032 = vrot.slane %v9030, 4
      %v9033 = vshll.u32 %v8876, 16
      %v9035 = vrot.slane %v9033, 5
      %v9036 = vor.u32 %v9032, %v9035
      %v9037 = vrot.slane %v9036, 4
      %v9039 = vshll.u32 %v8877, 16
      %v9041 = vrot.slane %v9039, 5
      %v9042 = vsel %vm375, %v9037, %v9041
      %v9043 = vshrl.u32 %v8877, 16
      %v9045 = vrot.slane %v9043, 4
      %v9046 = vor.u32 %v9045, %v9041
      %v9047 = vrot.slane %v9046, 4
      %v9049 = vshll.u32 %v8878, 16
      %v9051 = vrot.slane %v9049, 5
      %v9052 = vsel %vm375, %v9047, %v9051
      %v9054 = vshrl.u32 %v8879, 16
      %v9056 = vrot.slane %v9054, 4
      %v9057 = vshll.u32 %v8879, 16
      %v9059 = vrot.slane %v9057, 5
      %v9060 = vor.u32 %v9056, %v9059
      %v9061 = vrot.slane %v9060, 4
      %v9063 = vshll.u32 %v8880, 16
      %v9065 = vrot.slane %v9063, 5
      %v9066 = vsel %vm375, %v9061, %v9065
      %v9067 = vshrl.u32 %v8880, 16
      %v9069 = vrot.slane %v9067, 4
      %v9070 = vor.u32 %v9069, %v9065
      %v9071 = vrot.slane %v9070, 4
      %v9073 = vshll.u32 %v8881, 16
      %v9075 = vrot.slane %v9073, 5
      %v9076 = vsel %vm375, %v9071, %v9075
      %v9078 = vshrl.u32 %v8882, 16
      %v9080 = vrot.slane %v9078, 4
      %v9081 = vshll.u32 %v8882, 16
      %v9083 = vrot.slane %v9081, 5
      %v9084 = vor.u32 %v9080, %v9083
      %v9085 = vrot.slane %v9084, 4
      %v9087 = vshll.u32 %v8883, 16
      %v9089 = vrot.slane %v9087, 5
      %v9090 = vsel %vm375, %v9085, %v9089
      %v9091 = vshrl.u32 %v8883, 16
      %v9093 = vrot.slane %v9091, 4
      %v9094 = vor.u32 %v9093, %v9089
      %v9095 = vrot.slane %v9094, 4
      %v9097 = vshll.u32 %v8884, 16
      %v9099 = vrot.slane %v9097, 5
      %v9100 = vsel %vm375, %v9095, %v9099
      %v9102 = vshrl.u32 %v8885, 16
      %v9104 = vrot.slane %v9102, 4
      %v9105 = vshll.u32 %v8885, 16
      %v9107 = vrot.slane %v9105, 5
      %v9108 = vor.u32 %v9104, %v9107
      %v9109 = vrot.slane %v9108, 4
      %v9111 = vshll.u32 %v8886, 16
      %v9113 = vrot.slane %v9111, 5
      %v9114 = vsel %vm375, %v9109, %v9113
      %v9115 = vshrl.u32 %v8886, 16
      %v9117 = vrot.slane %v9115, 4
      %v9118 = vor.u32 %v9117, %v9113
      %v9119 = vrot.slane %v9118, 4
      %v9121 = vshll.u32 %v8887, 16
      %v9123 = vrot.slane %v9121, 5
      %v9124 = vsel %vm375, %v9119, %v9123
      %v9126 = vshrl.u32 %v8888, 16
      %v9128 = vrot.slane %v9126, 4
      %v9129 = vshll.u32 %v8888, 16
      %v9131 = vrot.slane %v9129, 5
      %v9132 = vor.u32 %v9128, %v9131
      %v9133 = vrot.slane %v9132, 4
      %v9135 = vshll.u32 %v8889, 16
      %v9137 = vrot.slane %v9135, 5
      %v9138 = vsel %vm375, %v9133, %v9137
      %v9139 = vshrl.u32 %v8889, 16
      %v9141 = vrot.slane %v9139, 4
      %v9142 = vor.u32 %v9141, %v9137
      %v9143 = vrot.slane %v9142, 4
      %v9145 = vshll.u32 %v8890, 16
      %v9147 = vrot.slane %v9145, 5
      %v9148 = vsel %vm375, %v9143, %v9147
      %v9150 = vshrl.u32 %v8891, 16
      %v9152 = vrot.slane %v9150, 4
      %v9153 = vshll.u32 %v8891, 16
      %v9155 = vrot.slane %v9153, 5
      %v9156 = vor.u32 %v9152, %v9155
      %v9157 = vrot.slane %v9156, 4
      %v9159 = vshll.u32 %v8892, 16
      %v9161 = vrot.slane %v9159, 5
      %v9162 = vsel %vm375, %v9157, %v9161
      %v9163 = vshrl.u32 %v8892, 16
      %v9165 = vrot.slane %v9163, 4
      %v9166 = vor.u32 %v9165, %v9161
      %v9167 = vrot.slane %v9166, 4
      %v9169 = vshll.u32 %v8893, 16
      %v9171 = vrot.slane %v9169, 5
      %v9172 = vsel %vm375, %v9167, %v9171
      %v9174 = vshrl.u32 %v8894, 16
      %v9176 = vrot.slane %v9174, 4
      %v9177 = vshll.u32 %v8894, 16
      %v9179 = vrot.slane %v9177, 5
      %v9180 = vor.u32 %v9176, %v9179
      %v9181 = vrot.slane %v9180, 4
      %v9183 = vshll.u32 %v8895, 16
      %v9185 = vrot.slane %v9183, 5
      %v9186 = vsel %vm375, %v9181, %v9185
      %v9187 = vshrl.u32 %v8895, 16
      %v9189 = vrot.slane %v9187, 4
      %v9190 = vor.u32 %v9189, %v9185
      %v9191 = vrot.slane %v9190, 4
      %v9193 = vshll.u32 %v8896, 16
      %v9195 = vrot.slane %v9193, 5
      %v9196 = vsel %vm375, %v9191, %v9195
      %v9198 = vshrl.u32 %v8897, 16
      %v9200 = vrot.slane %v9198, 4
      %v9201 = vshll.u32 %v8897, 16
      %v9203 = vrot.slane %v9201, 5
      %v9204 = vor.u32 %v9200, %v9203
      %v9205 = vrot.slane %v9204, 4
      %v9207 = vshll.u32 %v8898, 16
      %v9209 = vrot.slane %v9207, 5
      %v9210 = vsel %vm375, %v9205, %v9209
      %v9211 = vshrl.u32 %v8898, 16
      %v9213 = vrot.slane %v9211, 4
      %v9214 = vor.u32 %v9213, %v9209
      %v9215 = vrot.slane %v9214, 4
      %v9217 = vshll.u32 %v8899, 16
      %v9219 = vrot.slane %v9217, 5
      %v9220 = vsel %vm375, %v9215, %v9219
      %v9222 = vshrl.u32 %v8900, 16
      %v9224 = vrot.slane %v9222, 4
      %v9225 = vshll.u32 %v8900, 16
      %v9227 = vrot.slane %v9225, 5
      %v9228 = vor.u32 %v9224, %v9227
      %v9229 = vrot.slane %v9228, 4
      %v9231 = vshll.u32 %v8901, 16
      %v9233 = vrot.slane %v9231, 5
      %v9234 = vsel %vm375, %v9229, %v9233
      %v9235 = vshrl.u32 %v8901, 16
      %v9237 = vrot.slane %v9235, 4
      %v9238 = vor.u32 %v9237, %v9233
      %v9239 = vrot.slane %v9238, 4
      %v9241 = vshll.u32 %v8902, 16
      %v9243 = vrot.slane %v9241, 5
      %v9244 = vsel %vm375, %v9239, %v9243
      %v9246 = vshrl.u32 %v8903, 16
      %v9248 = vrot.slane %v9246, 4
      %v9249 = vshll.u32 %v8903, 16
      %v9251 = vrot.slane %v9249, 5
      %v9252 = vor.u32 %v9248, %v9251
      %v9253 = vrot.slane %v9252, 4
      %v9255 = vshll.u32 %v8904, 16
      %v9257 = vrot.slane %v9255, 5
      %v9258 = vsel %vm375, %v9253, %v9257
      %v9259 = vshrl.u32 %v8904, 16
      %v9261 = vrot.slane %v9259, 4
      %v9262 = vor.u32 %v9261, %v9257
      %v9263 = vrot.slane %v9262, 4
      %v9265 = vshll.u32 %v8905, 16
      %v9267 = vrot.slane %v9265, 5
      %v9268 = vsel %vm375, %v9263, %v9267
      %v9270 = vshrl.u32 %v8906, 16
      %v9272 = vrot.slane %v9270, 4
      %v9273 = vshll.u32 %v8906, 16
      %v9275 = vrot.slane %v9273, 5
      %v9276 = vor.u32 %v9272, %v9275
      %v9277 = vrot.slane %v9276, 4
      %v9279 = vshll.u32 %v8907, 16
      %v9281 = vrot.slane %v9279, 5
      %v9282 = vsel %vm375, %v9277, %v9281
      %v9283 = vshrl.u32 %v8907, 16
      %v9285 = vrot.slane %v9283, 4
      %v9286 = vor.u32 %v9285, %v9281
      %v9287 = vrot.slane %v9286, 4
      %v9289 = vshll.u32 %v8908, 16
      %v9291 = vrot.slane %v9289, 5
      %v9292 = vsel %vm375, %v9287, %v9291
      %s9293 = scalar_lea.vmem %s4, 20
      %v9294 = vld [vmem:[%s9293] sm:$0xf]
      %v9295 = vunpack.c.l.b16 %v8922
      %v9296 = vunpack.c.l.b16 %v8932
      %v9297 = vunpack.c.l.b16 %v8946
      %v9298 = vunpack.c.l.b16 %v8956
      %v9299 = vunpack.c.l.b16 %v8970
      %v9300 = vunpack.c.l.b16 %v8980
      %v9301 = vunpack.c.l.b16 %v8994
      %v9302 = vunpack.c.l.b16 %v9004
      %v9303 = vunpack.c.l.b16 %v9018
      %v9304 = vunpack.c.l.b16 %v9028
      %v9305 = vunpack.c.l.b16 %v9042
      %v9306 = vunpack.c.l.b16 %v9052
      %v9307 = vunpack.c.l.b16 %v9066
      %v9308 = vunpack.c.l.b16 %v9076
      %v9309 = vunpack.c.l.b16 %v9090
      %v9310 = vunpack.c.l.b16 %v9100
      %v9311 = vunpack.c.l.b16 %v9114
      %v9312 = vunpack.c.l.b16 %v9124
      %v9313 = vunpack.c.l.b16 %v9138
      %v9314 = vunpack.c.l.b16 %v9148
      %v9315 = vunpack.c.l.b16 %v9162
      %v9316 = vunpack.c.l.b16 %v9172
      %v9317 = vunpack.c.l.b16 %v9186
      %v9318 = vunpack.c.l.b16 %v9196
      %v9319 = vunpack.c.l.b16 %v9210
      %v9320 = vunpack.c.l.b16 %v9220
      %v9321 = vunpack.c.l.b16 %v9234
      %v9322 = vunpack.c.l.b16 %v9244
      %v9323 = vunpack.c.l.b16 %v9258
      %v9324 = vunpack.c.l.b16 %v9268
      %v9325 = vunpack.c.l.b16 %v9282
      %v9326 = vunpack.c.l.b16 %v9292
      %v9327 = vpack.c.b16 %v9296, %v9295
      %v9328 = vpack.c.b16 %v9298, %v9297
      %v9329 = vpack.c.b16 %v9300, %v9299
      %v9330 = vpack.c.b16 %v9302, %v9301
      %v9331 = vpack.c.b16 %v9304, %v9303
      %v9332 = vpack.c.b16 %v9306, %v9305
      %v9333 = vpack.c.b16 %v9308, %v9307
      %v9334 = vpack.c.b16 %v9310, %v9309
      %v9335 = vpack.c.b16 %v9312, %v9311
      %v9336 = vpack.c.b16 %v9314, %v9313
      %v9337 = vpack.c.b16 %v9316, %v9315
      %v9338 = vpack.c.b16 %v9318, %v9317
      %v9339 = vpack.c.b16 %v9320, %v9319
      %v9340 = vpack.c.b16 %v9322, %v9321
      %v9341 = vpack.c.b16 %v9324, %v9323
      %v9342 = vpack.c.b16 %v9326, %v9325
      %v9344 = vsel %vm6640, %v9327, 0
      %v9347 = vsel %vm6640, %v9328, 0
      %v9350 = vsel %vm6640, %v9329, 0
      %v9353 = vsel %vm6640, %v9330, 0
      %v9356 = vsel %vm6640, %v9331, 0
      %v9359 = vsel %vm6640, %v9332, 0
      %v9362 = vsel %vm6640, %v9333, 0
      %v9365 = vsel %vm6640, %v9334, 0
      %v9368 = vsel %vm6640, %v9335, 0
      %v9371 = vsel %vm6640, %v9336, 0
      %v9374 = vsel %vm6640, %v9337, 0
      %v9377 = vsel %vm6640, %v9338, 0
      %v9380 = vsel %vm6640, %v9339, 0
      %v9383 = vsel %vm6640, %v9340, 0
      %v9386 = vsel %vm6640, %v9341, 0
      %v9389 = vsel %vm6640, %v9342, 0
      %v9392 = vsel %vm6689, %v9294, 0
      %9394 = vmatprep.subr.bf16.mxu0 0
      %9395 = vmatpush1.bf16.msra.mxu0 0
      %9396 = vmatprep.subr.bf16.mxu0 0
      %9397 = vmatpush1.bf16.msra.mxu0 0
      %9398 = vmatprep.subr.bf16.mxu0 0
      %9399 = vmatpush1.bf16.msra.mxu0 0
      %9400 = vmatprep.subr.bf16.mxu0 0
      %9401 = vmatpush1.bf16.msra.mxu0 0
      %9402 = vmatprep.subr.bf16.mxu0 0
      %9403 = vmatpush1.bf16.msra.mxu0 0
      %9404 = vmatprep.subr.bf16.mxu0 0
      %9405 = vmatpush1.bf16.msra.mxu0 0
      %9406 = vmatprep.subr.bf16.mxu0 0
      %9407 = vmatpush1.bf16.msra.mxu0 0
      %9408 = vmatprep.subr.bf16.mxu0 0
      %9409 = vmatpush1.bf16.msra.mxu0 %v9392
      %9410 = vmatprep.subr.bf16.mxu0 0
      %9411 = vmatpush2.bf16.msra.mxu0 0
      %9412 = vmatprep.subr.bf16.mxu0 0
      %9413 = vmatpush2.bf16.msra.mxu0 0
      %9414 = vmatprep.subr.bf16.mxu0 0
      %9415 = vmatpush2.bf16.msra.mxu0 0
      %9416 = vmatprep.subr.bf16.mxu0 0
      %9417 = vmatpush2.bf16.msra.mxu0 0
      %9418 = vmatprep.subr.bf16.mxu0 0
      %9419 = vmatpush2.bf16.msra.mxu0 0
      %9420 = vmatprep.subr.bf16.mxu0 0
      %9421 = vmatpush2.bf16.msra.mxu0 0
      %9422 = vmatprep.subr.bf16.mxu0 0
      %9423 = vmatpush2.bf16.msra.mxu0 0
      %9424 = vmatprep.subr.bf16.mxu0 0
      %9425 = vmatpush2.bf16.msra.mxu0 0
      %9426 = vmatprep.mubr.bf16.mxu0 0
      %9427 = vmatmul.mubr.bf16.gmra.mxu0 %v9344
      %v9428 = vpop.f32.mrf.mxu0
      %v9429 = vadd.f32 0.0, %v9428
      %v9430 = vpop.f32.mrf.mxu0
      %v9431 = vpop.f32.mrf.mxu0
      %v9432 = vadd.f32 0.0, %v9431
      %v9433 = vpop.f32.mrf.mxu0
      %9434 = vmatprep.mubr.bf16.mxu0 0
      %9435 = vmatmul.mubr.bf16.gmra.mxu0 %v9347
      %v9436 = vpop.f32.mrf.mxu0
      %v9437 = vadd.f32 0.0, %v9436
      %v9438 = vpop.f32.mrf.mxu0
      %v9439 = vpop.f32.mrf.mxu0
      %v9440 = vadd.f32 0.0, %v9439
      %v9441 = vpop.f32.mrf.mxu0
      %9442 = vmatprep.mubr.bf16.mxu0 0
      %9443 = vmatmul.mubr.bf16.gmra.mxu0 %v9350
      %v9444 = vpop.f32.mrf.mxu0
      %v9445 = vadd.f32 0.0, %v9444
      %v9446 = vpop.f32.mrf.mxu0
      %v9447 = vpop.f32.mrf.mxu0
      %v9448 = vadd.f32 0.0, %v9447
      %v9449 = vpop.f32.mrf.mxu0
      %9450 = vmatprep.mubr.bf16.mxu0 0
      %9451 = vmatmul.mubr.bf16.gmra.mxu0 %v9353
      %v9452 = vpop.f32.mrf.mxu0
      %v9453 = vadd.f32 0.0, %v9452
      %v9454 = vpop.f32.mrf.mxu0
      %v9455 = vpop.f32.mrf.mxu0
      %v9456 = vadd.f32 0.0, %v9455
      %v9457 = vpop.f32.mrf.mxu0
      %9458 = vmatprep.mubr.bf16.mxu0 0
      %9459 = vmatmul.mubr.bf16.gmra.mxu0 %v9356
      %v9460 = vpop.f32.mrf.mxu0
      %v9461 = vadd.f32 0.0, %v9460
      %v9462 = vpop.f32.mrf.mxu0
      %v9463 = vpop.f32.mrf.mxu0
      %v9464 = vadd.f32 0.0, %v9463
      %v9465 = vpop.f32.mrf.mxu0
      %9466 = vmatprep.mubr.bf16.mxu0 0
      %9467 = vmatmul.mubr.bf16.gmra.mxu0 %v9359
      %v9468 = vpop.f32.mrf.mxu0
      %v9469 = vadd.f32 0.0, %v9468
      %v9470 = vpop.f32.mrf.mxu0
      %v9471 = vpop.f32.mrf.mxu0
      %v9472 = vadd.f32 0.0, %v9471
      %v9473 = vpop.f32.mrf.mxu0
      %9474 = vmatprep.mubr.bf16.mxu0 0
      %9475 = vmatmul.mubr.bf16.gmra.mxu0 %v9362
      %v9476 = vpop.f32.mrf.mxu0
      %v9477 = vadd.f32 0.0, %v9476
      %v9478 = vpop.f32.mrf.mxu0
      %v9479 = vpop.f32.mrf.mxu0
      %v9480 = vadd.f32 0.0, %v9479
      %v9481 = vpop.f32.mrf.mxu0
      %9482 = vmatprep.mubr.bf16.mxu0 0
      %9483 = vmatmul.mubr.bf16.gmra.mxu0 %v9365
      %v9484 = vpop.f32.mrf.mxu0
      %v9485 = vadd.f32 0.0, %v9484
      %v9486 = vpop.f32.mrf.mxu0
      %v9487 = vpop.f32.mrf.mxu0
      %v9488 = vadd.f32 0.0, %v9487
      %v9489 = vpop.f32.mrf.mxu0
      %9490 = vmatprep.mubr.bf16.mxu0 0
      %9491 = vmatmul.mubr.bf16.gmra.mxu0 %v9368
      %v9492 = vpop.f32.mrf.mxu0
      %v9493 = vadd.f32 0.0, %v9492
      %v9494 = vpop.f32.mrf.mxu0
      %v9495 = vpop.f32.mrf.mxu0
      %v9496 = vadd.f32 0.0, %v9495
      %v9497 = vpop.f32.mrf.mxu0
      %9498 = vmatprep.mubr.bf16.mxu0 0
      %9499 = vmatmul.mubr.bf16.gmra.mxu0 %v9371
      %v9500 = vpop.f32.mrf.mxu0
      %v9501 = vadd.f32 0.0, %v9500
      %v9502 = vpop.f32.mrf.mxu0
      %v9503 = vpop.f32.mrf.mxu0
      %v9504 = vadd.f32 0.0, %v9503
      %v9505 = vpop.f32.mrf.mxu0
      %9506 = vmatprep.mubr.bf16.mxu0 0
      %9507 = vmatmul.mubr.bf16.gmra.mxu0 %v9374
      %v9508 = vpop.f32.mrf.mxu0
      %v9509 = vadd.f32 0.0, %v9508
      %v9510 = vpop.f32.mrf.mxu0
      %v9511 = vpop.f32.mrf.mxu0
      %v9512 = vadd.f32 0.0, %v9511
      %v9513 = vpop.f32.mrf.mxu0
      %9514 = vmatprep.mubr.bf16.mxu0 0
      %9515 = vmatmul.mubr.bf16.gmra.mxu0 %v9377
      %v9516 = vpop.f32.mrf.mxu0
      %v9517 = vadd.f32 0.0, %v9516
      %v9518 = vpop.f32.mrf.mxu0
      %v9519 = vpop.f32.mrf.mxu0
      %v9520 = vadd.f32 0.0, %v9519
      %v9521 = vpop.f32.mrf.mxu0
      %9522 = vmatprep.mubr.bf16.mxu0 0
      %9523 = vmatmul.mubr.bf16.gmra.mxu0 %v9380
      %v9524 = vpop.f32.mrf.mxu0
      %v9525 = vadd.f32 0.0, %v9524
      %v9526 = vpop.f32.mrf.mxu0
      %v9527 = vpop.f32.mrf.mxu0
      %v9528 = vadd.f32 0.0, %v9527
      %v9529 = vpop.f32.mrf.mxu0
      %9530 = vmatprep.mubr.bf16.mxu0 0
      %9531 = vmatmul.mubr.bf16.gmra.mxu0 %v9383
      %v9532 = vpop.f32.mrf.mxu0
      %v9533 = vadd.f32 0.0, %v9532
      %v9534 = vpop.f32.mrf.mxu0
      %v9535 = vpop.f32.mrf.mxu0
      %v9536 = vadd.f32 0.0, %v9535
      %v9537 = vpop.f32.mrf.mxu0
      %9538 = vmatprep.mubr.bf16.mxu0 0
      %9539 = vmatmul.mubr.bf16.gmra.mxu0 %v9386
      %v9540 = vpop.f32.mrf.mxu0
      %v9541 = vadd.f32 0.0, %v9540
      %v9542 = vpop.f32.mrf.mxu0
      %v9543 = vpop.f32.mrf.mxu0
      %v9544 = vadd.f32 0.0, %v9543
      %v9545 = vpop.f32.mrf.mxu0
      %9546 = vmatprep.mubr.bf16.mxu0 0
      %9547 = vmatmul.mubr.bf16.gmra.mxu0 %v9389
      %v9548 = vpop.f32.mrf.mxu0
      %v9549 = vadd.f32 0.0, %v9548
      %v9550 = vpop.f32.mrf.mxu0
      %v9551 = vpop.f32.mrf.mxu0
      %v9552 = vadd.f32 0.0, %v9551
      %v9553 = vpop.f32.mrf.mxu0
      %9554 = vdwg.mxu0
      %v9555 = vadd.f32 %v8829, %v9429
      %v9556 = vadd.f32 %v8830, %v9432
      %v9557 = vadd.f32 %v8831, %v9437
      %v9558 = vadd.f32 %v8832, %v9440
      %v9559 = vadd.f32 %v8833, %v9445
      %v9560 = vadd.f32 %v8834, %v9448
      %v9561 = vadd.f32 %v8835, %v9453
      %v9562 = vadd.f32 %v8836, %v9456
      %v9563 = vadd.f32 %v8837, %v9461
      %v9564 = vadd.f32 %v8838, %v9464
      %v9565 = vadd.f32 %v8839, %v9469
      %v9566 = vadd.f32 %v8840, %v9472
      %v9567 = vadd.f32 %v8841, %v9477
      %v9568 = vadd.f32 %v8842, %v9480
      %v9569 = vadd.f32 %v8843, %v9485
      %v9570 = vadd.f32 %v8844, %v9488
      %v9571 = vadd.f32 %v8845, %v9493
      %v9572 = vadd.f32 %v8846, %v9496
      %v9573 = vadd.f32 %v8847, %v9501
      %v9574 = vadd.f32 %v8848, %v9504
      %v9575 = vadd.f32 %v8849, %v9509
      %v9576 = vadd.f32 %v8850, %v9512
      %v9577 = vadd.f32 %v8851, %v9517
      %v9578 = vadd.f32 %v8852, %v9520
      %v9579 = vadd.f32 %v8853, %v9525
      %v9580 = vadd.f32 %v8854, %v9528
      %v9581 = vadd.f32 %v8855, %v9533
      %v9582 = vadd.f32 %v8856, %v9536
      %v9583 = vadd.f32 %v8857, %v9541
      %v9584 = vadd.f32 %v8858, %v9544
      %v9585 = vadd.f32 %v8859, %v9549
      %v9586 = vadd.f32 %v8860, %v9552
      %s9587 = scalar_lea.vmem [#allocation2], 32
      %v9588 = vld [vmem:[%s9587] sm:$0x8]
      %v9589 = vld [vmem:[%s9587 + $0x4] sm:$0xf]
      %v9590 = vld [vmem:[%s9587 + $0x8] sm:$0xf]
      %v9591 = vld [vmem:[%s9587 + $0x10] sm:$0x8]
      %v9592 = vld [vmem:[%s9587 + $0x14] sm:$0xf]
      %v9593 = vld [vmem:[%s9587 + $0x18] sm:$0xf]
      %v9594 = vld [vmem:[%s9587 + $0x20] sm:$0x8]
      %v9595 = vld [vmem:[%s9587 + $0x24] sm:$0xf]
      %v9596 = vld [vmem:[%s9587 + $0x28] sm:$0xf]
      %v9597 = vld [vmem:[%s9587 + $0x30] sm:$0x8]
      %v9598 = vld [vmem:[%s9587 + $0x34] sm:$0xf]
      %v9599 = vld [vmem:[%s9587 + $0x38] sm:$0xf]
      %v9600 = vld [vmem:[%s9587 + $0x40] sm:$0x8]
      %v9601 = vld [vmem:[%s9587 + $0x44] sm:$0xf]
      %v9602 = vld [vmem:[%s9587 + $0x48] sm:$0xf]
      %v9603 = vld [vmem:[%s9587 + $0x50] sm:$0x8]
      %v9604 = vld [vmem:[%s9587 + $0x54] sm:$0xf]
      %v9605 = vld [vmem:[%s9587 + $0x58] sm:$0xf]
      %v9606 = vld [vmem:[%s9587 + $0x60] sm:$0x8]
      %v9607 = vld [vmem:[%s9587 + $0x64] sm:$0xf]
      %v9608 = vld [vmem:[%s9587 + $0x68] sm:$0xf]
      %v9609 = vld [vmem:[%s9587 + $0x70] sm:$0x8]
      %v9610 = vld [vmem:[%s9587 + $0x74] sm:$0xf]
      %v9611 = vld [vmem:[%s9587 + $0x78] sm:$0xf]
      %v9612 = vld [vmem:[%s9587 + $0x80] sm:$0x8]
      %v9613 = vld [vmem:[%s9587 + $0x84] sm:$0xf]
      %v9614 = vld [vmem:[%s9587 + $0x88] sm:$0xf]
      %v9615 = vld [vmem:[%s9587 + $0x90] sm:$0x8]
      %v9616 = vld [vmem:[%s9587 + $0x94] sm:$0xf]
      %v9617 = vld [vmem:[%s9587 + $0x98] sm:$0xf]
      %v9618 = vld [vmem:[%s9587 + $0xa0] sm:$0x8]
      %v9619 = vld [vmem:[%s9587 + $0xa4] sm:$0xf]
      %v9620 = vld [vmem:[%s9587 + $0xa8] sm:$0xf]
      %v9621 = vld [vmem:[%s9587 + $0xb0] sm:$0x8]
      %v9622 = vld [vmem:[%s9587 + $0xb4] sm:$0xf]
      %v9623 = vld [vmem:[%s9587 + $0xb8] sm:$0xf]
      %v9624 = vld [vmem:[%s9587 + $0xc0] sm:$0x8]
      %v9625 = vld [vmem:[%s9587 + $0xc4] sm:$0xf]
      %v9626 = vld [vmem:[%s9587 + $0xc8] sm:$0xf]
      %v9627 = vld [vmem:[%s9587 + $0xd0] sm:$0x8]
      %v9628 = vld [vmem:[%s9587 + $0xd4] sm:$0xf]
      %v9629 = vld [vmem:[%s9587 + $0xd8] sm:$0xf]
      %v9630 = vld [vmem:[%s9587 + $0xe0] sm:$0x8]
      %v9631 = vld [vmem:[%s9587 + $0xe4] sm:$0xf]
      %v9632 = vld [vmem:[%s9587 + $0xe8] sm:$0xf]
      %v9633 = vld [vmem:[%s9587 + $0xf0] sm:$0x8]
      %v9634 = vld [vmem:[%s9587 + $0xf4] sm:$0xf]
      %v9635 = vld [vmem:[%s9587 + $0xf8] sm:$0xf]
      %v9637 = vshrl.u32 %v9588, 16
      %v9639 = vrot.slane %v9637, 7
      %v9640 = vrot.slane %v9639, 4
      %v9642 = vshrl.u32 %v9589, 16
      %v9644 = vrot.slane %v9642, 7
      %v9645 = vshll.u32 %v9589, 16
      %v9647 = vor.u32 %v9644, %v9645
      %v9648 = vsel %vm6204, %v9640, %v9647
      %v9649 = vrot.slane %v9644, 4
      %v9651 = vshrl.u32 %v9590, 16
      %v9653 = vrot.slane %v9651, 7
      %v9654 = vshll.u32 %v9590, 16
      %v9656 = vor.u32 %v9653, %v9654
      %v9657 = vsel %vm6204, %v9649, %v9656
      %v9659 = vshrl.u32 %v9591, 16
      %v9661 = vrot.slane %v9659, 7
      %v9662 = vrot.slane %v9661, 4
      %v9664 = vshrl.u32 %v9592, 16
      %v9666 = vrot.slane %v9664, 7
      %v9667 = vshll.u32 %v9592, 16
      %v9669 = vor.u32 %v9666, %v9667
      %v9670 = vsel %vm6204, %v9662, %v9669
      %v9671 = vrot.slane %v9666, 4
      %v9673 = vshrl.u32 %v9593, 16
      %v9675 = vrot.slane %v9673, 7
      %v9676 = vshll.u32 %v9593, 16
      %v9678 = vor.u32 %v9675, %v9676
      %v9679 = vsel %vm6204, %v9671, %v9678
      %v9681 = vshrl.u32 %v9594, 16
      %v9683 = vrot.slane %v9681, 7
      %v9684 = vrot.slane %v9683, 4
      %v9686 = vshrl.u32 %v9595, 16
      %v9688 = vrot.slane %v9686, 7
      %v9689 = vshll.u32 %v9595, 16
      %v9691 = vor.u32 %v9688, %v9689
      %v9692 = vsel %vm6204, %v9684, %v9691
      %v9693 = vrot.slane %v9688, 4
      %v9695 = vshrl.u32 %v9596, 16
      %v9697 = vrot.slane %v9695, 7
      %v9698 = vshll.u32 %v9596, 16
      %v9700 = vor.u32 %v9697, %v9698
      %v9701 = vsel %vm6204, %v9693, %v9700
      %v9703 = vshrl.u32 %v9597, 16
      %v9705 = vrot.slane %v9703, 7
      %v9706 = vrot.slane %v9705, 4
      %v9708 = vshrl.u32 %v9598, 16
      %v9710 = vrot.slane %v9708, 7
      %v9711 = vshll.u32 %v9598, 16
      %v9713 = vor.u32 %v9710, %v9711
      %v9714 = vsel %vm6204, %v9706, %v9713
      %v9715 = vrot.slane %v9710, 4
      %v9717 = vshrl.u32 %v9599, 16
      %v9719 = vrot.slane %v9717, 7
      %v9720 = vshll.u32 %v9599, 16
      %v9722 = vor.u32 %v9719, %v9720
      %v9723 = vsel %vm6204, %v9715, %v9722
      %v9725 = vshrl.u32 %v9600, 16
      %v9727 = vrot.slane %v9725, 7
      %v9728 = vrot.slane %v9727, 4
      %v9730 = vshrl.u32 %v9601, 16
      %v9732 = vrot.slane %v9730, 7
      %v9733 = vshll.u32 %v9601, 16
      %v9735 = vor.u32 %v9732, %v9733
      %v9736 = vsel %vm6204, %v9728, %v9735
      %v9737 = vrot.slane %v9732, 4
      %v9739 = vshrl.u32 %v9602, 16
      %v9741 = vrot.slane %v9739, 7
      %v9742 = vshll.u32 %v9602, 16
      %v9744 = vor.u32 %v9741, %v9742
      %v9745 = vsel %vm6204, %v9737, %v9744
      %v9747 = vshrl.u32 %v9603, 16
      %v9749 = vrot.slane %v9747, 7
      %v9750 = vrot.slane %v9749, 4
      %v9752 = vshrl.u32 %v9604, 16
      %v9754 = vrot.slane %v9752, 7
      %v9755 = vshll.u32 %v9604, 16
      %v9757 = vor.u32 %v9754, %v9755
      %v9758 = vsel %vm6204, %v9750, %v9757
      %v9759 = vrot.slane %v9754, 4
      %v9761 = vshrl.u32 %v9605, 16
      %v9763 = vrot.slane %v9761, 7
      %v9764 = vshll.u32 %v9605, 16
      %v9766 = vor.u32 %v9763, %v9764
      %v9767 = vsel %vm6204, %v9759, %v9766
      %v9769 = vshrl.u32 %v9606, 16
      %v9771 = vrot.slane %v9769, 7
      %v9772 = vrot.slane %v9771, 4
      %v9774 = vshrl.u32 %v9607, 16
      %v9776 = vrot.slane %v9774, 7
      %v9777 = vshll.u32 %v9607, 16
      %v9779 = vor.u32 %v9776, %v9777
      %v9780 = vsel %vm6204, %v9772, %v9779
      %v9781 = vrot.slane %v9776, 4
      %v9783 = vshrl.u32 %v9608, 16
      %v9785 = vrot.slane %v9783, 7
      %v9786 = vshll.u32 %v9608, 16
      %v9788 = vor.u32 %v9785, %v9786
      %v9789 = vsel %vm6204, %v9781, %v9788
      %v9791 = vshrl.u32 %v9609, 16
      %v9793 = vrot.slane %v9791, 7
      %v9794 = vrot.slane %v9793, 4
      %v9796 = vshrl.u32 %v9610, 16
      %v9798 = vrot.slane %v9796, 7
      %v9799 = vshll.u32 %v9610, 16
      %v9801 = vor.u32 %v9798, %v9799
      %v9802 = vsel %vm6204, %v9794, %v9801
      %v9803 = vrot.slane %v9798, 4
      %v9805 = vshrl.u32 %v9611, 16
      %v9807 = vrot.slane %v9805, 7
      %v9808 = vshll.u32 %v9611, 16
      %v9810 = vor.u32 %v9807, %v9808
      %v9811 = vsel %vm6204, %v9803, %v9810
      %v9813 = vshrl.u32 %v9612, 16
      %v9815 = vrot.slane %v9813, 7
      %v9816 = vrot.slane %v9815, 4
      %v9818 = vshrl.u32 %v9613, 16
      %v9820 = vrot.slane %v9818, 7
      %v9821 = vshll.u32 %v9613, 16
      %v9823 = vor.u32 %v9820, %v9821
      %v9824 = vsel %vm6204, %v9816, %v9823
      %v9825 = vrot.slane %v9820, 4
      %v9827 = vshrl.u32 %v9614, 16
      %v9829 = vrot.slane %v9827, 7
      %v9830 = vshll.u32 %v9614, 16
      %v9832 = vor.u32 %v9829, %v9830
      %v9833 = vsel %vm6204, %v9825, %v9832
      %v9835 = vshrl.u32 %v9615, 16
      %v9837 = vrot.slane %v9835, 7
      %v9838 = vrot.slane %v9837, 4
      %v9840 = vshrl.u32 %v9616, 16
      %v9842 = vrot.slane %v9840, 7
      %v9843 = vshll.u32 %v9616, 16
      %v9845 = vor.u32 %v9842, %v9843
      %v9846 = vsel %vm6204, %v9838, %v9845
      %v9847 = vrot.slane %v9842, 4
      %v9849 = vshrl.u32 %v9617, 16
      %v9851 = vrot.slane %v9849, 7
      %v9852 = vshll.u32 %v9617, 16
      %v9854 = vor.u32 %v9851, %v9852
      %v9855 = vsel %vm6204, %v9847, %v9854
      %v9857 = vshrl.u32 %v9618, 16
      %v9859 = vrot.slane %v9857, 7
      %v9860 = vrot.slane %v9859, 4
      %v9862 = vshrl.u32 %v9619, 16
      %v9864 = vrot.slane %v9862, 7
      %v9865 = vshll.u32 %v9619, 16
      %v9867 = vor.u32 %v9864, %v9865
      %v9868 = vsel %vm6204, %v9860, %v9867
      %v9869 = vrot.slane %v9864, 4
      %v9871 = vshrl.u32 %v9620, 16
      %v9873 = vrot.slane %v9871, 7
      %v9874 = vshll.u32 %v9620, 16
      %v9876 = vor.u32 %v9873, %v9874
      %v9877 = vsel %vm6204, %v9869, %v9876
      %v9879 = vshrl.u32 %v9621, 16
      %v9881 = vrot.slane %v9879, 7
      %v9882 = vrot.slane %v9881, 4
      %v9884 = vshrl.u32 %v9622, 16
      %v9886 = vrot.slane %v9884, 7
      %v9887 = vshll.u32 %v9622, 16
      %v9889 = vor.u32 %v9886, %v9887
      %v9890 = vsel %vm6204, %v9882, %v9889
      %v9891 = vrot.slane %v9886, 4
      %v9893 = vshrl.u32 %v9623, 16
      %v9895 = vrot.slane %v9893, 7
      %v9896 = vshll.u32 %v9623, 16
      %v9898 = vor.u32 %v9895, %v9896
      %v9899 = vsel %vm6204, %v9891, %v9898
      %v9901 = vshrl.u32 %v9624, 16
      %v9903 = vrot.slane %v9901, 7
      %v9904 = vrot.slane %v9903, 4
      %v9906 = vshrl.u32 %v9625, 16
      %v9908 = vrot.slane %v9906, 7
      %v9909 = vshll.u32 %v9625, 16
      %v9911 = vor.u32 %v9908, %v9909
      %v9912 = vsel %vm6204, %v9904, %v9911
      %v9913 = vrot.slane %v9908, 4
      %v9915 = vshrl.u32 %v9626, 16
      %v9917 = vrot.slane %v9915, 7
      %v9918 = vshll.u32 %v9626, 16
      %v9920 = vor.u32 %v9917, %v9918
      %v9921 = vsel %vm6204, %v9913, %v9920
      %v9923 = vshrl.u32 %v9627, 16
      %v9925 = vrot.slane %v9923, 7
      %v9926 = vrot.slane %v9925, 4
      %v9928 = vshrl.u32 %v9628, 16
      %v9930 = vrot.slane %v9928, 7
      %v9931 = vshll.u32 %v9628, 16
      %v9933 = vor.u32 %v9930, %v9931
      %v9934 = vsel %vm6204, %v9926, %v9933
      %v9935 = vrot.slane %v9930, 4
      %v9937 = vshrl.u32 %v9629, 16
      %v9939 = vrot.slane %v9937, 7
      %v9940 = vshll.u32 %v9629, 16
      %v9942 = vor.u32 %v9939, %v9940
      %v9943 = vsel %vm6204, %v9935, %v9942
      %v9945 = vshrl.u32 %v9630, 16
      %v9947 = vrot.slane %v9945, 7
      %v9948 = vrot.slane %v9947, 4
      %v9950 = vshrl.u32 %v9631, 16
      %v9952 = vrot.slane %v9950, 7
      %v9953 = vshll.u32 %v9631, 16
      %v9955 = vor.u32 %v9952, %v9953
      %v9956 = vsel %vm6204, %v9948, %v9955
      %v9957 = vrot.slane %v9952, 4
      %v9959 = vshrl.u32 %v9632, 16
      %v9961 = vrot.slane %v9959, 7
      %v9962 = vshll.u32 %v9632, 16
      %v9964 = vor.u32 %v9961, %v9962
      %v9965 = vsel %vm6204, %v9957, %v9964
      %v9967 = vshrl.u32 %v9633, 16
      %v9969 = vrot.slane %v9967, 7
      %v9970 = vrot.slane %v9969, 4
      %v9972 = vshrl.u32 %v9634, 16
      %v9974 = vrot.slane %v9972, 7
      %v9975 = vshll.u32 %v9634, 16
      %v9977 = vor.u32 %v9974, %v9975
      %v9978 = vsel %vm6204, %v9970, %v9977
      %v9979 = vrot.slane %v9974, 4
      %v9981 = vshrl.u32 %v9635, 16
      %v9983 = vrot.slane %v9981, 7
      %v9984 = vshll.u32 %v9635, 16
      %v9986 = vor.u32 %v9983, %v9984
      %v9987 = vsel %vm6204, %v9979, %v9986
      %s9988 = scalar_lea.vmem %s4, 24
      %v9989 = vld [vmem:[%s9988] sm:$0xf]
      %v9990 = vunpack.c.l.b16 %v9648
      %v9991 = vunpack.c.l.b16 %v9657
      %v9992 = vunpack.c.l.b16 %v9670
      %v9993 = vunpack.c.l.b16 %v9679
      %v9994 = vunpack.c.l.b16 %v9692
      %v9995 = vunpack.c.l.b16 %v9701
      %v9996 = vunpack.c.l.b16 %v9714
      %v9997 = vunpack.c.l.b16 %v9723
      %v9998 = vunpack.c.l.b16 %v9736
      %v9999 = vunpack.c.l.b16 %v9745
      %v10000 = vunpack.c.l.b16 %v9758
      %v10001 = vunpack.c.l.b16 %v9767
      %v10002 = vunpack.c.l.b16 %v9780
      %v10003 = vunpack.c.l.b16 %v9789
      %v10004 = vunpack.c.l.b16 %v9802
      %v10005 = vunpack.c.l.b16 %v9811
      %v10006 = vunpack.c.l.b16 %v9824
      %v10007 = vunpack.c.l.b16 %v9833
      %v10008 = vunpack.c.l.b16 %v9846
      %v10009 = vunpack.c.l.b16 %v9855
      %v10010 = vunpack.c.l.b16 %v9868
      %v10011 = vunpack.c.l.b16 %v9877
      %v10012 = vunpack.c.l.b16 %v9890
      %v10013 = vunpack.c.l.b16 %v9899
      %v10014 = vunpack.c.l.b16 %v9912
      %v10015 = vunpack.c.l.b16 %v9921
      %v10016 = vunpack.c.l.b16 %v9934
      %v10017 = vunpack.c.l.b16 %v9943
      %v10018 = vunpack.c.l.b16 %v9956
      %v10019 = vunpack.c.l.b16 %v9965
      %v10020 = vunpack.c.l.b16 %v9978
      %v10021 = vunpack.c.l.b16 %v9987
      %v10022 = vpack.c.b16 %v9991, %v9990
      %v10023 = vpack.c.b16 %v9993, %v9992
      %v10024 = vpack.c.b16 %v9995, %v9994
      %v10025 = vpack.c.b16 %v9997, %v9996
      %v10026 = vpack.c.b16 %v9999, %v9998
      %v10027 = vpack.c.b16 %v10001, %v10000
      %v10028 = vpack.c.b16 %v10003, %v10002
      %v10029 = vpack.c.b16 %v10005, %v10004
      %v10030 = vpack.c.b16 %v10007, %v10006
      %v10031 = vpack.c.b16 %v10009, %v10008
      %v10032 = vpack.c.b16 %v10011, %v10010
      %v10033 = vpack.c.b16 %v10013, %v10012
      %v10034 = vpack.c.b16 %v10015, %v10014
      %v10035 = vpack.c.b16 %v10017, %v10016
      %v10036 = vpack.c.b16 %v10019, %v10018
      %v10037 = vpack.c.b16 %v10021, %v10020
      %v10039 = vsel %vm6640, %v10022, 0
      %v10042 = vsel %vm6640, %v10023, 0
      %v10045 = vsel %vm6640, %v10024, 0
      %v10048 = vsel %vm6640, %v10025, 0
      %v10051 = vsel %vm6640, %v10026, 0
      %v10054 = vsel %vm6640, %v10027, 0
      %v10057 = vsel %vm6640, %v10028, 0
      %v10060 = vsel %vm6640, %v10029, 0
      %v10063 = vsel %vm6640, %v10030, 0
      %v10066 = vsel %vm6640, %v10031, 0
      %v10069 = vsel %vm6640, %v10032, 0
      %v10072 = vsel %vm6640, %v10033, 0
      %v10075 = vsel %vm6640, %v10034, 0
      %v10078 = vsel %vm6640, %v10035, 0
      %v10081 = vsel %vm6640, %v10036, 0
      %v10084 = vsel %vm6640, %v10037, 0
      %v10087 = vsel %vm6689, %v9989, 0
      %10089 = vmatprep.subr.bf16.mxu0 0
      %10090 = vmatpush1.bf16.msra.mxu0 0
      %10091 = vmatprep.subr.bf16.mxu0 0
      %10092 = vmatpush1.bf16.msra.mxu0 0
      %10093 = vmatprep.subr.bf16.mxu0 0
      %10094 = vmatpush1.bf16.msra.mxu0 0
      %10095 = vmatprep.subr.bf16.mxu0 0
      %10096 = vmatpush1.bf16.msra.mxu0 0
      %10097 = vmatprep.subr.bf16.mxu0 0
      %10098 = vmatpush1.bf16.msra.mxu0 0
      %10099 = vmatprep.subr.bf16.mxu0 0
      %10100 = vmatpush1.bf16.msra.mxu0 0
      %10101 = vmatprep.subr.bf16.mxu0 0
      %10102 = vmatpush1.bf16.msra.mxu0 0
      %10103 = vmatprep.subr.bf16.mxu0 0
      %10104 = vmatpush1.bf16.msra.mxu0 %v10087
      %10105 = vmatprep.subr.bf16.mxu0 0
      %10106 = vmatpush2.bf16.msra.mxu0 0
      %10107 = vmatprep.subr.bf16.mxu0 0
      %10108 = vmatpush2.bf16.msra.mxu0 0
      %10109 = vmatprep.subr.bf16.mxu0 0
      %10110 = vmatpush2.bf16.msra.mxu0 0
      %10111 = vmatprep.subr.bf16.mxu0 0
      %10112 = vmatpush2.bf16.msra.mxu0 0
      %10113 = vmatprep.subr.bf16.mxu0 0
      %10114 = vmatpush2.bf16.msra.mxu0 0
      %10115 = vmatprep.subr.bf16.mxu0 0
      %10116 = vmatpush2.bf16.msra.mxu0 0
      %10117 = vmatprep.subr.bf16.mxu0 0
      %10118 = vmatpush2.bf16.msra.mxu0 0
      %10119 = vmatprep.subr.bf16.mxu0 0
      %10120 = vmatpush2.bf16.msra.mxu0 0
      %10121 = vmatprep.mubr.bf16.mxu0 0
      %10122 = vmatmul.mubr.bf16.gmra.mxu0 %v10039
      %v10123 = vpop.f32.mrf.mxu0
      %v10124 = vadd.f32 0.0, %v10123
      %v10125 = vpop.f32.mrf.mxu0
      %v10126 = vpop.f32.mrf.mxu0
      %v10127 = vadd.f32 0.0, %v10126
      %v10128 = vpop.f32.mrf.mxu0
      %10129 = vmatprep.mubr.bf16.mxu0 0
      %10130 = vmatmul.mubr.bf16.gmra.mxu0 %v10042
      %v10131 = vpop.f32.mrf.mxu0
      %v10132 = vadd.f32 0.0, %v10131
      %v10133 = vpop.f32.mrf.mxu0
      %v10134 = vpop.f32.mrf.mxu0
      %v10135 = vadd.f32 0.0, %v10134
      %v10136 = vpop.f32.mrf.mxu0
      %10137 = vmatprep.mubr.bf16.mxu0 0
      %10138 = vmatmul.mubr.bf16.gmra.mxu0 %v10045
      %v10139 = vpop.f32.mrf.mxu0
      %v10140 = vadd.f32 0.0, %v10139
      %v10141 = vpop.f32.mrf.mxu0
      %v10142 = vpop.f32.mrf.mxu0
      %v10143 = vadd.f32 0.0, %v10142
      %v10144 = vpop.f32.mrf.mxu0
      %10145 = vmatprep.mubr.bf16.mxu0 0
      %10146 = vmatmul.mubr.bf16.gmra.mxu0 %v10048
      %v10147 = vpop.f32.mrf.mxu0
      %v10148 = vadd.f32 0.0, %v10147
      %v10149 = vpop.f32.mrf.mxu0
      %v10150 = vpop.f32.mrf.mxu0
      %v10151 = vadd.f32 0.0, %v10150
      %v10152 = vpop.f32.mrf.mxu0
      %10153 = vmatprep.mubr.bf16.mxu0 0
      %10154 = vmatmul.mubr.bf16.gmra.mxu0 %v10051
      %v10155 = vpop.f32.mrf.mxu0
      %v10156 = vadd.f32 0.0, %v10155
      %v10157 = vpop.f32.mrf.mxu0
      %v10158 = vpop.f32.mrf.mxu0
      %v10159 = vadd.f32 0.0, %v10158
      %v10160 = vpop.f32.mrf.mxu0
      %10161 = vmatprep.mubr.bf16.mxu0 0
      %10162 = vmatmul.mubr.bf16.gmra.mxu0 %v10054
      %v10163 = vpop.f32.mrf.mxu0
      %v10164 = vadd.f32 0.0, %v10163
      %v10165 = vpop.f32.mrf.mxu0
      %v10166 = vpop.f32.mrf.mxu0
      %v10167 = vadd.f32 0.0, %v10166
      %v10168 = vpop.f32.mrf.mxu0
      %10169 = vmatprep.mubr.bf16.mxu0 0
      %10170 = vmatmul.mubr.bf16.gmra.mxu0 %v10057
      %v10171 = vpop.f32.mrf.mxu0
      %v10172 = vadd.f32 0.0, %v10171
      %v10173 = vpop.f32.mrf.mxu0
      %v10174 = vpop.f32.mrf.mxu0
      %v10175 = vadd.f32 0.0, %v10174
      %v10176 = vpop.f32.mrf.mxu0
      %10177 = vmatprep.mubr.bf16.mxu0 0
      %10178 = vmatmul.mubr.bf16.gmra.mxu0 %v10060
      %v10179 = vpop.f32.mrf.mxu0
      %v10180 = vadd.f32 0.0, %v10179
      %v10181 = vpop.f32.mrf.mxu0
      %v10182 = vpop.f32.mrf.mxu0
      %v10183 = vadd.f32 0.0, %v10182
      %v10184 = vpop.f32.mrf.mxu0
      %10185 = vmatprep.mubr.bf16.mxu0 0
      %10186 = vmatmul.mubr.bf16.gmra.mxu0 %v10063
      %v10187 = vpop.f32.mrf.mxu0
      %v10188 = vadd.f32 0.0, %v10187
      %v10189 = vpop.f32.mrf.mxu0
      %v10190 = vpop.f32.mrf.mxu0
      %v10191 = vadd.f32 0.0, %v10190
      %v10192 = vpop.f32.mrf.mxu0
      %10193 = vmatprep.mubr.bf16.mxu0 0
      %10194 = vmatmul.mubr.bf16.gmra.mxu0 %v10066
      %v10195 = vpop.f32.mrf.mxu0
      %v10196 = vadd.f32 0.0, %v10195
      %v10197 = vpop.f32.mrf.mxu0
      %v10198 = vpop.f32.mrf.mxu0
      %v10199 = vadd.f32 0.0, %v10198
      %v10200 = vpop.f32.mrf.mxu0
      %10201 = vmatprep.mubr.bf16.mxu0 0
      %10202 = vmatmul.mubr.bf16.gmra.mxu0 %v10069
      %v10203 = vpop.f32.mrf.mxu0
      %v10204 = vadd.f32 0.0, %v10203
      %v10205 = vpop.f32.mrf.mxu0
      %v10206 = vpop.f32.mrf.mxu0
      %v10207 = vadd.f32 0.0, %v10206
      %v10208 = vpop.f32.mrf.mxu0
      %10209 = vmatprep.mubr.bf16.mxu0 0
      %10210 = vmatmul.mubr.bf16.gmra.mxu0 %v10072
      %v10211 = vpop.f32.mrf.mxu0
      %v10212 = vadd.f32 0.0, %v10211
      %v10213 = vpop.f32.mrf.mxu0
      %v10214 = vpop.f32.mrf.mxu0
      %v10215 = vadd.f32 0.0, %v10214
      %v10216 = vpop.f32.mrf.mxu0
      %10217 = vmatprep.mubr.bf16.mxu0 0
      %10218 = vmatmul.mubr.bf16.gmra.mxu0 %v10075
      %v10219 = vpop.f32.mrf.mxu0
      %v10220 = vadd.f32 0.0, %v10219
      %v10221 = vpop.f32.mrf.mxu0
      %v10222 = vpop.f32.mrf.mxu0
      %v10223 = vadd.f32 0.0, %v10222
      %v10224 = vpop.f32.mrf.mxu0
      %10225 = vmatprep.mubr.bf16.mxu0 0
      %10226 = vmatmul.mubr.bf16.gmra.mxu0 %v10078
      %v10227 = vpop.f32.mrf.mxu0
      %v10228 = vadd.f32 0.0, %v10227
      %v10229 = vpop.f32.mrf.mxu0
      %v10230 = vpop.f32.mrf.mxu0
      %v10231 = vadd.f32 0.0, %v10230
      %v10232 = vpop.f32.mrf.mxu0
      %10233 = vmatprep.mubr.bf16.mxu0 0
      %10234 = vmatmul.mubr.bf16.gmra.mxu0 %v10081
      %v10235 = vpop.f32.mrf.mxu0
      %v10236 = vadd.f32 0.0, %v10235
      %v10237 = vpop.f32.mrf.mxu0
      %v10238 = vpop.f32.mrf.mxu0
      %v10239 = vadd.f32 0.0, %v10238
      %v10240 = vpop.f32.mrf.mxu0
      %10241 = vmatprep.mubr.bf16.mxu0 0
      %10242 = vmatmul.mubr.bf16.gmra.mxu0 %v10084
      %v10243 = vpop.f32.mrf.mxu0
      %v10244 = vadd.f32 0.0, %v10243
      %v10245 = vpop.f32.mrf.mxu0
      %v10246 = vpop.f32.mrf.mxu0
      %v10247 = vadd.f32 0.0, %v10246
      %v10248 = vpop.f32.mrf.mxu0
      %10249 = vdwg.mxu0
      %v10250 = vadd.f32 %v9555, %v10124
      %v10251 = vadd.f32 %v9556, %v10127
      %v10252 = vadd.f32 %v9557, %v10132
      %v10253 = vadd.f32 %v9558, %v10135
      %v10254 = vadd.f32 %v9559, %v10140
      %v10255 = vadd.f32 %v9560, %v10143
      %v10256 = vadd.f32 %v9561, %v10148
      %v10257 = vadd.f32 %v9562, %v10151
      %v10258 = vadd.f32 %v9563, %v10156
      %v10259 = vadd.f32 %v9564, %v10159
      %v10260 = vadd.f32 %v9565, %v10164
      %v10261 = vadd.f32 %v9566, %v10167
      %v10262 = vadd.f32 %v9567, %v10172
      %v10263 = vadd.f32 %v9568, %v10175
      %v10264 = vadd.f32 %v9569, %v10180
      %v10265 = vadd.f32 %v9570, %v10183
      %v10266 = vadd.f32 %v9571, %v10188
      %v10267 = vadd.f32 %v9572, %v10191
      %v10268 = vadd.f32 %v9573, %v10196
      %v10269 = vadd.f32 %v9574, %v10199
      %v10270 = vadd.f32 %v9575, %v10204
      %v10271 = vadd.f32 %v9576, %v10207
      %v10272 = vadd.f32 %v9577, %v10212
      %v10273 = vadd.f32 %v9578, %v10215
      %v10274 = vadd.f32 %v9579, %v10220
      %v10275 = vadd.f32 %v9580, %v10223
      %v10276 = vadd.f32 %v9581, %v10228
      %v10277 = vadd.f32 %v9582, %v10231
      %v10278 = vadd.f32 %v9583, %v10236
      %v10279 = vadd.f32 %v9584, %v10239
      %v10280 = vadd.f32 %v9585, %v10244
      %v10281 = vadd.f32 %v9586, %v10247
      %s10282 = scalar_lea.vmem %s4, 28
      %v10283 = vld [vmem:[%s10282] sm:$0xf]
      %v10316 = vunpack.c.l.b16 %v9589
      %v10317 = vunpack.c.l.b16 %v9590
      %v10318 = vunpack.c.l.b16 %v9592
      %v10319 = vunpack.c.l.b16 %v9593
      %v10320 = vunpack.c.l.b16 %v9595
      %v10321 = vunpack.c.l.b16 %v9596
      %v10322 = vunpack.c.l.b16 %v9598
      %v10323 = vunpack.c.l.b16 %v9599
      %v10324 = vunpack.c.l.b16 %v9601
      %v10325 = vunpack.c.l.b16 %v9602
      %v10326 = vunpack.c.l.b16 %v9604
      %v10327 = vunpack.c.l.b16 %v9605
      %v10328 = vunpack.c.l.b16 %v9607
      %v10329 = vunpack.c.l.b16 %v9608
      %v10330 = vunpack.c.l.b16 %v9610
      %v10331 = vunpack.c.l.b16 %v9611
      %v10332 = vunpack.c.l.b16 %v9613
      %v10333 = vunpack.c.l.b16 %v9614
      %v10334 = vunpack.c.l.b16 %v9616
      %v10335 = vunpack.c.l.b16 %v9617
      %v10336 = vunpack.c.l.b16 %v9619
      %v10337 = vunpack.c.l.b16 %v9620
      %v10338 = vunpack.c.l.b16 %v9622
      %v10339 = vunpack.c.l.b16 %v9623
      %v10340 = vunpack.c.l.b16 %v9625
      %v10341 = vunpack.c.l.b16 %v9626
      %v10342 = vunpack.c.l.b16 %v9628
      %v10343 = vunpack.c.l.b16 %v9629
      %v10344 = vunpack.c.l.b16 %v9631
      %v10345 = vunpack.c.l.b16 %v9632
      %v10346 = vunpack.c.l.b16 %v9634
      %v10347 = vunpack.c.l.b16 %v9635
      %v10348 = vpack.c.b16 %v10317, %v10316
      %v10349 = vpack.c.b16 %v10319, %v10318
      %v10350 = vpack.c.b16 %v10321, %v10320
      %v10351 = vpack.c.b16 %v10323, %v10322
      %v10352 = vpack.c.b16 %v10325, %v10324
      %v10353 = vpack.c.b16 %v10327, %v10326
      %v10354 = vpack.c.b16 %v10329, %v10328
      %v10355 = vpack.c.b16 %v10331, %v10330
      %v10356 = vpack.c.b16 %v10333, %v10332
      %v10357 = vpack.c.b16 %v10335, %v10334
      %v10358 = vpack.c.b16 %v10337, %v10336
      %v10359 = vpack.c.b16 %v10339, %v10338
      %v10360 = vpack.c.b16 %v10341, %v10340
      %v10361 = vpack.c.b16 %v10343, %v10342
      %v10362 = vpack.c.b16 %v10345, %v10344
      %v10363 = vpack.c.b16 %v10347, %v10346
      %v10365 = vsel %vm6640, %v10348, 0
      %v10368 = vsel %vm6640, %v10349, 0
      %v10371 = vsel %vm6640, %v10350, 0
      %v10374 = vsel %vm6640, %v10351, 0
      %v10377 = vsel %vm6640, %v10352, 0
      %v10380 = vsel %vm6640, %v10353, 0
      %v10383 = vsel %vm6640, %v10354, 0
      %v10386 = vsel %vm6640, %v10355, 0
      %v10389 = vsel %vm6640, %v10356, 0
      %v10392 = vsel %vm6640, %v10357, 0
      %v10395 = vsel %vm6640, %v10358, 0
      %v10398 = vsel %vm6640, %v10359, 0
      %v10401 = vsel %vm6640, %v10360, 0
      %v10404 = vsel %vm6640, %v10361, 0
      %v10407 = vsel %vm6640, %v10362, 0
      %v10410 = vsel %vm6640, %v10363, 0
      %v10413 = vsel %vm6689, %v10283, 0
      %10415 = vmatprep.subr.bf16.mxu0 0
      %10416 = vmatpush1.bf16.msra.mxu0 0
      %10417 = vmatprep.subr.bf16.mxu0 0
      %10418 = vmatpush1.bf16.msra.mxu0 0
      %10419 = vmatprep.subr.bf16.mxu0 0
      %10420 = vmatpush1.bf16.msra.mxu0 0
      %10421 = vmatprep.subr.bf16.mxu0 0
      %10422 = vmatpush1.bf16.msra.mxu0 0
      %10423 = vmatprep.subr.bf16.mxu0 0
      %10424 = vmatpush1.bf16.msra.mxu0 0
      %10425 = vmatprep.subr.bf16.mxu0 0
      %10426 = vmatpush1.bf16.msra.mxu0 0
      %10427 = vmatprep.subr.bf16.mxu0 0
      %10428 = vmatpush1.bf16.msra.mxu0 0
      %10429 = vmatprep.subr.bf16.mxu0 0
      %10430 = vmatpush1.bf16.msra.mxu0 %v10413
      %10431 = vmatprep.subr.bf16.mxu0 0
      %10432 = vmatpush2.bf16.msra.mxu0 0
      %10433 = vmatprep.subr.bf16.mxu0 0
      %10434 = vmatpush2.bf16.msra.mxu0 0
      %10435 = vmatprep.subr.bf16.mxu0 0
      %10436 = vmatpush2.bf16.msra.mxu0 0
      %10437 = vmatprep.subr.bf16.mxu0 0
      %10438 = vmatpush2.bf16.msra.mxu0 0
      %10439 = vmatprep.subr.bf16.mxu0 0
      %10440 = vmatpush2.bf16.msra.mxu0 0
      %10441 = vmatprep.subr.bf16.mxu0 0
      %10442 = vmatpush2.bf16.msra.mxu0 0
      %10443 = vmatprep.subr.bf16.mxu0 0
      %10444 = vmatpush2.bf16.msra.mxu0 0
      %10445 = vmatprep.subr.bf16.mxu0 0
      %10446 = vmatpush2.bf16.msra.mxu0 0
      %10447 = vmatprep.mubr.bf16.mxu0 0
      %10448 = vmatmul.mubr.bf16.gmra.mxu0 %v10365
      %v10449 = vpop.f32.mrf.mxu0
      %v10450 = vadd.f32 0.0, %v10449
      %v10451 = vpop.f32.mrf.mxu0
      %v10452 = vpop.f32.mrf.mxu0
      %v10453 = vadd.f32 0.0, %v10452
      %v10454 = vpop.f32.mrf.mxu0
      %10455 = vmatprep.mubr.bf16.mxu0 0
      %10456 = vmatmul.mubr.bf16.gmra.mxu0 %v10368
      %v10457 = vpop.f32.mrf.mxu0
      %v10458 = vadd.f32 0.0, %v10457
      %v10459 = vpop.f32.mrf.mxu0
      %v10460 = vpop.f32.mrf.mxu0
      %v10461 = vadd.f32 0.0, %v10460
      %v10462 = vpop.f32.mrf.mxu0
      %10463 = vmatprep.mubr.bf16.mxu0 0
      %10464 = vmatmul.mubr.bf16.gmra.mxu0 %v10371
      %v10465 = vpop.f32.mrf.mxu0
      %v10466 = vadd.f32 0.0, %v10465
      %v10467 = vpop.f32.mrf.mxu0
      %v10468 = vpop.f32.mrf.mxu0
      %v10469 = vadd.f32 0.0, %v10468
      %v10470 = vpop.f32.mrf.mxu0
      %10471 = vmatprep.mubr.bf16.mxu0 0
      %10472 = vmatmul.mubr.bf16.gmra.mxu0 %v10374
      %v10473 = vpop.f32.mrf.mxu0
      %v10474 = vadd.f32 0.0, %v10473
      %v10475 = vpop.f32.mrf.mxu0
      %v10476 = vpop.f32.mrf.mxu0
      %v10477 = vadd.f32 0.0, %v10476
      %v10478 = vpop.f32.mrf.mxu0
      %10479 = vmatprep.mubr.bf16.mxu0 0
      %10480 = vmatmul.mubr.bf16.gmra.mxu0 %v10377
      %v10481 = vpop.f32.mrf.mxu0
      %v10482 = vadd.f32 0.0, %v10481
      %v10483 = vpop.f32.mrf.mxu0
      %v10484 = vpop.f32.mrf.mxu0
      %v10485 = vadd.f32 0.0, %v10484
      %v10486 = vpop.f32.mrf.mxu0
      %10487 = vmatprep.mubr.bf16.mxu0 0
      %10488 = vmatmul.mubr.bf16.gmra.mxu0 %v10380
      %v10489 = vpop.f32.mrf.mxu0
      %v10490 = vadd.f32 0.0, %v10489
      %v10491 = vpop.f32.mrf.mxu0
      %v10492 = vpop.f32.mrf.mxu0
      %v10493 = vadd.f32 0.0, %v10492
      %v10494 = vpop.f32.mrf.mxu0
      %10495 = vmatprep.mubr.bf16.mxu0 0
      %10496 = vmatmul.mubr.bf16.gmra.mxu0 %v10383
      %v10497 = vpop.f32.mrf.mxu0
      %v10498 = vadd.f32 0.0, %v10497
      %v10499 = vpop.f32.mrf.mxu0
      %v10500 = vpop.f32.mrf.mxu0
      %v10501 = vadd.f32 0.0, %v10500
      %v10502 = vpop.f32.mrf.mxu0
      %10503 = vmatprep.mubr.bf16.mxu0 0
      %10504 = vmatmul.mubr.bf16.gmra.mxu0 %v10386
      %v10505 = vpop.f32.mrf.mxu0
      %v10506 = vadd.f32 0.0, %v10505
      %v10507 = vpop.f32.mrf.mxu0
      %v10508 = vpop.f32.mrf.mxu0
      %v10509 = vadd.f32 0.0, %v10508
      %v10510 = vpop.f32.mrf.mxu0
      %10511 = vmatprep.mubr.bf16.mxu0 0
      %10512 = vmatmul.mubr.bf16.gmra.mxu0 %v10389
      %v10513 = vpop.f32.mrf.mxu0
      %v10514 = vadd.f32 0.0, %v10513
      %v10515 = vpop.f32.mrf.mxu0
      %v10516 = vpop.f32.mrf.mxu0
      %v10517 = vadd.f32 0.0, %v10516
      %v10518 = vpop.f32.mrf.mxu0
      %10519 = vmatprep.mubr.bf16.mxu0 0
      %10520 = vmatmul.mubr.bf16.gmra.mxu0 %v10392
      %v10521 = vpop.f32.mrf.mxu0
      %v10522 = vadd.f32 0.0, %v10521
      %v10523 = vpop.f32.mrf.mxu0
      %v10524 = vpop.f32.mrf.mxu0
      %v10525 = vadd.f32 0.0, %v10524
      %v10526 = vpop.f32.mrf.mxu0
      %10527 = vmatprep.mubr.bf16.mxu0 0
      %10528 = vmatmul.mubr.bf16.gmra.mxu0 %v10395
      %v10529 = vpop.f32.mrf.mxu0
      %v10530 = vadd.f32 0.0, %v10529
      %v10531 = vpop.f32.mrf.mxu0
      %v10532 = vpop.f32.mrf.mxu0
      %v10533 = vadd.f32 0.0, %v10532
      %v10534 = vpop.f32.mrf.mxu0
      %10535 = vmatprep.mubr.bf16.mxu0 0
      %10536 = vmatmul.mubr.bf16.gmra.mxu0 %v10398
      %v10537 = vpop.f32.mrf.mxu0
      %v10538 = vadd.f32 0.0, %v10537
      %v10539 = vpop.f32.mrf.mxu0
      %v10540 = vpop.f32.mrf.mxu0
      %v10541 = vadd.f32 0.0, %v10540
      %v10542 = vpop.f32.mrf.mxu0
      %10543 = vmatprep.mubr.bf16.mxu0 0
      %10544 = vmatmul.mubr.bf16.gmra.mxu0 %v10401
      %v10545 = vpop.f32.mrf.mxu0
      %v10546 = vadd.f32 0.0, %v10545
      %v10547 = vpop.f32.mrf.mxu0
      %v10548 = vpop.f32.mrf.mxu0
      %v10549 = vadd.f32 0.0, %v10548
      %v10550 = vpop.f32.mrf.mxu0
      %10551 = vmatprep.mubr.bf16.mxu0 0
      %10552 = vmatmul.mubr.bf16.gmra.mxu0 %v10404
      %v10553 = vpop.f32.mrf.mxu0
      %v10554 = vadd.f32 0.0, %v10553
      %v10555 = vpop.f32.mrf.mxu0
      %v10556 = vpop.f32.mrf.mxu0
      %v10557 = vadd.f32 0.0, %v10556
      %v10558 = vpop.f32.mrf.mxu0
      %10559 = vmatprep.mubr.bf16.mxu0 0
      %10560 = vmatmul.mubr.bf16.gmra.mxu0 %v10407
      %v10561 = vpop.f32.mrf.mxu0
      %v10562 = vadd.f32 0.0, %v10561
      %v10563 = vpop.f32.mrf.mxu0
      %v10564 = vpop.f32.mrf.mxu0
      %v10565 = vadd.f32 0.0, %v10564
      %v10566 = vpop.f32.mrf.mxu0
      %10567 = vmatprep.mubr.bf16.mxu0 0
      %10568 = vmatmul.mubr.bf16.gmra.mxu0 %v10410
      %v10569 = vpop.f32.mrf.mxu0
      %v10570 = vadd.f32 0.0, %v10569
      %v10571 = vpop.f32.mrf.mxu0
      %v10572 = vpop.f32.mrf.mxu0
      %v10573 = vadd.f32 0.0, %v10572
      %v10574 = vpop.f32.mrf.mxu0
      %10575 = vdwg.mxu0
      %v10576 = vadd.f32 %v10250, %v10450
      %v10577 = vadd.f32 %v10251, %v10453
      %v10578 = vadd.f32 %v10252, %v10458
      %v10579 = vadd.f32 %v10253, %v10461
      %v10580 = vadd.f32 %v10254, %v10466
      %v10581 = vadd.f32 %v10255, %v10469
      %v10582 = vadd.f32 %v10256, %v10474
      %v10583 = vadd.f32 %v10257, %v10477
      %v10584 = vadd.f32 %v10258, %v10482
      %v10585 = vadd.f32 %v10259, %v10485
      %v10586 = vadd.f32 %v10260, %v10490
      %v10587 = vadd.f32 %v10261, %v10493
      %v10588 = vadd.f32 %v10262, %v10498
      %v10589 = vadd.f32 %v10263, %v10501
      %v10590 = vadd.f32 %v10264, %v10506
      %v10591 = vadd.f32 %v10265, %v10509
      %v10592 = vadd.f32 %v10266, %v10514
      %v10593 = vadd.f32 %v10267, %v10517
      %v10594 = vadd.f32 %v10268, %v10522
      %v10595 = vadd.f32 %v10269, %v10525
      %v10596 = vadd.f32 %v10270, %v10530
      %v10597 = vadd.f32 %v10271, %v10533
      %v10598 = vadd.f32 %v10272, %v10538
      %v10599 = vadd.f32 %v10273, %v10541
      %v10600 = vadd.f32 %v10274, %v10546
      %v10601 = vadd.f32 %v10275, %v10549
      %v10602 = vadd.f32 %v10276, %v10554
      %v10603 = vadd.f32 %v10277, %v10557
      %v10604 = vadd.f32 %v10278, %v10562
      %v10605 = vadd.f32 %v10279, %v10565
      %v10606 = vadd.f32 %v10280, %v10570
      %v10607 = vadd.f32 %v10281, %v10573
      %v10608 = vld [vmem:[%s9587 + $0x4] sm:$0xf]
      %v10609 = vld [vmem:[%s9587 + $0x8] sm:$0xf]
      %v10610 = vld [vmem:[%s9587 + $0xc] sm:$0x1]
      %v10611 = vld [vmem:[%s9587 + $0x14] sm:$0xf]
      %v10612 = vld [vmem:[%s9587 + $0x18] sm:$0xf]
      %v10613 = vld [vmem:[%s9587 + $0x1c] sm:$0x1]
      %v10614 = vld [vmem:[%s9587 + $0x24] sm:$0xf]
      %v10615 = vld [vmem:[%s9587 + $0x28] sm:$0xf]
      %v10616 = vld [vmem:[%s9587 + $0x2c] sm:$0x1]
      %v10617 = vld [vmem:[%s9587 + $0x34] sm:$0xf]
      %v10618 = vld [vmem:[%s9587 + $0x38] sm:$0xf]
      %v10619 = vld [vmem:[%s9587 + $0x3c] sm:$0x1]
      %v10620 = vld [vmem:[%s9587 + $0x44] sm:$0xf]
      %v10621 = vld [vmem:[%s9587 + $0x48] sm:$0xf]
      %v10622 = vld [vmem:[%s9587 + $0x4c] sm:$0x1]
      %v10623 = vld [vmem:[%s9587 + $0x54] sm:$0xf]
      %v10624 = vld [vmem:[%s9587 + $0x58] sm:$0xf]
      %v10625 = vld [vmem:[%s9587 + $0x5c] sm:$0x1]
      %v10626 = vld [vmem:[%s9587 + $0x64] sm:$0xf]
      %v10627 = vld [vmem:[%s9587 + $0x68] sm:$0xf]
      %v10628 = vld [vmem:[%s9587 + $0x6c] sm:$0x1]
      %v10629 = vld [vmem:[%s9587 + $0x74] sm:$0xf]
      %v10630 = vld [vmem:[%s9587 + $0x78] sm:$0xf]
      %v10631 = vld [vmem:[%s9587 + $0x7c] sm:$0x1]
      %v10632 = vld [vmem:[%s9587 + $0x84] sm:$0xf]
      %v10633 = vld [vmem:[%s9587 + $0x88] sm:$0xf]
      %v10634 = vld [vmem:[%s9587 + $0x8c] sm:$0x1]
      %v10635 = vld [vmem:[%s9587 + $0x94] sm:$0xf]
      %v10636 = vld [vmem:[%s9587 + $0x98] sm:$0xf]
      %v10637 = vld [vmem:[%s9587 + $0x9c] sm:$0x1]
      %v10638 = vld [vmem:[%s9587 + $0xa4] sm:$0xf]
      %v10639 = vld [vmem:[%s9587 + $0xa8] sm:$0xf]
      %v10640 = vld [vmem:[%s9587 + $0xac] sm:$0x1]
      %v10641 = vld [vmem:[%s9587 + $0xb4] sm:$0xf]
      %v10642 = vld [vmem:[%s9587 + $0xb8] sm:$0xf]
      %v10643 = vld [vmem:[%s9587 + $0xbc] sm:$0x1]
      %v10644 = vld [vmem:[%s9587 + $0xc4] sm:$0xf]
      %v10645 = vld [vmem:[%s9587 + $0xc8] sm:$0xf]
      %v10646 = vld [vmem:[%s9587 + $0xcc] sm:$0x1]
      %v10647 = vld [vmem:[%s9587 + $0xd4] sm:$0xf]
      %v10648 = vld [vmem:[%s9587 + $0xd8] sm:$0xf]
      %v10649 = vld [vmem:[%s9587 + $0xdc] sm:$0x1]
      %v10650 = vld [vmem:[%s9587 + $0xe4] sm:$0xf]
      %v10651 = vld [vmem:[%s9587 + $0xe8] sm:$0xf]
      %v10652 = vld [vmem:[%s9587 + $0xec] sm:$0x1]
      %v10653 = vld [vmem:[%s9587 + $0xf4] sm:$0xf]
      %v10654 = vld [vmem:[%s9587 + $0xf8] sm:$0xf]
      %v10655 = vld [vmem:[%s9587 + $0xfc] sm:$0x1]
      %v10657 = vshrl.u32 %v10608, 16
      %v10659 = vrot.slane %v10657, 4
      %v10660 = vshll.u32 %v10608, 16
      %v10662 = vrot.slane %v10660, 5
      %v10663 = vor.u32 %v10659, %v10662
      %v10664 = vrot.slane %v10663, 4
      %v10666 = vshll.u32 %v10609, 16
      %v10668 = vrot.slane %v10666, 5
      %v10669 = vsel %vm375, %v10664, %v10668
      %v10670 = vshrl.u32 %v10609, 16
      %v10672 = vrot.slane %v10670, 4
      %v10673 = vor.u32 %v10672, %v10668
      %v10674 = vrot.slane %v10673, 4
      %v10676 = vshll.u32 %v10610, 16
      %v10678 = vrot.slane %v10676, 5
      %v10679 = vsel %vm375, %v10674, %v10678
      %v10681 = vshrl.u32 %v10611, 16
      %v10683 = vrot.slane %v10681, 4
      %v10684 = vshll.u32 %v10611, 16
      %v10686 = vrot.slane %v10684, 5
      %v10687 = vor.u32 %v10683, %v10686
      %v10688 = vrot.slane %v10687, 4
      %v10690 = vshll.u32 %v10612, 16
      %v10692 = vrot.slane %v10690, 5
      %v10693 = vsel %vm375, %v10688, %v10692
      %v10694 = vshrl.u32 %v10612, 16
      %v10696 = vrot.slane %v10694, 4
      %v10697 = vor.u32 %v10696, %v10692
      %v10698 = vrot.slane %v10697, 4
      %v10700 = vshll.u32 %v10613, 16
      %v10702 = vrot.slane %v10700, 5
      %v10703 = vsel %vm375, %v10698, %v10702
      %v10705 = vshrl.u32 %v10614, 16
      %v10707 = vrot.slane %v10705, 4
      %v10708 = vshll.u32 %v10614, 16
      %v10710 = vrot.slane %v10708, 5
      %v10711 = vor.u32 %v10707, %v10710
      %v10712 = vrot.slane %v10711, 4
      %v10714 = vshll.u32 %v10615, 16
      %v10716 = vrot.slane %v10714, 5
      %v10717 = vsel %vm375, %v10712, %v10716
      %v10718 = vshrl.u32 %v10615, 16
      %v10720 = vrot.slane %v10718, 4
      %v10721 = vor.u32 %v10720, %v10716
      %v10722 = vrot.slane %v10721, 4
      %v10724 = vshll.u32 %v10616, 16
      %v10726 = vrot.slane %v10724, 5
      %v10727 = vsel %vm375, %v10722, %v10726
      %v10729 = vshrl.u32 %v10617, 16
      %v10731 = vrot.slane %v10729, 4
      %v10732 = vshll.u32 %v10617, 16
      %v10734 = vrot.slane %v10732, 5
      %v10735 = vor.u32 %v10731, %v10734
      %v10736 = vrot.slane %v10735, 4
      %v10738 = vshll.u32 %v10618, 16
      %v10740 = vrot.slane %v10738, 5
      %v10741 = vsel %vm375, %v10736, %v10740
      %v10742 = vshrl.u32 %v10618, 16
      %v10744 = vrot.slane %v10742, 4
      %v10745 = vor.u32 %v10744, %v10740
      %v10746 = vrot.slane %v10745, 4
      %v10748 = vshll.u32 %v10619, 16
      %v10750 = vrot.slane %v10748, 5
      %v10751 = vsel %vm375, %v10746, %v10750
      %v10753 = vshrl.u32 %v10620, 16
      %v10755 = vrot.slane %v10753, 4
      %v10756 = vshll.u32 %v10620, 16
      %v10758 = vrot.slane %v10756, 5
      %v10759 = vor.u32 %v10755, %v10758
      %v10760 = vrot.slane %v10759, 4
      %v10762 = vshll.u32 %v10621, 16
      %v10764 = vrot.slane %v10762, 5
      %v10765 = vsel %vm375, %v10760, %v10764
      %v10766 = vshrl.u32 %v10621, 16
      %v10768 = vrot.slane %v10766, 4
      %v10769 = vor.u32 %v10768, %v10764
      %v10770 = vrot.slane %v10769, 4
      %v10772 = vshll.u32 %v10622, 16
      %v10774 = vrot.slane %v10772, 5
      %v10775 = vsel %vm375, %v10770, %v10774
      %v10777 = vshrl.u32 %v10623, 16
      %v10779 = vrot.slane %v10777, 4
      %v10780 = vshll.u32 %v10623, 16
      %v10782 = vrot.slane %v10780, 5
      %v10783 = vor.u32 %v10779, %v10782
      %v10784 = vrot.slane %v10783, 4
      %v10786 = vshll.u32 %v10624, 16
      %v10788 = vrot.slane %v10786, 5
      %v10789 = vsel %vm375, %v10784, %v10788
      %v10790 = vshrl.u32 %v10624, 16
      %v10792 = vrot.slane %v10790, 4
      %v10793 = vor.u32 %v10792, %v10788
      %v10794 = vrot.slane %v10793, 4
      %v10796 = vshll.u32 %v10625, 16
      %v10798 = vrot.slane %v10796, 5
      %v10799 = vsel %vm375, %v10794, %v10798
      %v10801 = vshrl.u32 %v10626, 16
      %v10803 = vrot.slane %v10801, 4
      %v10804 = vshll.u32 %v10626, 16
      %v10806 = vrot.slane %v10804, 5
      %v10807 = vor.u32 %v10803, %v10806
      %v10808 = vrot.slane %v10807, 4
      %v10810 = vshll.u32 %v10627, 16
      %v10812 = vrot.slane %v10810, 5
      %v10813 = vsel %vm375, %v10808, %v10812
      %v10814 = vshrl.u32 %v10627, 16
      %v10816 = vrot.slane %v10814, 4
      %v10817 = vor.u32 %v10816, %v10812
      %v10818 = vrot.slane %v10817, 4
      %v10820 = vshll.u32 %v10628, 16
      %v10822 = vrot.slane %v10820, 5
      %v10823 = vsel %vm375, %v10818, %v10822
      %v10825 = vshrl.u32 %v10629, 16
      %v10827 = vrot.slane %v10825, 4
      %v10828 = vshll.u32 %v10629, 16
      %v10830 = vrot.slane %v10828, 5
      %v10831 = vor.u32 %v10827, %v10830
      %v10832 = vrot.slane %v10831, 4
      %v10834 = vshll.u32 %v10630, 16
      %v10836 = vrot.slane %v10834, 5
      %v10837 = vsel %vm375, %v10832, %v10836
      %v10838 = vshrl.u32 %v10630, 16
      %v10840 = vrot.slane %v10838, 4
      %v10841 = vor.u32 %v10840, %v10836
      %v10842 = vrot.slane %v10841, 4
      %v10844 = vshll.u32 %v10631, 16
      %v10846 = vrot.slane %v10844, 5
      %v10847 = vsel %vm375, %v10842, %v10846
      %v10849 = vshrl.u32 %v10632, 16
      %v10851 = vrot.slane %v10849, 4
      %v10852 = vshll.u32 %v10632, 16
      %v10854 = vrot.slane %v10852, 5
      %v10855 = vor.u32 %v10851, %v10854
      %v10856 = vrot.slane %v10855, 4
      %v10858 = vshll.u32 %v10633, 16
      %v10860 = vrot.slane %v10858, 5
      %v10861 = vsel %vm375, %v10856, %v10860
      %v10862 = vshrl.u32 %v10633, 16
      %v10864 = vrot.slane %v10862, 4
      %v10865 = vor.u32 %v10864, %v10860
      %v10866 = vrot.slane %v10865, 4
      %v10868 = vshll.u32 %v10634, 16
      %v10870 = vrot.slane %v10868, 5
      %v10871 = vsel %vm375, %v10866, %v10870
      %v10873 = vshrl.u32 %v10635, 16
      %v10875 = vrot.slane %v10873, 4
      %v10876 = vshll.u32 %v10635, 16
      %v10878 = vrot.slane %v10876, 5
      %v10879 = vor.u32 %v10875, %v10878
      %v10880 = vrot.slane %v10879, 4
      %v10882 = vshll.u32 %v10636, 16
      %v10884 = vrot.slane %v10882, 5
      %v10885 = vsel %vm375, %v10880, %v10884
      %v10886 = vshrl.u32 %v10636, 16
      %v10888 = vrot.slane %v10886, 4
      %v10889 = vor.u32 %v10888, %v10884
      %v10890 = vrot.slane %v10889, 4
      %v10892 = vshll.u32 %v10637, 16
      %v10894 = vrot.slane %v10892, 5
      %v10895 = vsel %vm375, %v10890, %v10894
      %v10897 = vshrl.u32 %v10638, 16
      %v10899 = vrot.slane %v10897, 4
      %v10900 = vshll.u32 %v10638, 16
      %v10902 = vrot.slane %v10900, 5
      %v10903 = vor.u32 %v10899, %v10902
      %v10904 = vrot.slane %v10903, 4
      %v10906 = vshll.u32 %v10639, 16
      %v10908 = vrot.slane %v10906, 5
      %v10909 = vsel %vm375, %v10904, %v10908
      %v10910 = vshrl.u32 %v10639, 16
      %v10912 = vrot.slane %v10910, 4
      %v10913 = vor.u32 %v10912, %v10908
      %v10914 = vrot.slane %v10913, 4
      %v10916 = vshll.u32 %v10640, 16
      %v10918 = vrot.slane %v10916, 5
      %v10919 = vsel %vm375, %v10914, %v10918
      %v10921 = vshrl.u32 %v10641, 16
      %v10923 = vrot.slane %v10921, 4
      %v10924 = vshll.u32 %v10641, 16
      %v10926 = vrot.slane %v10924, 5
      %v10927 = vor.u32 %v10923, %v10926
      %v10928 = vrot.slane %v10927, 4
      %v10930 = vshll.u32 %v10642, 16
      %v10932 = vrot.slane %v10930, 5
      %v10933 = vsel %vm375, %v10928, %v10932
      %v10934 = vshrl.u32 %v10642, 16
      %v10936 = vrot.slane %v10934, 4
      %v10937 = vor.u32 %v10936, %v10932
      %v10938 = vrot.slane %v10937, 4
      %v10940 = vshll.u32 %v10643, 16
      %v10942 = vrot.slane %v10940, 5
      %v10943 = vsel %vm375, %v10938, %v10942
      %v10945 = vshrl.u32 %v10644, 16
      %v10947 = vrot.slane %v10945, 4
      %v10948 = vshll.u32 %v10644, 16
      %v10950 = vrot.slane %v10948, 5
      %v10951 = vor.u32 %v10947, %v10950
      %v10952 = vrot.slane %v10951, 4
      %v10954 = vshll.u32 %v10645, 16
      %v10956 = vrot.slane %v10954, 5
      %v10957 = vsel %vm375, %v10952, %v10956
      %v10958 = vshrl.u32 %v10645, 16
      %v10960 = vrot.slane %v10958, 4
      %v10961 = vor.u32 %v10960, %v10956
      %v10962 = vrot.slane %v10961, 4
      %v10964 = vshll.u32 %v10646, 16
      %v10966 = vrot.slane %v10964, 5
      %v10967 = vsel %vm375, %v10962, %v10966
      %v10969 = vshrl.u32 %v10647, 16
      %v10971 = vrot.slane %v10969, 4
      %v10972 = vshll.u32 %v10647, 16
      %v10974 = vrot.slane %v10972, 5
      %v10975 = vor.u32 %v10971, %v10974
      %v10976 = vrot.slane %v10975, 4
      %v10978 = vshll.u32 %v10648, 16
      %v10980 = vrot.slane %v10978, 5
      %v10981 = vsel %vm375, %v10976, %v10980
      %v10982 = vshrl.u32 %v10648, 16
      %v10984 = vrot.slane %v10982, 4
      %v10985 = vor.u32 %v10984, %v10980
      %v10986 = vrot.slane %v10985, 4
      %v10988 = vshll.u32 %v10649, 16
      %v10990 = vrot.slane %v10988, 5
      %v10991 = vsel %vm375, %v10986, %v10990
      %v10993 = vshrl.u32 %v10650, 16
      %v10995 = vrot.slane %v10993, 4
      %v10996 = vshll.u32 %v10650, 16
      %v10998 = vrot.slane %v10996, 5
      %v10999 = vor.u32 %v10995, %v10998
      %v11000 = vrot.slane %v10999, 4
      %v11002 = vshll.u32 %v10651, 16
      %v11004 = vrot.slane %v11002, 5
      %v11005 = vsel %vm375, %v11000, %v11004
      %v11006 = vshrl.u32 %v10651, 16
      %v11008 = vrot.slane %v11006, 4
      %v11009 = vor.u32 %v11008, %v11004
      %v11010 = vrot.slane %v11009, 4
      %v11012 = vshll.u32 %v10652, 16
      %v11014 = vrot.slane %v11012, 5
      %v11015 = vsel %vm375, %v11010, %v11014
      %v11017 = vshrl.u32 %v10653, 16
      %v11019 = vrot.slane %v11017, 4
      %v11020 = vshll.u32 %v10653, 16
      %v11022 = vrot.slane %v11020, 5
      %v11023 = vor.u32 %v11019, %v11022
      %v11024 = vrot.slane %v11023, 4
      %v11026 = vshll.u32 %v10654, 16
      %v11028 = vrot.slane %v11026, 5
      %v11029 = vsel %vm375, %v11024, %v11028
      %v11030 = vshrl.u32 %v10654, 16
      %v11032 = vrot.slane %v11030, 4
      %v11033 = vor.u32 %v11032, %v11028
      %v11034 = vrot.slane %v11033, 4
      %v11036 = vshll.u32 %v10655, 16
      %v11038 = vrot.slane %v11036, 5
      %v11039 = vsel %vm375, %v11034, %v11038
      %s11040 = scalar_lea.vmem %s4, 32
      %v11041 = vld [vmem:[%s11040] sm:$0xf]
      %v11042 = vunpack.c.l.b16 %v10669
      %v11043 = vunpack.c.l.b16 %v10679
      %v11044 = vunpack.c.l.b16 %v10693
      %v11045 = vunpack.c.l.b16 %v10703
      %v11046 = vunpack.c.l.b16 %v10717
      %v11047 = vunpack.c.l.b16 %v10727
      %v11048 = vunpack.c.l.b16 %v10741
      %v11049 = vunpack.c.l.b16 %v10751
      %v11050 = vunpack.c.l.b16 %v10765
      %v11051 = vunpack.c.l.b16 %v10775
      %v11052 = vunpack.c.l.b16 %v10789
      %v11053 = vunpack.c.l.b16 %v10799
      %v11054 = vunpack.c.l.b16 %v10813
      %v11055 = vunpack.c.l.b16 %v10823
      %v11056 = vunpack.c.l.b16 %v10837
      %v11057 = vunpack.c.l.b16 %v10847
      %v11058 = vunpack.c.l.b16 %v10861
      %v11059 = vunpack.c.l.b16 %v10871
      %v11060 = vunpack.c.l.b16 %v10885
      %v11061 = vunpack.c.l.b16 %v10895
      %v11062 = vunpack.c.l.b16 %v10909
      %v11063 = vunpack.c.l.b16 %v10919
      %v11064 = vunpack.c.l.b16 %v10933
      %v11065 = vunpack.c.l.b16 %v10943
      %v11066 = vunpack.c.l.b16 %v10957
      %v11067 = vunpack.c.l.b16 %v10967
      %v11068 = vunpack.c.l.b16 %v10981
      %v11069 = vunpack.c.l.b16 %v10991
      %v11070 = vunpack.c.l.b16 %v11005
      %v11071 = vunpack.c.l.b16 %v11015
      %v11072 = vunpack.c.l.b16 %v11029
      %v11073 = vunpack.c.l.b16 %v11039
      %v11074 = vpack.c.b16 %v11043, %v11042
      %v11075 = vpack.c.b16 %v11045, %v11044
      %v11076 = vpack.c.b16 %v11047, %v11046
      %v11077 = vpack.c.b16 %v11049, %v11048
      %v11078 = vpack.c.b16 %v11051, %v11050
      %v11079 = vpack.c.b16 %v11053, %v11052
      %v11080 = vpack.c.b16 %v11055, %v11054
      %v11081 = vpack.c.b16 %v11057, %v11056
      %v11082 = vpack.c.b16 %v11059, %v11058
      %v11083 = vpack.c.b16 %v11061, %v11060
      %v11084 = vpack.c.b16 %v11063, %v11062
      %v11085 = vpack.c.b16 %v11065, %v11064
      %v11086 = vpack.c.b16 %v11067, %v11066
      %v11087 = vpack.c.b16 %v11069, %v11068
      %v11088 = vpack.c.b16 %v11071, %v11070
      %v11089 = vpack.c.b16 %v11073, %v11072
      %v11091 = vsel %vm6640, %v11074, 0
      %v11094 = vsel %vm6640, %v11075, 0
      %v11097 = vsel %vm6640, %v11076, 0
      %v11100 = vsel %vm6640, %v11077, 0
      %v11103 = vsel %vm6640, %v11078, 0
      %v11106 = vsel %vm6640, %v11079, 0
      %v11109 = vsel %vm6640, %v11080, 0
      %v11112 = vsel %vm6640, %v11081, 0
      %v11115 = vsel %vm6640, %v11082, 0
      %v11118 = vsel %vm6640, %v11083, 0
      %v11121 = vsel %vm6640, %v11084, 0
      %v11124 = vsel %vm6640, %v11085, 0
      %v11127 = vsel %vm6640, %v11086, 0
      %v11130 = vsel %vm6640, %v11087, 0
      %v11133 = vsel %vm6640, %v11088, 0
      %v11136 = vsel %vm6640, %v11089, 0
      %v11139 = vsel %vm6689, %v11041, 0
      %11141 = vmatprep.subr.bf16.mxu0 0
      %11142 = vmatpush1.bf16.msra.mxu0 0
      %11143 = vmatprep.subr.bf16.mxu0 0
      %11144 = vmatpush1.bf16.msra.mxu0 0
      %11145 = vmatprep.subr.bf16.mxu0 0
      %11146 = vmatpush1.bf16.msra.mxu0 0
      %11147 = vmatprep.subr.bf16.mxu0 0
      %11148 = vmatpush1.bf16.msra.mxu0 0
      %11149 = vmatprep.subr.bf16.mxu0 0
      %11150 = vmatpush1.bf16.msra.mxu0 0
      %11151 = vmatprep.subr.bf16.mxu0 0
      %11152 = vmatpush1.bf16.msra.mxu0 0
      %11153 = vmatprep.subr.bf16.mxu0 0
      %11154 = vmatpush1.bf16.msra.mxu0 0
      %11155 = vmatprep.subr.bf16.mxu0 0
      %11156 = vmatpush1.bf16.msra.mxu0 %v11139
      %11157 = vmatprep.subr.bf16.mxu0 0
      %11158 = vmatpush2.bf16.msra.mxu0 0
      %11159 = vmatprep.subr.bf16.mxu0 0
      %11160 = vmatpush2.bf16.msra.mxu0 0
      %11161 = vmatprep.subr.bf16.mxu0 0
      %11162 = vmatpush2.bf16.msra.mxu0 0
      %11163 = vmatprep.subr.bf16.mxu0 0
      %11164 = vmatpush2.bf16.msra.mxu0 0
      %11165 = vmatprep.subr.bf16.mxu0 0
      %11166 = vmatpush2.bf16.msra.mxu0 0
      %11167 = vmatprep.subr.bf16.mxu0 0
      %11168 = vmatpush2.bf16.msra.mxu0 0
      %11169 = vmatprep.subr.bf16.mxu0 0
      %11170 = vmatpush2.bf16.msra.mxu0 0
      %11171 = vmatprep.subr.bf16.mxu0 0
      %11172 = vmatpush2.bf16.msra.mxu0 0
      %11173 = vmatprep.mubr.bf16.mxu0 0
      %11174 = vmatmul.mubr.bf16.gmra.mxu0 %v11091
      %v11175 = vpop.f32.mrf.mxu0
      %v11176 = vadd.f32 0.0, %v11175
      %v11177 = vpop.f32.mrf.mxu0
      %v11178 = vpop.f32.mrf.mxu0
      %v11179 = vadd.f32 0.0, %v11178
      %v11180 = vpop.f32.mrf.mxu0
      %11181 = vmatprep.mubr.bf16.mxu0 0
      %11182 = vmatmul.mubr.bf16.gmra.mxu0 %v11094
      %v11183 = vpop.f32.mrf.mxu0
      %v11184 = vadd.f32 0.0, %v11183
      %v11185 = vpop.f32.mrf.mxu0
      %v11186 = vpop.f32.mrf.mxu0
      %v11187 = vadd.f32 0.0, %v11186
      %v11188 = vpop.f32.mrf.mxu0
      %11189 = vmatprep.mubr.bf16.mxu0 0
      %11190 = vmatmul.mubr.bf16.gmra.mxu0 %v11097
      %v11191 = vpop.f32.mrf.mxu0
      %v11192 = vadd.f32 0.0, %v11191
      %v11193 = vpop.f32.mrf.mxu0
      %v11194 = vpop.f32.mrf.mxu0
      %v11195 = vadd.f32 0.0, %v11194
      %v11196 = vpop.f32.mrf.mxu0
      %11197 = vmatprep.mubr.bf16.mxu0 0
      %11198 = vmatmul.mubr.bf16.gmra.mxu0 %v11100
      %v11199 = vpop.f32.mrf.mxu0
      %v11200 = vadd.f32 0.0, %v11199
      %v11201 = vpop.f32.mrf.mxu0
      %v11202 = vpop.f32.mrf.mxu0
      %v11203 = vadd.f32 0.0, %v11202
      %v11204 = vpop.f32.mrf.mxu0
      %11205 = vmatprep.mubr.bf16.mxu0 0
      %11206 = vmatmul.mubr.bf16.gmra.mxu0 %v11103
      %v11207 = vpop.f32.mrf.mxu0
      %v11208 = vadd.f32 0.0, %v11207
      %v11209 = vpop.f32.mrf.mxu0
      %v11210 = vpop.f32.mrf.mxu0
      %v11211 = vadd.f32 0.0, %v11210
      %v11212 = vpop.f32.mrf.mxu0
      %11213 = vmatprep.mubr.bf16.mxu0 0
      %11214 = vmatmul.mubr.bf16.gmra.mxu0 %v11106
      %v11215 = vpop.f32.mrf.mxu0
      %v11216 = vadd.f32 0.0, %v11215
      %v11217 = vpop.f32.mrf.mxu0
      %v11218 = vpop.f32.mrf.mxu0
      %v11219 = vadd.f32 0.0, %v11218
      %v11220 = vpop.f32.mrf.mxu0
      %11221 = vmatprep.mubr.bf16.mxu0 0
      %11222 = vmatmul.mubr.bf16.gmra.mxu0 %v11109
      %v11223 = vpop.f32.mrf.mxu0
      %v11224 = vadd.f32 0.0, %v11223
      %v11225 = vpop.f32.mrf.mxu0
      %v11226 = vpop.f32.mrf.mxu0
      %v11227 = vadd.f32 0.0, %v11226
      %v11228 = vpop.f32.mrf.mxu0
      %11229 = vmatprep.mubr.bf16.mxu0 0
      %11230 = vmatmul.mubr.bf16.gmra.mxu0 %v11112
      %v11231 = vpop.f32.mrf.mxu0
      %v11232 = vadd.f32 0.0, %v11231
      %v11233 = vpop.f32.mrf.mxu0
      %v11234 = vpop.f32.mrf.mxu0
      %v11235 = vadd.f32 0.0, %v11234
      %v11236 = vpop.f32.mrf.mxu0
      %11237 = vmatprep.mubr.bf16.mxu0 0
      %11238 = vmatmul.mubr.bf16.gmra.mxu0 %v11115
      %v11239 = vpop.f32.mrf.mxu0
      %v11240 = vadd.f32 0.0, %v11239
      %v11241 = vpop.f32.mrf.mxu0
      %v11242 = vpop.f32.mrf.mxu0
      %v11243 = vadd.f32 0.0, %v11242
      %v11244 = vpop.f32.mrf.mxu0
      %11245 = vmatprep.mubr.bf16.mxu0 0
      %11246 = vmatmul.mubr.bf16.gmra.mxu0 %v11118
      %v11247 = vpop.f32.mrf.mxu0
      %v11248 = vadd.f32 0.0, %v11247
      %v11249 = vpop.f32.mrf.mxu0
      %v11250 = vpop.f32.mrf.mxu0
      %v11251 = vadd.f32 0.0, %v11250
      %v11252 = vpop.f32.mrf.mxu0
      %11253 = vmatprep.mubr.bf16.mxu0 0
      %11254 = vmatmul.mubr.bf16.gmra.mxu0 %v11121
      %v11255 = vpop.f32.mrf.mxu0
      %v11256 = vadd.f32 0.0, %v11255
      %v11257 = vpop.f32.mrf.mxu0
      %v11258 = vpop.f32.mrf.mxu0
      %v11259 = vadd.f32 0.0, %v11258
      %v11260 = vpop.f32.mrf.mxu0
      %11261 = vmatprep.mubr.bf16.mxu0 0
      %11262 = vmatmul.mubr.bf16.gmra.mxu0 %v11124
      %v11263 = vpop.f32.mrf.mxu0
      %v11264 = vadd.f32 0.0, %v11263
      %v11265 = vpop.f32.mrf.mxu0
      %v11266 = vpop.f32.mrf.mxu0
      %v11267 = vadd.f32 0.0, %v11266
      %v11268 = vpop.f32.mrf.mxu0
      %11269 = vmatprep.mubr.bf16.mxu0 0
      %11270 = vmatmul.mubr.bf16.gmra.mxu0 %v11127
      %v11271 = vpop.f32.mrf.mxu0
      %v11272 = vadd.f32 0.0, %v11271
      %v11273 = vpop.f32.mrf.mxu0
      %v11274 = vpop.f32.mrf.mxu0
      %v11275 = vadd.f32 0.0, %v11274
      %v11276 = vpop.f32.mrf.mxu0
      %11277 = vmatprep.mubr.bf16.mxu0 0
      %11278 = vmatmul.mubr.bf16.gmra.mxu0 %v11130
      %v11279 = vpop.f32.mrf.mxu0
      %v11280 = vadd.f32 0.0, %v11279
      %v11281 = vpop.f32.mrf.mxu0
      %v11282 = vpop.f32.mrf.mxu0
      %v11283 = vadd.f32 0.0, %v11282
      %v11284 = vpop.f32.mrf.mxu0
      %11285 = vmatprep.mubr.bf16.mxu0 0
      %11286 = vmatmul.mubr.bf16.gmra.mxu0 %v11133
      %v11287 = vpop.f32.mrf.mxu0
      %v11288 = vadd.f32 0.0, %v11287
      %v11289 = vpop.f32.mrf.mxu0
      %v11290 = vpop.f32.mrf.mxu0
      %v11291 = vadd.f32 0.0, %v11290
      %v11292 = vpop.f32.mrf.mxu0
      %11293 = vmatprep.mubr.bf16.mxu0 0
      %11294 = vmatmul.mubr.bf16.gmra.mxu0 %v11136
      %v11295 = vpop.f32.mrf.mxu0
      %v11296 = vadd.f32 0.0, %v11295
      %v11297 = vpop.f32.mrf.mxu0
      %v11298 = vpop.f32.mrf.mxu0
      %v11299 = vadd.f32 0.0, %v11298
      %v11300 = vpop.f32.mrf.mxu0
      %11301 = vdwg.mxu0
      %v11302 = vadd.f32 %v10576, %v11176
      %v11303 = vadd.f32 %v10577, %v11179
      %v11304 = vadd.f32 %v10578, %v11184
      %v11305 = vadd.f32 %v10579, %v11187
      %v11306 = vadd.f32 %v10580, %v11192
      %v11307 = vadd.f32 %v10581, %v11195
      %v11308 = vadd.f32 %v10582, %v11200
      %v11309 = vadd.f32 %v10583, %v11203
      %v11310 = vadd.f32 %v10584, %v11208
      %v11311 = vadd.f32 %v10585, %v11211
      %v11312 = vadd.f32 %v10586, %v11216
      %v11313 = vadd.f32 %v10587, %v11219
      %v11314 = vadd.f32 %v10588, %v11224
      %v11315 = vadd.f32 %v10589, %v11227
      %v11316 = vadd.f32 %v10590, %v11232
      %v11317 = vadd.f32 %v10591, %v11235
      %v11318 = vadd.f32 %v10592, %v11240
      %v11319 = vadd.f32 %v10593, %v11243
      %v11320 = vadd.f32 %v10594, %v11248
      %v11321 = vadd.f32 %v10595, %v11251
      %v11322 = vadd.f32 %v10596, %v11256
      %v11323 = vadd.f32 %v10597, %v11259
      %v11324 = vadd.f32 %v10598, %v11264
      %v11325 = vadd.f32 %v10599, %v11267
      %v11326 = vadd.f32 %v10600, %v11272
      %v11327 = vadd.f32 %v10601, %v11275
      %v11328 = vadd.f32 %v10602, %v11280
      %v11329 = vadd.f32 %v10603, %v11283
      %v11330 = vadd.f32 %v10604, %v11288
      %v11331 = vadd.f32 %v10605, %v11291
      %v11332 = vadd.f32 %v10606, %v11296
      %v11333 = vadd.f32 %v10607, %v11299
      %v11334 = vld [vmem:[%s5] sm:$0x1]
      %v11336 = vlaneseq
      %v11337 = vshrl.u32 %v11336, 7
      %v11338 = vsub.s32 0, %v11337
      %v11339 = vrot.slane %v11334, %v11338
      %v11341 = vmul.f32 %v11302, %v11339
      %v11342 = vmul.f32 %v11303, %v11339
      %v11343 = vmul.f32 %v11304, %v11339
      %v11344 = vmul.f32 %v11305, %v11339
      %v11345 = vmul.f32 %v11306, %v11339
      %v11346 = vmul.f32 %v11307, %v11339
      %v11347 = vmul.f32 %v11308, %v11339
      %v11348 = vmul.f32 %v11309, %v11339
      %v11349 = vmul.f32 %v11310, %v11339
      %v11350 = vmul.f32 %v11311, %v11339
      %v11351 = vmul.f32 %v11312, %v11339
      %v11352 = vmul.f32 %v11313, %v11339
      %v11353 = vmul.f32 %v11314, %v11339
      %v11354 = vmul.f32 %v11315, %v11339
      %v11355 = vmul.f32 %v11316, %v11339
      %v11356 = vmul.f32 %v11317, %v11339
      %v11357 = vmul.f32 %v11318, %v11339
      %v11358 = vmul.f32 %v11319, %v11339
      %v11359 = vmul.f32 %v11320, %v11339
      %v11360 = vmul.f32 %v11321, %v11339
      %v11361 = vmul.f32 %v11322, %v11339
      %v11362 = vmul.f32 %v11323, %v11339
      %v11363 = vmul.f32 %v11324, %v11339
      %v11364 = vmul.f32 %v11325, %v11339
      %v11365 = vmul.f32 %v11326, %v11339
      %v11366 = vmul.f32 %v11327, %v11339
      %v11367 = vmul.f32 %v11328, %v11339
      %v11368 = vmul.f32 %v11329, %v11339
      %v11369 = vmul.f32 %v11330, %v11339
      %v11370 = vmul.f32 %v11331, %v11339
      %v11371 = vmul.f32 %v11332, %v11339
      %v11372 = vmul.f32 %v11333, %v11339
      %v11373 = vld [vmem:[%s6] sm:$0x1]
      %v11375 = vlaneseq
      %v11376 = vshrl.u32 %v11375, 7
      %v11377 = vsub.s32 0, %v11376
      %v11378 = vrot.slane %v11373, %v11377
      %v11380 = vadd.f32 %v11341, %v11378
      %v11381 = vadd.f32 %v11342, %v11378
      %v11382 = vadd.f32 %v11343, %v11378
      %v11383 = vadd.f32 %v11344, %v11378
      %v11384 = vadd.f32 %v11345, %v11378
      %v11385 = vadd.f32 %v11346, %v11378
      %v11386 = vadd.f32 %v11347, %v11378
      %v11387 = vadd.f32 %v11348, %v11378
      %v11388 = vadd.f32 %v11349, %v11378
      %v11389 = vadd.f32 %v11350, %v11378
      %v11390 = vadd.f32 %v11351, %v11378
      %v11391 = vadd.f32 %v11352, %v11378
      %v11392 = vadd.f32 %v11353, %v11378
      %v11393 = vadd.f32 %v11354, %v11378
      %v11394 = vadd.f32 %v11355, %v11378
      %v11395 = vadd.f32 %v11356, %v11378
      %v11396 = vadd.f32 %v11357, %v11378
      %v11397 = vadd.f32 %v11358, %v11378
      %v11398 = vadd.f32 %v11359, %v11378
      %v11399 = vadd.f32 %v11360, %v11378
      %v11400 = vadd.f32 %v11361, %v11378
      %v11401 = vadd.f32 %v11362, %v11378
      %v11402 = vadd.f32 %v11363, %v11378
      %v11403 = vadd.f32 %v11364, %v11378
      %v11404 = vadd.f32 %v11365, %v11378
      %v11405 = vadd.f32 %v11366, %v11378
      %v11406 = vadd.f32 %v11367, %v11378
      %v11407 = vadd.f32 %v11368, %v11378
      %v11408 = vadd.f32 %v11369, %v11378
      %v11409 = vadd.f32 %v11370, %v11378
      %v11410 = vadd.f32 %v11371, %v11378
      %v11411 = vadd.f32 %v11372, %v11378
      %v11412 = vmax.f32 %v11380, 0.0
      %v11413 = vmax.f32 %v11381, 0.0
      %v11414 = vmax.f32 %v11382, 0.0
      %v11415 = vmax.f32 %v11383, 0.0
      %v11416 = vmax.f32 %v11384, 0.0
      %v11417 = vmax.f32 %v11385, 0.0
      %v11418 = vmax.f32 %v11386, 0.0
      %v11419 = vmax.f32 %v11387, 0.0
      %v11420 = vmax.f32 %v11388, 0.0
      %v11421 = vmax.f32 %v11389, 0.0
      %v11422 = vmax.f32 %v11390, 0.0
      %v11423 = vmax.f32 %v11391, 0.0
      %v11424 = vmax.f32 %v11392, 0.0
      %v11425 = vmax.f32 %v11393, 0.0
      %v11426 = vmax.f32 %v11394, 0.0
      %v11427 = vmax.f32 %v11395, 0.0
      %v11428 = vmax.f32 %v11396, 0.0
      %v11429 = vmax.f32 %v11397, 0.0
      %v11430 = vmax.f32 %v11398, 0.0
      %v11431 = vmax.f32 %v11399, 0.0
      %v11432 = vmax.f32 %v11400, 0.0
      %v11433 = vmax.f32 %v11401, 0.0
      %v11434 = vmax.f32 %v11402, 0.0
      %v11435 = vmax.f32 %v11403, 0.0
      %v11436 = vmax.f32 %v11404, 0.0
      %v11437 = vmax.f32 %v11405, 0.0
      %v11438 = vmax.f32 %v11406, 0.0
      %v11439 = vmax.f32 %v11407, 0.0
      %v11440 = vmax.f32 %v11408, 0.0
      %v11441 = vmax.f32 %v11409, 0.0
      %v11442 = vmax.f32 %v11410, 0.0
      %v11443 = vmax.f32 %v11411, 0.0
      %v11444 = vpack.c.bf16 %v11413, %v11412
      %v11445 = vpack.c.bf16 %v11415, %v11414
      %v11446 = vpack.c.bf16 %v11417, %v11416
      %v11447 = vpack.c.bf16 %v11419, %v11418
      %v11448 = vpack.c.bf16 %v11421, %v11420
      %v11449 = vpack.c.bf16 %v11423, %v11422
      %v11450 = vpack.c.bf16 %v11425, %v11424
      %v11451 = vpack.c.bf16 %v11427, %v11426
      %v11452 = vpack.c.bf16 %v11429, %v11428
      %v11453 = vpack.c.bf16 %v11431, %v11430
      %v11454 = vpack.c.bf16 %v11433, %v11432
      %v11455 = vpack.c.bf16 %v11435, %v11434
      %v11456 = vpack.c.bf16 %v11437, %v11436
      %v11457 = vpack.c.bf16 %v11439, %v11438
      %v11458 = vpack.c.bf16 %v11441, %v11440
      %v11459 = vpack.c.bf16 %v11443, %v11442
      %v11476 = vunpack.c.l.b16 %v11444
      %v11477 = vunpack.c.h.b16 %v11444
      %v11478 = vunpack.c.l.b16 %v11445
      %v11479 = vunpack.c.h.b16 %v11445
      %v11480 = vunpack.c.l.b16 %v11446
      %v11481 = vunpack.c.h.b16 %v11446
      %v11482 = vunpack.c.l.b16 %v11447
      %v11483 = vunpack.c.h.b16 %v11447
      %v11484 = vunpack.c.l.b16 %v11448
      %v11485 = vunpack.c.h.b16 %v11448
      %v11486 = vunpack.c.l.b16 %v11449
      %v11487 = vunpack.c.h.b16 %v11449
      %v11488 = vunpack.c.l.b16 %v11450
      %v11489 = vunpack.c.h.b16 %v11450
      %v11490 = vunpack.c.l.b16 %v11451
      %v11491 = vunpack.c.h.b16 %v11451
      %v11492 = vunpack.c.l.b16 %v11452
      %v11493 = vunpack.c.h.b16 %v11452
      %v11494 = vunpack.c.l.b16 %v11453
      %v11495 = vunpack.c.h.b16 %v11453
      %v11496 = vunpack.c.l.b16 %v11454
      %v11497 = vunpack.c.h.b16 %v11454
      %v11498 = vunpack.c.l.b16 %v11455
      %v11499 = vunpack.c.h.b16 %v11455
      %v11500 = vunpack.c.l.b16 %v11456
      %v11501 = vunpack.c.h.b16 %v11456
      %v11502 = vunpack.c.l.b16 %v11457
      %v11503 = vunpack.c.h.b16 %v11457
      %v11504 = vunpack.c.l.b16 %v11458
      %v11505 = vunpack.c.h.b16 %v11458
      %v11506 = vunpack.c.l.b16 %v11459
      %v11507 = vunpack.c.h.b16 %v11459
      %v11508 = vpack.c.b16 %v11476, %v11476
      %v11509 = vpack.c.b16 %v11477, %v11477
      %v11510 = vpack.c.b16 %v11478, %v11478
      %v11511 = vpack.c.b16 %v11479, %v11479
      %v11512 = vpack.c.b16 %v11480, %v11480
      %v11513 = vpack.c.b16 %v11481, %v11481
      %v11514 = vpack.c.b16 %v11482, %v11482
      %v11515 = vpack.c.b16 %v11483, %v11483
      %v11516 = vpack.c.b16 %v11484, %v11484
      %v11517 = vpack.c.b16 %v11485, %v11485
      %v11518 = vpack.c.b16 %v11486, %v11486
      %v11519 = vpack.c.b16 %v11487, %v11487
      %v11520 = vpack.c.b16 %v11488, %v11488
      %v11521 = vpack.c.b16 %v11489, %v11489
      %v11522 = vpack.c.b16 %v11490, %v11490
      %v11523 = vpack.c.b16 %v11491, %v11491
      %v11524 = vpack.c.b16 %v11492, %v11492
      %v11525 = vpack.c.b16 %v11493, %v11493
      %v11526 = vpack.c.b16 %v11494, %v11494
      %v11527 = vpack.c.b16 %v11495, %v11495
      %v11528 = vpack.c.b16 %v11496, %v11496
      %v11529 = vpack.c.b16 %v11497, %v11497
      %v11530 = vpack.c.b16 %v11498, %v11498
      %v11531 = vpack.c.b16 %v11499, %v11499
      %v11532 = vpack.c.b16 %v11500, %v11500
      %v11533 = vpack.c.b16 %v11501, %v11501
      %v11534 = vpack.c.b16 %v11502, %v11502
      %v11535 = vpack.c.b16 %v11503, %v11503
      %v11536 = vpack.c.b16 %v11504, %v11504
      %v11537 = vpack.c.b16 %v11505, %v11505
      %v11538 = vpack.c.b16 %v11506, %v11506
      %v11539 = vpack.c.b16 %v11507, %v11507
      %11572 = vst.msk [vmem:[%s321] sm:$0xf] %vm5121, %v11508
      %11573 = vst.msk [vmem:[%s321 + $0x4] sm:$0xf] %vm5121, %v11509
      %11574 = vst.msk [vmem:[%s321 + $0x8] sm:$0xf] %vm5121, %v11510
      %11575 = vst.msk [vmem:[%s321 + $0xc] sm:$0xf] %vm5121, %v11511
      %11576 = vst.msk [vmem:[%s321 + $0x10] sm:$0xf] %vm5121, %v11512
      %11577 = vst.msk [vmem:[%s321 + $0x14] sm:$0xf] %vm5121, %v11513
      %11578 = vst.msk [vmem:[%s321 + $0x18] sm:$0xf] %vm5121, %v11514
      %11579 = vst.msk [vmem:[%s321 + $0x1c] sm:$0xf] %vm5121, %v11515
      %11580 = vst.msk [vmem:[%s321 + $0x20] sm:$0xf] %vm5121, %v11516
      %11581 = vst.msk [vmem:[%s321 + $0x24] sm:$0xf] %vm5121, %v11517
      %11582 = vst.msk [vmem:[%s321 + $0x28] sm:$0xf] %vm5121, %v11518
      %11583 = vst.msk [vmem:[%s321 + $0x2c] sm:$0xf] %vm5121, %v11519
      %11584 = vst.msk [vmem:[%s321 + $0x30] sm:$0xf] %vm5121, %v11520
      %11585 = vst.msk [vmem:[%s321 + $0x34] sm:$0xf] %vm5121, %v11521
      %11586 = vst.msk [vmem:[%s321 + $0x38] sm:$0xf] %vm5121, %v11522
      %11587 = vst.msk [vmem:[%s321 + $0x3c] sm:$0xf] %vm5121, %v11523
      %11588 = vst.msk [vmem:[%s321 + $0x40] sm:$0xf] %vm5121, %v11524
      %11589 = vst.msk [vmem:[%s321 + $0x44] sm:$0xf] %vm5121, %v11525
      %11590 = vst.msk [vmem:[%s321 + $0x48] sm:$0xf] %vm5121, %v11526
      %11591 = vst.msk [vmem:[%s321 + $0x4c] sm:$0xf] %vm5121, %v11527
      %11592 = vst.msk [vmem:[%s321 + $0x50] sm:$0xf] %vm5121, %v11528
      %11593 = vst.msk [vmem:[%s321 + $0x54] sm:$0xf] %vm5121, %v11529
      %11594 = vst.msk [vmem:[%s321 + $0x58] sm:$0xf] %vm5121, %v11530
      %11595 = vst.msk [vmem:[%s321 + $0x5c] sm:$0xf] %vm5121, %v11531
      %11596 = vst.msk [vmem:[%s321 + $0x60] sm:$0xf] %vm5121, %v11532
      %11597 = vst.msk [vmem:[%s321 + $0x64] sm:$0xf] %vm5121, %v11533
      %11598 = vst.msk [vmem:[%s321 + $0x68] sm:$0xf] %vm5121, %v11534
      %11599 = vst.msk [vmem:[%s321 + $0x6c] sm:$0xf] %vm5121, %v11535
      %11600 = vst.msk [vmem:[%s321 + $0x70] sm:$0xf] %vm5121, %v11536
      %11601 = vst.msk [vmem:[%s321 + $0x74] sm:$0xf] %vm5121, %v11537
      %11602 = vst.msk [vmem:[%s321 + $0x78] sm:$0xf] %vm5121, %v11538
      %11603 = vst.msk [vmem:[%s321 + $0x7c] sm:$0xf] %vm5121, %v11539
      %s11604 = smul.u32 16, %s23
      %p11605 = scmp.lt.s32.totalorder %s22, 1
      %s11606 = scalar_select %p11605, %s22, 1
      %p11607 = scmp.lt.s32.totalorder %s11604, 15
      %s11608 = scalar_select %p11607, %s11604, 15
      %s11609 = smul.addr %s11608, 2
      %s11610 = smul.addr %s11606, 32
      %s11611 = sadd.s32 %s11609, %s11610
      %s11612 = smul.addr %s11611, 4
      %s11613 = scalar_lea.vmem %s7, %s11612
      // Predicated region
      $region53: #{a_call__.1} parent=47 // pred_check
        %p11614 = pneg %p204
      $region54: #{a_call__.1} parent=47 // pred_check_branch
        %11616 = sbr.rel (%p11614) target = $region56
      $region55: #{a_call__.1} parent=47 // pred_region
        %s11617 = smul.u32 16, %s23
      $region56: #{a_call__.1} parent=47 // pred_fallthru
        _
    $region48: #{a_call__.1} parent=5 // pred_fallthru
      _
    %p11618 = scmp.le.s32.totalorder 2, %s13
    // Predicated region
    $region57: #{a_call__.1} parent=5 // pred_check
      %p11619 = pneg %p11618
    $region58: #{a_call__.1} parent=5 // pred_check_branch
      %11621 = sbr.rel (%p11619) target = $region60
    $region59: #{a_call__.1} parent=5 // pred_region
      %s11622 = ssub.s32 %s13, 2
      // Predicated region
      $region61: #{a_call__.1} parent=59 // pred_check
        %p11623 = pneg %p210
      $region62: #{a_call__.1} parent=59 // pred_check_branch
        %11625 = sbr.rel (%p11623) target = $region64
      $region63: #{a_call__.1} parent=59 // pred_region
        %s11626 = smul.u32 16, %s25
        %p11627 = scmp.lt.s32.totalorder %s24, 1
        %s11628 = scalar_select %p11627, %s24, 1
        %p11629 = scmp.lt.s32.totalorder %s11626, 15
        %s11630 = scalar_select %p11629, %s11626, 15
        %s11631 = smul.addr %s11630, 2
        %s11632 = smul.addr %s11628, 32
        %s11633 = sadd.s32 %s11631, %s11632
        %s11634 = smul.addr %s11633, 4
        %s11635 = scalar_lea.vmem %s7, %s11634
      $region64: #{a_call__.1} parent=59 // pred_fallthru
        _
    $region60: #{a_call__.1} parent=5 // pred_fallthru
      _
  $region6: #{a_call__.1} parent=0 // loop_footer
    %s17 = sadd.s32 1, %s13
  $region7: #{a_call__.1} parent=0 // loop_footer_branch
    %12 = sbr.rel target = $region3
  $region8: #{a_call__.1} parent=0 // loop_exit
    _

</llo_original>
